<compile_context>
chip_gen: v5e
topology: v5e:2x2
jax: 0.10.0
libtpu: 0.0.40
codegen_flags: <defaults>
</compile_context>

<pallas_src>
import jax
import jax.numpy as jnp
import numpy as np
from jax.experimental import pallas as pl
from jax.experimental.pallas import tpu as pltpu

_BN_EPS = 1e-5


# ----------------------------- kernel ---------------------------------------
def _make_local_extraction_kernel(num_blocks):
    def kernel(x_ref, w0_ref, b0_ref, wblk_ref, bblk_ref, o_ref):
        gt, c = o_ref.shape
        rows = x_ref.shape[0]
        k = rows // gt

        # transfer: folded Conv1d(ks=1)+BN (bf16 MXU operands, f32 accumulate) + ReLU
        h = jnp.dot(x_ref[...].astype(jnp.bfloat16), w0_ref[...],
                    preferred_element_type=jnp.float32) + b0_ref[...]
        h = jnp.maximum(h, 0.0)

        # ResConv1dBR blocks (static unroll; weight slices use static indices)
        for bi in range(num_blocks):
            t = jnp.dot(h.astype(jnp.bfloat16), wblk_ref[2 * bi],
                        preferred_element_type=jnp.float32) + bblk_ref[2 * bi]
            t = jnp.maximum(t, 0.0)
            t = jnp.dot(t.astype(jnp.bfloat16), wblk_ref[2 * bi + 1],
                        preferred_element_type=jnp.float32) + bblk_ref[2 * bi + 1]
            h = jnp.maximum(t + h, 0.0)

        # adaptive_max_pool1d(., 1): max over the k neighbours of each group
        # (k multiple of 8 -> tile-aligned sublane reduction on the XLU)
        o_ref[...] = jnp.max(h.reshape(gt, k, c), axis=1)

    return kernel


# ------------------------ generation-aware sizing -----------------------------
def _device_plan():
    """Returns (tensorcores_per_chip, per-tile VMEM budget bytes, vmem_limit_bytes)."""
    try:
        kind = jax.devices()[0].device_kind.lower()
    except Exception:
        kind = ""
    if "v7" in kind:                       # v7x: 2 TCs, only 64 MiB VMEM per TC
        return 2, 24 * 2**20, 32 * 2**20
    if "v6" in kind:                       # v6e: 1 TC, 128 MiB VMEM
        return 1, 32 * 2**20, 64 * 2**20
    if "v5p" in kind or "v4" in kind:      # megacore chips: 2 TCs, 128 MiB VMEM
        return 2, 32 * 2**20, 64 * 2**20
    if "v5" in kind:                       # v5e: 1 TC, 128 MiB VMEM (16 MiB scoped default)
        return 1, 12 * 2**20, 32 * 2**20
    return 1, 8 * 2**20, None              # unknown: conservative, keep default limit


def _pick_group_tile(G, k, dim, c, num_cores, tile_budget_bytes):
    """Largest multiple-of-8 divisor of G whose k-row tile fits the VMEM budget.
    Single-TC chips prefer a single grid step; multi-TC chips prefer an even step
    count so both TensorCores get equal work."""
    per_row_bytes = (2 * dim * 4      # double-buffered f32 input tile
                     + 2 * c * 4      # f32 h / t intermediates
                     + 2 * c * 2)     # bf16 copies feeding the MXU
    max_gt = max(int(tile_budget_bytes) // (per_row_bytes * k), 8)

    cands = [gt for gt in range(8, G + 1, 8) if G % gt == 0 and gt <= max_gt]
    if num_cores > 1:
        even = [gt for gt in cands if (G // gt) % num_cores == 0]
        if even:
            return max(even)
    if cands:
        return max(cands)
    # Fallback: full extent (always a legal block; sublane-masked stores if G%8!=0).
    return G


# ----------------------------- wrapper ---------------------------------------
def local_extraction_forward(x, w0, b0, wblk, bblk):
    """x: (b, num, k, dim) f32.
    w0: (dim, C) bf16, b0: (1, C) f32           -- folded transfer Conv1d+BN
    wblk: (2*blocks, C, C) bf16, bblk: (2*blocks, 1, C) f32 -- folded block Conv1d+BN."""
    b, num, k, dim = x.shape
    c = w0.shape[1]
    num_blocks = wblk.shape[0] // 2
    G = b * num

    num_cores, tile_budget, vmem_limit = _device_plan()
    gt = _pick_group_tile(G, k, dim, c, num_cores, tile_budget)
    rows = gt * k
    grid = (G // gt,)

    x_flat = x.reshape(G * k, dim)                 # layout glue only, no compute

    in_specs = [
        pl.BlockSpec((rows, dim), lambda i: (i, 0)),       # streamed input rows
        pl.BlockSpec(w0.shape, lambda i: (0, 0)),          # resident params ...
        pl.BlockSpec(b0.shape, lambda i: (0, 0)),
        pl.BlockSpec(wblk.shape, lambda i: (0, 0, 0)),
        pl.BlockSpec(bblk.shape, lambda i: (0, 0, 0)),
    ]

    flops = 2 * G * k * (dim * c + 2 * num_blocks * c * c)
    bytes_accessed = int(
        x_flat.size * x_flat.dtype.itemsize
        + w0.size * w0.dtype.itemsize + b0.size * b0.dtype.itemsize
        + wblk.size * wblk.dtype.itemsize + bblk.size * bblk.dtype.itemsize
        + G * c * 4)

    cp_kwargs = dict(dimension_semantics=("parallel",))
    if vmem_limit is not None:
        cp_kwargs["vmem_limit_bytes"] = int(vmem_limit)

    out = pl.pallas_call(
        _make_local_extraction_kernel(num_blocks),
        out_shape=jax.ShapeDtypeStruct((G, c), jnp.float32),
        grid_spec=pltpu.PrefetchScalarGridSpec(
            num_scalar_prefetch=0,
            grid=grid,
            in_specs=in_specs,
            out_specs=pl.BlockSpec((gt, c), lambda i: (i, 0)),
        ),
        compiler_params=pltpu.CompilerParams(**cp_kwargs),
        cost_estimate=pl.CostEstimate(
            flops=int(flops), transcendentals=0, bytes_accessed=bytes_accessed),
    )(x_flat, w0, b0, wblk, bblk)

    # layout glue: (b*num, C) -> (b, C, num)
    return out.reshape(b, num, c).transpose(0, 2, 1)


# ------------------------ parameters & folding --------------------------------
def _init_conv_bn(key, c_in, c_out):
    ks = jax.random.split(key, 6)
    return dict(
        w=jax.random.normal(ks[0], (c_out, c_in), jnp.float32) / np.sqrt(c_in),
        bias=0.1 * jax.random.normal(ks[1], (c_out,), jnp.float32),
        gamma=1.0 + 0.1 * jax.random.normal(ks[2], (c_out,), jnp.float32),
        beta=0.1 * jax.random.normal(ks[3], (c_out,), jnp.float32),
        mean=0.1 * jax.random.normal(ks[4], (c_out,), jnp.float32),
        var=0.5 + jax.random.uniform(ks[5], (c_out,), jnp.float32),
    )


def _fold_conv_bn(L, eps=_BN_EPS):
    # Conv1d(ks=1) weight (out,in) + eval-mode BN -> single affine:
    #   weight (in,out) cast to bf16 for the MXU, bias (1,out) kept in f32.
    scale = L['gamma'] / jnp.sqrt(L['var'] + eps)
    w_f = (L['w'] * scale[:, None]).T.astype(jnp.bfloat16)
    b_f = ((L['bias'] - L['mean']) * scale + L['beta']).reshape(1, -1)
    return w_f, b_f


def _pack_params(layers):
    w0, b0 = _fold_conv_bn(layers[0])
    wb, bb = [], []
    for L in layers[1:]:
        wf, bf = _fold_conv_bn(L)
        wb.append(wf)
        bb.append(bf)
    return w0, b0, jnp.stack(wb, axis=0), jnp.stack(bb, axis=0)


# ----------------------------- references -------------------------------------
def _reference_folded(x, w0, b0, wblk, bblk):
    # Unfused pure-JAX mirror of the exact kernel math (same folded bf16 weights,
    # bf16 dot operands, f32 accumulation) -> tight-tolerance correctness check.
    b, num, k, dim = x.shape
    num_blocks = wblk.shape[0] // 2
    h = jnp.dot(x.reshape(-1, dim).astype(jnp.bfloat16), w0,
                preferred_element_type=jnp.float32) + b0
    h = jnp.maximum(h, 0.0)
    for bi in range(num_blocks):
        t = jnp.dot(h.astype(jnp.bfloat16), wblk[2 * bi],
                    preferred_element_type=jnp.float32) + bblk[2 * bi]
        t = jnp.maximum(t, 0.0)
        t = jnp.dot(t.astype(jnp.bfloat16), wblk[2 * bi + 1],
                    preferred_element_type=jnp.float32) + bblk[2 * bi + 1]
        h = jnp.maximum(t + h, 0.0)
    h = jnp.max(h.reshape(b * num, k, -1), axis=1)
    return h.reshape(b, num, -1).transpose(0, 2, 1)


def _reference_torch_semantics(x, layers, num_blocks):
    # Op-by-op f32 mirror of the PyTorch forward (unfolded eval-mode BN) ->
    # loose-tolerance check that BN folding + bf16 matmuls stay faithful.
    b, num, k, dim = x.shape
    h = x.reshape(b * num, k, dim).transpose(0, 2, 1)            # (b*num, dim, k)

    def conv_bn(h, L, relu):
        y = jnp.einsum('oi,bil->bol', L['w'], h) + L['bias'][None, :, None]
        y = (y - L['mean'][None, :, None]) * (
            L['gamma'][None, :, None] / jnp.sqrt(L['var'][None, :, None] + _BN_EPS)
        ) + L['beta'][None, :, None]
        return jnp.maximum(y, 0.0) if relu else y

    h = conv_bn(h, layers[0], True)                              # transfer
    li = 1
    for _ in range(num_blocks):                                  # ResConv1dBR
        t = conv_bn(h, layers[li], True)
        t = conv_bn(t, layers[li + 1], False)
        h = jnp.maximum(t + h, 0.0)
        li += 2
    h = jnp.max(h, axis=-1)                                      # adaptive_max_pool1d(.,1)
    return h.reshape(b, num, -1).transpose(0, 2, 1)              # (b, C, num)


# ----------------------------------- main -------------------------------------
if __name__ == "__main__":
    # small shapes consistent with the module: in_channels=16, out_channels=128,
    # blocks=2, k=16 neighbours, num=64 points, batch=2
    B, NUM, K, D_IN, D_OUT, BLOCKS = 2, 64, 16, 16, 128, 2

    key = jax.random.PRNGKey(0)
    keys = jax.random.split(key, 2 + 2 * BLOCKS)
    kx, layer_keys = keys[0], keys[1:]

    x = jax.random.normal(kx, (B, NUM, K, D_IN), dtype=jnp.float32)

    # raw Conv1d(ks=1)+BatchNorm1d(eval) parameters: transfer + (net1, net2) per block
    layers = [_init_conv_bn(layer_keys[0], D_IN, D_OUT)]
    for bi in range(BLOCKS):
        layers.append(_init_conv_bn(layer_keys[1 + 2 * bi], D_OUT, D_OUT))   # net1
        layers.append(_init_conv_bn(layer_keys[2 + 2 * bi], D_OUT, D_OUT))   # net2

    w0, b0, wblk, bblk = _pack_params(layers)

    out = local_extraction_forward(x, w0, b0, wblk, bblk)
    jax.block_until_ready(out)

    # 1) tight check: Pallas kernel vs an unfused pure-JAX mirror of the same math
    ref_folded = _reference_folded(x, w0, b0, wblk, bblk)
    np.testing.assert_allclose(np.asarray(out), np.asarray(ref_folded),
                               rtol=1e-4, atol=1e-4)

    # 2) loose check: folded bf16-matmul path vs the f32 PyTorch-semantics forward
    ref_f32 = _reference_torch_semantics(x, layers, BLOCKS)
    np.testing.assert_allclose(np.asarray(out), np.asarray(ref_f32),
                               rtol=5e-2, atol=5e-2)

    print("KERNEL_OK")
</pallas_src>

<mosaic_0001>
module attributes {stable_mosaic.version = 11 : i64} {
  func.func @kernel(%arg0: i32, %arg1: memref<2048x16xf32, #tpu.memory_space<vmem>>, %arg2: memref<16x128xbf16, #tpu.memory_space<vmem>>, %arg3: memref<1x128xf32, #tpu.memory_space<vmem>>, %arg4: memref<4x128x128xbf16, #tpu.memory_space<vmem>>, %arg5: memref<4x1x128xf32, #tpu.memory_space<vmem>>, %arg6: memref<128x128xf32, #tpu.memory_space<vmem>>) attributes {dimension_semantics = [#tpu.dimension_semantics<parallel>], iteration_bounds = array<i64: 1>, scalar_prefetch = 0 : i64, scratch_operands = 0 : i64, tpu.core_type = #tpu.core_type<tc>, window_params = [{transform_indices = @transform_0, window_bounds = array<i64: 2048, 16>}, {pipeline_mode = #tpu.pipeline_mode<synchronous>, transform_indices = @transform_1, window_bounds = array<i64: 16, 128>}, {pipeline_mode = #tpu.pipeline_mode<synchronous>, transform_indices = @transform_2, window_bounds = array<i64: 1, 128>}, {pipeline_mode = #tpu.pipeline_mode<synchronous>, transform_indices = @transform_3, window_bounds = array<i64: 4, 128, 128>}, {pipeline_mode = #tpu.pipeline_mode<synchronous>, transform_indices = @transform_4, window_bounds = array<i64: 4, 1, 128>}, {transform_indices = @transform_5, window_bounds = array<i64: 128, 128>}]} {
    %c0 = arith.constant 0 : index
    %c0_0 = arith.constant 0 : index
    %0 = vector.load %arg1[%c0, %c0_0] : memref<2048x16xf32, #tpu.memory_space<vmem>>, vector<2048x16xf32>
    %1 = arith.truncf %0 : vector<2048x16xf32> to vector<2048x16xbf16>
    %c0_1 = arith.constant 0 : index
    %c0_2 = arith.constant 0 : index
    %2 = vector.load %arg2[%c0_1, %c0_2] : memref<16x128xbf16, #tpu.memory_space<vmem>>, vector<16x128xbf16>
    %cst = arith.constant dense<0.000000e+00> : vector<2048x128xf32>
    %3 = tpu.matmul %1, %2, %cst {dimension_numbers = #tpu.dot_dimension_numbers<[1], [0], [0], [1], [0, 0, 1, 1], [], []>} : vector<2048x16xbf16>, vector<16x128xbf16>, vector<2048x128xf32> -> vector<2048x128xf32>
    %c0_3 = arith.constant 0 : index
    %c0_4 = arith.constant 0 : index
    %4 = vector.load %arg3[%c0_3, %c0_4] : memref<1x128xf32, #tpu.memory_space<vmem>>, vector<1x128xf32>
    %5 = vector.broadcast %4 : vector<1x128xf32> to vector<2048x128xf32>
    %6 = arith.addf %3, %5 : vector<2048x128xf32>
    %cst_5 = arith.constant 0.000000e+00 : f32
    %7 = vector.broadcast %cst_5 : f32 to vector<2048x128xf32>
    %8 = arith.maximumf %6, %7 : vector<2048x128xf32>
    %9 = arith.truncf %8 : vector<2048x128xf32> to vector<2048x128xbf16>
    %c0_6 = arith.constant 0 : index
    %c0_7 = arith.constant 0 : index
    %c0_8 = arith.constant 0 : index
    %10 = vector.load %arg4[%c0_6, %c0_7, %c0_8] : memref<4x128x128xbf16, #tpu.memory_space<vmem>>, vector<1x128x128xbf16>
    %11 = vector.shape_cast %10 : vector<1x128x128xbf16> to vector<128x128xbf16>
    %cst_9 = arith.constant dense<0.000000e+00> : vector<2048x128xf32>
    %12 = tpu.matmul %9, %11, %cst_9 {dimension_numbers = #tpu.dot_dimension_numbers<[1], [0], [0], [1], [0, 0, 1, 1], [], []>} : vector<2048x128xbf16>, vector<128x128xbf16>, vector<2048x128xf32> -> vector<2048x128xf32>
    %c0_10 = arith.constant 0 : index
    %c0_11 = arith.constant 0 : index
    %c0_12 = arith.constant 0 : index
    %13 = vector.load %arg5[%c0_10, %c0_11, %c0_12] : memref<4x1x128xf32, #tpu.memory_space<vmem>>, vector<1x1x128xf32>
    %14 = vector.shape_cast %13 : vector<1x1x128xf32> to vector<1x128xf32>
    %15 = vector.broadcast %14 : vector<1x128xf32> to vector<2048x128xf32>
    %16 = arith.addf %12, %15 : vector<2048x128xf32>
    %cst_13 = arith.constant 0.000000e+00 : f32
    %17 = vector.broadcast %cst_13 : f32 to vector<2048x128xf32>
    %18 = arith.maximumf %16, %17 : vector<2048x128xf32>
    %19 = arith.truncf %18 : vector<2048x128xf32> to vector<2048x128xbf16>
    %c1 = arith.constant 1 : index
    %c0_14 = arith.constant 0 : index
    %c0_15 = arith.constant 0 : index
    %20 = vector.load %arg4[%c1, %c0_14, %c0_15] : memref<4x128x128xbf16, #tpu.memory_space<vmem>>, vector<1x128x128xbf16>
    %21 = vector.shape_cast %20 : vector<1x128x128xbf16> to vector<128x128xbf16>
    %cst_16 = arith.constant dense<0.000000e+00> : vector<2048x128xf32>
    %22 = tpu.matmul %19, %21, %cst_16 {dimension_numbers = #tpu.dot_dimension_numbers<[1], [0], [0], [1], [0, 0, 1, 1], [], []>} : vector<2048x128xbf16>, vector<128x128xbf16>, vector<2048x128xf32> -> vector<2048x128xf32>
    %c1_17 = arith.constant 1 : index
    %c0_18 = arith.constant 0 : index
    %c0_19 = arith.constant 0 : index
    %23 = vector.load %arg5[%c1_17, %c0_18, %c0_19] : memref<4x1x128xf32, #tpu.memory_space<vmem>>, vector<1x1x128xf32>
    %24 = vector.shape_cast %23 : vector<1x1x128xf32> to vector<1x128xf32>
    %25 = vector.broadcast %24 : vector<1x128xf32> to vector<2048x128xf32>
    %26 = arith.addf %22, %25 : vector<2048x128xf32>
    %27 = arith.addf %26, %8 : vector<2048x128xf32>
    %cst_20 = arith.constant 0.000000e+00 : f32
    %28 = vector.broadcast %cst_20 : f32 to vector<2048x128xf32>
    %29 = arith.maximumf %27, %28 : vector<2048x128xf32>
    %30 = arith.truncf %29 : vector<2048x128xf32> to vector<2048x128xbf16>
    %c2 = arith.constant 2 : index
    %c0_21 = arith.constant 0 : index
    %c0_22 = arith.constant 0 : index
    %31 = vector.load %arg4[%c2, %c0_21, %c0_22] : memref<4x128x128xbf16, #tpu.memory_space<vmem>>, vector<1x128x128xbf16>
    %32 = vector.shape_cast %31 : vector<1x128x128xbf16> to vector<128x128xbf16>
    %cst_23 = arith.constant dense<0.000000e+00> : vector<2048x128xf32>
    %33 = tpu.matmul %30, %32, %cst_23 {dimension_numbers = #tpu.dot_dimension_numbers<[1], [0], [0], [1], [0, 0, 1, 1], [], []>} : vector<2048x128xbf16>, vector<128x128xbf16>, vector<2048x128xf32> -> vector<2048x128xf32>
    %c2_24 = arith.constant 2 : index
    %c0_25 = arith.constant 0 : index
    %c0_26 = arith.constant 0 : index
    %34 = vector.load %arg5[%c2_24, %c0_25, %c0_26] : memref<4x1x128xf32, #tpu.memory_space<vmem>>, vector<1x1x128xf32>
    %35 = vector.shape_cast %34 : vector<1x1x128xf32> to vector<1x128xf32>
    %36 = vector.broadcast %35 : vector<1x128xf32> to vector<2048x128xf32>
    %37 = arith.addf %33, %36 : vector<2048x128xf32>
    %cst_27 = arith.constant 0.000000e+00 : f32
    %38 = vector.broadcast %cst_27 : f32 to vector<2048x128xf32>
    %39 = arith.maximumf %37, %38 : vector<2048x128xf32>
    %40 = arith.truncf %39 : vector<2048x128xf32> to vector<2048x128xbf16>
    %c3 = arith.constant 3 : index
    %c0_28 = arith.constant 0 : index
    %c0_29 = arith.constant 0 : index
    %41 = vector.load %arg4[%c3, %c0_28, %c0_29] : memref<4x128x128xbf16, #tpu.memory_space<vmem>>, vector<1x128x128xbf16>
    %42 = vector.shape_cast %41 : vector<1x128x128xbf16> to vector<128x128xbf16>
    %cst_30 = arith.constant dense<0.000000e+00> : vector<2048x128xf32>
    %43 = tpu.matmul %40, %42, %cst_30 {dimension_numbers = #tpu.dot_dimension_numbers<[1], [0], [0], [1], [0, 0, 1, 1], [], []>} : vector<2048x128xbf16>, vector<128x128xbf16>, vector<2048x128xf32> -> vector<2048x128xf32>
    %c3_31 = arith.constant 3 : index
    %c0_32 = arith.constant 0 : index
    %c0_33 = arith.constant 0 : index
    %44 = vector.load %arg5[%c3_31, %c0_32, %c0_33] : memref<4x1x128xf32, #tpu.memory_space<vmem>>, vector<1x1x128xf32>
    %45 = vector.shape_cast %44 : vector<1x1x128xf32> to vector<1x128xf32>
    %46 = vector.broadcast %45 : vector<1x128xf32> to vector<2048x128xf32>
    %47 = arith.addf %43, %46 : vector<2048x128xf32>
    %48 = arith.addf %47, %29 : vector<2048x128xf32>
    %cst_34 = arith.constant 0.000000e+00 : f32
    %49 = vector.broadcast %cst_34 : f32 to vector<2048x128xf32>
    %50 = arith.maximumf %48, %49 : vector<2048x128xf32>
    %51 = vector.shape_cast %50 : vector<2048x128xf32> to vector<128x16x128xf32>
    %cst_35 = arith.constant dense<0xFF800000> : vector<128x128xf32>
    %52 = vector.multi_reduction <maximumf>, %51, %cst_35 [1] : vector<128x16x128xf32> to vector<128x128xf32>
    %c0_36 = arith.constant 0 : index
    %c0_37 = arith.constant 0 : index
    %53 = vector.load %arg6[%c0_36, %c0_37] : memref<128x128xf32, #tpu.memory_space<vmem>>, vector<128x128xf32>
    tpu.vector_store %arg6[%c0_36, %c0_37], %52 {strides = array<i32>} : memref<128x128xf32, #tpu.memory_space<vmem>>, vector<128x128xf32>,
    return
  }
  func.func @transform_0(%arg0: i32) -> (i32, i32) {
    %c0_i32 = arith.constant 0 : i32
    %c0_i32_0 = arith.constant 0 : i32
    return %arg0, %c0_i32 : i32, i32
  }
  func.func @transform_1(%arg0: i32) -> (i32, i32) {
    %c0_i32 = arith.constant 0 : i32
    %c0_i32_0 = arith.constant 0 : i32
    %c0_i32_1 = arith.constant 0 : i32
    return %c0_i32, %c0_i32_0 : i32, i32
  }
  func.func @transform_2(%arg0: i32) -> (i32, i32) {
    %c0_i32 = arith.constant 0 : i32
    %c0_i32_0 = arith.constant 0 : i32
    %c0_i32_1 = arith.constant 0 : i32
    return %c0_i32, %c0_i32_0 : i32, i32
  }
  func.func @transform_3(%arg0: i32) -> (i32, i32, i32) {
    %c0_i32 = arith.constant 0 : i32
    %c0_i32_0 = arith.constant 0 : i32
    %c0_i32_1 = arith.constant 0 : i32
    %c0_i32_2 = arith.constant 0 : i32
    return %c0_i32, %c0_i32_0, %c0_i32_1 : i32, i32, i32
  }
  func.func @transform_4(%arg0: i32) -> (i32, i32, i32) {
    %c0_i32 = arith.constant 0 : i32
    %c0_i32_0 = arith.constant 0 : i32
    %c0_i32_1 = arith.constant 0 : i32
    %c0_i32_2 = arith.constant 0 : i32
    return %c0_i32, %c0_i32_0, %c0_i32_1 : i32, i32, i32
  }
  func.func @transform_5(%arg0: i32) -> (i32, i32) {
    %c0_i32 = arith.constant 0 : i32
    %c0_i32_0 = arith.constant 0 : i32
    return %arg0, %c0_i32 : i32, i32
  }
}

</mosaic_0001>

<llo_original>
// kernel: tpu_custom_call.1
$region0: #{tpu_custom_call.1}
  #allocation0 [shape = 'u32[]', space=smem, size = 0x4, offset = 0x4, fixed_abs, tag = 'smem constant byte address 0x4 - core index']
  #allocation1 [shape = 'u32[72,128]{1,0:T(1,128)}', space=vmem, size = 0x9000, scoped, tag = 'internal scratch']
  %s0 = inlined_call_operand.vmem [shape: f32[2048,16], index: 0, kind: input, shape index: {}]
  %s1 = inlined_call_operand.vmem [shape: bf16[16,128], index: 1, kind: input, shape index: {}]
  %s2 = inlined_call_operand.vmem [shape: f32[1,128], index: 2, kind: input, shape index: {}]
  %s3 = inlined_call_operand.vmem [shape: bf16[4,128,128], index: 3, kind: input, shape index: {}]
  %s4 = inlined_call_operand.vmem [shape: f32[4,1,128], index: 4, kind: input, shape index: {}]
  %s5 = inlined_call_operand.hbm [shape: f32[128,128], index: 5, kind: output, shape index: {}]
  %s6 = sld [smem:[#allocation0]]
  $region30: #{tpu_custom_call.1} parent=0
    _
  %s8 = ssub.s32 1, %s6
  %s9 = scalar_select 0, %s8, %s6
  $region1: #{tpu_custom_call.1} parent=0
    #allocation2 [shape = 'u8[65536]{0}', space=vmem, size = 0x10000, scoped, tag = 'output window, operand 0, single buffered']
    #allocation3 [shape = 's32[1]{0}', space=sflag, size = 0x4, scoped, tag = 'scoped memory for tpu_custom_call.1']
    %10 = vsyncpa [#allocation3], 0
    // Predicated region
    $region2: #{tpu_custom_call.1} parent=1 // pred_check
      _
    $region3: #{tpu_custom_call.1} parent=1 // pred_check_branch
      %12 = sbr.rel (0) target = $region5
    $region4: #{tpu_custom_call.1} parent=1 // pred_region
      _
    $region5: #{tpu_custom_call.1} parent=1 // pred_fallthru
      _
    // Predicated region
    $region6: #{tpu_custom_call.1} parent=1 // pred_check
      _
    $region7: #{tpu_custom_call.1} parent=1 // pred_check_branch
      %14 = sbr.rel (0) target = $region9
    $region8: #{tpu_custom_call.1} parent=1 // pred_region
      _
    $region9: #{tpu_custom_call.1} parent=1 // pred_fallthru
      _
    // Predicated region
    $region10: #{tpu_custom_call.1} parent=1 // pred_check
      _
    $region11: #{tpu_custom_call.1} parent=1 // pred_check_branch
      %16 = sbr.rel (0) target = $region13
    $region12: #{tpu_custom_call.1} parent=1 // pred_region
      _
    $region13: #{tpu_custom_call.1} parent=1 // pred_fallthru
      _
    // Predicated region
    $region14: #{tpu_custom_call.1} parent=1 // pred_check
      _
    $region15: #{tpu_custom_call.1} parent=1 // pred_check_branch
      %18 = sbr.rel (0) target = $region17
    $region16: #{tpu_custom_call.1} parent=1 // pred_region
      _
    $region17: #{tpu_custom_call.1} parent=1 // pred_fallthru
      _
    // Predicated region
    $region18: #{tpu_custom_call.1} parent=1 // pred_check
      _
    $region19: #{tpu_custom_call.1} parent=1 // pred_check_branch
      %20 = sbr.rel (0) target = $region21
    $region20: #{tpu_custom_call.1} parent=1 // pred_region
      _
    $region21: #{tpu_custom_call.1} parent=1 // pred_fallthru
      _
    %v22 = vld [vmem:[%s0] sm:$0xff]
    %v23 = vld [vmem:[%s0 + $0x8] sm:$0xff]
    %v24 = vld [vmem:[%s0 + $0x10] sm:$0xff]
    %v25 = vld [vmem:[%s0 + $0x18] sm:$0xff]
    %v26 = vld [vmem:[%s0 + $0x20] sm:$0xff]
    %v27 = vld [vmem:[%s0 + $0x28] sm:$0xff]
    %v28 = vld [vmem:[%s0 + $0x30] sm:$0xff]
    %v29 = vld [vmem:[%s0 + $0x38] sm:$0xff]
    %v30 = vld [vmem:[%s0 + $0x40] sm:$0xff]
    %v31 = vld [vmem:[%s0 + $0x48] sm:$0xff]
    %v32 = vld [vmem:[%s0 + $0x50] sm:$0xff]
    %v33 = vld [vmem:[%s0 + $0x58] sm:$0xff]
    %v34 = vld [vmem:[%s0 + $0x60] sm:$0xff]
    %v35 = vld [vmem:[%s0 + $0x68] sm:$0xff]
    %v36 = vld [vmem:[%s0 + $0x70] sm:$0xff]
    %v37 = vld [vmem:[%s0 + $0x78] sm:$0xff]
    %v38 = vld [vmem:[%s0 + $0x80] sm:$0xff]
    %v39 = vld [vmem:[%s0 + $0x88] sm:$0xff]
    %v40 = vld [vmem:[%s0 + $0x90] sm:$0xff]
    %v41 = vld [vmem:[%s0 + $0x98] sm:$0xff]
    %v42 = vld [vmem:[%s0 + $0xa0] sm:$0xff]
    %v43 = vld [vmem:[%s0 + $0xa8] sm:$0xff]
    %v44 = vld [vmem:[%s0 + $0xb0] sm:$0xff]
    %v45 = vld [vmem:[%s0 + $0xb8] sm:$0xff]
    %v46 = vld [vmem:[%s0 + $0xc0] sm:$0xff]
    %v47 = vld [vmem:[%s0 + $0xc8] sm:$0xff]
    %v48 = vld [vmem:[%s0 + $0xd0] sm:$0xff]
    %v49 = vld [vmem:[%s0 + $0xd8] sm:$0xff]
    %v50 = vld [vmem:[%s0 + $0xe0] sm:$0xff]
    %v51 = vld [vmem:[%s0 + $0xe8] sm:$0xff]
    %v52 = vld [vmem:[%s0 + $0xf0] sm:$0xff]
    %v53 = vld [vmem:[%s0 + $0xf8] sm:$0xff]
    %v54 = vld [vmem:[%s0 + $0x100] sm:$0xff]
    %v55 = vld [vmem:[%s0 + $0x108] sm:$0xff]
    %v56 = vld [vmem:[%s0 + $0x110] sm:$0xff]
    %v57 = vld [vmem:[%s0 + $0x118] sm:$0xff]
    %v58 = vld [vmem:[%s0 + $0x120] sm:$0xff]
    %v59 = vld [vmem:[%s0 + $0x128] sm:$0xff]
    %v60 = vld [vmem:[%s0 + $0x130] sm:$0xff]
    %v61 = vld [vmem:[%s0 + $0x138] sm:$0xff]
    %v62 = vld [vmem:[%s0 + $0x140] sm:$0xff]
    %v63 = vld [vmem:[%s0 + $0x148] sm:$0xff]
    %v64 = vld [vmem:[%s0 + $0x150] sm:$0xff]
    %v65 = vld [vmem:[%s0 + $0x158] sm:$0xff]
    %v66 = vld [vmem:[%s0 + $0x160] sm:$0xff]
    %v67 = vld [vmem:[%s0 + $0x168] sm:$0xff]
    %v68 = vld [vmem:[%s0 + $0x170] sm:$0xff]
    %v69 = vld [vmem:[%s0 + $0x178] sm:$0xff]
    %v70 = vld [vmem:[%s0 + $0x180] sm:$0xff]
    %v71 = vld [vmem:[%s0 + $0x188] sm:$0xff]
    %v72 = vld [vmem:[%s0 + $0x190] sm:$0xff]
    %v73 = vld [vmem:[%s0 + $0x198] sm:$0xff]
    %v74 = vld [vmem:[%s0 + $0x1a0] sm:$0xff]
    %v75 = vld [vmem:[%s0 + $0x1a8] sm:$0xff]
    %v76 = vld [vmem:[%s0 + $0x1b0] sm:$0xff]
    %v77 = vld [vmem:[%s0 + $0x1b8] sm:$0xff]
    %v78 = vld [vmem:[%s0 + $0x1c0] sm:$0xff]
    %v79 = vld [vmem:[%s0 + $0x1c8] sm:$0xff]
    %v80 = vld [vmem:[%s0 + $0x1d0] sm:$0xff]
    %v81 = vld [vmem:[%s0 + $0x1d8] sm:$0xff]
    %v82 = vld [vmem:[%s0 + $0x1e0] sm:$0xff]
    %v83 = vld [vmem:[%s0 + $0x1e8] sm:$0xff]
    %v84 = vld [vmem:[%s0 + $0x1f0] sm:$0xff]
    %v85 = vld [vmem:[%s0 + $0x1f8] sm:$0xff]
    %v86 = vld [vmem:[%s0 + $0x200] sm:$0xff]
    %v87 = vld [vmem:[%s0 + $0x208] sm:$0xff]
    %v88 = vld [vmem:[%s0 + $0x210] sm:$0xff]
    %v89 = vld [vmem:[%s0 + $0x218] sm:$0xff]
    %v90 = vld [vmem:[%s0 + $0x220] sm:$0xff]
    %v91 = vld [vmem:[%s0 + $0x228] sm:$0xff]
    %v92 = vld [vmem:[%s0 + $0x230] sm:$0xff]
    %v93 = vld [vmem:[%s0 + $0x238] sm:$0xff]
    %v94 = vld [vmem:[%s0 + $0x240] sm:$0xff]
    %v95 = vld [vmem:[%s0 + $0x248] sm:$0xff]
    %v96 = vld [vmem:[%s0 + $0x250] sm:$0xff]
    %v97 = vld [vmem:[%s0 + $0x258] sm:$0xff]
    %v98 = vld [vmem:[%s0 + $0x260] sm:$0xff]
    %v99 = vld [vmem:[%s0 + $0x268] sm:$0xff]
    %v100 = vld [vmem:[%s0 + $0x270] sm:$0xff]
    %v101 = vld [vmem:[%s0 + $0x278] sm:$0xff]
    %v102 = vld [vmem:[%s0 + $0x280] sm:$0xff]
    %v103 = vld [vmem:[%s0 + $0x288] sm:$0xff]
    %v104 = vld [vmem:[%s0 + $0x290] sm:$0xff]
    %v105 = vld [vmem:[%s0 + $0x298] sm:$0xff]
    %v106 = vld [vmem:[%s0 + $0x2a0] sm:$0xff]
    %v107 = vld [vmem:[%s0 + $0x2a8] sm:$0xff]
    %v108 = vld [vmem:[%s0 + $0x2b0] sm:$0xff]
    %v109 = vld [vmem:[%s0 + $0x2b8] sm:$0xff]
    %v110 = vld [vmem:[%s0 + $0x2c0] sm:$0xff]
    %v111 = vld [vmem:[%s0 + $0x2c8] sm:$0xff]
    %v112 = vld [vmem:[%s0 + $0x2d0] sm:$0xff]
    %v113 = vld [vmem:[%s0 + $0x2d8] sm:$0xff]
    %v114 = vld [vmem:[%s0 + $0x2e0] sm:$0xff]
    %v115 = vld [vmem:[%s0 + $0x2e8] sm:$0xff]
    %v116 = vld [vmem:[%s0 + $0x2f0] sm:$0xff]
    %v117 = vld [vmem:[%s0 + $0x2f8] sm:$0xff]
    %v118 = vld [vmem:[%s0 + $0x300] sm:$0xff]
    %v119 = vld [vmem:[%s0 + $0x308] sm:$0xff]
    %v120 = vld [vmem:[%s0 + $0x310] sm:$0xff]
    %v121 = vld [vmem:[%s0 + $0x318] sm:$0xff]
    %v122 = vld [vmem:[%s0 + $0x320] sm:$0xff]
    %v123 = vld [vmem:[%s0 + $0x328] sm:$0xff]
    %v124 = vld [vmem:[%s0 + $0x330] sm:$0xff]
    %v125 = vld [vmem:[%s0 + $0x338] sm:$0xff]
    %v126 = vld [vmem:[%s0 + $0x340] sm:$0xff]
    %v127 = vld [vmem:[%s0 + $0x348] sm:$0xff]
    %v128 = vld [vmem:[%s0 + $0x350] sm:$0xff]
    %v129 = vld [vmem:[%s0 + $0x358] sm:$0xff]
    %v130 = vld [vmem:[%s0 + $0x360] sm:$0xff]
    %v131 = vld [vmem:[%s0 + $0x368] sm:$0xff]
    %v132 = vld [vmem:[%s0 + $0x370] sm:$0xff]
    %v133 = vld [vmem:[%s0 + $0x378] sm:$0xff]
    %v134 = vld [vmem:[%s0 + $0x380] sm:$0xff]
    %v135 = vld [vmem:[%s0 + $0x388] sm:$0xff]
    %v136 = vld [vmem:[%s0 + $0x390] sm:$0xff]
    %v137 = vld [vmem:[%s0 + $0x398] sm:$0xff]
    %v138 = vld [vmem:[%s0 + $0x3a0] sm:$0xff]
    %v139 = vld [vmem:[%s0 + $0x3a8] sm:$0xff]
    %v140 = vld [vmem:[%s0 + $0x3b0] sm:$0xff]
    %v141 = vld [vmem:[%s0 + $0x3b8] sm:$0xff]
    %v142 = vld [vmem:[%s0 + $0x3c0] sm:$0xff]
    %v143 = vld [vmem:[%s0 + $0x3c8] sm:$0xff]
    %v144 = vld [vmem:[%s0 + $0x3d0] sm:$0xff]
    %v145 = vld [vmem:[%s0 + $0x3d8] sm:$0xff]
    %v146 = vld [vmem:[%s0 + $0x3e0] sm:$0xff]
    %v147 = vld [vmem:[%s0 + $0x3e8] sm:$0xff]
    %v148 = vld [vmem:[%s0 + $0x3f0] sm:$0xff]
    %v149 = vld [vmem:[%s0 + $0x3f8] sm:$0xff]
    %v150 = vld [vmem:[%s0 + $0x400] sm:$0xff]
    %v151 = vld [vmem:[%s0 + $0x408] sm:$0xff]
    %v152 = vld [vmem:[%s0 + $0x410] sm:$0xff]
    %v153 = vld [vmem:[%s0 + $0x418] sm:$0xff]
    %v154 = vld [vmem:[%s0 + $0x420] sm:$0xff]
    %v155 = vld [vmem:[%s0 + $0x428] sm:$0xff]
    %v156 = vld [vmem:[%s0 + $0x430] sm:$0xff]
    %v157 = vld [vmem:[%s0 + $0x438] sm:$0xff]
    %v158 = vld [vmem:[%s0 + $0x440] sm:$0xff]
    %v159 = vld [vmem:[%s0 + $0x448] sm:$0xff]
    %v160 = vld [vmem:[%s0 + $0x450] sm:$0xff]
    %v161 = vld [vmem:[%s0 + $0x458] sm:$0xff]
    %v162 = vld [vmem:[%s0 + $0x460] sm:$0xff]
    %v163 = vld [vmem:[%s0 + $0x468] sm:$0xff]
    %v164 = vld [vmem:[%s0 + $0x470] sm:$0xff]
    %v165 = vld [vmem:[%s0 + $0x478] sm:$0xff]
    %v166 = vld [vmem:[%s0 + $0x480] sm:$0xff]
    %v167 = vld [vmem:[%s0 + $0x488] sm:$0xff]
    %v168 = vld [vmem:[%s0 + $0x490] sm:$0xff]
    %v169 = vld [vmem:[%s0 + $0x498] sm:$0xff]
    %v170 = vld [vmem:[%s0 + $0x4a0] sm:$0xff]
    %v171 = vld [vmem:[%s0 + $0x4a8] sm:$0xff]
    %v172 = vld [vmem:[%s0 + $0x4b0] sm:$0xff]
    %v173 = vld [vmem:[%s0 + $0x4b8] sm:$0xff]
    %v174 = vld [vmem:[%s0 + $0x4c0] sm:$0xff]
    %v175 = vld [vmem:[%s0 + $0x4c8] sm:$0xff]
    %v176 = vld [vmem:[%s0 + $0x4d0] sm:$0xff]
    %v177 = vld [vmem:[%s0 + $0x4d8] sm:$0xff]
    %v178 = vld [vmem:[%s0 + $0x4e0] sm:$0xff]
    %v179 = vld [vmem:[%s0 + $0x4e8] sm:$0xff]
    %v180 = vld [vmem:[%s0 + $0x4f0] sm:$0xff]
    %v181 = vld [vmem:[%s0 + $0x4f8] sm:$0xff]
    %v182 = vld [vmem:[%s0 + $0x500] sm:$0xff]
    %v183 = vld [vmem:[%s0 + $0x508] sm:$0xff]
    %v184 = vld [vmem:[%s0 + $0x510] sm:$0xff]
    %v185 = vld [vmem:[%s0 + $0x518] sm:$0xff]
    %v186 = vld [vmem:[%s0 + $0x520] sm:$0xff]
    %v187 = vld [vmem:[%s0 + $0x528] sm:$0xff]
    %v188 = vld [vmem:[%s0 + $0x530] sm:$0xff]
    %v189 = vld [vmem:[%s0 + $0x538] sm:$0xff]
    %v190 = vld [vmem:[%s0 + $0x540] sm:$0xff]
    %v191 = vld [vmem:[%s0 + $0x548] sm:$0xff]
    %v192 = vld [vmem:[%s0 + $0x550] sm:$0xff]
    %v193 = vld [vmem:[%s0 + $0x558] sm:$0xff]
    %v194 = vld [vmem:[%s0 + $0x560] sm:$0xff]
    %v195 = vld [vmem:[%s0 + $0x568] sm:$0xff]
    %v196 = vld [vmem:[%s0 + $0x570] sm:$0xff]
    %v197 = vld [vmem:[%s0 + $0x578] sm:$0xff]
    %v198 = vld [vmem:[%s0 + $0x580] sm:$0xff]
    %v199 = vld [vmem:[%s0 + $0x588] sm:$0xff]
    %v200 = vld [vmem:[%s0 + $0x590] sm:$0xff]
    %v201 = vld [vmem:[%s0 + $0x598] sm:$0xff]
    %v202 = vld [vmem:[%s0 + $0x5a0] sm:$0xff]
    %v203 = vld [vmem:[%s0 + $0x5a8] sm:$0xff]
    %v204 = vld [vmem:[%s0 + $0x5b0] sm:$0xff]
    %v205 = vld [vmem:[%s0 + $0x5b8] sm:$0xff]
    %v206 = vld [vmem:[%s0 + $0x5c0] sm:$0xff]
    %v207 = vld [vmem:[%s0 + $0x5c8] sm:$0xff]
    %v208 = vld [vmem:[%s0 + $0x5d0] sm:$0xff]
    %v209 = vld [vmem:[%s0 + $0x5d8] sm:$0xff]
    %v210 = vld [vmem:[%s0 + $0x5e0] sm:$0xff]
    %v211 = vld [vmem:[%s0 + $0x5e8] sm:$0xff]
    %v212 = vld [vmem:[%s0 + $0x5f0] sm:$0xff]
    %v213 = vld [vmem:[%s0 + $0x5f8] sm:$0xff]
    %v214 = vld [vmem:[%s0 + $0x600] sm:$0xff]
    %v215 = vld [vmem:[%s0 + $0x608] sm:$0xff]
    %v216 = vld [vmem:[%s0 + $0x610] sm:$0xff]
    %v217 = vld [vmem:[%s0 + $0x618] sm:$0xff]
    %v218 = vld [vmem:[%s0 + $0x620] sm:$0xff]
    %v219 = vld [vmem:[%s0 + $0x628] sm:$0xff]
    %v220 = vld [vmem:[%s0 + $0x630] sm:$0xff]
    %v221 = vld [vmem:[%s0 + $0x638] sm:$0xff]
    %v222 = vld [vmem:[%s0 + $0x640] sm:$0xff]
    %v223 = vld [vmem:[%s0 + $0x648] sm:$0xff]
    %v224 = vld [vmem:[%s0 + $0x650] sm:$0xff]
    %v225 = vld [vmem:[%s0 + $0x658] sm:$0xff]
    %v226 = vld [vmem:[%s0 + $0x660] sm:$0xff]
    %v227 = vld [vmem:[%s0 + $0x668] sm:$0xff]
    %v228 = vld [vmem:[%s0 + $0x670] sm:$0xff]
    %v229 = vld [vmem:[%s0 + $0x678] sm:$0xff]
    %v230 = vld [vmem:[%s0 + $0x680] sm:$0xff]
    %v231 = vld [vmem:[%s0 + $0x688] sm:$0xff]
    %v232 = vld [vmem:[%s0 + $0x690] sm:$0xff]
    %v233 = vld [vmem:[%s0 + $0x698] sm:$0xff]
    %v234 = vld [vmem:[%s0 + $0x6a0] sm:$0xff]
    %v235 = vld [vmem:[%s0 + $0x6a8] sm:$0xff]
    %v236 = vld [vmem:[%s0 + $0x6b0] sm:$0xff]
    %v237 = vld [vmem:[%s0 + $0x6b8] sm:$0xff]
    %v238 = vld [vmem:[%s0 + $0x6c0] sm:$0xff]
    %v239 = vld [vmem:[%s0 + $0x6c8] sm:$0xff]
    %v240 = vld [vmem:[%s0 + $0x6d0] sm:$0xff]
    %v241 = vld [vmem:[%s0 + $0x6d8] sm:$0xff]
    %v242 = vld [vmem:[%s0 + $0x6e0] sm:$0xff]
    %v243 = vld [vmem:[%s0 + $0x6e8] sm:$0xff]
    %v244 = vld [vmem:[%s0 + $0x6f0] sm:$0xff]
    %v245 = vld [vmem:[%s0 + $0x6f8] sm:$0xff]
    %v246 = vld [vmem:[%s0 + $0x700] sm:$0xff]
    %v247 = vld [vmem:[%s0 + $0x708] sm:$0xff]
    %v248 = vld [vmem:[%s0 + $0x710] sm:$0xff]
    %v249 = vld [vmem:[%s0 + $0x718] sm:$0xff]
    %v250 = vld [vmem:[%s0 + $0x720] sm:$0xff]
    %v251 = vld [vmem:[%s0 + $0x728] sm:$0xff]
    %v252 = vld [vmem:[%s0 + $0x730] sm:$0xff]
    %v253 = vld [vmem:[%s0 + $0x738] sm:$0xff]
    %v254 = vld [vmem:[%s0 + $0x740] sm:$0xff]
    %v255 = vld [vmem:[%s0 + $0x748] sm:$0xff]
    %v256 = vld [vmem:[%s0 + $0x750] sm:$0xff]
    %v257 = vld [vmem:[%s0 + $0x758] sm:$0xff]
    %v258 = vld [vmem:[%s0 + $0x760] sm:$0xff]
    %v259 = vld [vmem:[%s0 + $0x768] sm:$0xff]
    %v260 = vld [vmem:[%s0 + $0x770] sm:$0xff]
    %v261 = vld [vmem:[%s0 + $0x778] sm:$0xff]
    %v262 = vld [vmem:[%s0 + $0x780] sm:$0xff]
    %v263 = vld [vmem:[%s0 + $0x788] sm:$0xff]
    %v264 = vld [vmem:[%s0 + $0x790] sm:$0xff]
    %v265 = vld [vmem:[%s0 + $0x798] sm:$0xff]
    %v266 = vld [vmem:[%s0 + $0x7a0] sm:$0xff]
    %v267 = vld [vmem:[%s0 + $0x7a8] sm:$0xff]
    %v268 = vld [vmem:[%s0 + $0x7b0] sm:$0xff]
    %v269 = vld [vmem:[%s0 + $0x7b8] sm:$0xff]
    %v270 = vld [vmem:[%s0 + $0x7c0] sm:$0xff]
    %v271 = vld [vmem:[%s0 + $0x7c8] sm:$0xff]
    %v272 = vld [vmem:[%s0 + $0x7d0] sm:$0xff]
    %v273 = vld [vmem:[%s0 + $0x7d8] sm:$0xff]
    %v274 = vld [vmem:[%s0 + $0x7e0] sm:$0xff]
    %v275 = vld [vmem:[%s0 + $0x7e8] sm:$0xff]
    %v276 = vld [vmem:[%s0 + $0x7f0] sm:$0xff]
    %v277 = vld [vmem:[%s0 + $0x7f8] sm:$0xff]
    %v278 = vpack.c.bf16 %v23, %v22
    %v279 = vpack.c.bf16 %v25, %v24
    %v280 = vpack.c.bf16 %v27, %v26
    %v281 = vpack.c.bf16 %v29, %v28
    %v282 = vpack.c.bf16 %v31, %v30
    %v283 = vpack.c.bf16 %v33, %v32
    %v284 = vpack.c.bf16 %v35, %v34
    %v285 = vpack.c.bf16 %v37, %v36
    %v286 = vpack.c.bf16 %v39, %v38
    %v287 = vpack.c.bf16 %v41, %v40
    %v288 = vpack.c.bf16 %v43, %v42
    %v289 = vpack.c.bf16 %v45, %v44
    %v290 = vpack.c.bf16 %v47, %v46
    %v291 = vpack.c.bf16 %v49, %v48
    %v292 = vpack.c.bf16 %v51, %v50
    %v293 = vpack.c.bf16 %v53, %v52
    %v294 = vpack.c.bf16 %v55, %v54
    %v295 = vpack.c.bf16 %v57, %v56
    %v296 = vpack.c.bf16 %v59, %v58
    %v297 = vpack.c.bf16 %v61, %v60
    %v298 = vpack.c.bf16 %v63, %v62
    %v299 = vpack.c.bf16 %v65, %v64
    %v300 = vpack.c.bf16 %v67, %v66
    %v301 = vpack.c.bf16 %v69, %v68
    %v302 = vpack.c.bf16 %v71, %v70
    %v303 = vpack.c.bf16 %v73, %v72
    %v304 = vpack.c.bf16 %v75, %v74
    %v305 = vpack.c.bf16 %v77, %v76
    %v306 = vpack.c.bf16 %v79, %v78
    %v307 = vpack.c.bf16 %v81, %v80
    %v308 = vpack.c.bf16 %v83, %v82
    %v309 = vpack.c.bf16 %v85, %v84
    %v310 = vpack.c.bf16 %v87, %v86
    %v311 = vpack.c.bf16 %v89, %v88
    %v312 = vpack.c.bf16 %v91, %v90
    %v313 = vpack.c.bf16 %v93, %v92
    %v314 = vpack.c.bf16 %v95, %v94
    %v315 = vpack.c.bf16 %v97, %v96
    %v316 = vpack.c.bf16 %v99, %v98
    %v317 = vpack.c.bf16 %v101, %v100
    %v318 = vpack.c.bf16 %v103, %v102
    %v319 = vpack.c.bf16 %v105, %v104
    %v320 = vpack.c.bf16 %v107, %v106
    %v321 = vpack.c.bf16 %v109, %v108
    %v322 = vpack.c.bf16 %v111, %v110
    %v323 = vpack.c.bf16 %v113, %v112
    %v324 = vpack.c.bf16 %v115, %v114
    %v325 = vpack.c.bf16 %v117, %v116
    %v326 = vpack.c.bf16 %v119, %v118
    %v327 = vpack.c.bf16 %v121, %v120
    %v328 = vpack.c.bf16 %v123, %v122
    %v329 = vpack.c.bf16 %v125, %v124
    %v330 = vpack.c.bf16 %v127, %v126
    %v331 = vpack.c.bf16 %v129, %v128
    %v332 = vpack.c.bf16 %v131, %v130
    %v333 = vpack.c.bf16 %v133, %v132
    %v334 = vpack.c.bf16 %v135, %v134
    %v335 = vpack.c.bf16 %v137, %v136
    %v336 = vpack.c.bf16 %v139, %v138
    %v337 = vpack.c.bf16 %v141, %v140
    %v338 = vpack.c.bf16 %v143, %v142
    %v339 = vpack.c.bf16 %v145, %v144
    %v340 = vpack.c.bf16 %v147, %v146
    %v341 = vpack.c.bf16 %v149, %v148
    %v342 = vpack.c.bf16 %v151, %v150
    %v343 = vpack.c.bf16 %v153, %v152
    %v344 = vpack.c.bf16 %v155, %v154
    %v345 = vpack.c.bf16 %v157, %v156
    %v346 = vpack.c.bf16 %v159, %v158
    %v347 = vpack.c.bf16 %v161, %v160
    %v348 = vpack.c.bf16 %v163, %v162
    %v349 = vpack.c.bf16 %v165, %v164
    %v350 = vpack.c.bf16 %v167, %v166
    %v351 = vpack.c.bf16 %v169, %v168
    %v352 = vpack.c.bf16 %v171, %v170
    %v353 = vpack.c.bf16 %v173, %v172
    %v354 = vpack.c.bf16 %v175, %v174
    %v355 = vpack.c.bf16 %v177, %v176
    %v356 = vpack.c.bf16 %v179, %v178
    %v357 = vpack.c.bf16 %v181, %v180
    %v358 = vpack.c.bf16 %v183, %v182
    %v359 = vpack.c.bf16 %v185, %v184
    %v360 = vpack.c.bf16 %v187, %v186
    %v361 = vpack.c.bf16 %v189, %v188
    %v362 = vpack.c.bf16 %v191, %v190
    %v363 = vpack.c.bf16 %v193, %v192
    %v364 = vpack.c.bf16 %v195, %v194
    %v365 = vpack.c.bf16 %v197, %v196
    %v366 = vpack.c.bf16 %v199, %v198
    %v367 = vpack.c.bf16 %v201, %v200
    %v368 = vpack.c.bf16 %v203, %v202
    %v369 = vpack.c.bf16 %v205, %v204
    %v370 = vpack.c.bf16 %v207, %v206
    %v371 = vpack.c.bf16 %v209, %v208
    %v372 = vpack.c.bf16 %v211, %v210
    %v373 = vpack.c.bf16 %v213, %v212
    %v374 = vpack.c.bf16 %v215, %v214
    %v375 = vpack.c.bf16 %v217, %v216
    %v376 = vpack.c.bf16 %v219, %v218
    %v377 = vpack.c.bf16 %v221, %v220
    %v378 = vpack.c.bf16 %v223, %v222
    %v379 = vpack.c.bf16 %v225, %v224
    %v380 = vpack.c.bf16 %v227, %v226
    %v381 = vpack.c.bf16 %v229, %v228
    %v382 = vpack.c.bf16 %v231, %v230
    %v383 = vpack.c.bf16 %v233, %v232
    %v384 = vpack.c.bf16 %v235, %v234
    %v385 = vpack.c.bf16 %v237, %v236
    %v386 = vpack.c.bf16 %v239, %v238
    %v387 = vpack.c.bf16 %v241, %v240
    %v388 = vpack.c.bf16 %v243, %v242
    %v389 = vpack.c.bf16 %v245, %v244
    %v390 = vpack.c.bf16 %v247, %v246
    %v391 = vpack.c.bf16 %v249, %v248
    %v392 = vpack.c.bf16 %v251, %v250
    %v393 = vpack.c.bf16 %v253, %v252
    %v394 = vpack.c.bf16 %v255, %v254
    %v395 = vpack.c.bf16 %v257, %v256
    %v396 = vpack.c.bf16 %v259, %v258
    %v397 = vpack.c.bf16 %v261, %v260
    %v398 = vpack.c.bf16 %v263, %v262
    %v399 = vpack.c.bf16 %v265, %v264
    %v400 = vpack.c.bf16 %v267, %v266
    %v401 = vpack.c.bf16 %v269, %v268
    %v402 = vpack.c.bf16 %v271, %v270
    %v403 = vpack.c.bf16 %v273, %v272
    %v404 = vpack.c.bf16 %v275, %v274
    %v405 = vpack.c.bf16 %v277, %v276
    %v406 = vld [vmem:[%s1] sm:$0xf]
    %v407 = vld [vmem:[%s1 + $0x4] sm:$0xf]
    %v408 = vld [vmem:[%s2] sm:$0x1]
    %v410 = vperm.slane %v408, 0
    %v414 = vunpack.c.l.b16 %v406
    %v415 = vunpack.c.l.b16 %v407
    %v416 = vpack.c.b16 %v415, %v414
    %vm418 = vcmask 130048
    %v420 = vsel %vm418, %v278, 0
    %v423 = vsel %vm418, %v279, 0
    %v426 = vsel %vm418, %v280, 0
    %v429 = vsel %vm418, %v281, 0
    %v432 = vsel %vm418, %v282, 0
    %v435 = vsel %vm418, %v283, 0
    %v438 = vsel %vm418, %v284, 0
    %v441 = vsel %vm418, %v285, 0
    %v444 = vsel %vm418, %v286, 0
    %v447 = vsel %vm418, %v287, 0
    %v450 = vsel %vm418, %v288, 0
    %v453 = vsel %vm418, %v289, 0
    %v456 = vsel %vm418, %v290, 0
    %v459 = vsel %vm418, %v291, 0
    %v462 = vsel %vm418, %v292, 0
    %v465 = vsel %vm418, %v293, 0
    %v468 = vsel %vm418, %v294, 0
    %v471 = vsel %vm418, %v295, 0
    %v474 = vsel %vm418, %v296, 0
    %v477 = vsel %vm418, %v297, 0
    %v480 = vsel %vm418, %v298, 0
    %v483 = vsel %vm418, %v299, 0
    %v486 = vsel %vm418, %v300, 0
    %v489 = vsel %vm418, %v301, 0
    %v492 = vsel %vm418, %v302, 0
    %v495 = vsel %vm418, %v303, 0
    %v498 = vsel %vm418, %v304, 0
    %v501 = vsel %vm418, %v305, 0
    %v504 = vsel %vm418, %v306, 0
    %v507 = vsel %vm418, %v307, 0
    %v510 = vsel %vm418, %v308, 0
    %v513 = vsel %vm418, %v309, 0
    %v516 = vsel %vm418, %v310, 0
    %v519 = vsel %vm418, %v311, 0
    %v522 = vsel %vm418, %v312, 0
    %v525 = vsel %vm418, %v313, 0
    %v528 = vsel %vm418, %v314, 0
    %v531 = vsel %vm418, %v315, 0
    %v534 = vsel %vm418, %v316, 0
    %v537 = vsel %vm418, %v317, 0
    %v540 = vsel %vm418, %v318, 0
    %v543 = vsel %vm418, %v319, 0
    %v546 = vsel %vm418, %v320, 0
    %v549 = vsel %vm418, %v321, 0
    %v552 = vsel %vm418, %v322, 0
    %v555 = vsel %vm418, %v323, 0
    %v558 = vsel %vm418, %v324, 0
    %v561 = vsel %vm418, %v325, 0
    %v564 = vsel %vm418, %v326, 0
    %v567 = vsel %vm418, %v327, 0
    %v570 = vsel %vm418, %v328, 0
    %v573 = vsel %vm418, %v329, 0
    %v576 = vsel %vm418, %v330, 0
    %v579 = vsel %vm418, %v331, 0
    %v582 = vsel %vm418, %v332, 0
    %v585 = vsel %vm418, %v333, 0
    %v588 = vsel %vm418, %v334, 0
    %v591 = vsel %vm418, %v335, 0
    %v594 = vsel %vm418, %v336, 0
    %v597 = vsel %vm418, %v337, 0
    %v600 = vsel %vm418, %v338, 0
    %v603 = vsel %vm418, %v339, 0
    %v606 = vsel %vm418, %v340, 0
    %v609 = vsel %vm418, %v341, 0
    %v612 = vsel %vm418, %v342, 0
    %v615 = vsel %vm418, %v343, 0
    %v618 = vsel %vm418, %v344, 0
    %v621 = vsel %vm418, %v345, 0
    %v624 = vsel %vm418, %v346, 0
    %v627 = vsel %vm418, %v347, 0
    %v630 = vsel %vm418, %v348, 0
    %v633 = vsel %vm418, %v349, 0
    %v636 = vsel %vm418, %v350, 0
    %v639 = vsel %vm418, %v351, 0
    %v642 = vsel %vm418, %v352, 0
    %v645 = vsel %vm418, %v353, 0
    %v648 = vsel %vm418, %v354, 0
    %v651 = vsel %vm418, %v355, 0
    %v654 = vsel %vm418, %v356, 0
    %v657 = vsel %vm418, %v357, 0
    %v660 = vsel %vm418, %v358, 0
    %v663 = vsel %vm418, %v359, 0
    %v666 = vsel %vm418, %v360, 0
    %v669 = vsel %vm418, %v361, 0
    %v672 = vsel %vm418, %v362, 0
    %v675 = vsel %vm418, %v363, 0
    %v678 = vsel %vm418, %v364, 0
    %v681 = vsel %vm418, %v365, 0
    %v684 = vsel %vm418, %v366, 0
    %v687 = vsel %vm418, %v367, 0
    %v690 = vsel %vm418, %v368, 0
    %v693 = vsel %vm418, %v369, 0
    %v696 = vsel %vm418, %v370, 0
    %v699 = vsel %vm418, %v371, 0
    %v702 = vsel %vm418, %v372, 0
    %v705 = vsel %vm418, %v373, 0
    %v708 = vsel %vm418, %v374, 0
    %v711 = vsel %vm418, %v375, 0
    %v714 = vsel %vm418, %v376, 0
    %v717 = vsel %vm418, %v377, 0
    %v720 = vsel %vm418, %v378, 0
    %v723 = vsel %vm418, %v379, 0
    %v726 = vsel %vm418, %v380, 0
    %v729 = vsel %vm418, %v381, 0
    %v732 = vsel %vm418, %v382, 0
    %v735 = vsel %vm418, %v383, 0
    %v738 = vsel %vm418, %v384, 0
    %v741 = vsel %vm418, %v385, 0
    %v744 = vsel %vm418, %v386, 0
    %v747 = vsel %vm418, %v387, 0
    %v750 = vsel %vm418, %v388, 0
    %v753 = vsel %vm418, %v389, 0
    %v756 = vsel %vm418, %v390, 0
    %v759 = vsel %vm418, %v391, 0
    %v762 = vsel %vm418, %v392, 0
    %v765 = vsel %vm418, %v393, 0
    %v768 = vsel %vm418, %v394, 0
    %v771 = vsel %vm418, %v395, 0
    %v774 = vsel %vm418, %v396, 0
    %v777 = vsel %vm418, %v397, 0
    %v780 = vsel %vm418, %v398, 0
    %v783 = vsel %vm418, %v399, 0
    %v786 = vsel %vm418, %v400, 0
    %v789 = vsel %vm418, %v401, 0
    %v792 = vsel %vm418, %v402, 0
    %v795 = vsel %vm418, %v403, 0
    %v798 = vsel %vm418, %v404, 0
    %v801 = vsel %vm418, %v405, 0
    %803 = vmatpush.bf16.msra.mxu0 0
    %804 = vmatpush.bf16.msra.mxu0 0
    %805 = vmatpush.bf16.msra.mxu0 0
    %806 = vmatpush.bf16.msra.mxu0 0
    %807 = vmatpush.bf16.msra.mxu0 0
    %808 = vmatpush.bf16.msra.mxu0 0
    %809 = vmatpush.bf16.msra.mxu0 0
    %810 = vmatpush.bf16.msra.mxu0 %v416
    %811 = vmatmul.bf16.gmra.mxu0 %v420
    %v812 = vpop.f32.mrf.mxu0
    %v813 = vadd.f32 %v410, %v812
    %v814 = vpop.f32.mrf.mxu0
    %v815 = vadd.f32 %v410, %v814
    %816 = vmatmul.bf16.gmra.mxu0 %v423
    %v817 = vpop.f32.mrf.mxu0
    %v818 = vadd.f32 %v410, %v817
    %v819 = vpop.f32.mrf.mxu0
    %v820 = vadd.f32 %v410, %v819
    %821 = vmatmul.bf16.gmra.mxu0 %v426
    %v822 = vpop.f32.mrf.mxu0
    %v823 = vadd.f32 %v410, %v822
    %v824 = vpop.f32.mrf.mxu0
    %v825 = vadd.f32 %v410, %v824
    %826 = vmatmul.bf16.gmra.mxu0 %v429
    %v827 = vpop.f32.mrf.mxu0
    %v828 = vadd.f32 %v410, %v827
    %v829 = vpop.f32.mrf.mxu0
    %v830 = vadd.f32 %v410, %v829
    %831 = vmatmul.bf16.gmra.mxu0 %v432
    %v832 = vpop.f32.mrf.mxu0
    %v833 = vadd.f32 %v410, %v832
    %v834 = vpop.f32.mrf.mxu0
    %v835 = vadd.f32 %v410, %v834
    %836 = vmatmul.bf16.gmra.mxu0 %v435
    %v837 = vpop.f32.mrf.mxu0
    %v838 = vadd.f32 %v410, %v837
    %v839 = vpop.f32.mrf.mxu0
    %v840 = vadd.f32 %v410, %v839
    %841 = vmatmul.bf16.gmra.mxu0 %v438
    %v842 = vpop.f32.mrf.mxu0
    %v843 = vadd.f32 %v410, %v842
    %v844 = vpop.f32.mrf.mxu0
    %v845 = vadd.f32 %v410, %v844
    %846 = vmatmul.bf16.gmra.mxu0 %v441
    %v847 = vpop.f32.mrf.mxu0
    %v848 = vadd.f32 %v410, %v847
    %v849 = vpop.f32.mrf.mxu0
    %v850 = vadd.f32 %v410, %v849
    %851 = vmatmul.bf16.gmra.mxu0 %v444
    %v852 = vpop.f32.mrf.mxu0
    %v853 = vadd.f32 %v410, %v852
    %v854 = vpop.f32.mrf.mxu0
    %v855 = vadd.f32 %v410, %v854
    %856 = vmatmul.bf16.gmra.mxu0 %v447
    %v857 = vpop.f32.mrf.mxu0
    %v858 = vadd.f32 %v410, %v857
    %v859 = vpop.f32.mrf.mxu0
    %v860 = vadd.f32 %v410, %v859
    %861 = vmatmul.bf16.gmra.mxu0 %v450
    %v862 = vpop.f32.mrf.mxu0
    %v863 = vadd.f32 %v410, %v862
    %v864 = vpop.f32.mrf.mxu0
    %v865 = vadd.f32 %v410, %v864
    %866 = vmatmul.bf16.gmra.mxu0 %v453
    %v867 = vpop.f32.mrf.mxu0
    %v868 = vadd.f32 %v410, %v867
    %v869 = vpop.f32.mrf.mxu0
    %v870 = vadd.f32 %v410, %v869
    %871 = vmatmul.bf16.gmra.mxu0 %v456
    %v872 = vpop.f32.mrf.mxu0
    %v873 = vadd.f32 %v410, %v872
    %v874 = vpop.f32.mrf.mxu0
    %v875 = vadd.f32 %v410, %v874
    %876 = vmatmul.bf16.gmra.mxu0 %v459
    %v877 = vpop.f32.mrf.mxu0
    %v878 = vadd.f32 %v410, %v877
    %v879 = vpop.f32.mrf.mxu0
    %v880 = vadd.f32 %v410, %v879
    %881 = vmatmul.bf16.gmra.mxu0 %v462
    %v882 = vpop.f32.mrf.mxu0
    %v883 = vadd.f32 %v410, %v882
    %v884 = vpop.f32.mrf.mxu0
    %v885 = vadd.f32 %v410, %v884
    %886 = vmatmul.bf16.gmra.mxu0 %v465
    %v887 = vpop.f32.mrf.mxu0
    %v888 = vadd.f32 %v410, %v887
    %v889 = vpop.f32.mrf.mxu0
    %v890 = vadd.f32 %v410, %v889
    %891 = vmatmul.bf16.gmra.mxu0 %v468
    %v892 = vpop.f32.mrf.mxu0
    %v893 = vadd.f32 %v410, %v892
    %v894 = vpop.f32.mrf.mxu0
    %v895 = vadd.f32 %v410, %v894
    %896 = vmatmul.bf16.gmra.mxu0 %v471
    %v897 = vpop.f32.mrf.mxu0
    %v898 = vadd.f32 %v410, %v897
    %v899 = vpop.f32.mrf.mxu0
    %v900 = vadd.f32 %v410, %v899
    %901 = vmatmul.bf16.gmra.mxu0 %v474
    %v902 = vpop.f32.mrf.mxu0
    %v903 = vadd.f32 %v410, %v902
    %v904 = vpop.f32.mrf.mxu0
    %v905 = vadd.f32 %v410, %v904
    %906 = vmatmul.bf16.gmra.mxu0 %v477
    %v907 = vpop.f32.mrf.mxu0
    %v908 = vadd.f32 %v410, %v907
    %v909 = vpop.f32.mrf.mxu0
    %v910 = vadd.f32 %v410, %v909
    %911 = vmatmul.bf16.gmra.mxu0 %v480
    %v912 = vpop.f32.mrf.mxu0
    %v913 = vadd.f32 %v410, %v912
    %v914 = vpop.f32.mrf.mxu0
    %v915 = vadd.f32 %v410, %v914
    %916 = vmatmul.bf16.gmra.mxu0 %v483
    %v917 = vpop.f32.mrf.mxu0
    %v918 = vadd.f32 %v410, %v917
    %v919 = vpop.f32.mrf.mxu0
    %v920 = vadd.f32 %v410, %v919
    %921 = vmatmul.bf16.gmra.mxu0 %v486
    %v922 = vpop.f32.mrf.mxu0
    %v923 = vadd.f32 %v410, %v922
    %v924 = vpop.f32.mrf.mxu0
    %v925 = vadd.f32 %v410, %v924
    %926 = vmatmul.bf16.gmra.mxu0 %v489
    %v927 = vpop.f32.mrf.mxu0
    %v928 = vadd.f32 %v410, %v927
    %v929 = vpop.f32.mrf.mxu0
    %v930 = vadd.f32 %v410, %v929
    %931 = vmatmul.bf16.gmra.mxu0 %v492
    %v932 = vpop.f32.mrf.mxu0
    %v933 = vadd.f32 %v410, %v932
    %v934 = vpop.f32.mrf.mxu0
    %v935 = vadd.f32 %v410, %v934
    %936 = vmatmul.bf16.gmra.mxu0 %v495
    %v937 = vpop.f32.mrf.mxu0
    %v938 = vadd.f32 %v410, %v937
    %v939 = vpop.f32.mrf.mxu0
    %v940 = vadd.f32 %v410, %v939
    %941 = vmatmul.bf16.gmra.mxu0 %v498
    %v942 = vpop.f32.mrf.mxu0
    %v943 = vadd.f32 %v410, %v942
    %v944 = vpop.f32.mrf.mxu0
    %v945 = vadd.f32 %v410, %v944
    %946 = vmatmul.bf16.gmra.mxu0 %v501
    %v947 = vpop.f32.mrf.mxu0
    %v948 = vadd.f32 %v410, %v947
    %v949 = vpop.f32.mrf.mxu0
    %v950 = vadd.f32 %v410, %v949
    %951 = vmatmul.bf16.gmra.mxu0 %v504
    %v952 = vpop.f32.mrf.mxu0
    %v953 = vadd.f32 %v410, %v952
    %v954 = vpop.f32.mrf.mxu0
    %v955 = vadd.f32 %v410, %v954
    %956 = vmatmul.bf16.gmra.mxu0 %v507
    %v957 = vpop.f32.mrf.mxu0
    %v958 = vadd.f32 %v410, %v957
    %v959 = vpop.f32.mrf.mxu0
    %v960 = vadd.f32 %v410, %v959
    %961 = vmatmul.bf16.gmra.mxu0 %v510
    %v962 = vpop.f32.mrf.mxu0
    %v963 = vadd.f32 %v410, %v962
    %v964 = vpop.f32.mrf.mxu0
    %v965 = vadd.f32 %v410, %v964
    %966 = vmatmul.bf16.gmra.mxu0 %v513
    %v967 = vpop.f32.mrf.mxu0
    %v968 = vadd.f32 %v410, %v967
    %v969 = vpop.f32.mrf.mxu0
    %v970 = vadd.f32 %v410, %v969
    %971 = vmatmul.bf16.gmra.mxu0 %v516
    %v972 = vpop.f32.mrf.mxu0
    %v973 = vadd.f32 %v410, %v972
    %v974 = vpop.f32.mrf.mxu0
    %v975 = vadd.f32 %v410, %v974
    %976 = vmatmul.bf16.gmra.mxu0 %v519
    %v977 = vpop.f32.mrf.mxu0
    %v978 = vadd.f32 %v410, %v977
    %v979 = vpop.f32.mrf.mxu0
    %v980 = vadd.f32 %v410, %v979
    %981 = vmatmul.bf16.gmra.mxu0 %v522
    %v982 = vpop.f32.mrf.mxu0
    %v983 = vadd.f32 %v410, %v982
    %v984 = vpop.f32.mrf.mxu0
    %v985 = vadd.f32 %v410, %v984
    %986 = vmatmul.bf16.gmra.mxu0 %v525
    %v987 = vpop.f32.mrf.mxu0
    %v988 = vadd.f32 %v410, %v987
    %v989 = vpop.f32.mrf.mxu0
    %v990 = vadd.f32 %v410, %v989
    %991 = vmatmul.bf16.gmra.mxu0 %v528
    %v992 = vpop.f32.mrf.mxu0
    %v993 = vadd.f32 %v410, %v992
    %v994 = vpop.f32.mrf.mxu0
    %v995 = vadd.f32 %v410, %v994
    %996 = vmatmul.bf16.gmra.mxu0 %v531
    %v997 = vpop.f32.mrf.mxu0
    %v998 = vadd.f32 %v410, %v997
    %v999 = vpop.f32.mrf.mxu0
    %v1000 = vadd.f32 %v410, %v999
    %1001 = vmatmul.bf16.gmra.mxu0 %v534
    %v1002 = vpop.f32.mrf.mxu0
    %v1003 = vadd.f32 %v410, %v1002
    %v1004 = vpop.f32.mrf.mxu0
    %v1005 = vadd.f32 %v410, %v1004
    %1006 = vmatmul.bf16.gmra.mxu0 %v537
    %v1007 = vpop.f32.mrf.mxu0
    %v1008 = vadd.f32 %v410, %v1007
    %v1009 = vpop.f32.mrf.mxu0
    %v1010 = vadd.f32 %v410, %v1009
    %1011 = vmatmul.bf16.gmra.mxu0 %v540
    %v1012 = vpop.f32.mrf.mxu0
    %v1013 = vadd.f32 %v410, %v1012
    %v1014 = vpop.f32.mrf.mxu0
    %v1015 = vadd.f32 %v410, %v1014
    %1016 = vmatmul.bf16.gmra.mxu0 %v543
    %v1017 = vpop.f32.mrf.mxu0
    %v1018 = vadd.f32 %v410, %v1017
    %v1019 = vpop.f32.mrf.mxu0
    %v1020 = vadd.f32 %v410, %v1019
    %1021 = vmatmul.bf16.gmra.mxu0 %v546
    %v1022 = vpop.f32.mrf.mxu0
    %v1023 = vadd.f32 %v410, %v1022
    %v1024 = vpop.f32.mrf.mxu0
    %v1025 = vadd.f32 %v410, %v1024
    %1026 = vmatmul.bf16.gmra.mxu0 %v549
    %v1027 = vpop.f32.mrf.mxu0
    %v1028 = vadd.f32 %v410, %v1027
    %v1029 = vpop.f32.mrf.mxu0
    %v1030 = vadd.f32 %v410, %v1029
    %1031 = vmatmul.bf16.gmra.mxu0 %v552
    %v1032 = vpop.f32.mrf.mxu0
    %v1033 = vadd.f32 %v410, %v1032
    %v1034 = vpop.f32.mrf.mxu0
    %v1035 = vadd.f32 %v410, %v1034
    %1036 = vmatmul.bf16.gmra.mxu0 %v555
    %v1037 = vpop.f32.mrf.mxu0
    %v1038 = vadd.f32 %v410, %v1037
    %v1039 = vpop.f32.mrf.mxu0
    %v1040 = vadd.f32 %v410, %v1039
    %1041 = vmatmul.bf16.gmra.mxu0 %v558
    %v1042 = vpop.f32.mrf.mxu0
    %v1043 = vadd.f32 %v410, %v1042
    %v1044 = vpop.f32.mrf.mxu0
    %v1045 = vadd.f32 %v410, %v1044
    %1046 = vmatmul.bf16.gmra.mxu0 %v561
    %v1047 = vpop.f32.mrf.mxu0
    %v1048 = vadd.f32 %v410, %v1047
    %v1049 = vpop.f32.mrf.mxu0
    %v1050 = vadd.f32 %v410, %v1049
    %1051 = vmatmul.bf16.gmra.mxu0 %v564
    %v1052 = vpop.f32.mrf.mxu0
    %v1053 = vadd.f32 %v410, %v1052
    %v1054 = vpop.f32.mrf.mxu0
    %v1055 = vadd.f32 %v410, %v1054
    %1056 = vmatmul.bf16.gmra.mxu0 %v567
    %v1057 = vpop.f32.mrf.mxu0
    %v1058 = vadd.f32 %v410, %v1057
    %v1059 = vpop.f32.mrf.mxu0
    %v1060 = vadd.f32 %v410, %v1059
    %1061 = vmatmul.bf16.gmra.mxu0 %v570
    %v1062 = vpop.f32.mrf.mxu0
    %v1063 = vadd.f32 %v410, %v1062
    %v1064 = vpop.f32.mrf.mxu0
    %v1065 = vadd.f32 %v410, %v1064
    %1066 = vmatmul.bf16.gmra.mxu0 %v573
    %v1067 = vpop.f32.mrf.mxu0
    %v1068 = vadd.f32 %v410, %v1067
    %v1069 = vpop.f32.mrf.mxu0
    %v1070 = vadd.f32 %v410, %v1069
    %1071 = vmatmul.bf16.gmra.mxu0 %v576
    %v1072 = vpop.f32.mrf.mxu0
    %v1073 = vadd.f32 %v410, %v1072
    %v1074 = vpop.f32.mrf.mxu0
    %v1075 = vadd.f32 %v410, %v1074
    %1076 = vmatmul.bf16.gmra.mxu0 %v579
    %v1077 = vpop.f32.mrf.mxu0
    %v1078 = vadd.f32 %v410, %v1077
    %v1079 = vpop.f32.mrf.mxu0
    %v1080 = vadd.f32 %v410, %v1079
    %1081 = vmatmul.bf16.gmra.mxu0 %v582
    %v1082 = vpop.f32.mrf.mxu0
    %v1083 = vadd.f32 %v410, %v1082
    %v1084 = vpop.f32.mrf.mxu0
    %v1085 = vadd.f32 %v410, %v1084
    %1086 = vmatmul.bf16.gmra.mxu0 %v585
    %v1087 = vpop.f32.mrf.mxu0
    %v1088 = vadd.f32 %v410, %v1087
    %v1089 = vpop.f32.mrf.mxu0
    %v1090 = vadd.f32 %v410, %v1089
    %1091 = vmatmul.bf16.gmra.mxu0 %v588
    %v1092 = vpop.f32.mrf.mxu0
    %v1093 = vadd.f32 %v410, %v1092
    %v1094 = vpop.f32.mrf.mxu0
    %v1095 = vadd.f32 %v410, %v1094
    %1096 = vmatmul.bf16.gmra.mxu0 %v591
    %v1097 = vpop.f32.mrf.mxu0
    %v1098 = vadd.f32 %v410, %v1097
    %v1099 = vpop.f32.mrf.mxu0
    %v1100 = vadd.f32 %v410, %v1099
    %1101 = vmatmul.bf16.gmra.mxu0 %v594
    %v1102 = vpop.f32.mrf.mxu0
    %v1103 = vadd.f32 %v410, %v1102
    %v1104 = vpop.f32.mrf.mxu0
    %v1105 = vadd.f32 %v410, %v1104
    %1106 = vmatmul.bf16.gmra.mxu0 %v597
    %v1107 = vpop.f32.mrf.mxu0
    %v1108 = vadd.f32 %v410, %v1107
    %v1109 = vpop.f32.mrf.mxu0
    %v1110 = vadd.f32 %v410, %v1109
    %1111 = vmatmul.bf16.gmra.mxu0 %v600
    %v1112 = vpop.f32.mrf.mxu0
    %v1113 = vadd.f32 %v410, %v1112
    %v1114 = vpop.f32.mrf.mxu0
    %v1115 = vadd.f32 %v410, %v1114
    %1116 = vmatmul.bf16.gmra.mxu0 %v603
    %v1117 = vpop.f32.mrf.mxu0
    %v1118 = vadd.f32 %v410, %v1117
    %v1119 = vpop.f32.mrf.mxu0
    %v1120 = vadd.f32 %v410, %v1119
    %1121 = vmatmul.bf16.gmra.mxu0 %v606
    %v1122 = vpop.f32.mrf.mxu0
    %v1123 = vadd.f32 %v410, %v1122
    %v1124 = vpop.f32.mrf.mxu0
    %v1125 = vadd.f32 %v410, %v1124
    %1126 = vmatmul.bf16.gmra.mxu0 %v609
    %v1127 = vpop.f32.mrf.mxu0
    %v1128 = vadd.f32 %v410, %v1127
    %v1129 = vpop.f32.mrf.mxu0
    %v1130 = vadd.f32 %v410, %v1129
    %1131 = vmatmul.bf16.gmra.mxu0 %v612
    %v1132 = vpop.f32.mrf.mxu0
    %v1133 = vadd.f32 %v410, %v1132
    %v1134 = vpop.f32.mrf.mxu0
    %v1135 = vadd.f32 %v410, %v1134
    %1136 = vmatmul.bf16.gmra.mxu0 %v615
    %v1137 = vpop.f32.mrf.mxu0
    %v1138 = vadd.f32 %v410, %v1137
    %v1139 = vpop.f32.mrf.mxu0
    %v1140 = vadd.f32 %v410, %v1139
    %1141 = vmatmul.bf16.gmra.mxu0 %v618
    %v1142 = vpop.f32.mrf.mxu0
    %v1143 = vadd.f32 %v410, %v1142
    %v1144 = vpop.f32.mrf.mxu0
    %v1145 = vadd.f32 %v410, %v1144
    %1146 = vmatmul.bf16.gmra.mxu0 %v621
    %v1147 = vpop.f32.mrf.mxu0
    %v1148 = vadd.f32 %v410, %v1147
    %v1149 = vpop.f32.mrf.mxu0
    %v1150 = vadd.f32 %v410, %v1149
    %1151 = vmatmul.bf16.gmra.mxu0 %v624
    %v1152 = vpop.f32.mrf.mxu0
    %v1153 = vadd.f32 %v410, %v1152
    %v1154 = vpop.f32.mrf.mxu0
    %v1155 = vadd.f32 %v410, %v1154
    %1156 = vmatmul.bf16.gmra.mxu0 %v627
    %v1157 = vpop.f32.mrf.mxu0
    %v1158 = vadd.f32 %v410, %v1157
    %v1159 = vpop.f32.mrf.mxu0
    %v1160 = vadd.f32 %v410, %v1159
    %1161 = vmatmul.bf16.gmra.mxu0 %v630
    %v1162 = vpop.f32.mrf.mxu0
    %v1163 = vadd.f32 %v410, %v1162
    %v1164 = vpop.f32.mrf.mxu0
    %v1165 = vadd.f32 %v410, %v1164
    %1166 = vmatmul.bf16.gmra.mxu0 %v633
    %v1167 = vpop.f32.mrf.mxu0
    %v1168 = vadd.f32 %v410, %v1167
    %v1169 = vpop.f32.mrf.mxu0
    %v1170 = vadd.f32 %v410, %v1169
    %1171 = vmatmul.bf16.gmra.mxu0 %v636
    %v1172 = vpop.f32.mrf.mxu0
    %v1173 = vadd.f32 %v410, %v1172
    %v1174 = vpop.f32.mrf.mxu0
    %v1175 = vadd.f32 %v410, %v1174
    %1176 = vmatmul.bf16.gmra.mxu0 %v639
    %v1177 = vpop.f32.mrf.mxu0
    %v1178 = vadd.f32 %v410, %v1177
    %v1179 = vpop.f32.mrf.mxu0
    %v1180 = vadd.f32 %v410, %v1179
    %1181 = vmatmul.bf16.gmra.mxu0 %v642
    %v1182 = vpop.f32.mrf.mxu0
    %v1183 = vadd.f32 %v410, %v1182
    %v1184 = vpop.f32.mrf.mxu0
    %v1185 = vadd.f32 %v410, %v1184
    %1186 = vmatmul.bf16.gmra.mxu0 %v645
    %v1187 = vpop.f32.mrf.mxu0
    %v1188 = vadd.f32 %v410, %v1187
    %v1189 = vpop.f32.mrf.mxu0
    %v1190 = vadd.f32 %v410, %v1189
    %1191 = vmatmul.bf16.gmra.mxu0 %v648
    %v1192 = vpop.f32.mrf.mxu0
    %v1193 = vadd.f32 %v410, %v1192
    %v1194 = vpop.f32.mrf.mxu0
    %v1195 = vadd.f32 %v410, %v1194
    %1196 = vmatmul.bf16.gmra.mxu0 %v651
    %v1197 = vpop.f32.mrf.mxu0
    %v1198 = vadd.f32 %v410, %v1197
    %v1199 = vpop.f32.mrf.mxu0
    %v1200 = vadd.f32 %v410, %v1199
    %1201 = vmatmul.bf16.gmra.mxu0 %v654
    %v1202 = vpop.f32.mrf.mxu0
    %v1203 = vadd.f32 %v410, %v1202
    %v1204 = vpop.f32.mrf.mxu0
    %v1205 = vadd.f32 %v410, %v1204
    %1206 = vmatmul.bf16.gmra.mxu0 %v657
    %v1207 = vpop.f32.mrf.mxu0
    %v1208 = vadd.f32 %v410, %v1207
    %v1209 = vpop.f32.mrf.mxu0
    %v1210 = vadd.f32 %v410, %v1209
    %1211 = vmatmul.bf16.gmra.mxu0 %v660
    %v1212 = vpop.f32.mrf.mxu0
    %v1213 = vadd.f32 %v410, %v1212
    %v1214 = vpop.f32.mrf.mxu0
    %v1215 = vadd.f32 %v410, %v1214
    %1216 = vmatmul.bf16.gmra.mxu0 %v663
    %v1217 = vpop.f32.mrf.mxu0
    %v1218 = vadd.f32 %v410, %v1217
    %v1219 = vpop.f32.mrf.mxu0
    %v1220 = vadd.f32 %v410, %v1219
    %1221 = vmatmul.bf16.gmra.mxu0 %v666
    %v1222 = vpop.f32.mrf.mxu0
    %v1223 = vadd.f32 %v410, %v1222
    %v1224 = vpop.f32.mrf.mxu0
    %v1225 = vadd.f32 %v410, %v1224
    %1226 = vmatmul.bf16.gmra.mxu0 %v669
    %v1227 = vpop.f32.mrf.mxu0
    %v1228 = vadd.f32 %v410, %v1227
    %v1229 = vpop.f32.mrf.mxu0
    %v1230 = vadd.f32 %v410, %v1229
    %1231 = vmatmul.bf16.gmra.mxu0 %v672
    %v1232 = vpop.f32.mrf.mxu0
    %v1233 = vadd.f32 %v410, %v1232
    %v1234 = vpop.f32.mrf.mxu0
    %v1235 = vadd.f32 %v410, %v1234
    %1236 = vmatmul.bf16.gmra.mxu0 %v675
    %v1237 = vpop.f32.mrf.mxu0
    %v1238 = vadd.f32 %v410, %v1237
    %v1239 = vpop.f32.mrf.mxu0
    %v1240 = vadd.f32 %v410, %v1239
    %1241 = vmatmul.bf16.gmra.mxu0 %v678
    %v1242 = vpop.f32.mrf.mxu0
    %v1243 = vadd.f32 %v410, %v1242
    %v1244 = vpop.f32.mrf.mxu0
    %v1245 = vadd.f32 %v410, %v1244
    %1246 = vmatmul.bf16.gmra.mxu0 %v681
    %v1247 = vpop.f32.mrf.mxu0
    %v1248 = vadd.f32 %v410, %v1247
    %v1249 = vpop.f32.mrf.mxu0
    %v1250 = vadd.f32 %v410, %v1249
    %1251 = vmatmul.bf16.gmra.mxu0 %v684
    %v1252 = vpop.f32.mrf.mxu0
    %v1253 = vadd.f32 %v410, %v1252
    %v1254 = vpop.f32.mrf.mxu0
    %v1255 = vadd.f32 %v410, %v1254
    %1256 = vmatmul.bf16.gmra.mxu0 %v687
    %v1257 = vpop.f32.mrf.mxu0
    %v1258 = vadd.f32 %v410, %v1257
    %v1259 = vpop.f32.mrf.mxu0
    %v1260 = vadd.f32 %v410, %v1259
    %1261 = vmatmul.bf16.gmra.mxu0 %v690
    %v1262 = vpop.f32.mrf.mxu0
    %v1263 = vadd.f32 %v410, %v1262
    %v1264 = vpop.f32.mrf.mxu0
    %v1265 = vadd.f32 %v410, %v1264
    %1266 = vmatmul.bf16.gmra.mxu0 %v693
    %v1267 = vpop.f32.mrf.mxu0
    %v1268 = vadd.f32 %v410, %v1267
    %v1269 = vpop.f32.mrf.mxu0
    %v1270 = vadd.f32 %v410, %v1269
    %1271 = vmatmul.bf16.gmra.mxu0 %v696
    %v1272 = vpop.f32.mrf.mxu0
    %v1273 = vadd.f32 %v410, %v1272
    %v1274 = vpop.f32.mrf.mxu0
    %v1275 = vadd.f32 %v410, %v1274
    %1276 = vmatmul.bf16.gmra.mxu0 %v699
    %v1277 = vpop.f32.mrf.mxu0
    %v1278 = vadd.f32 %v410, %v1277
    %v1279 = vpop.f32.mrf.mxu0
    %v1280 = vadd.f32 %v410, %v1279
    %1281 = vmatmul.bf16.gmra.mxu0 %v702
    %v1282 = vpop.f32.mrf.mxu0
    %v1283 = vadd.f32 %v410, %v1282
    %v1284 = vpop.f32.mrf.mxu0
    %v1285 = vadd.f32 %v410, %v1284
    %1286 = vmatmul.bf16.gmra.mxu0 %v705
    %v1287 = vpop.f32.mrf.mxu0
    %v1288 = vadd.f32 %v410, %v1287
    %v1289 = vpop.f32.mrf.mxu0
    %v1290 = vadd.f32 %v410, %v1289
    %1291 = vmatmul.bf16.gmra.mxu0 %v708
    %v1292 = vpop.f32.mrf.mxu0
    %v1293 = vadd.f32 %v410, %v1292
    %v1294 = vpop.f32.mrf.mxu0
    %v1295 = vadd.f32 %v410, %v1294
    %1296 = vmatmul.bf16.gmra.mxu0 %v711
    %v1297 = vpop.f32.mrf.mxu0
    %v1298 = vadd.f32 %v410, %v1297
    %v1299 = vpop.f32.mrf.mxu0
    %v1300 = vadd.f32 %v410, %v1299
    %1301 = vmatmul.bf16.gmra.mxu0 %v714
    %v1302 = vpop.f32.mrf.mxu0
    %v1303 = vadd.f32 %v410, %v1302
    %v1304 = vpop.f32.mrf.mxu0
    %v1305 = vadd.f32 %v410, %v1304
    %1306 = vmatmul.bf16.gmra.mxu0 %v717
    %v1307 = vpop.f32.mrf.mxu0
    %v1308 = vadd.f32 %v410, %v1307
    %v1309 = vpop.f32.mrf.mxu0
    %v1310 = vadd.f32 %v410, %v1309
    %1311 = vmatmul.bf16.gmra.mxu0 %v720
    %v1312 = vpop.f32.mrf.mxu0
    %v1313 = vadd.f32 %v410, %v1312
    %v1314 = vpop.f32.mrf.mxu0
    %v1315 = vadd.f32 %v410, %v1314
    %1316 = vmatmul.bf16.gmra.mxu0 %v723
    %v1317 = vpop.f32.mrf.mxu0
    %v1318 = vadd.f32 %v410, %v1317
    %v1319 = vpop.f32.mrf.mxu0
    %v1320 = vadd.f32 %v410, %v1319
    %1321 = vmatmul.bf16.gmra.mxu0 %v726
    %v1322 = vpop.f32.mrf.mxu0
    %v1323 = vadd.f32 %v410, %v1322
    %v1324 = vpop.f32.mrf.mxu0
    %v1325 = vadd.f32 %v410, %v1324
    %1326 = vmatmul.bf16.gmra.mxu0 %v729
    %v1327 = vpop.f32.mrf.mxu0
    %v1328 = vadd.f32 %v410, %v1327
    %v1329 = vpop.f32.mrf.mxu0
    %v1330 = vadd.f32 %v410, %v1329
    %1331 = vmatmul.bf16.gmra.mxu0 %v732
    %v1332 = vpop.f32.mrf.mxu0
    %v1333 = vadd.f32 %v410, %v1332
    %v1334 = vpop.f32.mrf.mxu0
    %v1335 = vadd.f32 %v410, %v1334
    %1336 = vmatmul.bf16.gmra.mxu0 %v735
    %v1337 = vpop.f32.mrf.mxu0
    %v1338 = vadd.f32 %v410, %v1337
    %v1339 = vpop.f32.mrf.mxu0
    %v1340 = vadd.f32 %v410, %v1339
    %1341 = vmatmul.bf16.gmra.mxu0 %v738
    %v1342 = vpop.f32.mrf.mxu0
    %v1343 = vadd.f32 %v410, %v1342
    %v1344 = vpop.f32.mrf.mxu0
    %v1345 = vadd.f32 %v410, %v1344
    %1346 = vmatmul.bf16.gmra.mxu0 %v741
    %v1347 = vpop.f32.mrf.mxu0
    %v1348 = vadd.f32 %v410, %v1347
    %v1349 = vpop.f32.mrf.mxu0
    %v1350 = vadd.f32 %v410, %v1349
    %1351 = vmatmul.bf16.gmra.mxu0 %v744
    %v1352 = vpop.f32.mrf.mxu0
    %v1353 = vadd.f32 %v410, %v1352
    %v1354 = vpop.f32.mrf.mxu0
    %v1355 = vadd.f32 %v410, %v1354
    %1356 = vmatmul.bf16.gmra.mxu0 %v747
    %v1357 = vpop.f32.mrf.mxu0
    %v1358 = vadd.f32 %v410, %v1357
    %v1359 = vpop.f32.mrf.mxu0
    %v1360 = vadd.f32 %v410, %v1359
    %1361 = vmatmul.bf16.gmra.mxu0 %v750
    %v1362 = vpop.f32.mrf.mxu0
    %v1363 = vadd.f32 %v410, %v1362
    %v1364 = vpop.f32.mrf.mxu0
    %v1365 = vadd.f32 %v410, %v1364
    %1366 = vmatmul.bf16.gmra.mxu0 %v753
    %v1367 = vpop.f32.mrf.mxu0
    %v1368 = vadd.f32 %v410, %v1367
    %v1369 = vpop.f32.mrf.mxu0
    %v1370 = vadd.f32 %v410, %v1369
    %1371 = vmatmul.bf16.gmra.mxu0 %v756
    %v1372 = vpop.f32.mrf.mxu0
    %v1373 = vadd.f32 %v410, %v1372
    %v1374 = vpop.f32.mrf.mxu0
    %v1375 = vadd.f32 %v410, %v1374
    %1376 = vmatmul.bf16.gmra.mxu0 %v759
    %v1377 = vpop.f32.mrf.mxu0
    %v1378 = vadd.f32 %v410, %v1377
    %v1379 = vpop.f32.mrf.mxu0
    %v1380 = vadd.f32 %v410, %v1379
    %1381 = vmatmul.bf16.gmra.mxu0 %v762
    %v1382 = vpop.f32.mrf.mxu0
    %v1383 = vadd.f32 %v410, %v1382
    %v1384 = vpop.f32.mrf.mxu0
    %v1385 = vadd.f32 %v410, %v1384
    %1386 = vmatmul.bf16.gmra.mxu0 %v765
    %v1387 = vpop.f32.mrf.mxu0
    %v1388 = vadd.f32 %v410, %v1387
    %v1389 = vpop.f32.mrf.mxu0
    %v1390 = vadd.f32 %v410, %v1389
    %1391 = vmatmul.bf16.gmra.mxu0 %v768
    %v1392 = vpop.f32.mrf.mxu0
    %v1393 = vadd.f32 %v410, %v1392
    %v1394 = vpop.f32.mrf.mxu0
    %v1395 = vadd.f32 %v410, %v1394
    %1396 = vmatmul.bf16.gmra.mxu0 %v771
    %v1397 = vpop.f32.mrf.mxu0
    %v1398 = vadd.f32 %v410, %v1397
    %v1399 = vpop.f32.mrf.mxu0
    %v1400 = vadd.f32 %v410, %v1399
    %1401 = vmatmul.bf16.gmra.mxu0 %v774
    %v1402 = vpop.f32.mrf.mxu0
    %v1403 = vadd.f32 %v410, %v1402
    %v1404 = vpop.f32.mrf.mxu0
    %v1405 = vadd.f32 %v410, %v1404
    %1406 = vmatmul.bf16.gmra.mxu0 %v777
    %v1407 = vpop.f32.mrf.mxu0
    %v1408 = vadd.f32 %v410, %v1407
    %v1409 = vpop.f32.mrf.mxu0
    %v1410 = vadd.f32 %v410, %v1409
    %1411 = vmatmul.bf16.gmra.mxu0 %v780
    %v1412 = vpop.f32.mrf.mxu0
    %v1413 = vadd.f32 %v410, %v1412
    %v1414 = vpop.f32.mrf.mxu0
    %v1415 = vadd.f32 %v410, %v1414
    %1416 = vmatmul.bf16.gmra.mxu0 %v783
    %v1417 = vpop.f32.mrf.mxu0
    %v1418 = vadd.f32 %v410, %v1417
    %v1419 = vpop.f32.mrf.mxu0
    %v1420 = vadd.f32 %v410, %v1419
    %1421 = vmatmul.bf16.gmra.mxu0 %v786
    %v1422 = vpop.f32.mrf.mxu0
    %v1423 = vadd.f32 %v410, %v1422
    %v1424 = vpop.f32.mrf.mxu0
    %v1425 = vadd.f32 %v410, %v1424
    %1426 = vmatmul.bf16.gmra.mxu0 %v789
    %v1427 = vpop.f32.mrf.mxu0
    %v1428 = vadd.f32 %v410, %v1427
    %v1429 = vpop.f32.mrf.mxu0
    %v1430 = vadd.f32 %v410, %v1429
    %1431 = vmatmul.bf16.gmra.mxu0 %v792
    %v1432 = vpop.f32.mrf.mxu0
    %v1433 = vadd.f32 %v410, %v1432
    %v1434 = vpop.f32.mrf.mxu0
    %v1435 = vadd.f32 %v410, %v1434
    %1436 = vmatmul.bf16.gmra.mxu0 %v795
    %v1437 = vpop.f32.mrf.mxu0
    %v1438 = vadd.f32 %v410, %v1437
    %v1439 = vpop.f32.mrf.mxu0
    %v1440 = vadd.f32 %v410, %v1439
    %1441 = vmatmul.bf16.gmra.mxu0 %v798
    %v1442 = vpop.f32.mrf.mxu0
    %v1443 = vadd.f32 %v410, %v1442
    %v1444 = vpop.f32.mrf.mxu0
    %v1445 = vadd.f32 %v410, %v1444
    %1446 = vmatmul.bf16.gmra.mxu0 %v801
    %v1447 = vpop.f32.mrf.mxu0
    %v1448 = vadd.f32 %v410, %v1447
    %v1449 = vpop.f32.mrf.mxu0
    %v1450 = vadd.f32 %v410, %v1449
    %1451 = vdwg.mxu0
    %v1452 = vmax.f32 %v813, 0.0
    %v1453 = vmax.f32 %v815, 0.0
    %v1454 = vmax.f32 %v818, 0.0
    %v1455 = vmax.f32 %v820, 0.0
    %v1456 = vmax.f32 %v823, 0.0
    %v1457 = vmax.f32 %v825, 0.0
    %v1458 = vmax.f32 %v828, 0.0
    %v1459 = vmax.f32 %v830, 0.0
    %v1460 = vmax.f32 %v833, 0.0
    %v1461 = vmax.f32 %v835, 0.0
    %v1462 = vmax.f32 %v838, 0.0
    %v1463 = vmax.f32 %v840, 0.0
    %v1464 = vmax.f32 %v843, 0.0
    %v1465 = vmax.f32 %v845, 0.0
    %v1466 = vmax.f32 %v848, 0.0
    %v1467 = vmax.f32 %v850, 0.0
    %v1468 = vmax.f32 %v853, 0.0
    %v1469 = vmax.f32 %v855, 0.0
    %v1470 = vmax.f32 %v858, 0.0
    %v1471 = vmax.f32 %v860, 0.0
    %v1472 = vmax.f32 %v863, 0.0
    %v1473 = vmax.f32 %v865, 0.0
    %v1474 = vmax.f32 %v868, 0.0
    %v1475 = vmax.f32 %v870, 0.0
    %v1476 = vmax.f32 %v873, 0.0
    %v1477 = vmax.f32 %v875, 0.0
    %v1478 = vmax.f32 %v878, 0.0
    %v1479 = vmax.f32 %v880, 0.0
    %v1480 = vmax.f32 %v883, 0.0
    %v1481 = vmax.f32 %v885, 0.0
    %v1482 = vmax.f32 %v888, 0.0
    %v1483 = vmax.f32 %v890, 0.0
    %v1484 = vmax.f32 %v893, 0.0
    %v1485 = vmax.f32 %v895, 0.0
    %v1486 = vmax.f32 %v898, 0.0
    %v1487 = vmax.f32 %v900, 0.0
    %v1488 = vmax.f32 %v903, 0.0
    %v1489 = vmax.f32 %v905, 0.0
    %v1490 = vmax.f32 %v908, 0.0
    %v1491 = vmax.f32 %v910, 0.0
    %v1492 = vmax.f32 %v913, 0.0
    %v1493 = vmax.f32 %v915, 0.0
    %v1494 = vmax.f32 %v918, 0.0
    %v1495 = vmax.f32 %v920, 0.0
    %v1496 = vmax.f32 %v923, 0.0
    %v1497 = vmax.f32 %v925, 0.0
    %v1498 = vmax.f32 %v928, 0.0
    %v1499 = vmax.f32 %v930, 0.0
    %v1500 = vmax.f32 %v933, 0.0
    %v1501 = vmax.f32 %v935, 0.0
    %v1502 = vmax.f32 %v938, 0.0
    %v1503 = vmax.f32 %v940, 0.0
    %v1504 = vmax.f32 %v943, 0.0
    %v1505 = vmax.f32 %v945, 0.0
    %v1506 = vmax.f32 %v948, 0.0
    %v1507 = vmax.f32 %v950, 0.0
    %v1508 = vmax.f32 %v953, 0.0
    %v1509 = vmax.f32 %v955, 0.0
    %v1510 = vmax.f32 %v958, 0.0
    %v1511 = vmax.f32 %v960, 0.0
    %v1512 = vmax.f32 %v963, 0.0
    %v1513 = vmax.f32 %v965, 0.0
    %v1514 = vmax.f32 %v968, 0.0
    %v1515 = vmax.f32 %v970, 0.0
    %v1516 = vmax.f32 %v973, 0.0
    %v1517 = vmax.f32 %v975, 0.0
    %v1518 = vmax.f32 %v978, 0.0
    %v1519 = vmax.f32 %v980, 0.0
    %v1520 = vmax.f32 %v983, 0.0
    %v1521 = vmax.f32 %v985, 0.0
    %v1522 = vmax.f32 %v988, 0.0
    %v1523 = vmax.f32 %v990, 0.0
    %v1524 = vmax.f32 %v993, 0.0
    %v1525 = vmax.f32 %v995, 0.0
    %v1526 = vmax.f32 %v998, 0.0
    %v1527 = vmax.f32 %v1000, 0.0
    %v1528 = vmax.f32 %v1003, 0.0
    %v1529 = vmax.f32 %v1005, 0.0
    %v1530 = vmax.f32 %v1008, 0.0
    %v1531 = vmax.f32 %v1010, 0.0
    %v1532 = vmax.f32 %v1013, 0.0
    %v1533 = vmax.f32 %v1015, 0.0
    %v1534 = vmax.f32 %v1018, 0.0
    %v1535 = vmax.f32 %v1020, 0.0
    %v1536 = vmax.f32 %v1023, 0.0
    %v1537 = vmax.f32 %v1025, 0.0
    %v1538 = vmax.f32 %v1028, 0.0
    %v1539 = vmax.f32 %v1030, 0.0
    %v1540 = vmax.f32 %v1033, 0.0
    %v1541 = vmax.f32 %v1035, 0.0
    %v1542 = vmax.f32 %v1038, 0.0
    %v1543 = vmax.f32 %v1040, 0.0
    %v1544 = vmax.f32 %v1043, 0.0
    %v1545 = vmax.f32 %v1045, 0.0
    %v1546 = vmax.f32 %v1048, 0.0
    %v1547 = vmax.f32 %v1050, 0.0
    %v1548 = vmax.f32 %v1053, 0.0
    %v1549 = vmax.f32 %v1055, 0.0
    %v1550 = vmax.f32 %v1058, 0.0
    %v1551 = vmax.f32 %v1060, 0.0
    %v1552 = vmax.f32 %v1063, 0.0
    %v1553 = vmax.f32 %v1065, 0.0
    %v1554 = vmax.f32 %v1068, 0.0
    %v1555 = vmax.f32 %v1070, 0.0
    %v1556 = vmax.f32 %v1073, 0.0
    %v1557 = vmax.f32 %v1075, 0.0
    %v1558 = vmax.f32 %v1078, 0.0
    %v1559 = vmax.f32 %v1080, 0.0
    %v1560 = vmax.f32 %v1083, 0.0
    %v1561 = vmax.f32 %v1085, 0.0
    %v1562 = vmax.f32 %v1088, 0.0
    %v1563 = vmax.f32 %v1090, 0.0
    %v1564 = vmax.f32 %v1093, 0.0
    %v1565 = vmax.f32 %v1095, 0.0
    %v1566 = vmax.f32 %v1098, 0.0
    %v1567 = vmax.f32 %v1100, 0.0
    %v1568 = vmax.f32 %v1103, 0.0
    %v1569 = vmax.f32 %v1105, 0.0
    %v1570 = vmax.f32 %v1108, 0.0
    %v1571 = vmax.f32 %v1110, 0.0
    %v1572 = vmax.f32 %v1113, 0.0
    %v1573 = vmax.f32 %v1115, 0.0
    %v1574 = vmax.f32 %v1118, 0.0
    %v1575 = vmax.f32 %v1120, 0.0
    %v1576 = vmax.f32 %v1123, 0.0
    %v1577 = vmax.f32 %v1125, 0.0
    %v1578 = vmax.f32 %v1128, 0.0
    %v1579 = vmax.f32 %v1130, 0.0
    %v1580 = vmax.f32 %v1133, 0.0
    %v1581 = vmax.f32 %v1135, 0.0
    %v1582 = vmax.f32 %v1138, 0.0
    %v1583 = vmax.f32 %v1140, 0.0
    %v1584 = vmax.f32 %v1143, 0.0
    %v1585 = vmax.f32 %v1145, 0.0
    %v1586 = vmax.f32 %v1148, 0.0
    %v1587 = vmax.f32 %v1150, 0.0
    %v1588 = vmax.f32 %v1153, 0.0
    %v1589 = vmax.f32 %v1155, 0.0
    %v1590 = vmax.f32 %v1158, 0.0
    %v1591 = vmax.f32 %v1160, 0.0
    %v1592 = vmax.f32 %v1163, 0.0
    %v1593 = vmax.f32 %v1165, 0.0
    %v1594 = vmax.f32 %v1168, 0.0
    %v1595 = vmax.f32 %v1170, 0.0
    %v1596 = vmax.f32 %v1173, 0.0
    %v1597 = vmax.f32 %v1175, 0.0
    %v1598 = vmax.f32 %v1178, 0.0
    %v1599 = vmax.f32 %v1180, 0.0
    %v1600 = vmax.f32 %v1183, 0.0
    %v1601 = vmax.f32 %v1185, 0.0
    %v1602 = vmax.f32 %v1188, 0.0
    %v1603 = vmax.f32 %v1190, 0.0
    %v1604 = vmax.f32 %v1193, 0.0
    %v1605 = vmax.f32 %v1195, 0.0
    %v1606 = vmax.f32 %v1198, 0.0
    %v1607 = vmax.f32 %v1200, 0.0
    %v1608 = vmax.f32 %v1203, 0.0
    %v1609 = vmax.f32 %v1205, 0.0
    %v1610 = vmax.f32 %v1208, 0.0
    %v1611 = vmax.f32 %v1210, 0.0
    %v1612 = vmax.f32 %v1213, 0.0
    %v1613 = vmax.f32 %v1215, 0.0
    %v1614 = vmax.f32 %v1218, 0.0
    %v1615 = vmax.f32 %v1220, 0.0
    %v1616 = vmax.f32 %v1223, 0.0
    %v1617 = vmax.f32 %v1225, 0.0
    %v1618 = vmax.f32 %v1228, 0.0
    %v1619 = vmax.f32 %v1230, 0.0
    %v1620 = vmax.f32 %v1233, 0.0
    %v1621 = vmax.f32 %v1235, 0.0
    %v1622 = vmax.f32 %v1238, 0.0
    %v1623 = vmax.f32 %v1240, 0.0
    %v1624 = vmax.f32 %v1243, 0.0
    %v1625 = vmax.f32 %v1245, 0.0
    %v1626 = vmax.f32 %v1248, 0.0
    %v1627 = vmax.f32 %v1250, 0.0
    %v1628 = vmax.f32 %v1253, 0.0
    %v1629 = vmax.f32 %v1255, 0.0
    %v1630 = vmax.f32 %v1258, 0.0
    %v1631 = vmax.f32 %v1260, 0.0
    %v1632 = vmax.f32 %v1263, 0.0
    %v1633 = vmax.f32 %v1265, 0.0
    %v1634 = vmax.f32 %v1268, 0.0
    %v1635 = vmax.f32 %v1270, 0.0
    %v1636 = vmax.f32 %v1273, 0.0
    %v1637 = vmax.f32 %v1275, 0.0
    %v1638 = vmax.f32 %v1278, 0.0
    %v1639 = vmax.f32 %v1280, 0.0
    %v1640 = vmax.f32 %v1283, 0.0
    %v1641 = vmax.f32 %v1285, 0.0
    %v1642 = vmax.f32 %v1288, 0.0
    %v1643 = vmax.f32 %v1290, 0.0
    %v1644 = vmax.f32 %v1293, 0.0
    %v1645 = vmax.f32 %v1295, 0.0
    %v1646 = vmax.f32 %v1298, 0.0
    %v1647 = vmax.f32 %v1300, 0.0
    %v1648 = vmax.f32 %v1303, 0.0
    %v1649 = vmax.f32 %v1305, 0.0
    %v1650 = vmax.f32 %v1308, 0.0
    %v1651 = vmax.f32 %v1310, 0.0
    %v1652 = vmax.f32 %v1313, 0.0
    %v1653 = vmax.f32 %v1315, 0.0
    %v1654 = vmax.f32 %v1318, 0.0
    %v1655 = vmax.f32 %v1320, 0.0
    %v1656 = vmax.f32 %v1323, 0.0
    %v1657 = vmax.f32 %v1325, 0.0
    %v1658 = vmax.f32 %v1328, 0.0
    %v1659 = vmax.f32 %v1330, 0.0
    %v1660 = vmax.f32 %v1333, 0.0
    %v1661 = vmax.f32 %v1335, 0.0
    %v1662 = vmax.f32 %v1338, 0.0
    %v1663 = vmax.f32 %v1340, 0.0
    %v1664 = vmax.f32 %v1343, 0.0
    %v1665 = vmax.f32 %v1345, 0.0
    %v1666 = vmax.f32 %v1348, 0.0
    %v1667 = vmax.f32 %v1350, 0.0
    %v1668 = vmax.f32 %v1353, 0.0
    %v1669 = vmax.f32 %v1355, 0.0
    %v1670 = vmax.f32 %v1358, 0.0
    %v1671 = vmax.f32 %v1360, 0.0
    %v1672 = vmax.f32 %v1363, 0.0
    %v1673 = vmax.f32 %v1365, 0.0
    %v1674 = vmax.f32 %v1368, 0.0
    %v1675 = vmax.f32 %v1370, 0.0
    %v1676 = vmax.f32 %v1373, 0.0
    %v1677 = vmax.f32 %v1375, 0.0
    %v1678 = vmax.f32 %v1378, 0.0
    %v1679 = vmax.f32 %v1380, 0.0
    %v1680 = vmax.f32 %v1383, 0.0
    %v1681 = vmax.f32 %v1385, 0.0
    %v1682 = vmax.f32 %v1388, 0.0
    %v1683 = vmax.f32 %v1390, 0.0
    %v1684 = vmax.f32 %v1393, 0.0
    %v1685 = vmax.f32 %v1395, 0.0
    %v1686 = vmax.f32 %v1398, 0.0
    %v1687 = vmax.f32 %v1400, 0.0
    %v1688 = vmax.f32 %v1403, 0.0
    %v1689 = vmax.f32 %v1405, 0.0
    %v1690 = vmax.f32 %v1408, 0.0
    %v1691 = vmax.f32 %v1410, 0.0
    %v1692 = vmax.f32 %v1413, 0.0
    %v1693 = vmax.f32 %v1415, 0.0
    %v1694 = vmax.f32 %v1418, 0.0
    %v1695 = vmax.f32 %v1420, 0.0
    %v1696 = vmax.f32 %v1423, 0.0
    %v1697 = vmax.f32 %v1425, 0.0
    %v1698 = vmax.f32 %v1428, 0.0
    %v1699 = vmax.f32 %v1430, 0.0
    %v1700 = vmax.f32 %v1433, 0.0
    %v1701 = vmax.f32 %v1435, 0.0
    %v1702 = vmax.f32 %v1438, 0.0
    %v1703 = vmax.f32 %v1440, 0.0
    %v1704 = vmax.f32 %v1443, 0.0
    %v1705 = vmax.f32 %v1445, 0.0
    %v1706 = vmax.f32 %v1448, 0.0
    %v1707 = vmax.f32 %v1450, 0.0
    %v1708 = vpack.c.bf16 %v1453, %v1452
    %v1709 = vpack.c.bf16 %v1455, %v1454
    %v1710 = vpack.c.bf16 %v1457, %v1456
    %v1711 = vpack.c.bf16 %v1459, %v1458
    %v1712 = vpack.c.bf16 %v1461, %v1460
    %v1713 = vpack.c.bf16 %v1463, %v1462
    %v1714 = vpack.c.bf16 %v1465, %v1464
    %v1715 = vpack.c.bf16 %v1467, %v1466
    %v1716 = vpack.c.bf16 %v1469, %v1468
    %v1717 = vpack.c.bf16 %v1471, %v1470
    %v1718 = vpack.c.bf16 %v1473, %v1472
    %v1719 = vpack.c.bf16 %v1475, %v1474
    %v1720 = vpack.c.bf16 %v1477, %v1476
    %v1721 = vpack.c.bf16 %v1479, %v1478
    %v1722 = vpack.c.bf16 %v1481, %v1480
    %v1723 = vpack.c.bf16 %v1483, %v1482
    %v1724 = vpack.c.bf16 %v1485, %v1484
    %v1725 = vpack.c.bf16 %v1487, %v1486
    %v1726 = vpack.c.bf16 %v1489, %v1488
    %v1727 = vpack.c.bf16 %v1491, %v1490
    %v1728 = vpack.c.bf16 %v1493, %v1492
    %v1729 = vpack.c.bf16 %v1495, %v1494
    %v1730 = vpack.c.bf16 %v1497, %v1496
    %v1731 = vpack.c.bf16 %v1499, %v1498
    %v1732 = vpack.c.bf16 %v1501, %v1500
    %v1733 = vpack.c.bf16 %v1503, %v1502
    %v1734 = vpack.c.bf16 %v1505, %v1504
    %v1735 = vpack.c.bf16 %v1507, %v1506
    %v1736 = vpack.c.bf16 %v1509, %v1508
    %v1737 = vpack.c.bf16 %v1511, %v1510
    %v1738 = vpack.c.bf16 %v1513, %v1512
    %v1739 = vpack.c.bf16 %v1515, %v1514
    %v1740 = vpack.c.bf16 %v1517, %v1516
    %v1741 = vpack.c.bf16 %v1519, %v1518
    %v1742 = vpack.c.bf16 %v1521, %v1520
    %v1743 = vpack.c.bf16 %v1523, %v1522
    %v1744 = vpack.c.bf16 %v1525, %v1524
    %v1745 = vpack.c.bf16 %v1527, %v1526
    %v1746 = vpack.c.bf16 %v1529, %v1528
    %v1747 = vpack.c.bf16 %v1531, %v1530
    %v1748 = vpack.c.bf16 %v1533, %v1532
    %v1749 = vpack.c.bf16 %v1535, %v1534
    %v1750 = vpack.c.bf16 %v1537, %v1536
    %v1751 = vpack.c.bf16 %v1539, %v1538
    %v1752 = vpack.c.bf16 %v1541, %v1540
    %v1753 = vpack.c.bf16 %v1543, %v1542
    %v1754 = vpack.c.bf16 %v1545, %v1544
    %v1755 = vpack.c.bf16 %v1547, %v1546
    %v1756 = vpack.c.bf16 %v1549, %v1548
    %v1757 = vpack.c.bf16 %v1551, %v1550
    %v1758 = vpack.c.bf16 %v1553, %v1552
    %v1759 = vpack.c.bf16 %v1555, %v1554
    %v1760 = vpack.c.bf16 %v1557, %v1556
    %v1761 = vpack.c.bf16 %v1559, %v1558
    %v1762 = vpack.c.bf16 %v1561, %v1560
    %v1763 = vpack.c.bf16 %v1563, %v1562
    %v1764 = vpack.c.bf16 %v1565, %v1564
    %v1765 = vpack.c.bf16 %v1567, %v1566
    %v1766 = vpack.c.bf16 %v1569, %v1568
    %v1767 = vpack.c.bf16 %v1571, %v1570
    %v1768 = vpack.c.bf16 %v1573, %v1572
    %v1769 = vpack.c.bf16 %v1575, %v1574
    %v1770 = vpack.c.bf16 %v1577, %v1576
    %v1771 = vpack.c.bf16 %v1579, %v1578
    %v1772 = vpack.c.bf16 %v1581, %v1580
    %v1773 = vpack.c.bf16 %v1583, %v1582
    %v1774 = vpack.c.bf16 %v1585, %v1584
    %v1775 = vpack.c.bf16 %v1587, %v1586
    %v1776 = vpack.c.bf16 %v1589, %v1588
    %v1777 = vpack.c.bf16 %v1591, %v1590
    %v1778 = vpack.c.bf16 %v1593, %v1592
    %v1779 = vpack.c.bf16 %v1595, %v1594
    %v1780 = vpack.c.bf16 %v1597, %v1596
    %v1781 = vpack.c.bf16 %v1599, %v1598
    %v1782 = vpack.c.bf16 %v1601, %v1600
    %v1783 = vpack.c.bf16 %v1603, %v1602
    %v1784 = vpack.c.bf16 %v1605, %v1604
    %v1785 = vpack.c.bf16 %v1607, %v1606
    %v1786 = vpack.c.bf16 %v1609, %v1608
    %v1787 = vpack.c.bf16 %v1611, %v1610
    %v1788 = vpack.c.bf16 %v1613, %v1612
    %v1789 = vpack.c.bf16 %v1615, %v1614
    %v1790 = vpack.c.bf16 %v1617, %v1616
    %v1791 = vpack.c.bf16 %v1619, %v1618
    %v1792 = vpack.c.bf16 %v1621, %v1620
    %v1793 = vpack.c.bf16 %v1623, %v1622
    %v1794 = vpack.c.bf16 %v1625, %v1624
    %v1795 = vpack.c.bf16 %v1627, %v1626
    %v1796 = vpack.c.bf16 %v1629, %v1628
    %v1797 = vpack.c.bf16 %v1631, %v1630
    %v1798 = vpack.c.bf16 %v1633, %v1632
    %v1799 = vpack.c.bf16 %v1635, %v1634
    %v1800 = vpack.c.bf16 %v1637, %v1636
    %v1801 = vpack.c.bf16 %v1639, %v1638
    %v1802 = vpack.c.bf16 %v1641, %v1640
    %v1803 = vpack.c.bf16 %v1643, %v1642
    %v1804 = vpack.c.bf16 %v1645, %v1644
    %v1805 = vpack.c.bf16 %v1647, %v1646
    %v1806 = vpack.c.bf16 %v1649, %v1648
    %v1807 = vpack.c.bf16 %v1651, %v1650
    %v1808 = vpack.c.bf16 %v1653, %v1652
    %v1809 = vpack.c.bf16 %v1655, %v1654
    %v1810 = vpack.c.bf16 %v1657, %v1656
    %v1811 = vpack.c.bf16 %v1659, %v1658
    %v1812 = vpack.c.bf16 %v1661, %v1660
    %v1813 = vpack.c.bf16 %v1663, %v1662
    %v1814 = vpack.c.bf16 %v1665, %v1664
    %v1815 = vpack.c.bf16 %v1667, %v1666
    %v1816 = vpack.c.bf16 %v1669, %v1668
    %v1817 = vpack.c.bf16 %v1671, %v1670
    %v1818 = vpack.c.bf16 %v1673, %v1672
    %v1819 = vpack.c.bf16 %v1675, %v1674
    %v1820 = vpack.c.bf16 %v1677, %v1676
    %v1821 = vpack.c.bf16 %v1679, %v1678
    %v1822 = vpack.c.bf16 %v1681, %v1680
    %v1823 = vpack.c.bf16 %v1683, %v1682
    %v1824 = vpack.c.bf16 %v1685, %v1684
    %v1825 = vpack.c.bf16 %v1687, %v1686
    %v1826 = vpack.c.bf16 %v1689, %v1688
    %v1827 = vpack.c.bf16 %v1691, %v1690
    %v1828 = vpack.c.bf16 %v1693, %v1692
    %v1829 = vpack.c.bf16 %v1695, %v1694
    %v1830 = vpack.c.bf16 %v1697, %v1696
    %v1831 = vpack.c.bf16 %v1699, %v1698
    %v1832 = vpack.c.bf16 %v1701, %v1700
    %v1833 = vpack.c.bf16 %v1703, %v1702
    %v1834 = vpack.c.bf16 %v1705, %v1704
    %v1835 = vpack.c.bf16 %v1707, %v1706
    %v1836 = vld [vmem:[%s3] sm:$0xf]
    %v1837 = vld [vmem:[%s3 + $0x4] sm:$0xf]
    %v1838 = vld [vmem:[%s3 + $0x8] sm:$0xf]
    %v1839 = vld [vmem:[%s3 + $0xc] sm:$0xf]
    %v1840 = vld [vmem:[%s3 + $0x10] sm:$0xf]
    %v1841 = vld [vmem:[%s3 + $0x14] sm:$0xf]
    %v1842 = vld [vmem:[%s3 + $0x18] sm:$0xf]
    %v1843 = vld [vmem:[%s3 + $0x1c] sm:$0xf]
    %v1844 = vld [vmem:[%s3 + $0x20] sm:$0xf]
    %v1845 = vld [vmem:[%s3 + $0x24] sm:$0xf]
    %v1846 = vld [vmem:[%s3 + $0x28] sm:$0xf]
    %v1847 = vld [vmem:[%s3 + $0x2c] sm:$0xf]
    %v1848 = vld [vmem:[%s3 + $0x30] sm:$0xf]
    %v1849 = vld [vmem:[%s3 + $0x34] sm:$0xf]
    %v1850 = vld [vmem:[%s3 + $0x38] sm:$0xf]
    %v1851 = vld [vmem:[%s3 + $0x3c] sm:$0xf]
    %v1852 = vld [vmem:[%s4] sm:$0x1]
    %v1854 = vperm.slane %v1852, 0
    %v1872 = vunpack.c.l.b16 %v1836
    %v1873 = vunpack.c.l.b16 %v1837
    %v1874 = vunpack.c.l.b16 %v1838
    %v1875 = vunpack.c.l.b16 %v1839
    %v1876 = vunpack.c.l.b16 %v1840
    %v1877 = vunpack.c.l.b16 %v1841
    %v1878 = vunpack.c.l.b16 %v1842
    %v1879 = vunpack.c.l.b16 %v1843
    %v1880 = vunpack.c.l.b16 %v1844
    %v1881 = vunpack.c.l.b16 %v1845
    %v1882 = vunpack.c.l.b16 %v1846
    %v1883 = vunpack.c.l.b16 %v1847
    %v1884 = vunpack.c.l.b16 %v1848
    %v1885 = vunpack.c.l.b16 %v1849
    %v1886 = vunpack.c.l.b16 %v1850
    %v1887 = vunpack.c.l.b16 %v1851
    %v1888 = vpack.c.b16 %v1873, %v1872
    %v1889 = vpack.c.b16 %v1875, %v1874
    %v1890 = vpack.c.b16 %v1877, %v1876
    %v1891 = vpack.c.b16 %v1879, %v1878
    %v1892 = vpack.c.b16 %v1881, %v1880
    %v1893 = vpack.c.b16 %v1883, %v1882
    %v1894 = vpack.c.b16 %v1885, %v1884
    %v1895 = vpack.c.b16 %v1887, %v1886
    %1904 = vmatpush.bf16.msra.mxu0 %v1895
    %1905 = vmatpush.bf16.msra.mxu0 %v1894
    %1906 = vmatpush.bf16.msra.mxu0 %v1893
    %1907 = vmatpush.bf16.msra.mxu0 %v1892
    %1908 = vmatpush.bf16.msra.mxu0 %v1891
    %1909 = vmatpush.bf16.msra.mxu0 %v1890
    %1910 = vmatpush.bf16.msra.mxu0 %v1889
    %1911 = vmatpush.bf16.msra.mxu0 %v1888
    %1912 = vmatmul.bf16.gmra.mxu0 %v1708
    %v1913 = vpop.f32.mrf.mxu0
    %v1914 = vadd.f32 %v1854, %v1913
    %v1915 = vpop.f32.mrf.mxu0
    %v1916 = vadd.f32 %v1854, %v1915
    %1917 = vmatmul.bf16.gmra.mxu0 %v1709
    %v1918 = vpop.f32.mrf.mxu0
    %v1919 = vadd.f32 %v1854, %v1918
    %v1920 = vpop.f32.mrf.mxu0
    %v1921 = vadd.f32 %v1854, %v1920
    %1922 = vmatmul.bf16.gmra.mxu0 %v1710
    %v1923 = vpop.f32.mrf.mxu0
    %v1924 = vadd.f32 %v1854, %v1923
    %v1925 = vpop.f32.mrf.mxu0
    %v1926 = vadd.f32 %v1854, %v1925
    %1927 = vmatmul.bf16.gmra.mxu0 %v1711
    %v1928 = vpop.f32.mrf.mxu0
    %v1929 = vadd.f32 %v1854, %v1928
    %v1930 = vpop.f32.mrf.mxu0
    %v1931 = vadd.f32 %v1854, %v1930
    %1932 = vmatmul.bf16.gmra.mxu0 %v1712
    %v1933 = vpop.f32.mrf.mxu0
    %v1934 = vadd.f32 %v1854, %v1933
    %v1935 = vpop.f32.mrf.mxu0
    %v1936 = vadd.f32 %v1854, %v1935
    %1937 = vmatmul.bf16.gmra.mxu0 %v1713
    %v1938 = vpop.f32.mrf.mxu0
    %v1939 = vadd.f32 %v1854, %v1938
    %v1940 = vpop.f32.mrf.mxu0
    %v1941 = vadd.f32 %v1854, %v1940
    %1942 = vmatmul.bf16.gmra.mxu0 %v1714
    %v1943 = vpop.f32.mrf.mxu0
    %v1944 = vadd.f32 %v1854, %v1943
    %v1945 = vpop.f32.mrf.mxu0
    %v1946 = vadd.f32 %v1854, %v1945
    %1947 = vmatmul.bf16.gmra.mxu0 %v1715
    %v1948 = vpop.f32.mrf.mxu0
    %v1949 = vadd.f32 %v1854, %v1948
    %v1950 = vpop.f32.mrf.mxu0
    %v1951 = vadd.f32 %v1854, %v1950
    %1952 = vmatmul.bf16.gmra.mxu0 %v1716
    %v1953 = vpop.f32.mrf.mxu0
    %v1954 = vadd.f32 %v1854, %v1953
    %v1955 = vpop.f32.mrf.mxu0
    %v1956 = vadd.f32 %v1854, %v1955
    %1957 = vmatmul.bf16.gmra.mxu0 %v1717
    %v1958 = vpop.f32.mrf.mxu0
    %v1959 = vadd.f32 %v1854, %v1958
    %v1960 = vpop.f32.mrf.mxu0
    %v1961 = vadd.f32 %v1854, %v1960
    %1962 = vmatmul.bf16.gmra.mxu0 %v1718
    %v1963 = vpop.f32.mrf.mxu0
    %v1964 = vadd.f32 %v1854, %v1963
    %v1965 = vpop.f32.mrf.mxu0
    %v1966 = vadd.f32 %v1854, %v1965
    %1967 = vmatmul.bf16.gmra.mxu0 %v1719
    %v1968 = vpop.f32.mrf.mxu0
    %v1969 = vadd.f32 %v1854, %v1968
    %v1970 = vpop.f32.mrf.mxu0
    %v1971 = vadd.f32 %v1854, %v1970
    %1972 = vmatmul.bf16.gmra.mxu0 %v1720
    %v1973 = vpop.f32.mrf.mxu0
    %v1974 = vadd.f32 %v1854, %v1973
    %v1975 = vpop.f32.mrf.mxu0
    %v1976 = vadd.f32 %v1854, %v1975
    %1977 = vmatmul.bf16.gmra.mxu0 %v1721
    %v1978 = vpop.f32.mrf.mxu0
    %v1979 = vadd.f32 %v1854, %v1978
    %v1980 = vpop.f32.mrf.mxu0
    %v1981 = vadd.f32 %v1854, %v1980
    %1982 = vmatmul.bf16.gmra.mxu0 %v1722
    %v1983 = vpop.f32.mrf.mxu0
    %v1984 = vadd.f32 %v1854, %v1983
    %v1985 = vpop.f32.mrf.mxu0
    %v1986 = vadd.f32 %v1854, %v1985
    %1987 = vmatmul.bf16.gmra.mxu0 %v1723
    %v1988 = vpop.f32.mrf.mxu0
    %v1989 = vadd.f32 %v1854, %v1988
    %v1990 = vpop.f32.mrf.mxu0
    %v1991 = vadd.f32 %v1854, %v1990
    %1992 = vmatmul.bf16.gmra.mxu0 %v1724
    %v1993 = vpop.f32.mrf.mxu0
    %v1994 = vadd.f32 %v1854, %v1993
    %v1995 = vpop.f32.mrf.mxu0
    %v1996 = vadd.f32 %v1854, %v1995
    %1997 = vmatmul.bf16.gmra.mxu0 %v1725
    %v1998 = vpop.f32.mrf.mxu0
    %v1999 = vadd.f32 %v1854, %v1998
    %v2000 = vpop.f32.mrf.mxu0
    %v2001 = vadd.f32 %v1854, %v2000
    %2002 = vmatmul.bf16.gmra.mxu0 %v1726
    %v2003 = vpop.f32.mrf.mxu0
    %v2004 = vadd.f32 %v1854, %v2003
    %v2005 = vpop.f32.mrf.mxu0
    %v2006 = vadd.f32 %v1854, %v2005
    %2007 = vmatmul.bf16.gmra.mxu0 %v1727
    %v2008 = vpop.f32.mrf.mxu0
    %v2009 = vadd.f32 %v1854, %v2008
    %v2010 = vpop.f32.mrf.mxu0
    %v2011 = vadd.f32 %v1854, %v2010
    %2012 = vmatmul.bf16.gmra.mxu0 %v1728
    %v2013 = vpop.f32.mrf.mxu0
    %v2014 = vadd.f32 %v1854, %v2013
    %v2015 = vpop.f32.mrf.mxu0
    %v2016 = vadd.f32 %v1854, %v2015
    %2017 = vmatmul.bf16.gmra.mxu0 %v1729
    %v2018 = vpop.f32.mrf.mxu0
    %v2019 = vadd.f32 %v1854, %v2018
    %v2020 = vpop.f32.mrf.mxu0
    %v2021 = vadd.f32 %v1854, %v2020
    %2022 = vmatmul.bf16.gmra.mxu0 %v1730
    %v2023 = vpop.f32.mrf.mxu0
    %v2024 = vadd.f32 %v1854, %v2023
    %v2025 = vpop.f32.mrf.mxu0
    %v2026 = vadd.f32 %v1854, %v2025
    %2027 = vmatmul.bf16.gmra.mxu0 %v1731
    %v2028 = vpop.f32.mrf.mxu0
    %v2029 = vadd.f32 %v1854, %v2028
    %v2030 = vpop.f32.mrf.mxu0
    %v2031 = vadd.f32 %v1854, %v2030
    %2032 = vmatmul.bf16.gmra.mxu0 %v1732
    %v2033 = vpop.f32.mrf.mxu0
    %v2034 = vadd.f32 %v1854, %v2033
    %v2035 = vpop.f32.mrf.mxu0
    %v2036 = vadd.f32 %v1854, %v2035
    %2037 = vmatmul.bf16.gmra.mxu0 %v1733
    %v2038 = vpop.f32.mrf.mxu0
    %v2039 = vadd.f32 %v1854, %v2038
    %v2040 = vpop.f32.mrf.mxu0
    %v2041 = vadd.f32 %v1854, %v2040
    %2042 = vmatmul.bf16.gmra.mxu0 %v1734
    %v2043 = vpop.f32.mrf.mxu0
    %v2044 = vadd.f32 %v1854, %v2043
    %v2045 = vpop.f32.mrf.mxu0
    %v2046 = vadd.f32 %v1854, %v2045
    %2047 = vmatmul.bf16.gmra.mxu0 %v1735
    %v2048 = vpop.f32.mrf.mxu0
    %v2049 = vadd.f32 %v1854, %v2048
    %v2050 = vpop.f32.mrf.mxu0
    %v2051 = vadd.f32 %v1854, %v2050
    %2052 = vmatmul.bf16.gmra.mxu0 %v1736
    %v2053 = vpop.f32.mrf.mxu0
    %v2054 = vadd.f32 %v1854, %v2053
    %v2055 = vpop.f32.mrf.mxu0
    %v2056 = vadd.f32 %v1854, %v2055
    %2057 = vmatmul.bf16.gmra.mxu0 %v1737
    %v2058 = vpop.f32.mrf.mxu0
    %v2059 = vadd.f32 %v1854, %v2058
    %v2060 = vpop.f32.mrf.mxu0
    %v2061 = vadd.f32 %v1854, %v2060
    %2062 = vmatmul.bf16.gmra.mxu0 %v1738
    %v2063 = vpop.f32.mrf.mxu0
    %v2064 = vadd.f32 %v1854, %v2063
    %v2065 = vpop.f32.mrf.mxu0
    %v2066 = vadd.f32 %v1854, %v2065
    %2067 = vmatmul.bf16.gmra.mxu0 %v1739
    %v2068 = vpop.f32.mrf.mxu0
    %v2069 = vadd.f32 %v1854, %v2068
    %v2070 = vpop.f32.mrf.mxu0
    %v2071 = vadd.f32 %v1854, %v2070
    %2072 = vmatmul.bf16.gmra.mxu0 %v1740
    %v2073 = vpop.f32.mrf.mxu0
    %v2074 = vadd.f32 %v1854, %v2073
    %v2075 = vpop.f32.mrf.mxu0
    %v2076 = vadd.f32 %v1854, %v2075
    %2077 = vmatmul.bf16.gmra.mxu0 %v1741
    %v2078 = vpop.f32.mrf.mxu0
    %v2079 = vadd.f32 %v1854, %v2078
    %v2080 = vpop.f32.mrf.mxu0
    %v2081 = vadd.f32 %v1854, %v2080
    %2082 = vmatmul.bf16.gmra.mxu0 %v1742
    %v2083 = vpop.f32.mrf.mxu0
    %v2084 = vadd.f32 %v1854, %v2083
    %v2085 = vpop.f32.mrf.mxu0
    %v2086 = vadd.f32 %v1854, %v2085
    %2087 = vmatmul.bf16.gmra.mxu0 %v1743
    %v2088 = vpop.f32.mrf.mxu0
    %v2089 = vadd.f32 %v1854, %v2088
    %v2090 = vpop.f32.mrf.mxu0
    %v2091 = vadd.f32 %v1854, %v2090
    %2092 = vmatmul.bf16.gmra.mxu0 %v1744
    %v2093 = vpop.f32.mrf.mxu0
    %v2094 = vadd.f32 %v1854, %v2093
    %v2095 = vpop.f32.mrf.mxu0
    %v2096 = vadd.f32 %v1854, %v2095
    %2097 = vmatmul.bf16.gmra.mxu0 %v1745
    %v2098 = vpop.f32.mrf.mxu0
    %v2099 = vadd.f32 %v1854, %v2098
    %v2100 = vpop.f32.mrf.mxu0
    %v2101 = vadd.f32 %v1854, %v2100
    %2102 = vmatmul.bf16.gmra.mxu0 %v1746
    %v2103 = vpop.f32.mrf.mxu0
    %v2104 = vadd.f32 %v1854, %v2103
    %v2105 = vpop.f32.mrf.mxu0
    %v2106 = vadd.f32 %v1854, %v2105
    %2107 = vmatmul.bf16.gmra.mxu0 %v1747
    %v2108 = vpop.f32.mrf.mxu0
    %v2109 = vadd.f32 %v1854, %v2108
    %v2110 = vpop.f32.mrf.mxu0
    %v2111 = vadd.f32 %v1854, %v2110
    %2112 = vmatmul.bf16.gmra.mxu0 %v1748
    %v2113 = vpop.f32.mrf.mxu0
    %v2114 = vadd.f32 %v1854, %v2113
    %v2115 = vpop.f32.mrf.mxu0
    %v2116 = vadd.f32 %v1854, %v2115
    %2117 = vmatmul.bf16.gmra.mxu0 %v1749
    %v2118 = vpop.f32.mrf.mxu0
    %v2119 = vadd.f32 %v1854, %v2118
    %v2120 = vpop.f32.mrf.mxu0
    %v2121 = vadd.f32 %v1854, %v2120
    %2122 = vmatmul.bf16.gmra.mxu0 %v1750
    %v2123 = vpop.f32.mrf.mxu0
    %v2124 = vadd.f32 %v1854, %v2123
    %v2125 = vpop.f32.mrf.mxu0
    %v2126 = vadd.f32 %v1854, %v2125
    %2127 = vmatmul.bf16.gmra.mxu0 %v1751
    %v2128 = vpop.f32.mrf.mxu0
    %v2129 = vadd.f32 %v1854, %v2128
    %v2130 = vpop.f32.mrf.mxu0
    %v2131 = vadd.f32 %v1854, %v2130
    %2132 = vmatmul.bf16.gmra.mxu0 %v1752
    %v2133 = vpop.f32.mrf.mxu0
    %v2134 = vadd.f32 %v1854, %v2133
    %v2135 = vpop.f32.mrf.mxu0
    %v2136 = vadd.f32 %v1854, %v2135
    %2137 = vmatmul.bf16.gmra.mxu0 %v1753
    %v2138 = vpop.f32.mrf.mxu0
    %v2139 = vadd.f32 %v1854, %v2138
    %v2140 = vpop.f32.mrf.mxu0
    %v2141 = vadd.f32 %v1854, %v2140
    %2142 = vmatmul.bf16.gmra.mxu0 %v1754
    %v2143 = vpop.f32.mrf.mxu0
    %v2144 = vadd.f32 %v1854, %v2143
    %v2145 = vpop.f32.mrf.mxu0
    %v2146 = vadd.f32 %v1854, %v2145
    %2147 = vmatmul.bf16.gmra.mxu0 %v1755
    %v2148 = vpop.f32.mrf.mxu0
    %v2149 = vadd.f32 %v1854, %v2148
    %v2150 = vpop.f32.mrf.mxu0
    %v2151 = vadd.f32 %v1854, %v2150
    %2152 = vmatmul.bf16.gmra.mxu0 %v1756
    %v2153 = vpop.f32.mrf.mxu0
    %v2154 = vadd.f32 %v1854, %v2153
    %v2155 = vpop.f32.mrf.mxu0
    %v2156 = vadd.f32 %v1854, %v2155
    %2157 = vmatmul.bf16.gmra.mxu0 %v1757
    %v2158 = vpop.f32.mrf.mxu0
    %v2159 = vadd.f32 %v1854, %v2158
    %v2160 = vpop.f32.mrf.mxu0
    %v2161 = vadd.f32 %v1854, %v2160
    %2162 = vmatmul.bf16.gmra.mxu0 %v1758
    %v2163 = vpop.f32.mrf.mxu0
    %v2164 = vadd.f32 %v1854, %v2163
    %v2165 = vpop.f32.mrf.mxu0
    %v2166 = vadd.f32 %v1854, %v2165
    %2167 = vmatmul.bf16.gmra.mxu0 %v1759
    %v2168 = vpop.f32.mrf.mxu0
    %v2169 = vadd.f32 %v1854, %v2168
    %v2170 = vpop.f32.mrf.mxu0
    %v2171 = vadd.f32 %v1854, %v2170
    %2172 = vmatmul.bf16.gmra.mxu0 %v1760
    %v2173 = vpop.f32.mrf.mxu0
    %v2174 = vadd.f32 %v1854, %v2173
    %v2175 = vpop.f32.mrf.mxu0
    %v2176 = vadd.f32 %v1854, %v2175
    %2177 = vmatmul.bf16.gmra.mxu0 %v1761
    %v2178 = vpop.f32.mrf.mxu0
    %v2179 = vadd.f32 %v1854, %v2178
    %v2180 = vpop.f32.mrf.mxu0
    %v2181 = vadd.f32 %v1854, %v2180
    %2182 = vmatmul.bf16.gmra.mxu0 %v1762
    %v2183 = vpop.f32.mrf.mxu0
    %v2184 = vadd.f32 %v1854, %v2183
    %v2185 = vpop.f32.mrf.mxu0
    %v2186 = vadd.f32 %v1854, %v2185
    %2187 = vmatmul.bf16.gmra.mxu0 %v1763
    %v2188 = vpop.f32.mrf.mxu0
    %v2189 = vadd.f32 %v1854, %v2188
    %v2190 = vpop.f32.mrf.mxu0
    %v2191 = vadd.f32 %v1854, %v2190
    %2192 = vmatmul.bf16.gmra.mxu0 %v1764
    %v2193 = vpop.f32.mrf.mxu0
    %v2194 = vadd.f32 %v1854, %v2193
    %v2195 = vpop.f32.mrf.mxu0
    %v2196 = vadd.f32 %v1854, %v2195
    %2197 = vmatmul.bf16.gmra.mxu0 %v1765
    %v2198 = vpop.f32.mrf.mxu0
    %v2199 = vadd.f32 %v1854, %v2198
    %v2200 = vpop.f32.mrf.mxu0
    %v2201 = vadd.f32 %v1854, %v2200
    %2202 = vmatmul.bf16.gmra.mxu0 %v1766
    %v2203 = vpop.f32.mrf.mxu0
    %v2204 = vadd.f32 %v1854, %v2203
    %v2205 = vpop.f32.mrf.mxu0
    %v2206 = vadd.f32 %v1854, %v2205
    %2207 = vmatmul.bf16.gmra.mxu0 %v1767
    %v2208 = vpop.f32.mrf.mxu0
    %v2209 = vadd.f32 %v1854, %v2208
    %v2210 = vpop.f32.mrf.mxu0
    %v2211 = vadd.f32 %v1854, %v2210
    %2212 = vmatmul.bf16.gmra.mxu0 %v1768
    %v2213 = vpop.f32.mrf.mxu0
    %v2214 = vadd.f32 %v1854, %v2213
    %v2215 = vpop.f32.mrf.mxu0
    %v2216 = vadd.f32 %v1854, %v2215
    %2217 = vmatmul.bf16.gmra.mxu0 %v1769
    %v2218 = vpop.f32.mrf.mxu0
    %v2219 = vadd.f32 %v1854, %v2218
    %v2220 = vpop.f32.mrf.mxu0
    %v2221 = vadd.f32 %v1854, %v2220
    %2222 = vmatmul.bf16.gmra.mxu0 %v1770
    %v2223 = vpop.f32.mrf.mxu0
    %v2224 = vadd.f32 %v1854, %v2223
    %v2225 = vpop.f32.mrf.mxu0
    %v2226 = vadd.f32 %v1854, %v2225
    %2227 = vmatmul.bf16.gmra.mxu0 %v1771
    %v2228 = vpop.f32.mrf.mxu0
    %v2229 = vadd.f32 %v1854, %v2228
    %v2230 = vpop.f32.mrf.mxu0
    %v2231 = vadd.f32 %v1854, %v2230
    %2232 = vmatmul.bf16.gmra.mxu0 %v1772
    %v2233 = vpop.f32.mrf.mxu0
    %v2234 = vadd.f32 %v1854, %v2233
    %v2235 = vpop.f32.mrf.mxu0
    %v2236 = vadd.f32 %v1854, %v2235
    %2237 = vmatmul.bf16.gmra.mxu0 %v1773
    %v2238 = vpop.f32.mrf.mxu0
    %v2239 = vadd.f32 %v1854, %v2238
    %v2240 = vpop.f32.mrf.mxu0
    %v2241 = vadd.f32 %v1854, %v2240
    %2242 = vmatmul.bf16.gmra.mxu0 %v1774
    %v2243 = vpop.f32.mrf.mxu0
    %v2244 = vadd.f32 %v1854, %v2243
    %v2245 = vpop.f32.mrf.mxu0
    %v2246 = vadd.f32 %v1854, %v2245
    %2247 = vmatmul.bf16.gmra.mxu0 %v1775
    %v2248 = vpop.f32.mrf.mxu0
    %v2249 = vadd.f32 %v1854, %v2248
    %v2250 = vpop.f32.mrf.mxu0
    %v2251 = vadd.f32 %v1854, %v2250
    %2252 = vmatmul.bf16.gmra.mxu0 %v1776
    %v2253 = vpop.f32.mrf.mxu0
    %v2254 = vadd.f32 %v1854, %v2253
    %v2255 = vpop.f32.mrf.mxu0
    %v2256 = vadd.f32 %v1854, %v2255
    %2257 = vmatmul.bf16.gmra.mxu0 %v1777
    %v2258 = vpop.f32.mrf.mxu0
    %v2259 = vadd.f32 %v1854, %v2258
    %v2260 = vpop.f32.mrf.mxu0
    %v2261 = vadd.f32 %v1854, %v2260
    %2262 = vmatmul.bf16.gmra.mxu0 %v1778
    %v2263 = vpop.f32.mrf.mxu0
    %v2264 = vadd.f32 %v1854, %v2263
    %v2265 = vpop.f32.mrf.mxu0
    %v2266 = vadd.f32 %v1854, %v2265
    %2267 = vmatmul.bf16.gmra.mxu0 %v1779
    %v2268 = vpop.f32.mrf.mxu0
    %v2269 = vadd.f32 %v1854, %v2268
    %v2270 = vpop.f32.mrf.mxu0
    %v2271 = vadd.f32 %v1854, %v2270
    %2272 = vmatmul.bf16.gmra.mxu0 %v1780
    %v2273 = vpop.f32.mrf.mxu0
    %v2274 = vadd.f32 %v1854, %v2273
    %v2275 = vpop.f32.mrf.mxu0
    %v2276 = vadd.f32 %v1854, %v2275
    %2277 = vmatmul.bf16.gmra.mxu0 %v1781
    %v2278 = vpop.f32.mrf.mxu0
    %v2279 = vadd.f32 %v1854, %v2278
    %v2280 = vpop.f32.mrf.mxu0
    %v2281 = vadd.f32 %v1854, %v2280
    %2282 = vmatmul.bf16.gmra.mxu0 %v1782
    %v2283 = vpop.f32.mrf.mxu0
    %v2284 = vadd.f32 %v1854, %v2283
    %v2285 = vpop.f32.mrf.mxu0
    %v2286 = vadd.f32 %v1854, %v2285
    %2287 = vmatmul.bf16.gmra.mxu0 %v1783
    %v2288 = vpop.f32.mrf.mxu0
    %v2289 = vadd.f32 %v1854, %v2288
    %v2290 = vpop.f32.mrf.mxu0
    %v2291 = vadd.f32 %v1854, %v2290
    %2292 = vmatmul.bf16.gmra.mxu0 %v1784
    %v2293 = vpop.f32.mrf.mxu0
    %v2294 = vadd.f32 %v1854, %v2293
    %v2295 = vpop.f32.mrf.mxu0
    %v2296 = vadd.f32 %v1854, %v2295
    %2297 = vmatmul.bf16.gmra.mxu0 %v1785
    %v2298 = vpop.f32.mrf.mxu0
    %v2299 = vadd.f32 %v1854, %v2298
    %v2300 = vpop.f32.mrf.mxu0
    %v2301 = vadd.f32 %v1854, %v2300
    %2302 = vmatmul.bf16.gmra.mxu0 %v1786
    %v2303 = vpop.f32.mrf.mxu0
    %v2304 = vadd.f32 %v1854, %v2303
    %v2305 = vpop.f32.mrf.mxu0
    %v2306 = vadd.f32 %v1854, %v2305
    %2307 = vmatmul.bf16.gmra.mxu0 %v1787
    %v2308 = vpop.f32.mrf.mxu0
    %v2309 = vadd.f32 %v1854, %v2308
    %v2310 = vpop.f32.mrf.mxu0
    %v2311 = vadd.f32 %v1854, %v2310
    %2312 = vmatmul.bf16.gmra.mxu0 %v1788
    %v2313 = vpop.f32.mrf.mxu0
    %v2314 = vadd.f32 %v1854, %v2313
    %v2315 = vpop.f32.mrf.mxu0
    %v2316 = vadd.f32 %v1854, %v2315
    %2317 = vmatmul.bf16.gmra.mxu0 %v1789
    %v2318 = vpop.f32.mrf.mxu0
    %v2319 = vadd.f32 %v1854, %v2318
    %v2320 = vpop.f32.mrf.mxu0
    %v2321 = vadd.f32 %v1854, %v2320
    %2322 = vmatmul.bf16.gmra.mxu0 %v1790
    %v2323 = vpop.f32.mrf.mxu0
    %v2324 = vadd.f32 %v1854, %v2323
    %v2325 = vpop.f32.mrf.mxu0
    %v2326 = vadd.f32 %v1854, %v2325
    %2327 = vmatmul.bf16.gmra.mxu0 %v1791
    %v2328 = vpop.f32.mrf.mxu0
    %v2329 = vadd.f32 %v1854, %v2328
    %v2330 = vpop.f32.mrf.mxu0
    %v2331 = vadd.f32 %v1854, %v2330
    %2332 = vmatmul.bf16.gmra.mxu0 %v1792
    %v2333 = vpop.f32.mrf.mxu0
    %v2334 = vadd.f32 %v1854, %v2333
    %v2335 = vpop.f32.mrf.mxu0
    %v2336 = vadd.f32 %v1854, %v2335
    %2337 = vmatmul.bf16.gmra.mxu0 %v1793
    %v2338 = vpop.f32.mrf.mxu0
    %v2339 = vadd.f32 %v1854, %v2338
    %v2340 = vpop.f32.mrf.mxu0
    %v2341 = vadd.f32 %v1854, %v2340
    %2342 = vmatmul.bf16.gmra.mxu0 %v1794
    %v2343 = vpop.f32.mrf.mxu0
    %v2344 = vadd.f32 %v1854, %v2343
    %v2345 = vpop.f32.mrf.mxu0
    %v2346 = vadd.f32 %v1854, %v2345
    %2347 = vmatmul.bf16.gmra.mxu0 %v1795
    %v2348 = vpop.f32.mrf.mxu0
    %v2349 = vadd.f32 %v1854, %v2348
    %v2350 = vpop.f32.mrf.mxu0
    %v2351 = vadd.f32 %v1854, %v2350
    %2352 = vmatmul.bf16.gmra.mxu0 %v1796
    %v2353 = vpop.f32.mrf.mxu0
    %v2354 = vadd.f32 %v1854, %v2353
    %v2355 = vpop.f32.mrf.mxu0
    %v2356 = vadd.f32 %v1854, %v2355
    %2357 = vmatmul.bf16.gmra.mxu0 %v1797
    %v2358 = vpop.f32.mrf.mxu0
    %v2359 = vadd.f32 %v1854, %v2358
    %v2360 = vpop.f32.mrf.mxu0
    %v2361 = vadd.f32 %v1854, %v2360
    %2362 = vmatmul.bf16.gmra.mxu0 %v1798
    %v2363 = vpop.f32.mrf.mxu0
    %v2364 = vadd.f32 %v1854, %v2363
    %v2365 = vpop.f32.mrf.mxu0
    %v2366 = vadd.f32 %v1854, %v2365
    %2367 = vmatmul.bf16.gmra.mxu0 %v1799
    %v2368 = vpop.f32.mrf.mxu0
    %v2369 = vadd.f32 %v1854, %v2368
    %v2370 = vpop.f32.mrf.mxu0
    %v2371 = vadd.f32 %v1854, %v2370
    %2372 = vmatmul.bf16.gmra.mxu0 %v1800
    %v2373 = vpop.f32.mrf.mxu0
    %v2374 = vadd.f32 %v1854, %v2373
    %v2375 = vpop.f32.mrf.mxu0
    %v2376 = vadd.f32 %v1854, %v2375
    %2377 = vmatmul.bf16.gmra.mxu0 %v1801
    %v2378 = vpop.f32.mrf.mxu0
    %v2379 = vadd.f32 %v1854, %v2378
    %v2380 = vpop.f32.mrf.mxu0
    %v2381 = vadd.f32 %v1854, %v2380
    %2382 = vmatmul.bf16.gmra.mxu0 %v1802
    %v2383 = vpop.f32.mrf.mxu0
    %v2384 = vadd.f32 %v1854, %v2383
    %v2385 = vpop.f32.mrf.mxu0
    %v2386 = vadd.f32 %v1854, %v2385
    %2387 = vmatmul.bf16.gmra.mxu0 %v1803
    %v2388 = vpop.f32.mrf.mxu0
    %v2389 = vadd.f32 %v1854, %v2388
    %v2390 = vpop.f32.mrf.mxu0
    %v2391 = vadd.f32 %v1854, %v2390
    %2392 = vmatmul.bf16.gmra.mxu0 %v1804
    %v2393 = vpop.f32.mrf.mxu0
    %v2394 = vadd.f32 %v1854, %v2393
    %v2395 = vpop.f32.mrf.mxu0
    %v2396 = vadd.f32 %v1854, %v2395
    %2397 = vmatmul.bf16.gmra.mxu0 %v1805
    %v2398 = vpop.f32.mrf.mxu0
    %v2399 = vadd.f32 %v1854, %v2398
    %v2400 = vpop.f32.mrf.mxu0
    %v2401 = vadd.f32 %v1854, %v2400
    %2402 = vmatmul.bf16.gmra.mxu0 %v1806
    %v2403 = vpop.f32.mrf.mxu0
    %v2404 = vadd.f32 %v1854, %v2403
    %v2405 = vpop.f32.mrf.mxu0
    %v2406 = vadd.f32 %v1854, %v2405
    %2407 = vmatmul.bf16.gmra.mxu0 %v1807
    %v2408 = vpop.f32.mrf.mxu0
    %v2409 = vadd.f32 %v1854, %v2408
    %v2410 = vpop.f32.mrf.mxu0
    %v2411 = vadd.f32 %v1854, %v2410
    %2412 = vmatmul.bf16.gmra.mxu0 %v1808
    %v2413 = vpop.f32.mrf.mxu0
    %v2414 = vadd.f32 %v1854, %v2413
    %v2415 = vpop.f32.mrf.mxu0
    %v2416 = vadd.f32 %v1854, %v2415
    %2417 = vmatmul.bf16.gmra.mxu0 %v1809
    %v2418 = vpop.f32.mrf.mxu0
    %v2419 = vadd.f32 %v1854, %v2418
    %v2420 = vpop.f32.mrf.mxu0
    %v2421 = vadd.f32 %v1854, %v2420
    %2422 = vmatmul.bf16.gmra.mxu0 %v1810
    %v2423 = vpop.f32.mrf.mxu0
    %v2424 = vadd.f32 %v1854, %v2423
    %v2425 = vpop.f32.mrf.mxu0
    %v2426 = vadd.f32 %v1854, %v2425
    %2427 = vmatmul.bf16.gmra.mxu0 %v1811
    %v2428 = vpop.f32.mrf.mxu0
    %v2429 = vadd.f32 %v1854, %v2428
    %v2430 = vpop.f32.mrf.mxu0
    %v2431 = vadd.f32 %v1854, %v2430
    %2432 = vmatmul.bf16.gmra.mxu0 %v1812
    %v2433 = vpop.f32.mrf.mxu0
    %v2434 = vadd.f32 %v1854, %v2433
    %v2435 = vpop.f32.mrf.mxu0
    %v2436 = vadd.f32 %v1854, %v2435
    %2437 = vmatmul.bf16.gmra.mxu0 %v1813
    %v2438 = vpop.f32.mrf.mxu0
    %v2439 = vadd.f32 %v1854, %v2438
    %v2440 = vpop.f32.mrf.mxu0
    %v2441 = vadd.f32 %v1854, %v2440
    %2442 = vmatmul.bf16.gmra.mxu0 %v1814
    %v2443 = vpop.f32.mrf.mxu0
    %v2444 = vadd.f32 %v1854, %v2443
    %v2445 = vpop.f32.mrf.mxu0
    %v2446 = vadd.f32 %v1854, %v2445
    %2447 = vmatmul.bf16.gmra.mxu0 %v1815
    %v2448 = vpop.f32.mrf.mxu0
    %v2449 = vadd.f32 %v1854, %v2448
    %v2450 = vpop.f32.mrf.mxu0
    %v2451 = vadd.f32 %v1854, %v2450
    %2452 = vmatmul.bf16.gmra.mxu0 %v1816
    %v2453 = vpop.f32.mrf.mxu0
    %v2454 = vadd.f32 %v1854, %v2453
    %v2455 = vpop.f32.mrf.mxu0
    %v2456 = vadd.f32 %v1854, %v2455
    %2457 = vmatmul.bf16.gmra.mxu0 %v1817
    %v2458 = vpop.f32.mrf.mxu0
    %v2459 = vadd.f32 %v1854, %v2458
    %v2460 = vpop.f32.mrf.mxu0
    %v2461 = vadd.f32 %v1854, %v2460
    %2462 = vmatmul.bf16.gmra.mxu0 %v1818
    %v2463 = vpop.f32.mrf.mxu0
    %v2464 = vadd.f32 %v1854, %v2463
    %v2465 = vpop.f32.mrf.mxu0
    %v2466 = vadd.f32 %v1854, %v2465
    %2467 = vmatmul.bf16.gmra.mxu0 %v1819
    %v2468 = vpop.f32.mrf.mxu0
    %v2469 = vadd.f32 %v1854, %v2468
    %v2470 = vpop.f32.mrf.mxu0
    %v2471 = vadd.f32 %v1854, %v2470
    %2472 = vmatmul.bf16.gmra.mxu0 %v1820
    %v2473 = vpop.f32.mrf.mxu0
    %v2474 = vadd.f32 %v1854, %v2473
    %v2475 = vpop.f32.mrf.mxu0
    %v2476 = vadd.f32 %v1854, %v2475
    %2477 = vmatmul.bf16.gmra.mxu0 %v1821
    %v2478 = vpop.f32.mrf.mxu0
    %v2479 = vadd.f32 %v1854, %v2478
    %v2480 = vpop.f32.mrf.mxu0
    %v2481 = vadd.f32 %v1854, %v2480
    %2482 = vmatmul.bf16.gmra.mxu0 %v1822
    %v2483 = vpop.f32.mrf.mxu0
    %v2484 = vadd.f32 %v1854, %v2483
    %v2485 = vpop.f32.mrf.mxu0
    %v2486 = vadd.f32 %v1854, %v2485
    %2487 = vmatmul.bf16.gmra.mxu0 %v1823
    %v2488 = vpop.f32.mrf.mxu0
    %v2489 = vadd.f32 %v1854, %v2488
    %v2490 = vpop.f32.mrf.mxu0
    %v2491 = vadd.f32 %v1854, %v2490
    %2492 = vmatmul.bf16.gmra.mxu0 %v1824
    %v2493 = vpop.f32.mrf.mxu0
    %v2494 = vadd.f32 %v1854, %v2493
    %v2495 = vpop.f32.mrf.mxu0
    %v2496 = vadd.f32 %v1854, %v2495
    %2497 = vmatmul.bf16.gmra.mxu0 %v1825
    %v2498 = vpop.f32.mrf.mxu0
    %v2499 = vadd.f32 %v1854, %v2498
    %v2500 = vpop.f32.mrf.mxu0
    %v2501 = vadd.f32 %v1854, %v2500
    %2502 = vmatmul.bf16.gmra.mxu0 %v1826
    %v2503 = vpop.f32.mrf.mxu0
    %v2504 = vadd.f32 %v1854, %v2503
    %v2505 = vpop.f32.mrf.mxu0
    %v2506 = vadd.f32 %v1854, %v2505
    %2507 = vmatmul.bf16.gmra.mxu0 %v1827
    %v2508 = vpop.f32.mrf.mxu0
    %v2509 = vadd.f32 %v1854, %v2508
    %v2510 = vpop.f32.mrf.mxu0
    %v2511 = vadd.f32 %v1854, %v2510
    %2512 = vmatmul.bf16.gmra.mxu0 %v1828
    %v2513 = vpop.f32.mrf.mxu0
    %v2514 = vadd.f32 %v1854, %v2513
    %v2515 = vpop.f32.mrf.mxu0
    %v2516 = vadd.f32 %v1854, %v2515
    %2517 = vmatmul.bf16.gmra.mxu0 %v1829
    %v2518 = vpop.f32.mrf.mxu0
    %v2519 = vadd.f32 %v1854, %v2518
    %v2520 = vpop.f32.mrf.mxu0
    %v2521 = vadd.f32 %v1854, %v2520
    %2522 = vmatmul.bf16.gmra.mxu0 %v1830
    %v2523 = vpop.f32.mrf.mxu0
    %v2524 = vadd.f32 %v1854, %v2523
    %v2525 = vpop.f32.mrf.mxu0
    %v2526 = vadd.f32 %v1854, %v2525
    %2527 = vmatmul.bf16.gmra.mxu0 %v1831
    %v2528 = vpop.f32.mrf.mxu0
    %v2529 = vadd.f32 %v1854, %v2528
    %v2530 = vpop.f32.mrf.mxu0
    %v2531 = vadd.f32 %v1854, %v2530
    %2532 = vmatmul.bf16.gmra.mxu0 %v1832
    %v2533 = vpop.f32.mrf.mxu0
    %v2534 = vadd.f32 %v1854, %v2533
    %v2535 = vpop.f32.mrf.mxu0
    %v2536 = vadd.f32 %v1854, %v2535
    %2537 = vmatmul.bf16.gmra.mxu0 %v1833
    %v2538 = vpop.f32.mrf.mxu0
    %v2539 = vadd.f32 %v1854, %v2538
    %v2540 = vpop.f32.mrf.mxu0
    %v2541 = vadd.f32 %v1854, %v2540
    %2542 = vmatmul.bf16.gmra.mxu0 %v1834
    %v2543 = vpop.f32.mrf.mxu0
    %v2544 = vadd.f32 %v1854, %v2543
    %v2545 = vpop.f32.mrf.mxu0
    %v2546 = vadd.f32 %v1854, %v2545
    %2547 = vmatmul.bf16.gmra.mxu0 %v1835
    %v2548 = vpop.f32.mrf.mxu0
    %v2549 = vadd.f32 %v1854, %v2548
    %v2550 = vpop.f32.mrf.mxu0
    %v2551 = vadd.f32 %v1854, %v2550
    %2552 = vdwg.mxu0
    %v2553 = vmax.f32 %v1914, 0.0
    %v2554 = vmax.f32 %v1916, 0.0
    %v2555 = vmax.f32 %v1919, 0.0
    %v2556 = vmax.f32 %v1921, 0.0
    %v2557 = vmax.f32 %v1924, 0.0
    %v2558 = vmax.f32 %v1926, 0.0
    %v2559 = vmax.f32 %v1929, 0.0
    %v2560 = vmax.f32 %v1931, 0.0
    %v2561 = vmax.f32 %v1934, 0.0
    %v2562 = vmax.f32 %v1936, 0.0
    %v2563 = vmax.f32 %v1939, 0.0
    %v2564 = vmax.f32 %v1941, 0.0
    %v2565 = vmax.f32 %v1944, 0.0
    %v2566 = vmax.f32 %v1946, 0.0
    %v2567 = vmax.f32 %v1949, 0.0
    %v2568 = vmax.f32 %v1951, 0.0
    %v2569 = vmax.f32 %v1954, 0.0
    %v2570 = vmax.f32 %v1956, 0.0
    %v2571 = vmax.f32 %v1959, 0.0
    %v2572 = vmax.f32 %v1961, 0.0
    %v2573 = vmax.f32 %v1964, 0.0
    %v2574 = vmax.f32 %v1966, 0.0
    %v2575 = vmax.f32 %v1969, 0.0
    %v2576 = vmax.f32 %v1971, 0.0
    %v2577 = vmax.f32 %v1974, 0.0
    %v2578 = vmax.f32 %v1976, 0.0
    %v2579 = vmax.f32 %v1979, 0.0
    %v2580 = vmax.f32 %v1981, 0.0
    %v2581 = vmax.f32 %v1984, 0.0
    %v2582 = vmax.f32 %v1986, 0.0
    %v2583 = vmax.f32 %v1989, 0.0
    %v2584 = vmax.f32 %v1991, 0.0
    %v2585 = vmax.f32 %v1994, 0.0
    %v2586 = vmax.f32 %v1996, 0.0
    %v2587 = vmax.f32 %v1999, 0.0
    %v2588 = vmax.f32 %v2001, 0.0
    %v2589 = vmax.f32 %v2004, 0.0
    %v2590 = vmax.f32 %v2006, 0.0
    %v2591 = vmax.f32 %v2009, 0.0
    %v2592 = vmax.f32 %v2011, 0.0
    %v2593 = vmax.f32 %v2014, 0.0
    %v2594 = vmax.f32 %v2016, 0.0
    %v2595 = vmax.f32 %v2019, 0.0
    %v2596 = vmax.f32 %v2021, 0.0
    %v2597 = vmax.f32 %v2024, 0.0
    %v2598 = vmax.f32 %v2026, 0.0
    %v2599 = vmax.f32 %v2029, 0.0
    %v2600 = vmax.f32 %v2031, 0.0
    %v2601 = vmax.f32 %v2034, 0.0
    %v2602 = vmax.f32 %v2036, 0.0
    %v2603 = vmax.f32 %v2039, 0.0
    %v2604 = vmax.f32 %v2041, 0.0
    %v2605 = vmax.f32 %v2044, 0.0
    %v2606 = vmax.f32 %v2046, 0.0
    %v2607 = vmax.f32 %v2049, 0.0
    %v2608 = vmax.f32 %v2051, 0.0
    %v2609 = vmax.f32 %v2054, 0.0
    %v2610 = vmax.f32 %v2056, 0.0
    %v2611 = vmax.f32 %v2059, 0.0
    %v2612 = vmax.f32 %v2061, 0.0
    %v2613 = vmax.f32 %v2064, 0.0
    %v2614 = vmax.f32 %v2066, 0.0
    %v2615 = vmax.f32 %v2069, 0.0
    %v2616 = vmax.f32 %v2071, 0.0
    %v2617 = vmax.f32 %v2074, 0.0
    %v2618 = vmax.f32 %v2076, 0.0
    %v2619 = vmax.f32 %v2079, 0.0
    %v2620 = vmax.f32 %v2081, 0.0
    %v2621 = vmax.f32 %v2084, 0.0
    %v2622 = vmax.f32 %v2086, 0.0
    %v2623 = vmax.f32 %v2089, 0.0
    %v2624 = vmax.f32 %v2091, 0.0
    %v2625 = vmax.f32 %v2094, 0.0
    %v2626 = vmax.f32 %v2096, 0.0
    %v2627 = vmax.f32 %v2099, 0.0
    %v2628 = vmax.f32 %v2101, 0.0
    %v2629 = vmax.f32 %v2104, 0.0
    %v2630 = vmax.f32 %v2106, 0.0
    %v2631 = vmax.f32 %v2109, 0.0
    %v2632 = vmax.f32 %v2111, 0.0
    %v2633 = vmax.f32 %v2114, 0.0
    %v2634 = vmax.f32 %v2116, 0.0
    %v2635 = vmax.f32 %v2119, 0.0
    %v2636 = vmax.f32 %v2121, 0.0
    %v2637 = vmax.f32 %v2124, 0.0
    %v2638 = vmax.f32 %v2126, 0.0
    %v2639 = vmax.f32 %v2129, 0.0
    %v2640 = vmax.f32 %v2131, 0.0
    %v2641 = vmax.f32 %v2134, 0.0
    %v2642 = vmax.f32 %v2136, 0.0
    %v2643 = vmax.f32 %v2139, 0.0
    %v2644 = vmax.f32 %v2141, 0.0
    %v2645 = vmax.f32 %v2144, 0.0
    %v2646 = vmax.f32 %v2146, 0.0
    %v2647 = vmax.f32 %v2149, 0.0
    %v2648 = vmax.f32 %v2151, 0.0
    %v2649 = vmax.f32 %v2154, 0.0
    %v2650 = vmax.f32 %v2156, 0.0
    %v2651 = vmax.f32 %v2159, 0.0
    %v2652 = vmax.f32 %v2161, 0.0
    %v2653 = vmax.f32 %v2164, 0.0
    %v2654 = vmax.f32 %v2166, 0.0
    %v2655 = vmax.f32 %v2169, 0.0
    %v2656 = vmax.f32 %v2171, 0.0
    %v2657 = vmax.f32 %v2174, 0.0
    %v2658 = vmax.f32 %v2176, 0.0
    %v2659 = vmax.f32 %v2179, 0.0
    %v2660 = vmax.f32 %v2181, 0.0
    %v2661 = vmax.f32 %v2184, 0.0
    %v2662 = vmax.f32 %v2186, 0.0
    %v2663 = vmax.f32 %v2189, 0.0
    %v2664 = vmax.f32 %v2191, 0.0
    %v2665 = vmax.f32 %v2194, 0.0
    %v2666 = vmax.f32 %v2196, 0.0
    %v2667 = vmax.f32 %v2199, 0.0
    %v2668 = vmax.f32 %v2201, 0.0
    %v2669 = vmax.f32 %v2204, 0.0
    %v2670 = vmax.f32 %v2206, 0.0
    %v2671 = vmax.f32 %v2209, 0.0
    %v2672 = vmax.f32 %v2211, 0.0
    %v2673 = vmax.f32 %v2214, 0.0
    %v2674 = vmax.f32 %v2216, 0.0
    %v2675 = vmax.f32 %v2219, 0.0
    %v2676 = vmax.f32 %v2221, 0.0
    %v2677 = vmax.f32 %v2224, 0.0
    %v2678 = vmax.f32 %v2226, 0.0
    %v2679 = vmax.f32 %v2229, 0.0
    %v2680 = vmax.f32 %v2231, 0.0
    %v2681 = vmax.f32 %v2234, 0.0
    %v2682 = vmax.f32 %v2236, 0.0
    %v2683 = vmax.f32 %v2239, 0.0
    %v2684 = vmax.f32 %v2241, 0.0
    %v2685 = vmax.f32 %v2244, 0.0
    %v2686 = vmax.f32 %v2246, 0.0
    %v2687 = vmax.f32 %v2249, 0.0
    %v2688 = vmax.f32 %v2251, 0.0
    %v2689 = vmax.f32 %v2254, 0.0
    %v2690 = vmax.f32 %v2256, 0.0
    %v2691 = vmax.f32 %v2259, 0.0
    %v2692 = vmax.f32 %v2261, 0.0
    %v2693 = vmax.f32 %v2264, 0.0
    %v2694 = vmax.f32 %v2266, 0.0
    %v2695 = vmax.f32 %v2269, 0.0
    %v2696 = vmax.f32 %v2271, 0.0
    %v2697 = vmax.f32 %v2274, 0.0
    %v2698 = vmax.f32 %v2276, 0.0
    %v2699 = vmax.f32 %v2279, 0.0
    %v2700 = vmax.f32 %v2281, 0.0
    %v2701 = vmax.f32 %v2284, 0.0
    %v2702 = vmax.f32 %v2286, 0.0
    %v2703 = vmax.f32 %v2289, 0.0
    %v2704 = vmax.f32 %v2291, 0.0
    %v2705 = vmax.f32 %v2294, 0.0
    %v2706 = vmax.f32 %v2296, 0.0
    %v2707 = vmax.f32 %v2299, 0.0
    %v2708 = vmax.f32 %v2301, 0.0
    %v2709 = vmax.f32 %v2304, 0.0
    %v2710 = vmax.f32 %v2306, 0.0
    %v2711 = vmax.f32 %v2309, 0.0
    %v2712 = vmax.f32 %v2311, 0.0
    %v2713 = vmax.f32 %v2314, 0.0
    %v2714 = vmax.f32 %v2316, 0.0
    %v2715 = vmax.f32 %v2319, 0.0
    %v2716 = vmax.f32 %v2321, 0.0
    %v2717 = vmax.f32 %v2324, 0.0
    %v2718 = vmax.f32 %v2326, 0.0
    %v2719 = vmax.f32 %v2329, 0.0
    %v2720 = vmax.f32 %v2331, 0.0
    %v2721 = vmax.f32 %v2334, 0.0
    %v2722 = vmax.f32 %v2336, 0.0
    %v2723 = vmax.f32 %v2339, 0.0
    %v2724 = vmax.f32 %v2341, 0.0
    %v2725 = vmax.f32 %v2344, 0.0
    %v2726 = vmax.f32 %v2346, 0.0
    %v2727 = vmax.f32 %v2349, 0.0
    %v2728 = vmax.f32 %v2351, 0.0
    %v2729 = vmax.f32 %v2354, 0.0
    %v2730 = vmax.f32 %v2356, 0.0
    %v2731 = vmax.f32 %v2359, 0.0
    %v2732 = vmax.f32 %v2361, 0.0
    %v2733 = vmax.f32 %v2364, 0.0
    %v2734 = vmax.f32 %v2366, 0.0
    %v2735 = vmax.f32 %v2369, 0.0
    %v2736 = vmax.f32 %v2371, 0.0
    %v2737 = vmax.f32 %v2374, 0.0
    %v2738 = vmax.f32 %v2376, 0.0
    %v2739 = vmax.f32 %v2379, 0.0
    %v2740 = vmax.f32 %v2381, 0.0
    %v2741 = vmax.f32 %v2384, 0.0
    %v2742 = vmax.f32 %v2386, 0.0
    %v2743 = vmax.f32 %v2389, 0.0
    %v2744 = vmax.f32 %v2391, 0.0
    %v2745 = vmax.f32 %v2394, 0.0
    %v2746 = vmax.f32 %v2396, 0.0
    %v2747 = vmax.f32 %v2399, 0.0
    %v2748 = vmax.f32 %v2401, 0.0
    %v2749 = vmax.f32 %v2404, 0.0
    %v2750 = vmax.f32 %v2406, 0.0
    %v2751 = vmax.f32 %v2409, 0.0
    %v2752 = vmax.f32 %v2411, 0.0
    %v2753 = vmax.f32 %v2414, 0.0
    %v2754 = vmax.f32 %v2416, 0.0
    %v2755 = vmax.f32 %v2419, 0.0
    %v2756 = vmax.f32 %v2421, 0.0
    %v2757 = vmax.f32 %v2424, 0.0
    %v2758 = vmax.f32 %v2426, 0.0
    %v2759 = vmax.f32 %v2429, 0.0
    %v2760 = vmax.f32 %v2431, 0.0
    %v2761 = vmax.f32 %v2434, 0.0
    %v2762 = vmax.f32 %v2436, 0.0
    %v2763 = vmax.f32 %v2439, 0.0
    %v2764 = vmax.f32 %v2441, 0.0
    %v2765 = vmax.f32 %v2444, 0.0
    %v2766 = vmax.f32 %v2446, 0.0
    %v2767 = vmax.f32 %v2449, 0.0
    %v2768 = vmax.f32 %v2451, 0.0
    %v2769 = vmax.f32 %v2454, 0.0
    %v2770 = vmax.f32 %v2456, 0.0
    %v2771 = vmax.f32 %v2459, 0.0
    %v2772 = vmax.f32 %v2461, 0.0
    %v2773 = vmax.f32 %v2464, 0.0
    %v2774 = vmax.f32 %v2466, 0.0
    %v2775 = vmax.f32 %v2469, 0.0
    %v2776 = vmax.f32 %v2471, 0.0
    %v2777 = vmax.f32 %v2474, 0.0
    %v2778 = vmax.f32 %v2476, 0.0
    %v2779 = vmax.f32 %v2479, 0.0
    %v2780 = vmax.f32 %v2481, 0.0
    %v2781 = vmax.f32 %v2484, 0.0
    %v2782 = vmax.f32 %v2486, 0.0
    %v2783 = vmax.f32 %v2489, 0.0
    %v2784 = vmax.f32 %v2491, 0.0
    %v2785 = vmax.f32 %v2494, 0.0
    %v2786 = vmax.f32 %v2496, 0.0
    %v2787 = vmax.f32 %v2499, 0.0
    %v2788 = vmax.f32 %v2501, 0.0
    %v2789 = vmax.f32 %v2504, 0.0
    %v2790 = vmax.f32 %v2506, 0.0
    %v2791 = vmax.f32 %v2509, 0.0
    %v2792 = vmax.f32 %v2511, 0.0
    %v2793 = vmax.f32 %v2514, 0.0
    %v2794 = vmax.f32 %v2516, 0.0
    %v2795 = vmax.f32 %v2519, 0.0
    %v2796 = vmax.f32 %v2521, 0.0
    %v2797 = vmax.f32 %v2524, 0.0
    %v2798 = vmax.f32 %v2526, 0.0
    %v2799 = vmax.f32 %v2529, 0.0
    %v2800 = vmax.f32 %v2531, 0.0
    %v2801 = vmax.f32 %v2534, 0.0
    %v2802 = vmax.f32 %v2536, 0.0
    %v2803 = vmax.f32 %v2539, 0.0
    %v2804 = vmax.f32 %v2541, 0.0
    %v2805 = vmax.f32 %v2544, 0.0
    %v2806 = vmax.f32 %v2546, 0.0
    %v2807 = vmax.f32 %v2549, 0.0
    %v2808 = vmax.f32 %v2551, 0.0
    %v2809 = vpack.c.bf16 %v2554, %v2553
    %v2810 = vpack.c.bf16 %v2556, %v2555
    %v2811 = vpack.c.bf16 %v2558, %v2557
    %v2812 = vpack.c.bf16 %v2560, %v2559
    %v2813 = vpack.c.bf16 %v2562, %v2561
    %v2814 = vpack.c.bf16 %v2564, %v2563
    %v2815 = vpack.c.bf16 %v2566, %v2565
    %v2816 = vpack.c.bf16 %v2568, %v2567
    %v2817 = vpack.c.bf16 %v2570, %v2569
    %v2818 = vpack.c.bf16 %v2572, %v2571
    %v2819 = vpack.c.bf16 %v2574, %v2573
    %v2820 = vpack.c.bf16 %v2576, %v2575
    %v2821 = vpack.c.bf16 %v2578, %v2577
    %v2822 = vpack.c.bf16 %v2580, %v2579
    %v2823 = vpack.c.bf16 %v2582, %v2581
    %v2824 = vpack.c.bf16 %v2584, %v2583
    %v2825 = vpack.c.bf16 %v2586, %v2585
    %v2826 = vpack.c.bf16 %v2588, %v2587
    %v2827 = vpack.c.bf16 %v2590, %v2589
    %v2828 = vpack.c.bf16 %v2592, %v2591
    %v2829 = vpack.c.bf16 %v2594, %v2593
    %v2830 = vpack.c.bf16 %v2596, %v2595
    %v2831 = vpack.c.bf16 %v2598, %v2597
    %v2832 = vpack.c.bf16 %v2600, %v2599
    %v2833 = vpack.c.bf16 %v2602, %v2601
    %v2834 = vpack.c.bf16 %v2604, %v2603
    %v2835 = vpack.c.bf16 %v2606, %v2605
    %v2836 = vpack.c.bf16 %v2608, %v2607
    %v2837 = vpack.c.bf16 %v2610, %v2609
    %v2838 = vpack.c.bf16 %v2612, %v2611
    %v2839 = vpack.c.bf16 %v2614, %v2613
    %v2840 = vpack.c.bf16 %v2616, %v2615
    %v2841 = vpack.c.bf16 %v2618, %v2617
    %v2842 = vpack.c.bf16 %v2620, %v2619
    %v2843 = vpack.c.bf16 %v2622, %v2621
    %v2844 = vpack.c.bf16 %v2624, %v2623
    %v2845 = vpack.c.bf16 %v2626, %v2625
    %v2846 = vpack.c.bf16 %v2628, %v2627
    %v2847 = vpack.c.bf16 %v2630, %v2629
    %v2848 = vpack.c.bf16 %v2632, %v2631
    %v2849 = vpack.c.bf16 %v2634, %v2633
    %v2850 = vpack.c.bf16 %v2636, %v2635
    %v2851 = vpack.c.bf16 %v2638, %v2637
    %v2852 = vpack.c.bf16 %v2640, %v2639
    %v2853 = vpack.c.bf16 %v2642, %v2641
    %v2854 = vpack.c.bf16 %v2644, %v2643
    %v2855 = vpack.c.bf16 %v2646, %v2645
    %v2856 = vpack.c.bf16 %v2648, %v2647
    %v2857 = vpack.c.bf16 %v2650, %v2649
    %v2858 = vpack.c.bf16 %v2652, %v2651
    %v2859 = vpack.c.bf16 %v2654, %v2653
    %v2860 = vpack.c.bf16 %v2656, %v2655
    %v2861 = vpack.c.bf16 %v2658, %v2657
    %v2862 = vpack.c.bf16 %v2660, %v2659
    %v2863 = vpack.c.bf16 %v2662, %v2661
    %v2864 = vpack.c.bf16 %v2664, %v2663
    %v2865 = vpack.c.bf16 %v2666, %v2665
    %v2866 = vpack.c.bf16 %v2668, %v2667
    %v2867 = vpack.c.bf16 %v2670, %v2669
    %v2868 = vpack.c.bf16 %v2672, %v2671
    %v2869 = vpack.c.bf16 %v2674, %v2673
    %v2870 = vpack.c.bf16 %v2676, %v2675
    %v2871 = vpack.c.bf16 %v2678, %v2677
    %v2872 = vpack.c.bf16 %v2680, %v2679
    %v2873 = vpack.c.bf16 %v2682, %v2681
    %v2874 = vpack.c.bf16 %v2684, %v2683
    %v2875 = vpack.c.bf16 %v2686, %v2685
    %v2876 = vpack.c.bf16 %v2688, %v2687
    %v2877 = vpack.c.bf16 %v2690, %v2689
    %v2878 = vpack.c.bf16 %v2692, %v2691
    %v2879 = vpack.c.bf16 %v2694, %v2693
    %v2880 = vpack.c.bf16 %v2696, %v2695
    %v2881 = vpack.c.bf16 %v2698, %v2697
    %v2882 = vpack.c.bf16 %v2700, %v2699
    %v2883 = vpack.c.bf16 %v2702, %v2701
    %v2884 = vpack.c.bf16 %v2704, %v2703
    %v2885 = vpack.c.bf16 %v2706, %v2705
    %v2886 = vpack.c.bf16 %v2708, %v2707
    %v2887 = vpack.c.bf16 %v2710, %v2709
    %v2888 = vpack.c.bf16 %v2712, %v2711
    %v2889 = vpack.c.bf16 %v2714, %v2713
    %v2890 = vpack.c.bf16 %v2716, %v2715
    %v2891 = vpack.c.bf16 %v2718, %v2717
    %v2892 = vpack.c.bf16 %v2720, %v2719
    %v2893 = vpack.c.bf16 %v2722, %v2721
    %v2894 = vpack.c.bf16 %v2724, %v2723
    %v2895 = vpack.c.bf16 %v2726, %v2725
    %v2896 = vpack.c.bf16 %v2728, %v2727
    %v2897 = vpack.c.bf16 %v2730, %v2729
    %v2898 = vpack.c.bf16 %v2732, %v2731
    %v2899 = vpack.c.bf16 %v2734, %v2733
    %v2900 = vpack.c.bf16 %v2736, %v2735
    %v2901 = vpack.c.bf16 %v2738, %v2737
    %v2902 = vpack.c.bf16 %v2740, %v2739
    %v2903 = vpack.c.bf16 %v2742, %v2741
    %v2904 = vpack.c.bf16 %v2744, %v2743
    %v2905 = vpack.c.bf16 %v2746, %v2745
    %v2906 = vpack.c.bf16 %v2748, %v2747
    %v2907 = vpack.c.bf16 %v2750, %v2749
    %v2908 = vpack.c.bf16 %v2752, %v2751
    %v2909 = vpack.c.bf16 %v2754, %v2753
    %v2910 = vpack.c.bf16 %v2756, %v2755
    %v2911 = vpack.c.bf16 %v2758, %v2757
    %v2912 = vpack.c.bf16 %v2760, %v2759
    %v2913 = vpack.c.bf16 %v2762, %v2761
    %v2914 = vpack.c.bf16 %v2764, %v2763
    %v2915 = vpack.c.bf16 %v2766, %v2765
    %v2916 = vpack.c.bf16 %v2768, %v2767
    %v2917 = vpack.c.bf16 %v2770, %v2769
    %v2918 = vpack.c.bf16 %v2772, %v2771
    %v2919 = vpack.c.bf16 %v2774, %v2773
    %v2920 = vpack.c.bf16 %v2776, %v2775
    %v2921 = vpack.c.bf16 %v2778, %v2777
    %v2922 = vpack.c.bf16 %v2780, %v2779
    %v2923 = vpack.c.bf16 %v2782, %v2781
    %v2924 = vpack.c.bf16 %v2784, %v2783
    %v2925 = vpack.c.bf16 %v2786, %v2785
    %v2926 = vpack.c.bf16 %v2788, %v2787
    %v2927 = vpack.c.bf16 %v2790, %v2789
    %v2928 = vpack.c.bf16 %v2792, %v2791
    %v2929 = vpack.c.bf16 %v2794, %v2793
    %v2930 = vpack.c.bf16 %v2796, %v2795
    %v2931 = vpack.c.bf16 %v2798, %v2797
    %v2932 = vpack.c.bf16 %v2800, %v2799
    %v2933 = vpack.c.bf16 %v2802, %v2801
    %v2934 = vpack.c.bf16 %v2804, %v2803
    %v2935 = vpack.c.bf16 %v2806, %v2805
    %v2936 = vpack.c.bf16 %v2808, %v2807
    %s2937 = scalar_lea.vmem %s3, 64
    %v2938 = vld [vmem:[%s2937] sm:$0xf]
    %v2939 = vld [vmem:[%s2937 + $0x4] sm:$0xf]
    %v2940 = vld [vmem:[%s2937 + $0x8] sm:$0xf]
    %v2941 = vld [vmem:[%s2937 + $0xc] sm:$0xf]
    %v2942 = vld [vmem:[%s2937 + $0x10] sm:$0xf]
    %v2943 = vld [vmem:[%s2937 + $0x14] sm:$0xf]
    %v2944 = vld [vmem:[%s2937 + $0x18] sm:$0xf]
    %v2945 = vld [vmem:[%s2937 + $0x1c] sm:$0xf]
    %v2946 = vld [vmem:[%s2937 + $0x20] sm:$0xf]
    %v2947 = vld [vmem:[%s2937 + $0x24] sm:$0xf]
    %v2948 = vld [vmem:[%s2937 + $0x28] sm:$0xf]
    %v2949 = vld [vmem:[%s2937 + $0x2c] sm:$0xf]
    %v2950 = vld [vmem:[%s2937 + $0x30] sm:$0xf]
    %v2951 = vld [vmem:[%s2937 + $0x34] sm:$0xf]
    %v2952 = vld [vmem:[%s2937 + $0x38] sm:$0xf]
    %v2953 = vld [vmem:[%s2937 + $0x3c] sm:$0xf]
    %s2954 = scalar_lea.vmem %s4, 1
    %v2955 = vld [vmem:[%s2954] sm:$0x1]
    %v2957 = vperm.slane %v2955, 0
    %v2975 = vunpack.c.l.b16 %v2938
    %v2976 = vunpack.c.l.b16 %v2939
    %v2977 = vunpack.c.l.b16 %v2940
    %v2978 = vunpack.c.l.b16 %v2941
    %v2979 = vunpack.c.l.b16 %v2942
    %v2980 = vunpack.c.l.b16 %v2943
    %v2981 = vunpack.c.l.b16 %v2944
    %v2982 = vunpack.c.l.b16 %v2945
    %v2983 = vunpack.c.l.b16 %v2946
    %v2984 = vunpack.c.l.b16 %v2947
    %v2985 = vunpack.c.l.b16 %v2948
    %v2986 = vunpack.c.l.b16 %v2949
    %v2987 = vunpack.c.l.b16 %v2950
    %v2988 = vunpack.c.l.b16 %v2951
    %v2989 = vunpack.c.l.b16 %v2952
    %v2990 = vunpack.c.l.b16 %v2953
    %v2991 = vpack.c.b16 %v2976, %v2975
    %v2992 = vpack.c.b16 %v2978, %v2977
    %v2993 = vpack.c.b16 %v2980, %v2979
    %v2994 = vpack.c.b16 %v2982, %v2981
    %v2995 = vpack.c.b16 %v2984, %v2983
    %v2996 = vpack.c.b16 %v2986, %v2985
    %v2997 = vpack.c.b16 %v2988, %v2987
    %v2998 = vpack.c.b16 %v2990, %v2989
    %3007 = vmatpush.bf16.msra.mxu0 %v2998
    %3008 = vmatpush.bf16.msra.mxu0 %v2997
    %3009 = vmatpush.bf16.msra.mxu0 %v2996
    %3010 = vmatpush.bf16.msra.mxu0 %v2995
    %3011 = vmatpush.bf16.msra.mxu0 %v2994
    %3012 = vmatpush.bf16.msra.mxu0 %v2993
    %3013 = vmatpush.bf16.msra.mxu0 %v2992
    %3014 = vmatpush.bf16.msra.mxu0 %v2991
    %3015 = vmatmul.bf16.gmra.mxu0 %v2809
    %v3016 = vpop.f32.mrf.mxu0
    %v3017 = vadd.f32 %v2957, %v3016
    %v3018 = vpop.f32.mrf.mxu0
    %v3019 = vadd.f32 %v2957, %v3018
    %3020 = vmatmul.bf16.gmra.mxu0 %v2810
    %v3021 = vpop.f32.mrf.mxu0
    %v3022 = vadd.f32 %v2957, %v3021
    %v3023 = vpop.f32.mrf.mxu0
    %v3024 = vadd.f32 %v2957, %v3023
    %3025 = vmatmul.bf16.gmra.mxu0 %v2811
    %v3026 = vpop.f32.mrf.mxu0
    %v3027 = vadd.f32 %v2957, %v3026
    %v3028 = vpop.f32.mrf.mxu0
    %v3029 = vadd.f32 %v2957, %v3028
    %3030 = vmatmul.bf16.gmra.mxu0 %v2812
    %v3031 = vpop.f32.mrf.mxu0
    %v3032 = vadd.f32 %v2957, %v3031
    %v3033 = vpop.f32.mrf.mxu0
    %v3034 = vadd.f32 %v2957, %v3033
    %3035 = vmatmul.bf16.gmra.mxu0 %v2813
    %v3036 = vpop.f32.mrf.mxu0
    %v3037 = vadd.f32 %v2957, %v3036
    %v3038 = vpop.f32.mrf.mxu0
    %v3039 = vadd.f32 %v2957, %v3038
    %3040 = vmatmul.bf16.gmra.mxu0 %v2814
    %v3041 = vpop.f32.mrf.mxu0
    %v3042 = vadd.f32 %v2957, %v3041
    %v3043 = vpop.f32.mrf.mxu0
    %v3044 = vadd.f32 %v2957, %v3043
    %3045 = vmatmul.bf16.gmra.mxu0 %v2815
    %v3046 = vpop.f32.mrf.mxu0
    %v3047 = vadd.f32 %v2957, %v3046
    %v3048 = vpop.f32.mrf.mxu0
    %v3049 = vadd.f32 %v2957, %v3048
    %3050 = vmatmul.bf16.gmra.mxu0 %v2816
    %v3051 = vpop.f32.mrf.mxu0
    %v3052 = vadd.f32 %v2957, %v3051
    %v3053 = vpop.f32.mrf.mxu0
    %v3054 = vadd.f32 %v2957, %v3053
    %3055 = vmatmul.bf16.gmra.mxu0 %v2817
    %v3056 = vpop.f32.mrf.mxu0
    %v3057 = vadd.f32 %v2957, %v3056
    %v3058 = vpop.f32.mrf.mxu0
    %v3059 = vadd.f32 %v2957, %v3058
    %3060 = vmatmul.bf16.gmra.mxu0 %v2818
    %v3061 = vpop.f32.mrf.mxu0
    %v3062 = vadd.f32 %v2957, %v3061
    %v3063 = vpop.f32.mrf.mxu0
    %v3064 = vadd.f32 %v2957, %v3063
    %3065 = vmatmul.bf16.gmra.mxu0 %v2819
    %v3066 = vpop.f32.mrf.mxu0
    %v3067 = vadd.f32 %v2957, %v3066
    %v3068 = vpop.f32.mrf.mxu0
    %v3069 = vadd.f32 %v2957, %v3068
    %3070 = vmatmul.bf16.gmra.mxu0 %v2820
    %v3071 = vpop.f32.mrf.mxu0
    %v3072 = vadd.f32 %v2957, %v3071
    %v3073 = vpop.f32.mrf.mxu0
    %v3074 = vadd.f32 %v2957, %v3073
    %3075 = vmatmul.bf16.gmra.mxu0 %v2821
    %v3076 = vpop.f32.mrf.mxu0
    %v3077 = vadd.f32 %v2957, %v3076
    %v3078 = vpop.f32.mrf.mxu0
    %v3079 = vadd.f32 %v2957, %v3078
    %3080 = vmatmul.bf16.gmra.mxu0 %v2822
    %v3081 = vpop.f32.mrf.mxu0
    %v3082 = vadd.f32 %v2957, %v3081
    %v3083 = vpop.f32.mrf.mxu0
    %v3084 = vadd.f32 %v2957, %v3083
    %3085 = vmatmul.bf16.gmra.mxu0 %v2823
    %v3086 = vpop.f32.mrf.mxu0
    %v3087 = vadd.f32 %v2957, %v3086
    %v3088 = vpop.f32.mrf.mxu0
    %v3089 = vadd.f32 %v2957, %v3088
    %3090 = vmatmul.bf16.gmra.mxu0 %v2824
    %v3091 = vpop.f32.mrf.mxu0
    %v3092 = vadd.f32 %v2957, %v3091
    %v3093 = vpop.f32.mrf.mxu0
    %v3094 = vadd.f32 %v2957, %v3093
    %3095 = vmatmul.bf16.gmra.mxu0 %v2825
    %v3096 = vpop.f32.mrf.mxu0
    %v3097 = vadd.f32 %v2957, %v3096
    %v3098 = vpop.f32.mrf.mxu0
    %v3099 = vadd.f32 %v2957, %v3098
    %3100 = vmatmul.bf16.gmra.mxu0 %v2826
    %v3101 = vpop.f32.mrf.mxu0
    %v3102 = vadd.f32 %v2957, %v3101
    %v3103 = vpop.f32.mrf.mxu0
    %v3104 = vadd.f32 %v2957, %v3103
    %3105 = vmatmul.bf16.gmra.mxu0 %v2827
    %v3106 = vpop.f32.mrf.mxu0
    %v3107 = vadd.f32 %v2957, %v3106
    %v3108 = vpop.f32.mrf.mxu0
    %v3109 = vadd.f32 %v2957, %v3108
    %3110 = vmatmul.bf16.gmra.mxu0 %v2828
    %v3111 = vpop.f32.mrf.mxu0
    %v3112 = vadd.f32 %v2957, %v3111
    %v3113 = vpop.f32.mrf.mxu0
    %v3114 = vadd.f32 %v2957, %v3113
    %3115 = vmatmul.bf16.gmra.mxu0 %v2829
    %v3116 = vpop.f32.mrf.mxu0
    %v3117 = vadd.f32 %v2957, %v3116
    %v3118 = vpop.f32.mrf.mxu0
    %v3119 = vadd.f32 %v2957, %v3118
    %3120 = vmatmul.bf16.gmra.mxu0 %v2830
    %v3121 = vpop.f32.mrf.mxu0
    %v3122 = vadd.f32 %v2957, %v3121
    %v3123 = vpop.f32.mrf.mxu0
    %v3124 = vadd.f32 %v2957, %v3123
    %3125 = vmatmul.bf16.gmra.mxu0 %v2831
    %v3126 = vpop.f32.mrf.mxu0
    %v3127 = vadd.f32 %v2957, %v3126
    %v3128 = vpop.f32.mrf.mxu0
    %v3129 = vadd.f32 %v2957, %v3128
    %3130 = vmatmul.bf16.gmra.mxu0 %v2832
    %v3131 = vpop.f32.mrf.mxu0
    %v3132 = vadd.f32 %v2957, %v3131
    %v3133 = vpop.f32.mrf.mxu0
    %v3134 = vadd.f32 %v2957, %v3133
    %3135 = vmatmul.bf16.gmra.mxu0 %v2833
    %v3136 = vpop.f32.mrf.mxu0
    %v3137 = vadd.f32 %v2957, %v3136
    %v3138 = vpop.f32.mrf.mxu0
    %v3139 = vadd.f32 %v2957, %v3138
    %3140 = vmatmul.bf16.gmra.mxu0 %v2834
    %v3141 = vpop.f32.mrf.mxu0
    %v3142 = vadd.f32 %v2957, %v3141
    %v3143 = vpop.f32.mrf.mxu0
    %v3144 = vadd.f32 %v2957, %v3143
    %3145 = vmatmul.bf16.gmra.mxu0 %v2835
    %v3146 = vpop.f32.mrf.mxu0
    %v3147 = vadd.f32 %v2957, %v3146
    %v3148 = vpop.f32.mrf.mxu0
    %v3149 = vadd.f32 %v2957, %v3148
    %3150 = vmatmul.bf16.gmra.mxu0 %v2836
    %v3151 = vpop.f32.mrf.mxu0
    %v3152 = vadd.f32 %v2957, %v3151
    %v3153 = vpop.f32.mrf.mxu0
    %v3154 = vadd.f32 %v2957, %v3153
    %3155 = vmatmul.bf16.gmra.mxu0 %v2837
    %v3156 = vpop.f32.mrf.mxu0
    %v3157 = vadd.f32 %v2957, %v3156
    %v3158 = vpop.f32.mrf.mxu0
    %v3159 = vadd.f32 %v2957, %v3158
    %3160 = vmatmul.bf16.gmra.mxu0 %v2838
    %v3161 = vpop.f32.mrf.mxu0
    %v3162 = vadd.f32 %v2957, %v3161
    %v3163 = vpop.f32.mrf.mxu0
    %v3164 = vadd.f32 %v2957, %v3163
    %3165 = vmatmul.bf16.gmra.mxu0 %v2839
    %v3166 = vpop.f32.mrf.mxu0
    %v3167 = vadd.f32 %v2957, %v3166
    %v3168 = vpop.f32.mrf.mxu0
    %v3169 = vadd.f32 %v2957, %v3168
    %3170 = vmatmul.bf16.gmra.mxu0 %v2840
    %v3171 = vpop.f32.mrf.mxu0
    %v3172 = vadd.f32 %v2957, %v3171
    %v3173 = vpop.f32.mrf.mxu0
    %v3174 = vadd.f32 %v2957, %v3173
    %3175 = vmatmul.bf16.gmra.mxu0 %v2841
    %v3176 = vpop.f32.mrf.mxu0
    %v3177 = vadd.f32 %v2957, %v3176
    %v3178 = vpop.f32.mrf.mxu0
    %v3179 = vadd.f32 %v2957, %v3178
    %3180 = vmatmul.bf16.gmra.mxu0 %v2842
    %v3181 = vpop.f32.mrf.mxu0
    %v3182 = vadd.f32 %v2957, %v3181
    %v3183 = vpop.f32.mrf.mxu0
    %v3184 = vadd.f32 %v2957, %v3183
    %3185 = vmatmul.bf16.gmra.mxu0 %v2843
    %v3186 = vpop.f32.mrf.mxu0
    %v3187 = vadd.f32 %v2957, %v3186
    %v3188 = vpop.f32.mrf.mxu0
    %v3189 = vadd.f32 %v2957, %v3188
    %3190 = vmatmul.bf16.gmra.mxu0 %v2844
    %v3191 = vpop.f32.mrf.mxu0
    %v3192 = vadd.f32 %v2957, %v3191
    %v3193 = vpop.f32.mrf.mxu0
    %v3194 = vadd.f32 %v2957, %v3193
    %3195 = vmatmul.bf16.gmra.mxu0 %v2845
    %v3196 = vpop.f32.mrf.mxu0
    %v3197 = vadd.f32 %v2957, %v3196
    %v3198 = vpop.f32.mrf.mxu0
    %v3199 = vadd.f32 %v2957, %v3198
    %3200 = vmatmul.bf16.gmra.mxu0 %v2846
    %v3201 = vpop.f32.mrf.mxu0
    %v3202 = vadd.f32 %v2957, %v3201
    %v3203 = vpop.f32.mrf.mxu0
    %v3204 = vadd.f32 %v2957, %v3203
    %3205 = vmatmul.bf16.gmra.mxu0 %v2847
    %v3206 = vpop.f32.mrf.mxu0
    %v3207 = vadd.f32 %v2957, %v3206
    %v3208 = vpop.f32.mrf.mxu0
    %v3209 = vadd.f32 %v2957, %v3208
    %3210 = vmatmul.bf16.gmra.mxu0 %v2848
    %v3211 = vpop.f32.mrf.mxu0
    %v3212 = vadd.f32 %v2957, %v3211
    %v3213 = vpop.f32.mrf.mxu0
    %v3214 = vadd.f32 %v2957, %v3213
    %3215 = vmatmul.bf16.gmra.mxu0 %v2849
    %v3216 = vpop.f32.mrf.mxu0
    %v3217 = vadd.f32 %v2957, %v3216
    %v3218 = vpop.f32.mrf.mxu0
    %v3219 = vadd.f32 %v2957, %v3218
    %3220 = vmatmul.bf16.gmra.mxu0 %v2850
    %v3221 = vpop.f32.mrf.mxu0
    %v3222 = vadd.f32 %v2957, %v3221
    %v3223 = vpop.f32.mrf.mxu0
    %v3224 = vadd.f32 %v2957, %v3223
    %3225 = vmatmul.bf16.gmra.mxu0 %v2851
    %v3226 = vpop.f32.mrf.mxu0
    %v3227 = vadd.f32 %v2957, %v3226
    %v3228 = vpop.f32.mrf.mxu0
    %v3229 = vadd.f32 %v2957, %v3228
    %3230 = vmatmul.bf16.gmra.mxu0 %v2852
    %v3231 = vpop.f32.mrf.mxu0
    %v3232 = vadd.f32 %v2957, %v3231
    %v3233 = vpop.f32.mrf.mxu0
    %v3234 = vadd.f32 %v2957, %v3233
    %3235 = vmatmul.bf16.gmra.mxu0 %v2853
    %v3236 = vpop.f32.mrf.mxu0
    %v3237 = vadd.f32 %v2957, %v3236
    %v3238 = vpop.f32.mrf.mxu0
    %v3239 = vadd.f32 %v2957, %v3238
    %3240 = vmatmul.bf16.gmra.mxu0 %v2854
    %v3241 = vpop.f32.mrf.mxu0
    %v3242 = vadd.f32 %v2957, %v3241
    %v3243 = vpop.f32.mrf.mxu0
    %v3244 = vadd.f32 %v2957, %v3243
    %3245 = vmatmul.bf16.gmra.mxu0 %v2855
    %v3246 = vpop.f32.mrf.mxu0
    %v3247 = vadd.f32 %v2957, %v3246
    %v3248 = vpop.f32.mrf.mxu0
    %v3249 = vadd.f32 %v2957, %v3248
    %3250 = vmatmul.bf16.gmra.mxu0 %v2856
    %v3251 = vpop.f32.mrf.mxu0
    %v3252 = vadd.f32 %v2957, %v3251
    %v3253 = vpop.f32.mrf.mxu0
    %v3254 = vadd.f32 %v2957, %v3253
    %3255 = vmatmul.bf16.gmra.mxu0 %v2857
    %v3256 = vpop.f32.mrf.mxu0
    %v3257 = vadd.f32 %v2957, %v3256
    %v3258 = vpop.f32.mrf.mxu0
    %v3259 = vadd.f32 %v2957, %v3258
    %3260 = vmatmul.bf16.gmra.mxu0 %v2858
    %v3261 = vpop.f32.mrf.mxu0
    %v3262 = vadd.f32 %v2957, %v3261
    %v3263 = vpop.f32.mrf.mxu0
    %v3264 = vadd.f32 %v2957, %v3263
    %3265 = vmatmul.bf16.gmra.mxu0 %v2859
    %v3266 = vpop.f32.mrf.mxu0
    %v3267 = vadd.f32 %v2957, %v3266
    %v3268 = vpop.f32.mrf.mxu0
    %v3269 = vadd.f32 %v2957, %v3268
    %3270 = vmatmul.bf16.gmra.mxu0 %v2860
    %v3271 = vpop.f32.mrf.mxu0
    %v3272 = vadd.f32 %v2957, %v3271
    %v3273 = vpop.f32.mrf.mxu0
    %v3274 = vadd.f32 %v2957, %v3273
    %3275 = vmatmul.bf16.gmra.mxu0 %v2861
    %v3276 = vpop.f32.mrf.mxu0
    %v3277 = vadd.f32 %v2957, %v3276
    %v3278 = vpop.f32.mrf.mxu0
    %v3279 = vadd.f32 %v2957, %v3278
    %3280 = vmatmul.bf16.gmra.mxu0 %v2862
    %v3281 = vpop.f32.mrf.mxu0
    %v3282 = vadd.f32 %v2957, %v3281
    %v3283 = vpop.f32.mrf.mxu0
    %v3284 = vadd.f32 %v2957, %v3283
    %3285 = vmatmul.bf16.gmra.mxu0 %v2863
    %v3286 = vpop.f32.mrf.mxu0
    %v3287 = vadd.f32 %v2957, %v3286
    %v3288 = vpop.f32.mrf.mxu0
    %v3289 = vadd.f32 %v2957, %v3288
    %3290 = vmatmul.bf16.gmra.mxu0 %v2864
    %v3291 = vpop.f32.mrf.mxu0
    %v3292 = vadd.f32 %v2957, %v3291
    %v3293 = vpop.f32.mrf.mxu0
    %v3294 = vadd.f32 %v2957, %v3293
    %3295 = vmatmul.bf16.gmra.mxu0 %v2865
    %v3296 = vpop.f32.mrf.mxu0
    %v3297 = vadd.f32 %v2957, %v3296
    %v3298 = vpop.f32.mrf.mxu0
    %v3299 = vadd.f32 %v2957, %v3298
    %3300 = vmatmul.bf16.gmra.mxu0 %v2866
    %v3301 = vpop.f32.mrf.mxu0
    %v3302 = vadd.f32 %v2957, %v3301
    %v3303 = vpop.f32.mrf.mxu0
    %v3304 = vadd.f32 %v2957, %v3303
    %3305 = vmatmul.bf16.gmra.mxu0 %v2867
    %v3306 = vpop.f32.mrf.mxu0
    %v3307 = vadd.f32 %v2957, %v3306
    %v3308 = vpop.f32.mrf.mxu0
    %v3309 = vadd.f32 %v2957, %v3308
    %3310 = vmatmul.bf16.gmra.mxu0 %v2868
    %v3311 = vpop.f32.mrf.mxu0
    %v3312 = vadd.f32 %v2957, %v3311
    %v3313 = vpop.f32.mrf.mxu0
    %v3314 = vadd.f32 %v2957, %v3313
    %3315 = vmatmul.bf16.gmra.mxu0 %v2869
    %v3316 = vpop.f32.mrf.mxu0
    %v3317 = vadd.f32 %v2957, %v3316
    %v3318 = vpop.f32.mrf.mxu0
    %v3319 = vadd.f32 %v2957, %v3318
    %3320 = vmatmul.bf16.gmra.mxu0 %v2870
    %v3321 = vpop.f32.mrf.mxu0
    %v3322 = vadd.f32 %v2957, %v3321
    %v3323 = vpop.f32.mrf.mxu0
    %v3324 = vadd.f32 %v2957, %v3323
    %3325 = vmatmul.bf16.gmra.mxu0 %v2871
    %v3326 = vpop.f32.mrf.mxu0
    %v3327 = vadd.f32 %v2957, %v3326
    %v3328 = vpop.f32.mrf.mxu0
    %v3329 = vadd.f32 %v2957, %v3328
    %3330 = vmatmul.bf16.gmra.mxu0 %v2872
    %v3331 = vpop.f32.mrf.mxu0
    %v3332 = vadd.f32 %v2957, %v3331
    %v3333 = vpop.f32.mrf.mxu0
    %v3334 = vadd.f32 %v2957, %v3333
    %3335 = vmatmul.bf16.gmra.mxu0 %v2873
    %v3336 = vpop.f32.mrf.mxu0
    %v3337 = vadd.f32 %v2957, %v3336
    %v3338 = vpop.f32.mrf.mxu0
    %v3339 = vadd.f32 %v2957, %v3338
    %3340 = vmatmul.bf16.gmra.mxu0 %v2874
    %v3341 = vpop.f32.mrf.mxu0
    %v3342 = vadd.f32 %v2957, %v3341
    %v3343 = vpop.f32.mrf.mxu0
    %v3344 = vadd.f32 %v2957, %v3343
    %3345 = vmatmul.bf16.gmra.mxu0 %v2875
    %v3346 = vpop.f32.mrf.mxu0
    %v3347 = vadd.f32 %v2957, %v3346
    %v3348 = vpop.f32.mrf.mxu0
    %v3349 = vadd.f32 %v2957, %v3348
    %3350 = vmatmul.bf16.gmra.mxu0 %v2876
    %v3351 = vpop.f32.mrf.mxu0
    %v3352 = vadd.f32 %v2957, %v3351
    %v3353 = vpop.f32.mrf.mxu0
    %v3354 = vadd.f32 %v2957, %v3353
    %3355 = vmatmul.bf16.gmra.mxu0 %v2877
    %v3356 = vpop.f32.mrf.mxu0
    %v3357 = vadd.f32 %v2957, %v3356
    %v3358 = vpop.f32.mrf.mxu0
    %v3359 = vadd.f32 %v2957, %v3358
    %3360 = vmatmul.bf16.gmra.mxu0 %v2878
    %v3361 = vpop.f32.mrf.mxu0
    %v3362 = vadd.f32 %v2957, %v3361
    %v3363 = vpop.f32.mrf.mxu0
    %v3364 = vadd.f32 %v2957, %v3363
    %3365 = vmatmul.bf16.gmra.mxu0 %v2879
    %v3366 = vpop.f32.mrf.mxu0
    %v3367 = vadd.f32 %v2957, %v3366
    %v3368 = vpop.f32.mrf.mxu0
    %v3369 = vadd.f32 %v2957, %v3368
    %3370 = vmatmul.bf16.gmra.mxu0 %v2880
    %v3371 = vpop.f32.mrf.mxu0
    %v3372 = vadd.f32 %v2957, %v3371
    %v3373 = vpop.f32.mrf.mxu0
    %v3374 = vadd.f32 %v2957, %v3373
    %3375 = vmatmul.bf16.gmra.mxu0 %v2881
    %v3376 = vpop.f32.mrf.mxu0
    %v3377 = vadd.f32 %v2957, %v3376
    %v3378 = vpop.f32.mrf.mxu0
    %v3379 = vadd.f32 %v2957, %v3378
    %3380 = vmatmul.bf16.gmra.mxu0 %v2882
    %v3381 = vpop.f32.mrf.mxu0
    %v3382 = vadd.f32 %v2957, %v3381
    %v3383 = vpop.f32.mrf.mxu0
    %v3384 = vadd.f32 %v2957, %v3383
    %3385 = vmatmul.bf16.gmra.mxu0 %v2883
    %v3386 = vpop.f32.mrf.mxu0
    %v3387 = vadd.f32 %v2957, %v3386
    %v3388 = vpop.f32.mrf.mxu0
    %v3389 = vadd.f32 %v2957, %v3388
    %3390 = vmatmul.bf16.gmra.mxu0 %v2884
    %v3391 = vpop.f32.mrf.mxu0
    %v3392 = vadd.f32 %v2957, %v3391
    %v3393 = vpop.f32.mrf.mxu0
    %v3394 = vadd.f32 %v2957, %v3393
    %3395 = vmatmul.bf16.gmra.mxu0 %v2885
    %v3396 = vpop.f32.mrf.mxu0
    %v3397 = vadd.f32 %v2957, %v3396
    %v3398 = vpop.f32.mrf.mxu0
    %v3399 = vadd.f32 %v2957, %v3398
    %3400 = vmatmul.bf16.gmra.mxu0 %v2886
    %v3401 = vpop.f32.mrf.mxu0
    %v3402 = vadd.f32 %v2957, %v3401
    %v3403 = vpop.f32.mrf.mxu0
    %v3404 = vadd.f32 %v2957, %v3403
    %3405 = vmatmul.bf16.gmra.mxu0 %v2887
    %v3406 = vpop.f32.mrf.mxu0
    %v3407 = vadd.f32 %v2957, %v3406
    %v3408 = vpop.f32.mrf.mxu0
    %v3409 = vadd.f32 %v2957, %v3408
    %3410 = vmatmul.bf16.gmra.mxu0 %v2888
    %v3411 = vpop.f32.mrf.mxu0
    %v3412 = vadd.f32 %v2957, %v3411
    %v3413 = vpop.f32.mrf.mxu0
    %v3414 = vadd.f32 %v2957, %v3413
    %3415 = vmatmul.bf16.gmra.mxu0 %v2889
    %v3416 = vpop.f32.mrf.mxu0
    %v3417 = vadd.f32 %v2957, %v3416
    %v3418 = vpop.f32.mrf.mxu0
    %v3419 = vadd.f32 %v2957, %v3418
    %3420 = vmatmul.bf16.gmra.mxu0 %v2890
    %v3421 = vpop.f32.mrf.mxu0
    %v3422 = vadd.f32 %v2957, %v3421
    %v3423 = vpop.f32.mrf.mxu0
    %v3424 = vadd.f32 %v2957, %v3423
    %3425 = vmatmul.bf16.gmra.mxu0 %v2891
    %v3426 = vpop.f32.mrf.mxu0
    %v3427 = vadd.f32 %v2957, %v3426
    %v3428 = vpop.f32.mrf.mxu0
    %v3429 = vadd.f32 %v2957, %v3428
    %3430 = vmatmul.bf16.gmra.mxu0 %v2892
    %v3431 = vpop.f32.mrf.mxu0
    %v3432 = vadd.f32 %v2957, %v3431
    %v3433 = vpop.f32.mrf.mxu0
    %v3434 = vadd.f32 %v2957, %v3433
    %3435 = vmatmul.bf16.gmra.mxu0 %v2893
    %v3436 = vpop.f32.mrf.mxu0
    %v3437 = vadd.f32 %v2957, %v3436
    %v3438 = vpop.f32.mrf.mxu0
    %v3439 = vadd.f32 %v2957, %v3438
    %3440 = vmatmul.bf16.gmra.mxu0 %v2894
    %v3441 = vpop.f32.mrf.mxu0
    %v3442 = vadd.f32 %v2957, %v3441
    %v3443 = vpop.f32.mrf.mxu0
    %v3444 = vadd.f32 %v2957, %v3443
    %3445 = vmatmul.bf16.gmra.mxu0 %v2895
    %v3446 = vpop.f32.mrf.mxu0
    %v3447 = vadd.f32 %v2957, %v3446
    %v3448 = vpop.f32.mrf.mxu0
    %v3449 = vadd.f32 %v2957, %v3448
    %3450 = vmatmul.bf16.gmra.mxu0 %v2896
    %v3451 = vpop.f32.mrf.mxu0
    %v3452 = vadd.f32 %v2957, %v3451
    %v3453 = vpop.f32.mrf.mxu0
    %v3454 = vadd.f32 %v2957, %v3453
    %3455 = vmatmul.bf16.gmra.mxu0 %v2897
    %v3456 = vpop.f32.mrf.mxu0
    %v3457 = vadd.f32 %v2957, %v3456
    %v3458 = vpop.f32.mrf.mxu0
    %v3459 = vadd.f32 %v2957, %v3458
    %3460 = vmatmul.bf16.gmra.mxu0 %v2898
    %v3461 = vpop.f32.mrf.mxu0
    %v3462 = vadd.f32 %v2957, %v3461
    %v3463 = vpop.f32.mrf.mxu0
    %v3464 = vadd.f32 %v2957, %v3463
    %3465 = vmatmul.bf16.gmra.mxu0 %v2899
    %v3466 = vpop.f32.mrf.mxu0
    %v3467 = vadd.f32 %v2957, %v3466
    %v3468 = vpop.f32.mrf.mxu0
    %v3469 = vadd.f32 %v2957, %v3468
    %3470 = vmatmul.bf16.gmra.mxu0 %v2900
    %v3471 = vpop.f32.mrf.mxu0
    %v3472 = vadd.f32 %v2957, %v3471
    %v3473 = vpop.f32.mrf.mxu0
    %v3474 = vadd.f32 %v2957, %v3473
    %3475 = vmatmul.bf16.gmra.mxu0 %v2901
    %v3476 = vpop.f32.mrf.mxu0
    %v3477 = vadd.f32 %v2957, %v3476
    %v3478 = vpop.f32.mrf.mxu0
    %v3479 = vadd.f32 %v2957, %v3478
    %3480 = vmatmul.bf16.gmra.mxu0 %v2902
    %v3481 = vpop.f32.mrf.mxu0
    %v3482 = vadd.f32 %v2957, %v3481
    %v3483 = vpop.f32.mrf.mxu0
    %v3484 = vadd.f32 %v2957, %v3483
    %3485 = vmatmul.bf16.gmra.mxu0 %v2903
    %v3486 = vpop.f32.mrf.mxu0
    %v3487 = vadd.f32 %v2957, %v3486
    %v3488 = vpop.f32.mrf.mxu0
    %v3489 = vadd.f32 %v2957, %v3488
    %3490 = vmatmul.bf16.gmra.mxu0 %v2904
    %v3491 = vpop.f32.mrf.mxu0
    %v3492 = vadd.f32 %v2957, %v3491
    %v3493 = vpop.f32.mrf.mxu0
    %v3494 = vadd.f32 %v2957, %v3493
    %3495 = vmatmul.bf16.gmra.mxu0 %v2905
    %v3496 = vpop.f32.mrf.mxu0
    %v3497 = vadd.f32 %v2957, %v3496
    %v3498 = vpop.f32.mrf.mxu0
    %v3499 = vadd.f32 %v2957, %v3498
    %3500 = vmatmul.bf16.gmra.mxu0 %v2906
    %v3501 = vpop.f32.mrf.mxu0
    %v3502 = vadd.f32 %v2957, %v3501
    %v3503 = vpop.f32.mrf.mxu0
    %v3504 = vadd.f32 %v2957, %v3503
    %3505 = vmatmul.bf16.gmra.mxu0 %v2907
    %v3506 = vpop.f32.mrf.mxu0
    %v3507 = vadd.f32 %v2957, %v3506
    %v3508 = vpop.f32.mrf.mxu0
    %v3509 = vadd.f32 %v2957, %v3508
    %3510 = vmatmul.bf16.gmra.mxu0 %v2908
    %v3511 = vpop.f32.mrf.mxu0
    %v3512 = vadd.f32 %v2957, %v3511
    %v3513 = vpop.f32.mrf.mxu0
    %v3514 = vadd.f32 %v2957, %v3513
    %3515 = vmatmul.bf16.gmra.mxu0 %v2909
    %v3516 = vpop.f32.mrf.mxu0
    %v3517 = vadd.f32 %v2957, %v3516
    %v3518 = vpop.f32.mrf.mxu0
    %v3519 = vadd.f32 %v2957, %v3518
    %3520 = vmatmul.bf16.gmra.mxu0 %v2910
    %v3521 = vpop.f32.mrf.mxu0
    %v3522 = vadd.f32 %v2957, %v3521
    %v3523 = vpop.f32.mrf.mxu0
    %v3524 = vadd.f32 %v2957, %v3523
    %3525 = vmatmul.bf16.gmra.mxu0 %v2911
    %v3526 = vpop.f32.mrf.mxu0
    %v3527 = vadd.f32 %v2957, %v3526
    %v3528 = vpop.f32.mrf.mxu0
    %v3529 = vadd.f32 %v2957, %v3528
    %3530 = vmatmul.bf16.gmra.mxu0 %v2912
    %v3531 = vpop.f32.mrf.mxu0
    %v3532 = vadd.f32 %v2957, %v3531
    %v3533 = vpop.f32.mrf.mxu0
    %v3534 = vadd.f32 %v2957, %v3533
    %3535 = vmatmul.bf16.gmra.mxu0 %v2913
    %v3536 = vpop.f32.mrf.mxu0
    %v3537 = vadd.f32 %v2957, %v3536
    %v3538 = vpop.f32.mrf.mxu0
    %v3539 = vadd.f32 %v2957, %v3538
    %3540 = vmatmul.bf16.gmra.mxu0 %v2914
    %v3541 = vpop.f32.mrf.mxu0
    %v3542 = vadd.f32 %v2957, %v3541
    %v3543 = vpop.f32.mrf.mxu0
    %v3544 = vadd.f32 %v2957, %v3543
    %3545 = vmatmul.bf16.gmra.mxu0 %v2915
    %v3546 = vpop.f32.mrf.mxu0
    %v3547 = vadd.f32 %v2957, %v3546
    %v3548 = vpop.f32.mrf.mxu0
    %v3549 = vadd.f32 %v2957, %v3548
    %3550 = vmatmul.bf16.gmra.mxu0 %v2916
    %v3551 = vpop.f32.mrf.mxu0
    %v3552 = vadd.f32 %v2957, %v3551
    %v3553 = vpop.f32.mrf.mxu0
    %v3554 = vadd.f32 %v2957, %v3553
    %3555 = vmatmul.bf16.gmra.mxu0 %v2917
    %v3556 = vpop.f32.mrf.mxu0
    %v3557 = vadd.f32 %v2957, %v3556
    %v3558 = vpop.f32.mrf.mxu0
    %v3559 = vadd.f32 %v2957, %v3558
    %3560 = vmatmul.bf16.gmra.mxu0 %v2918
    %v3561 = vpop.f32.mrf.mxu0
    %v3562 = vadd.f32 %v2957, %v3561
    %v3563 = vpop.f32.mrf.mxu0
    %v3564 = vadd.f32 %v2957, %v3563
    %3565 = vmatmul.bf16.gmra.mxu0 %v2919
    %v3566 = vpop.f32.mrf.mxu0
    %v3567 = vadd.f32 %v2957, %v3566
    %v3568 = vpop.f32.mrf.mxu0
    %v3569 = vadd.f32 %v2957, %v3568
    %3570 = vmatmul.bf16.gmra.mxu0 %v2920
    %v3571 = vpop.f32.mrf.mxu0
    %v3572 = vadd.f32 %v2957, %v3571
    %v3573 = vpop.f32.mrf.mxu0
    %v3574 = vadd.f32 %v2957, %v3573
    %3575 = vmatmul.bf16.gmra.mxu0 %v2921
    %v3576 = vpop.f32.mrf.mxu0
    %v3577 = vadd.f32 %v2957, %v3576
    %v3578 = vpop.f32.mrf.mxu0
    %v3579 = vadd.f32 %v2957, %v3578
    %3580 = vmatmul.bf16.gmra.mxu0 %v2922
    %v3581 = vpop.f32.mrf.mxu0
    %v3582 = vadd.f32 %v2957, %v3581
    %v3583 = vpop.f32.mrf.mxu0
    %v3584 = vadd.f32 %v2957, %v3583
    %3585 = vmatmul.bf16.gmra.mxu0 %v2923
    %v3586 = vpop.f32.mrf.mxu0
    %v3587 = vadd.f32 %v2957, %v3586
    %v3588 = vpop.f32.mrf.mxu0
    %v3589 = vadd.f32 %v2957, %v3588
    %3590 = vmatmul.bf16.gmra.mxu0 %v2924
    %v3591 = vpop.f32.mrf.mxu0
    %v3592 = vadd.f32 %v2957, %v3591
    %v3593 = vpop.f32.mrf.mxu0
    %v3594 = vadd.f32 %v2957, %v3593
    %3595 = vmatmul.bf16.gmra.mxu0 %v2925
    %v3596 = vpop.f32.mrf.mxu0
    %v3597 = vadd.f32 %v2957, %v3596
    %v3598 = vpop.f32.mrf.mxu0
    %v3599 = vadd.f32 %v2957, %v3598
    %3600 = vmatmul.bf16.gmra.mxu0 %v2926
    %v3601 = vpop.f32.mrf.mxu0
    %v3602 = vadd.f32 %v2957, %v3601
    %v3603 = vpop.f32.mrf.mxu0
    %v3604 = vadd.f32 %v2957, %v3603
    %3605 = vmatmul.bf16.gmra.mxu0 %v2927
    %v3606 = vpop.f32.mrf.mxu0
    %v3607 = vadd.f32 %v2957, %v3606
    %v3608 = vpop.f32.mrf.mxu0
    %v3609 = vadd.f32 %v2957, %v3608
    %3610 = vmatmul.bf16.gmra.mxu0 %v2928
    %v3611 = vpop.f32.mrf.mxu0
    %v3612 = vadd.f32 %v2957, %v3611
    %v3613 = vpop.f32.mrf.mxu0
    %v3614 = vadd.f32 %v2957, %v3613
    %3615 = vmatmul.bf16.gmra.mxu0 %v2929
    %v3616 = vpop.f32.mrf.mxu0
    %v3617 = vadd.f32 %v2957, %v3616
    %v3618 = vpop.f32.mrf.mxu0
    %v3619 = vadd.f32 %v2957, %v3618
    %3620 = vmatmul.bf16.gmra.mxu0 %v2930
    %v3621 = vpop.f32.mrf.mxu0
    %v3622 = vadd.f32 %v2957, %v3621
    %v3623 = vpop.f32.mrf.mxu0
    %v3624 = vadd.f32 %v2957, %v3623
    %3625 = vmatmul.bf16.gmra.mxu0 %v2931
    %v3626 = vpop.f32.mrf.mxu0
    %v3627 = vadd.f32 %v2957, %v3626
    %v3628 = vpop.f32.mrf.mxu0
    %v3629 = vadd.f32 %v2957, %v3628
    %3630 = vmatmul.bf16.gmra.mxu0 %v2932
    %v3631 = vpop.f32.mrf.mxu0
    %v3632 = vadd.f32 %v2957, %v3631
    %v3633 = vpop.f32.mrf.mxu0
    %v3634 = vadd.f32 %v2957, %v3633
    %3635 = vmatmul.bf16.gmra.mxu0 %v2933
    %v3636 = vpop.f32.mrf.mxu0
    %v3637 = vadd.f32 %v2957, %v3636
    %v3638 = vpop.f32.mrf.mxu0
    %v3639 = vadd.f32 %v2957, %v3638
    %3640 = vmatmul.bf16.gmra.mxu0 %v2934
    %v3641 = vpop.f32.mrf.mxu0
    %v3642 = vadd.f32 %v2957, %v3641
    %v3643 = vpop.f32.mrf.mxu0
    %v3644 = vadd.f32 %v2957, %v3643
    %3645 = vmatmul.bf16.gmra.mxu0 %v2935
    %v3646 = vpop.f32.mrf.mxu0
    %v3647 = vadd.f32 %v2957, %v3646
    %v3648 = vpop.f32.mrf.mxu0
    %v3649 = vadd.f32 %v2957, %v3648
    %3650 = vmatmul.bf16.gmra.mxu0 %v2936
    %v3651 = vpop.f32.mrf.mxu0
    %v3652 = vadd.f32 %v2957, %v3651
    %v3653 = vpop.f32.mrf.mxu0
    %v3654 = vadd.f32 %v2957, %v3653
    %3655 = vdwg.mxu0
    %v3656 = vadd.f32 %v3017, %v1452
    %v3657 = vadd.f32 %v3019, %v1453
    %v3658 = vadd.f32 %v3022, %v1454
    %v3659 = vadd.f32 %v3024, %v1455
    %v3660 = vadd.f32 %v3027, %v1456
    %v3661 = vadd.f32 %v3029, %v1457
    %v3662 = vadd.f32 %v3032, %v1458
    %v3663 = vadd.f32 %v3034, %v1459
    %v3664 = vadd.f32 %v3037, %v1460
    %v3665 = vadd.f32 %v3039, %v1461
    %v3666 = vadd.f32 %v3042, %v1462
    %v3667 = vadd.f32 %v3044, %v1463
    %v3668 = vadd.f32 %v3047, %v1464
    %v3669 = vadd.f32 %v3049, %v1465
    %v3670 = vadd.f32 %v3052, %v1466
    %v3671 = vadd.f32 %v3054, %v1467
    %v3672 = vadd.f32 %v3057, %v1468
    %v3673 = vadd.f32 %v3059, %v1469
    %v3674 = vadd.f32 %v3062, %v1470
    %v3675 = vadd.f32 %v3064, %v1471
    %v3676 = vadd.f32 %v3067, %v1472
    %v3677 = vadd.f32 %v3069, %v1473
    %v3678 = vadd.f32 %v3072, %v1474
    %v3679 = vadd.f32 %v3074, %v1475
    %v3680 = vadd.f32 %v3077, %v1476
    %v3681 = vadd.f32 %v3079, %v1477
    %v3682 = vadd.f32 %v3082, %v1478
    %v3683 = vadd.f32 %v3084, %v1479
    %v3684 = vadd.f32 %v3087, %v1480
    %v3685 = vadd.f32 %v3089, %v1481
    %v3686 = vadd.f32 %v3092, %v1482
    %v3687 = vadd.f32 %v3094, %v1483
    %v3688 = vadd.f32 %v3097, %v1484
    %v3689 = vadd.f32 %v3099, %v1485
    %v3690 = vadd.f32 %v3102, %v1486
    %v3691 = vadd.f32 %v3104, %v1487
    %v3692 = vadd.f32 %v3107, %v1488
    %v3693 = vadd.f32 %v3109, %v1489
    %v3694 = vadd.f32 %v3112, %v1490
    %v3695 = vadd.f32 %v3114, %v1491
    %v3696 = vadd.f32 %v3117, %v1492
    %v3697 = vadd.f32 %v3119, %v1493
    %v3698 = vadd.f32 %v3122, %v1494
    %v3699 = vadd.f32 %v3124, %v1495
    %v3700 = vadd.f32 %v3127, %v1496
    %v3701 = vadd.f32 %v3129, %v1497
    %v3702 = vadd.f32 %v3132, %v1498
    %v3703 = vadd.f32 %v3134, %v1499
    %v3704 = vadd.f32 %v3137, %v1500
    %v3705 = vadd.f32 %v3139, %v1501
    %v3706 = vadd.f32 %v3142, %v1502
    %v3707 = vadd.f32 %v3144, %v1503
    %v3708 = vadd.f32 %v3147, %v1504
    %v3709 = vadd.f32 %v3149, %v1505
    %v3710 = vadd.f32 %v3152, %v1506
    %v3711 = vadd.f32 %v3154, %v1507
    %v3712 = vadd.f32 %v3157, %v1508
    %v3713 = vadd.f32 %v3159, %v1509
    %v3714 = vadd.f32 %v3162, %v1510
    %v3715 = vadd.f32 %v3164, %v1511
    %v3716 = vadd.f32 %v3167, %v1512
    %v3717 = vadd.f32 %v3169, %v1513
    %v3718 = vadd.f32 %v3172, %v1514
    %v3719 = vadd.f32 %v3174, %v1515
    %v3720 = vadd.f32 %v3177, %v1516
    %v3721 = vadd.f32 %v3179, %v1517
    %v3722 = vadd.f32 %v3182, %v1518
    %v3723 = vadd.f32 %v3184, %v1519
    %v3724 = vadd.f32 %v3187, %v1520
    %v3725 = vadd.f32 %v3189, %v1521
    %v3726 = vadd.f32 %v3192, %v1522
    %v3727 = vadd.f32 %v3194, %v1523
    %v3728 = vadd.f32 %v3197, %v1524
    %v3729 = vadd.f32 %v3199, %v1525
    %v3730 = vadd.f32 %v3202, %v1526
    %v3731 = vadd.f32 %v3204, %v1527
    %v3732 = vadd.f32 %v3207, %v1528
    %v3733 = vadd.f32 %v3209, %v1529
    %v3734 = vadd.f32 %v3212, %v1530
    %v3735 = vadd.f32 %v3214, %v1531
    %v3736 = vadd.f32 %v3217, %v1532
    %v3737 = vadd.f32 %v3219, %v1533
    %v3738 = vadd.f32 %v3222, %v1534
    %v3739 = vadd.f32 %v3224, %v1535
    %v3740 = vadd.f32 %v3227, %v1536
    %v3741 = vadd.f32 %v3229, %v1537
    %v3742 = vadd.f32 %v3232, %v1538
    %v3743 = vadd.f32 %v3234, %v1539
    %v3744 = vadd.f32 %v3237, %v1540
    %v3745 = vadd.f32 %v3239, %v1541
    %v3746 = vadd.f32 %v3242, %v1542
    %v3747 = vadd.f32 %v3244, %v1543
    %v3748 = vadd.f32 %v3247, %v1544
    %v3749 = vadd.f32 %v3249, %v1545
    %v3750 = vadd.f32 %v3252, %v1546
    %v3751 = vadd.f32 %v3254, %v1547
    %v3752 = vadd.f32 %v3257, %v1548
    %v3753 = vadd.f32 %v3259, %v1549
    %v3754 = vadd.f32 %v3262, %v1550
    %v3755 = vadd.f32 %v3264, %v1551
    %v3756 = vadd.f32 %v3267, %v1552
    %v3757 = vadd.f32 %v3269, %v1553
    %v3758 = vadd.f32 %v3272, %v1554
    %v3759 = vadd.f32 %v3274, %v1555
    %v3760 = vadd.f32 %v3277, %v1556
    %v3761 = vadd.f32 %v3279, %v1557
    %v3762 = vadd.f32 %v3282, %v1558
    %v3763 = vadd.f32 %v3284, %v1559
    %v3764 = vadd.f32 %v3287, %v1560
    %v3765 = vadd.f32 %v3289, %v1561
    %v3766 = vadd.f32 %v3292, %v1562
    %v3767 = vadd.f32 %v3294, %v1563
    %v3768 = vadd.f32 %v3297, %v1564
    %v3769 = vadd.f32 %v3299, %v1565
    %v3770 = vadd.f32 %v3302, %v1566
    %v3771 = vadd.f32 %v3304, %v1567
    %v3772 = vadd.f32 %v3307, %v1568
    %v3773 = vadd.f32 %v3309, %v1569
    %v3774 = vadd.f32 %v3312, %v1570
    %v3775 = vadd.f32 %v3314, %v1571
    %v3776 = vadd.f32 %v3317, %v1572
    %v3777 = vadd.f32 %v3319, %v1573
    %v3778 = vadd.f32 %v3322, %v1574
    %v3779 = vadd.f32 %v3324, %v1575
    %v3780 = vadd.f32 %v3327, %v1576
    %v3781 = vadd.f32 %v3329, %v1577
    %v3782 = vadd.f32 %v3332, %v1578
    %v3783 = vadd.f32 %v3334, %v1579
    %v3784 = vadd.f32 %v3337, %v1580
    %v3785 = vadd.f32 %v3339, %v1581
    %v3786 = vadd.f32 %v3342, %v1582
    %v3787 = vadd.f32 %v3344, %v1583
    %v3788 = vadd.f32 %v3347, %v1584
    %v3789 = vadd.f32 %v3349, %v1585
    %v3790 = vadd.f32 %v3352, %v1586
    %v3791 = vadd.f32 %v3354, %v1587
    %v3792 = vadd.f32 %v3357, %v1588
    %v3793 = vadd.f32 %v3359, %v1589
    %v3794 = vadd.f32 %v3362, %v1590
    %v3795 = vadd.f32 %v3364, %v1591
    %v3796 = vadd.f32 %v3367, %v1592
    %v3797 = vadd.f32 %v3369, %v1593
    %v3798 = vadd.f32 %v3372, %v1594
    %v3799 = vadd.f32 %v3374, %v1595
    %v3800 = vadd.f32 %v3377, %v1596
    %v3801 = vadd.f32 %v3379, %v1597
    %v3802 = vadd.f32 %v3382, %v1598
    %v3803 = vadd.f32 %v3384, %v1599
    %v3804 = vadd.f32 %v3387, %v1600
    %v3805 = vadd.f32 %v3389, %v1601
    %v3806 = vadd.f32 %v3392, %v1602
    %v3807 = vadd.f32 %v3394, %v1603
    %v3808 = vadd.f32 %v3397, %v1604
    %v3809 = vadd.f32 %v3399, %v1605
    %v3810 = vadd.f32 %v3402, %v1606
    %v3811 = vadd.f32 %v3404, %v1607
    %v3812 = vadd.f32 %v3407, %v1608
    %v3813 = vadd.f32 %v3409, %v1609
    %v3814 = vadd.f32 %v3412, %v1610
    %v3815 = vadd.f32 %v3414, %v1611
    %v3816 = vadd.f32 %v3417, %v1612
    %v3817 = vadd.f32 %v3419, %v1613
    %v3818 = vadd.f32 %v3422, %v1614
    %v3819 = vadd.f32 %v3424, %v1615
    %v3820 = vadd.f32 %v3427, %v1616
    %v3821 = vadd.f32 %v3429, %v1617
    %v3822 = vadd.f32 %v3432, %v1618
    %v3823 = vadd.f32 %v3434, %v1619
    %v3824 = vadd.f32 %v3437, %v1620
    %v3825 = vadd.f32 %v3439, %v1621
    %v3826 = vadd.f32 %v3442, %v1622
    %v3827 = vadd.f32 %v3444, %v1623
    %v3828 = vadd.f32 %v3447, %v1624
    %v3829 = vadd.f32 %v3449, %v1625
    %v3830 = vadd.f32 %v3452, %v1626
    %v3831 = vadd.f32 %v3454, %v1627
    %v3832 = vadd.f32 %v3457, %v1628
    %v3833 = vadd.f32 %v3459, %v1629
    %v3834 = vadd.f32 %v3462, %v1630
    %v3835 = vadd.f32 %v3464, %v1631
    %v3836 = vadd.f32 %v3467, %v1632
    %v3837 = vadd.f32 %v3469, %v1633
    %v3838 = vadd.f32 %v3472, %v1634
    %v3839 = vadd.f32 %v3474, %v1635
    %v3840 = vadd.f32 %v3477, %v1636
    %v3841 = vadd.f32 %v3479, %v1637
    %v3842 = vadd.f32 %v3482, %v1638
    %v3843 = vadd.f32 %v3484, %v1639
    %v3844 = vadd.f32 %v3487, %v1640
    %v3845 = vadd.f32 %v3489, %v1641
    %v3846 = vadd.f32 %v3492, %v1642
    %v3847 = vadd.f32 %v3494, %v1643
    %v3848 = vadd.f32 %v3497, %v1644
    %v3849 = vadd.f32 %v3499, %v1645
    %v3850 = vadd.f32 %v3502, %v1646
    %v3851 = vadd.f32 %v3504, %v1647
    %v3852 = vadd.f32 %v3507, %v1648
    %v3853 = vadd.f32 %v3509, %v1649
    %v3854 = vadd.f32 %v3512, %v1650
    %v3855 = vadd.f32 %v3514, %v1651
    %v3856 = vadd.f32 %v3517, %v1652
    %v3857 = vadd.f32 %v3519, %v1653
    %v3858 = vadd.f32 %v3522, %v1654
    %v3859 = vadd.f32 %v3524, %v1655
    %v3860 = vadd.f32 %v3527, %v1656
    %v3861 = vadd.f32 %v3529, %v1657
    %v3862 = vadd.f32 %v3532, %v1658
    %v3863 = vadd.f32 %v3534, %v1659
    %v3864 = vadd.f32 %v3537, %v1660
    %v3865 = vadd.f32 %v3539, %v1661
    %v3866 = vadd.f32 %v3542, %v1662
    %v3867 = vadd.f32 %v3544, %v1663
    %v3868 = vadd.f32 %v3547, %v1664
    %v3869 = vadd.f32 %v3549, %v1665
    %v3870 = vadd.f32 %v3552, %v1666
    %v3871 = vadd.f32 %v3554, %v1667
    %v3872 = vadd.f32 %v3557, %v1668
    %v3873 = vadd.f32 %v3559, %v1669
    %v3874 = vadd.f32 %v3562, %v1670
    %v3875 = vadd.f32 %v3564, %v1671
    %v3876 = vadd.f32 %v3567, %v1672
    %v3877 = vadd.f32 %v3569, %v1673
    %v3878 = vadd.f32 %v3572, %v1674
    %v3879 = vadd.f32 %v3574, %v1675
    %v3880 = vadd.f32 %v3577, %v1676
    %v3881 = vadd.f32 %v3579, %v1677
    %v3882 = vadd.f32 %v3582, %v1678
    %v3883 = vadd.f32 %v3584, %v1679
    %v3884 = vadd.f32 %v3587, %v1680
    %v3885 = vadd.f32 %v3589, %v1681
    %v3886 = vadd.f32 %v3592, %v1682
    %v3887 = vadd.f32 %v3594, %v1683
    %v3888 = vadd.f32 %v3597, %v1684
    %v3889 = vadd.f32 %v3599, %v1685
    %v3890 = vadd.f32 %v3602, %v1686
    %v3891 = vadd.f32 %v3604, %v1687
    %v3892 = vadd.f32 %v3607, %v1688
    %v3893 = vadd.f32 %v3609, %v1689
    %v3894 = vadd.f32 %v3612, %v1690
    %v3895 = vadd.f32 %v3614, %v1691
    %v3896 = vadd.f32 %v3617, %v1692
    %v3897 = vadd.f32 %v3619, %v1693
    %v3898 = vadd.f32 %v3622, %v1694
    %v3899 = vadd.f32 %v3624, %v1695
    %v3900 = vadd.f32 %v3627, %v1696
    %v3901 = vadd.f32 %v3629, %v1697
    %v3902 = vadd.f32 %v3632, %v1698
    %v3903 = vadd.f32 %v3634, %v1699
    %v3904 = vadd.f32 %v3637, %v1700
    %v3905 = vadd.f32 %v3639, %v1701
    %v3906 = vadd.f32 %v3642, %v1702
    %v3907 = vadd.f32 %v3644, %v1703
    %v3908 = vadd.f32 %v3647, %v1704
    %v3909 = vadd.f32 %v3649, %v1705
    %v3910 = vadd.f32 %v3652, %v1706
    %v3911 = vadd.f32 %v3654, %v1707
    %v3912 = vmax.f32 %v3656, 0.0
    %v3913 = vmax.f32 %v3657, 0.0
    %v3914 = vmax.f32 %v3658, 0.0
    %v3915 = vmax.f32 %v3659, 0.0
    %v3916 = vmax.f32 %v3660, 0.0
    %v3917 = vmax.f32 %v3661, 0.0
    %v3918 = vmax.f32 %v3662, 0.0
    %v3919 = vmax.f32 %v3663, 0.0
    %v3920 = vmax.f32 %v3664, 0.0
    %v3921 = vmax.f32 %v3665, 0.0
    %v3922 = vmax.f32 %v3666, 0.0
    %v3923 = vmax.f32 %v3667, 0.0
    %v3924 = vmax.f32 %v3668, 0.0
    %v3925 = vmax.f32 %v3669, 0.0
    %v3926 = vmax.f32 %v3670, 0.0
    %v3927 = vmax.f32 %v3671, 0.0
    %v3928 = vmax.f32 %v3672, 0.0
    %v3929 = vmax.f32 %v3673, 0.0
    %v3930 = vmax.f32 %v3674, 0.0
    %v3931 = vmax.f32 %v3675, 0.0
    %v3932 = vmax.f32 %v3676, 0.0
    %v3933 = vmax.f32 %v3677, 0.0
    %v3934 = vmax.f32 %v3678, 0.0
    %v3935 = vmax.f32 %v3679, 0.0
    %v3936 = vmax.f32 %v3680, 0.0
    %v3937 = vmax.f32 %v3681, 0.0
    %v3938 = vmax.f32 %v3682, 0.0
    %v3939 = vmax.f32 %v3683, 0.0
    %v3940 = vmax.f32 %v3684, 0.0
    %v3941 = vmax.f32 %v3685, 0.0
    %v3942 = vmax.f32 %v3686, 0.0
    %v3943 = vmax.f32 %v3687, 0.0
    %v3944 = vmax.f32 %v3688, 0.0
    %v3945 = vmax.f32 %v3689, 0.0
    %v3946 = vmax.f32 %v3690, 0.0
    %v3947 = vmax.f32 %v3691, 0.0
    %v3948 = vmax.f32 %v3692, 0.0
    %v3949 = vmax.f32 %v3693, 0.0
    %v3950 = vmax.f32 %v3694, 0.0
    %v3951 = vmax.f32 %v3695, 0.0
    %v3952 = vmax.f32 %v3696, 0.0
    %v3953 = vmax.f32 %v3697, 0.0
    %v3954 = vmax.f32 %v3698, 0.0
    %v3955 = vmax.f32 %v3699, 0.0
    %v3956 = vmax.f32 %v3700, 0.0
    %v3957 = vmax.f32 %v3701, 0.0
    %v3958 = vmax.f32 %v3702, 0.0
    %v3959 = vmax.f32 %v3703, 0.0
    %v3960 = vmax.f32 %v3704, 0.0
    %v3961 = vmax.f32 %v3705, 0.0
    %v3962 = vmax.f32 %v3706, 0.0
    %v3963 = vmax.f32 %v3707, 0.0
    %v3964 = vmax.f32 %v3708, 0.0
    %v3965 = vmax.f32 %v3709, 0.0
    %v3966 = vmax.f32 %v3710, 0.0
    %v3967 = vmax.f32 %v3711, 0.0
    %v3968 = vmax.f32 %v3712, 0.0
    %v3969 = vmax.f32 %v3713, 0.0
    %v3970 = vmax.f32 %v3714, 0.0
    %v3971 = vmax.f32 %v3715, 0.0
    %v3972 = vmax.f32 %v3716, 0.0
    %v3973 = vmax.f32 %v3717, 0.0
    %v3974 = vmax.f32 %v3718, 0.0
    %v3975 = vmax.f32 %v3719, 0.0
    %v3976 = vmax.f32 %v3720, 0.0
    %v3977 = vmax.f32 %v3721, 0.0
    %v3978 = vmax.f32 %v3722, 0.0
    %v3979 = vmax.f32 %v3723, 0.0
    %v3980 = vmax.f32 %v3724, 0.0
    %v3981 = vmax.f32 %v3725, 0.0
    %v3982 = vmax.f32 %v3726, 0.0
    %v3983 = vmax.f32 %v3727, 0.0
    %v3984 = vmax.f32 %v3728, 0.0
    %v3985 = vmax.f32 %v3729, 0.0
    %v3986 = vmax.f32 %v3730, 0.0
    %v3987 = vmax.f32 %v3731, 0.0
    %v3988 = vmax.f32 %v3732, 0.0
    %v3989 = vmax.f32 %v3733, 0.0
    %v3990 = vmax.f32 %v3734, 0.0
    %v3991 = vmax.f32 %v3735, 0.0
    %v3992 = vmax.f32 %v3736, 0.0
    %v3993 = vmax.f32 %v3737, 0.0
    %v3994 = vmax.f32 %v3738, 0.0
    %v3995 = vmax.f32 %v3739, 0.0
    %v3996 = vmax.f32 %v3740, 0.0
    %v3997 = vmax.f32 %v3741, 0.0
    %v3998 = vmax.f32 %v3742, 0.0
    %v3999 = vmax.f32 %v3743, 0.0
    %v4000 = vmax.f32 %v3744, 0.0
    %v4001 = vmax.f32 %v3745, 0.0
    %v4002 = vmax.f32 %v3746, 0.0
    %v4003 = vmax.f32 %v3747, 0.0
    %v4004 = vmax.f32 %v3748, 0.0
    %v4005 = vmax.f32 %v3749, 0.0
    %v4006 = vmax.f32 %v3750, 0.0
    %v4007 = vmax.f32 %v3751, 0.0
    %v4008 = vmax.f32 %v3752, 0.0
    %v4009 = vmax.f32 %v3753, 0.0
    %v4010 = vmax.f32 %v3754, 0.0
    %v4011 = vmax.f32 %v3755, 0.0
    %v4012 = vmax.f32 %v3756, 0.0
    %v4013 = vmax.f32 %v3757, 0.0
    %v4014 = vmax.f32 %v3758, 0.0
    %v4015 = vmax.f32 %v3759, 0.0
    %v4016 = vmax.f32 %v3760, 0.0
    %v4017 = vmax.f32 %v3761, 0.0
    %v4018 = vmax.f32 %v3762, 0.0
    %v4019 = vmax.f32 %v3763, 0.0
    %v4020 = vmax.f32 %v3764, 0.0
    %v4021 = vmax.f32 %v3765, 0.0
    %v4022 = vmax.f32 %v3766, 0.0
    %v4023 = vmax.f32 %v3767, 0.0
    %v4024 = vmax.f32 %v3768, 0.0
    %v4025 = vmax.f32 %v3769, 0.0
    %v4026 = vmax.f32 %v3770, 0.0
    %v4027 = vmax.f32 %v3771, 0.0
    %v4028 = vmax.f32 %v3772, 0.0
    %v4029 = vmax.f32 %v3773, 0.0
    %v4030 = vmax.f32 %v3774, 0.0
    %v4031 = vmax.f32 %v3775, 0.0
    %v4032 = vmax.f32 %v3776, 0.0
    %v4033 = vmax.f32 %v3777, 0.0
    %v4034 = vmax.f32 %v3778, 0.0
    %v4035 = vmax.f32 %v3779, 0.0
    %v4036 = vmax.f32 %v3780, 0.0
    %v4037 = vmax.f32 %v3781, 0.0
    %v4038 = vmax.f32 %v3782, 0.0
    %v4039 = vmax.f32 %v3783, 0.0
    %v4040 = vmax.f32 %v3784, 0.0
    %v4041 = vmax.f32 %v3785, 0.0
    %v4042 = vmax.f32 %v3786, 0.0
    %v4043 = vmax.f32 %v3787, 0.0
    %v4044 = vmax.f32 %v3788, 0.0
    %v4045 = vmax.f32 %v3789, 0.0
    %v4046 = vmax.f32 %v3790, 0.0
    %v4047 = vmax.f32 %v3791, 0.0
    %v4048 = vmax.f32 %v3792, 0.0
    %v4049 = vmax.f32 %v3793, 0.0
    %v4050 = vmax.f32 %v3794, 0.0
    %v4051 = vmax.f32 %v3795, 0.0
    %v4052 = vmax.f32 %v3796, 0.0
    %v4053 = vmax.f32 %v3797, 0.0
    %v4054 = vmax.f32 %v3798, 0.0
    %v4055 = vmax.f32 %v3799, 0.0
    %v4056 = vmax.f32 %v3800, 0.0
    %v4057 = vmax.f32 %v3801, 0.0
    %v4058 = vmax.f32 %v3802, 0.0
    %v4059 = vmax.f32 %v3803, 0.0
    %v4060 = vmax.f32 %v3804, 0.0
    %v4061 = vmax.f32 %v3805, 0.0
    %v4062 = vmax.f32 %v3806, 0.0
    %v4063 = vmax.f32 %v3807, 0.0
    %v4064 = vmax.f32 %v3808, 0.0
    %v4065 = vmax.f32 %v3809, 0.0
    %v4066 = vmax.f32 %v3810, 0.0
    %v4067 = vmax.f32 %v3811, 0.0
    %v4068 = vmax.f32 %v3812, 0.0
    %v4069 = vmax.f32 %v3813, 0.0
    %v4070 = vmax.f32 %v3814, 0.0
    %v4071 = vmax.f32 %v3815, 0.0
    %v4072 = vmax.f32 %v3816, 0.0
    %v4073 = vmax.f32 %v3817, 0.0
    %v4074 = vmax.f32 %v3818, 0.0
    %v4075 = vmax.f32 %v3819, 0.0
    %v4076 = vmax.f32 %v3820, 0.0
    %v4077 = vmax.f32 %v3821, 0.0
    %v4078 = vmax.f32 %v3822, 0.0
    %v4079 = vmax.f32 %v3823, 0.0
    %v4080 = vmax.f32 %v3824, 0.0
    %v4081 = vmax.f32 %v3825, 0.0
    %v4082 = vmax.f32 %v3826, 0.0
    %v4083 = vmax.f32 %v3827, 0.0
    %v4084 = vmax.f32 %v3828, 0.0
    %v4085 = vmax.f32 %v3829, 0.0
    %v4086 = vmax.f32 %v3830, 0.0
    %v4087 = vmax.f32 %v3831, 0.0
    %v4088 = vmax.f32 %v3832, 0.0
    %v4089 = vmax.f32 %v3833, 0.0
    %v4090 = vmax.f32 %v3834, 0.0
    %v4091 = vmax.f32 %v3835, 0.0
    %v4092 = vmax.f32 %v3836, 0.0
    %v4093 = vmax.f32 %v3837, 0.0
    %v4094 = vmax.f32 %v3838, 0.0
    %v4095 = vmax.f32 %v3839, 0.0
    %v4096 = vmax.f32 %v3840, 0.0
    %v4097 = vmax.f32 %v3841, 0.0
    %v4098 = vmax.f32 %v3842, 0.0
    %v4099 = vmax.f32 %v3843, 0.0
    %v4100 = vmax.f32 %v3844, 0.0
    %v4101 = vmax.f32 %v3845, 0.0
    %v4102 = vmax.f32 %v3846, 0.0
    %v4103 = vmax.f32 %v3847, 0.0
    %v4104 = vmax.f32 %v3848, 0.0
    %v4105 = vmax.f32 %v3849, 0.0
    %v4106 = vmax.f32 %v3850, 0.0
    %v4107 = vmax.f32 %v3851, 0.0
    %v4108 = vmax.f32 %v3852, 0.0
    %v4109 = vmax.f32 %v3853, 0.0
    %v4110 = vmax.f32 %v3854, 0.0
    %v4111 = vmax.f32 %v3855, 0.0
    %v4112 = vmax.f32 %v3856, 0.0
    %v4113 = vmax.f32 %v3857, 0.0
    %v4114 = vmax.f32 %v3858, 0.0
    %v4115 = vmax.f32 %v3859, 0.0
    %v4116 = vmax.f32 %v3860, 0.0
    %v4117 = vmax.f32 %v3861, 0.0
    %v4118 = vmax.f32 %v3862, 0.0
    %v4119 = vmax.f32 %v3863, 0.0
    %v4120 = vmax.f32 %v3864, 0.0
    %v4121 = vmax.f32 %v3865, 0.0
    %v4122 = vmax.f32 %v3866, 0.0
    %v4123 = vmax.f32 %v3867, 0.0
    %v4124 = vmax.f32 %v3868, 0.0
    %v4125 = vmax.f32 %v3869, 0.0
    %v4126 = vmax.f32 %v3870, 0.0
    %v4127 = vmax.f32 %v3871, 0.0
    %v4128 = vmax.f32 %v3872, 0.0
    %v4129 = vmax.f32 %v3873, 0.0
    %v4130 = vmax.f32 %v3874, 0.0
    %v4131 = vmax.f32 %v3875, 0.0
    %v4132 = vmax.f32 %v3876, 0.0
    %v4133 = vmax.f32 %v3877, 0.0
    %v4134 = vmax.f32 %v3878, 0.0
    %v4135 = vmax.f32 %v3879, 0.0
    %v4136 = vmax.f32 %v3880, 0.0
    %v4137 = vmax.f32 %v3881, 0.0
    %v4138 = vmax.f32 %v3882, 0.0
    %v4139 = vmax.f32 %v3883, 0.0
    %v4140 = vmax.f32 %v3884, 0.0
    %v4141 = vmax.f32 %v3885, 0.0
    %v4142 = vmax.f32 %v3886, 0.0
    %v4143 = vmax.f32 %v3887, 0.0
    %v4144 = vmax.f32 %v3888, 0.0
    %v4145 = vmax.f32 %v3889, 0.0
    %v4146 = vmax.f32 %v3890, 0.0
    %v4147 = vmax.f32 %v3891, 0.0
    %v4148 = vmax.f32 %v3892, 0.0
    %v4149 = vmax.f32 %v3893, 0.0
    %v4150 = vmax.f32 %v3894, 0.0
    %v4151 = vmax.f32 %v3895, 0.0
    %v4152 = vmax.f32 %v3896, 0.0
    %v4153 = vmax.f32 %v3897, 0.0
    %v4154 = vmax.f32 %v3898, 0.0
    %v4155 = vmax.f32 %v3899, 0.0
    %v4156 = vmax.f32 %v3900, 0.0
    %v4157 = vmax.f32 %v3901, 0.0
    %v4158 = vmax.f32 %v3902, 0.0
    %v4159 = vmax.f32 %v3903, 0.0
    %v4160 = vmax.f32 %v3904, 0.0
    %v4161 = vmax.f32 %v3905, 0.0
    %v4162 = vmax.f32 %v3906, 0.0
    %v4163 = vmax.f32 %v3907, 0.0
    %v4164 = vmax.f32 %v3908, 0.0
    %v4165 = vmax.f32 %v3909, 0.0
    %v4166 = vmax.f32 %v3910, 0.0
    %v4167 = vmax.f32 %v3911, 0.0
    %v4168 = vpack.c.bf16 %v3913, %v3912
    %v4169 = vpack.c.bf16 %v3915, %v3914
    %v4170 = vpack.c.bf16 %v3917, %v3916
    %v4171 = vpack.c.bf16 %v3919, %v3918
    %v4172 = vpack.c.bf16 %v3921, %v3920
    %v4173 = vpack.c.bf16 %v3923, %v3922
    %v4174 = vpack.c.bf16 %v3925, %v3924
    %v4175 = vpack.c.bf16 %v3927, %v3926
    %v4176 = vpack.c.bf16 %v3929, %v3928
    %v4177 = vpack.c.bf16 %v3931, %v3930
    %v4178 = vpack.c.bf16 %v3933, %v3932
    %v4179 = vpack.c.bf16 %v3935, %v3934
    %v4180 = vpack.c.bf16 %v3937, %v3936
    %v4181 = vpack.c.bf16 %v3939, %v3938
    %v4182 = vpack.c.bf16 %v3941, %v3940
    %v4183 = vpack.c.bf16 %v3943, %v3942
    %v4184 = vpack.c.bf16 %v3945, %v3944
    %v4185 = vpack.c.bf16 %v3947, %v3946
    %v4186 = vpack.c.bf16 %v3949, %v3948
    %v4187 = vpack.c.bf16 %v3951, %v3950
    %v4188 = vpack.c.bf16 %v3953, %v3952
    %v4189 = vpack.c.bf16 %v3955, %v3954
    %v4190 = vpack.c.bf16 %v3957, %v3956
    %v4191 = vpack.c.bf16 %v3959, %v3958
    %v4192 = vpack.c.bf16 %v3961, %v3960
    %v4193 = vpack.c.bf16 %v3963, %v3962
    %v4194 = vpack.c.bf16 %v3965, %v3964
    %v4195 = vpack.c.bf16 %v3967, %v3966
    %v4196 = vpack.c.bf16 %v3969, %v3968
    %v4197 = vpack.c.bf16 %v3971, %v3970
    %v4198 = vpack.c.bf16 %v3973, %v3972
    %v4199 = vpack.c.bf16 %v3975, %v3974
    %v4200 = vpack.c.bf16 %v3977, %v3976
    %v4201 = vpack.c.bf16 %v3979, %v3978
    %v4202 = vpack.c.bf16 %v3981, %v3980
    %v4203 = vpack.c.bf16 %v3983, %v3982
    %v4204 = vpack.c.bf16 %v3985, %v3984
    %v4205 = vpack.c.bf16 %v3987, %v3986
    %v4206 = vpack.c.bf16 %v3989, %v3988
    %v4207 = vpack.c.bf16 %v3991, %v3990
    %v4208 = vpack.c.bf16 %v3993, %v3992
    %v4209 = vpack.c.bf16 %v3995, %v3994
    %v4210 = vpack.c.bf16 %v3997, %v3996
    %v4211 = vpack.c.bf16 %v3999, %v3998
    %v4212 = vpack.c.bf16 %v4001, %v4000
    %v4213 = vpack.c.bf16 %v4003, %v4002
    %v4214 = vpack.c.bf16 %v4005, %v4004
    %v4215 = vpack.c.bf16 %v4007, %v4006
    %v4216 = vpack.c.bf16 %v4009, %v4008
    %v4217 = vpack.c.bf16 %v4011, %v4010
    %v4218 = vpack.c.bf16 %v4013, %v4012
    %v4219 = vpack.c.bf16 %v4015, %v4014
    %v4220 = vpack.c.bf16 %v4017, %v4016
    %v4221 = vpack.c.bf16 %v4019, %v4018
    %v4222 = vpack.c.bf16 %v4021, %v4020
    %v4223 = vpack.c.bf16 %v4023, %v4022
    %v4224 = vpack.c.bf16 %v4025, %v4024
    %v4225 = vpack.c.bf16 %v4027, %v4026
    %v4226 = vpack.c.bf16 %v4029, %v4028
    %v4227 = vpack.c.bf16 %v4031, %v4030
    %v4228 = vpack.c.bf16 %v4033, %v4032
    %v4229 = vpack.c.bf16 %v4035, %v4034
    %v4230 = vpack.c.bf16 %v4037, %v4036
    %v4231 = vpack.c.bf16 %v4039, %v4038
    %v4232 = vpack.c.bf16 %v4041, %v4040
    %v4233 = vpack.c.bf16 %v4043, %v4042
    %v4234 = vpack.c.bf16 %v4045, %v4044
    %v4235 = vpack.c.bf16 %v4047, %v4046
    %v4236 = vpack.c.bf16 %v4049, %v4048
    %v4237 = vpack.c.bf16 %v4051, %v4050
    %v4238 = vpack.c.bf16 %v4053, %v4052
    %v4239 = vpack.c.bf16 %v4055, %v4054
    %v4240 = vpack.c.bf16 %v4057, %v4056
    %v4241 = vpack.c.bf16 %v4059, %v4058
    %v4242 = vpack.c.bf16 %v4061, %v4060
    %v4243 = vpack.c.bf16 %v4063, %v4062
    %v4244 = vpack.c.bf16 %v4065, %v4064
    %v4245 = vpack.c.bf16 %v4067, %v4066
    %v4246 = vpack.c.bf16 %v4069, %v4068
    %v4247 = vpack.c.bf16 %v4071, %v4070
    %v4248 = vpack.c.bf16 %v4073, %v4072
    %v4249 = vpack.c.bf16 %v4075, %v4074
    %v4250 = vpack.c.bf16 %v4077, %v4076
    %v4251 = vpack.c.bf16 %v4079, %v4078
    %v4252 = vpack.c.bf16 %v4081, %v4080
    %v4253 = vpack.c.bf16 %v4083, %v4082
    %v4254 = vpack.c.bf16 %v4085, %v4084
    %v4255 = vpack.c.bf16 %v4087, %v4086
    %v4256 = vpack.c.bf16 %v4089, %v4088
    %v4257 = vpack.c.bf16 %v4091, %v4090
    %v4258 = vpack.c.bf16 %v4093, %v4092
    %v4259 = vpack.c.bf16 %v4095, %v4094
    %v4260 = vpack.c.bf16 %v4097, %v4096
    %v4261 = vpack.c.bf16 %v4099, %v4098
    %v4262 = vpack.c.bf16 %v4101, %v4100
    %v4263 = vpack.c.bf16 %v4103, %v4102
    %v4264 = vpack.c.bf16 %v4105, %v4104
    %v4265 = vpack.c.bf16 %v4107, %v4106
    %v4266 = vpack.c.bf16 %v4109, %v4108
    %v4267 = vpack.c.bf16 %v4111, %v4110
    %v4268 = vpack.c.bf16 %v4113, %v4112
    %v4269 = vpack.c.bf16 %v4115, %v4114
    %v4270 = vpack.c.bf16 %v4117, %v4116
    %v4271 = vpack.c.bf16 %v4119, %v4118
    %v4272 = vpack.c.bf16 %v4121, %v4120
    %v4273 = vpack.c.bf16 %v4123, %v4122
    %v4274 = vpack.c.bf16 %v4125, %v4124
    %v4275 = vpack.c.bf16 %v4127, %v4126
    %v4276 = vpack.c.bf16 %v4129, %v4128
    %v4277 = vpack.c.bf16 %v4131, %v4130
    %v4278 = vpack.c.bf16 %v4133, %v4132
    %v4279 = vpack.c.bf16 %v4135, %v4134
    %v4280 = vpack.c.bf16 %v4137, %v4136
    %v4281 = vpack.c.bf16 %v4139, %v4138
    %v4282 = vpack.c.bf16 %v4141, %v4140
    %v4283 = vpack.c.bf16 %v4143, %v4142
    %v4284 = vpack.c.bf16 %v4145, %v4144
    %v4285 = vpack.c.bf16 %v4147, %v4146
    %v4286 = vpack.c.bf16 %v4149, %v4148
    %v4287 = vpack.c.bf16 %v4151, %v4150
    %v4288 = vpack.c.bf16 %v4153, %v4152
    %v4289 = vpack.c.bf16 %v4155, %v4154
    %v4290 = vpack.c.bf16 %v4157, %v4156
    %v4291 = vpack.c.bf16 %v4159, %v4158
    %v4292 = vpack.c.bf16 %v4161, %v4160
    %v4293 = vpack.c.bf16 %v4163, %v4162
    %v4294 = vpack.c.bf16 %v4165, %v4164
    %v4295 = vpack.c.bf16 %v4167, %v4166
    %s4296 = scalar_lea.vmem %s3, 128
    %v4297 = vld [vmem:[%s4296] sm:$0xf]
    %v4298 = vld [vmem:[%s4296 + $0x4] sm:$0xf]
    %v4299 = vld [vmem:[%s4296 + $0x8] sm:$0xf]
    %v4300 = vld [vmem:[%s4296 + $0xc] sm:$0xf]
    %v4301 = vld [vmem:[%s4296 + $0x10] sm:$0xf]
    %v4302 = vld [vmem:[%s4296 + $0x14] sm:$0xf]
    %v4303 = vld [vmem:[%s4296 + $0x18] sm:$0xf]
    %v4304 = vld [vmem:[%s4296 + $0x1c] sm:$0xf]
    %v4305 = vld [vmem:[%s4296 + $0x20] sm:$0xf]
    %v4306 = vld [vmem:[%s4296 + $0x24] sm:$0xf]
    %v4307 = vld [vmem:[%s4296 + $0x28] sm:$0xf]
    %v4308 = vld [vmem:[%s4296 + $0x2c] sm:$0xf]
    %v4309 = vld [vmem:[%s4296 + $0x30] sm:$0xf]
    %v4310 = vld [vmem:[%s4296 + $0x34] sm:$0xf]
    %v4311 = vld [vmem:[%s4296 + $0x38] sm:$0xf]
    %v4312 = vld [vmem:[%s4296 + $0x3c] sm:$0xf]
    %s4313 = scalar_lea.vmem %s4, 2
    %v4314 = vld [vmem:[%s4313] sm:$0x1]
    %v4316 = vperm.slane %v4314, 0
    %v4334 = vunpack.c.l.b16 %v4297
    %v4335 = vunpack.c.l.b16 %v4298
    %v4336 = vunpack.c.l.b16 %v4299
    %v4337 = vunpack.c.l.b16 %v4300
    %v4338 = vunpack.c.l.b16 %v4301
    %v4339 = vunpack.c.l.b16 %v4302
    %v4340 = vunpack.c.l.b16 %v4303
    %v4341 = vunpack.c.l.b16 %v4304
    %v4342 = vunpack.c.l.b16 %v4305
    %v4343 = vunpack.c.l.b16 %v4306
    %v4344 = vunpack.c.l.b16 %v4307
    %v4345 = vunpack.c.l.b16 %v4308
    %v4346 = vunpack.c.l.b16 %v4309
    %v4347 = vunpack.c.l.b16 %v4310
    %v4348 = vunpack.c.l.b16 %v4311
    %v4349 = vunpack.c.l.b16 %v4312
    %v4350 = vpack.c.b16 %v4335, %v4334
    %v4351 = vpack.c.b16 %v4337, %v4336
    %v4352 = vpack.c.b16 %v4339, %v4338
    %v4353 = vpack.c.b16 %v4341, %v4340
    %v4354 = vpack.c.b16 %v4343, %v4342
    %v4355 = vpack.c.b16 %v4345, %v4344
    %v4356 = vpack.c.b16 %v4347, %v4346
    %v4357 = vpack.c.b16 %v4349, %v4348
    %4366 = vmatpush.bf16.msra.mxu0 %v4357
    %4367 = vmatpush.bf16.msra.mxu0 %v4356
    %4368 = vmatpush.bf16.msra.mxu0 %v4355
    %4369 = vmatpush.bf16.msra.mxu0 %v4354
    %4370 = vmatpush.bf16.msra.mxu0 %v4353
    %4371 = vmatpush.bf16.msra.mxu0 %v4352
    %4372 = vmatpush.bf16.msra.mxu0 %v4351
    %4373 = vmatpush.bf16.msra.mxu0 %v4350
    %4374 = vmatmul.bf16.gmra.mxu0 %v4168
    %v4375 = vpop.f32.mrf.mxu0
    %v4376 = vadd.f32 %v4316, %v4375
    %v4377 = vpop.f32.mrf.mxu0
    %v4378 = vadd.f32 %v4316, %v4377
    %4379 = vmatmul.bf16.gmra.mxu0 %v4169
    %v4380 = vpop.f32.mrf.mxu0
    %v4381 = vadd.f32 %v4316, %v4380
    %v4382 = vpop.f32.mrf.mxu0
    %v4383 = vadd.f32 %v4316, %v4382
    %4384 = vmatmul.bf16.gmra.mxu0 %v4170
    %v4385 = vpop.f32.mrf.mxu0
    %v4386 = vadd.f32 %v4316, %v4385
    %v4387 = vpop.f32.mrf.mxu0
    %v4388 = vadd.f32 %v4316, %v4387
    %4389 = vmatmul.bf16.gmra.mxu0 %v4171
    %v4390 = vpop.f32.mrf.mxu0
    %v4391 = vadd.f32 %v4316, %v4390
    %v4392 = vpop.f32.mrf.mxu0
    %v4393 = vadd.f32 %v4316, %v4392
    %4394 = vmatmul.bf16.gmra.mxu0 %v4172
    %v4395 = vpop.f32.mrf.mxu0
    %v4396 = vadd.f32 %v4316, %v4395
    %v4397 = vpop.f32.mrf.mxu0
    %v4398 = vadd.f32 %v4316, %v4397
    %4399 = vmatmul.bf16.gmra.mxu0 %v4173
    %v4400 = vpop.f32.mrf.mxu0
    %v4401 = vadd.f32 %v4316, %v4400
    %v4402 = vpop.f32.mrf.mxu0
    %v4403 = vadd.f32 %v4316, %v4402
    %4404 = vmatmul.bf16.gmra.mxu0 %v4174
    %v4405 = vpop.f32.mrf.mxu0
    %v4406 = vadd.f32 %v4316, %v4405
    %v4407 = vpop.f32.mrf.mxu0
    %v4408 = vadd.f32 %v4316, %v4407
    %4409 = vmatmul.bf16.gmra.mxu0 %v4175
    %v4410 = vpop.f32.mrf.mxu0
    %v4411 = vadd.f32 %v4316, %v4410
    %v4412 = vpop.f32.mrf.mxu0
    %v4413 = vadd.f32 %v4316, %v4412
    %4414 = vmatmul.bf16.gmra.mxu0 %v4176
    %v4415 = vpop.f32.mrf.mxu0
    %v4416 = vadd.f32 %v4316, %v4415
    %v4417 = vpop.f32.mrf.mxu0
    %v4418 = vadd.f32 %v4316, %v4417
    %4419 = vmatmul.bf16.gmra.mxu0 %v4177
    %v4420 = vpop.f32.mrf.mxu0
    %v4421 = vadd.f32 %v4316, %v4420
    %v4422 = vpop.f32.mrf.mxu0
    %v4423 = vadd.f32 %v4316, %v4422
    %4424 = vmatmul.bf16.gmra.mxu0 %v4178
    %v4425 = vpop.f32.mrf.mxu0
    %v4426 = vadd.f32 %v4316, %v4425
    %v4427 = vpop.f32.mrf.mxu0
    %v4428 = vadd.f32 %v4316, %v4427
    %4429 = vmatmul.bf16.gmra.mxu0 %v4179
    %v4430 = vpop.f32.mrf.mxu0
    %v4431 = vadd.f32 %v4316, %v4430
    %v4432 = vpop.f32.mrf.mxu0
    %v4433 = vadd.f32 %v4316, %v4432
    %4434 = vmatmul.bf16.gmra.mxu0 %v4180
    %v4435 = vpop.f32.mrf.mxu0
    %v4436 = vadd.f32 %v4316, %v4435
    %v4437 = vpop.f32.mrf.mxu0
    %v4438 = vadd.f32 %v4316, %v4437
    %4439 = vmatmul.bf16.gmra.mxu0 %v4181
    %v4440 = vpop.f32.mrf.mxu0
    %v4441 = vadd.f32 %v4316, %v4440
    %v4442 = vpop.f32.mrf.mxu0
    %v4443 = vadd.f32 %v4316, %v4442
    %4444 = vmatmul.bf16.gmra.mxu0 %v4182
    %v4445 = vpop.f32.mrf.mxu0
    %v4446 = vadd.f32 %v4316, %v4445
    %v4447 = vpop.f32.mrf.mxu0
    %v4448 = vadd.f32 %v4316, %v4447
    %4449 = vmatmul.bf16.gmra.mxu0 %v4183
    %v4450 = vpop.f32.mrf.mxu0
    %v4451 = vadd.f32 %v4316, %v4450
    %v4452 = vpop.f32.mrf.mxu0
    %v4453 = vadd.f32 %v4316, %v4452
    %4454 = vmatmul.bf16.gmra.mxu0 %v4184
    %v4455 = vpop.f32.mrf.mxu0
    %v4456 = vadd.f32 %v4316, %v4455
    %v4457 = vpop.f32.mrf.mxu0
    %v4458 = vadd.f32 %v4316, %v4457
    %4459 = vmatmul.bf16.gmra.mxu0 %v4185
    %v4460 = vpop.f32.mrf.mxu0
    %v4461 = vadd.f32 %v4316, %v4460
    %v4462 = vpop.f32.mrf.mxu0
    %v4463 = vadd.f32 %v4316, %v4462
    %4464 = vmatmul.bf16.gmra.mxu0 %v4186
    %v4465 = vpop.f32.mrf.mxu0
    %v4466 = vadd.f32 %v4316, %v4465
    %v4467 = vpop.f32.mrf.mxu0
    %v4468 = vadd.f32 %v4316, %v4467
    %4469 = vmatmul.bf16.gmra.mxu0 %v4187
    %v4470 = vpop.f32.mrf.mxu0
    %v4471 = vadd.f32 %v4316, %v4470
    %v4472 = vpop.f32.mrf.mxu0
    %v4473 = vadd.f32 %v4316, %v4472
    %4474 = vmatmul.bf16.gmra.mxu0 %v4188
    %v4475 = vpop.f32.mrf.mxu0
    %v4476 = vadd.f32 %v4316, %v4475
    %v4477 = vpop.f32.mrf.mxu0
    %v4478 = vadd.f32 %v4316, %v4477
    %4479 = vmatmul.bf16.gmra.mxu0 %v4189
    %v4480 = vpop.f32.mrf.mxu0
    %v4481 = vadd.f32 %v4316, %v4480
    %v4482 = vpop.f32.mrf.mxu0
    %v4483 = vadd.f32 %v4316, %v4482
    %4484 = vmatmul.bf16.gmra.mxu0 %v4190
    %v4485 = vpop.f32.mrf.mxu0
    %v4486 = vadd.f32 %v4316, %v4485
    %v4487 = vpop.f32.mrf.mxu0
    %v4488 = vadd.f32 %v4316, %v4487
    %4489 = vmatmul.bf16.gmra.mxu0 %v4191
    %v4490 = vpop.f32.mrf.mxu0
    %v4491 = vadd.f32 %v4316, %v4490
    %v4492 = vpop.f32.mrf.mxu0
    %v4493 = vadd.f32 %v4316, %v4492
    %4494 = vmatmul.bf16.gmra.mxu0 %v4192
    %v4495 = vpop.f32.mrf.mxu0
    %v4496 = vadd.f32 %v4316, %v4495
    %v4497 = vpop.f32.mrf.mxu0
    %v4498 = vadd.f32 %v4316, %v4497
    %4499 = vmatmul.bf16.gmra.mxu0 %v4193
    %v4500 = vpop.f32.mrf.mxu0
    %v4501 = vadd.f32 %v4316, %v4500
    %v4502 = vpop.f32.mrf.mxu0
    %v4503 = vadd.f32 %v4316, %v4502
    %4504 = vmatmul.bf16.gmra.mxu0 %v4194
    %v4505 = vpop.f32.mrf.mxu0
    %v4506 = vadd.f32 %v4316, %v4505
    %v4507 = vpop.f32.mrf.mxu0
    %v4508 = vadd.f32 %v4316, %v4507
    %4509 = vmatmul.bf16.gmra.mxu0 %v4195
    %v4510 = vpop.f32.mrf.mxu0
    %v4511 = vadd.f32 %v4316, %v4510
    %v4512 = vpop.f32.mrf.mxu0
    %v4513 = vadd.f32 %v4316, %v4512
    %4514 = vmatmul.bf16.gmra.mxu0 %v4196
    %v4515 = vpop.f32.mrf.mxu0
    %v4516 = vadd.f32 %v4316, %v4515
    %v4517 = vpop.f32.mrf.mxu0
    %v4518 = vadd.f32 %v4316, %v4517
    %4519 = vmatmul.bf16.gmra.mxu0 %v4197
    %v4520 = vpop.f32.mrf.mxu0
    %v4521 = vadd.f32 %v4316, %v4520
    %v4522 = vpop.f32.mrf.mxu0
    %v4523 = vadd.f32 %v4316, %v4522
    %4524 = vmatmul.bf16.gmra.mxu0 %v4198
    %v4525 = vpop.f32.mrf.mxu0
    %v4526 = vadd.f32 %v4316, %v4525
    %v4527 = vpop.f32.mrf.mxu0
    %v4528 = vadd.f32 %v4316, %v4527
    %4529 = vmatmul.bf16.gmra.mxu0 %v4199
    %v4530 = vpop.f32.mrf.mxu0
    %v4531 = vadd.f32 %v4316, %v4530
    %v4532 = vpop.f32.mrf.mxu0
    %v4533 = vadd.f32 %v4316, %v4532
    %4534 = vmatmul.bf16.gmra.mxu0 %v4200
    %v4535 = vpop.f32.mrf.mxu0
    %v4536 = vadd.f32 %v4316, %v4535
    %v4537 = vpop.f32.mrf.mxu0
    %v4538 = vadd.f32 %v4316, %v4537
    %4539 = vmatmul.bf16.gmra.mxu0 %v4201
    %v4540 = vpop.f32.mrf.mxu0
    %v4541 = vadd.f32 %v4316, %v4540
    %v4542 = vpop.f32.mrf.mxu0
    %v4543 = vadd.f32 %v4316, %v4542
    %4544 = vmatmul.bf16.gmra.mxu0 %v4202
    %v4545 = vpop.f32.mrf.mxu0
    %v4546 = vadd.f32 %v4316, %v4545
    %v4547 = vpop.f32.mrf.mxu0
    %v4548 = vadd.f32 %v4316, %v4547
    %4549 = vmatmul.bf16.gmra.mxu0 %v4203
    %v4550 = vpop.f32.mrf.mxu0
    %v4551 = vadd.f32 %v4316, %v4550
    %v4552 = vpop.f32.mrf.mxu0
    %v4553 = vadd.f32 %v4316, %v4552
    %4554 = vmatmul.bf16.gmra.mxu0 %v4204
    %v4555 = vpop.f32.mrf.mxu0
    %v4556 = vadd.f32 %v4316, %v4555
    %v4557 = vpop.f32.mrf.mxu0
    %v4558 = vadd.f32 %v4316, %v4557
    %4559 = vmatmul.bf16.gmra.mxu0 %v4205
    %v4560 = vpop.f32.mrf.mxu0
    %v4561 = vadd.f32 %v4316, %v4560
    %v4562 = vpop.f32.mrf.mxu0
    %v4563 = vadd.f32 %v4316, %v4562
    %4564 = vmatmul.bf16.gmra.mxu0 %v4206
    %v4565 = vpop.f32.mrf.mxu0
    %v4566 = vadd.f32 %v4316, %v4565
    %v4567 = vpop.f32.mrf.mxu0
    %v4568 = vadd.f32 %v4316, %v4567
    %4569 = vmatmul.bf16.gmra.mxu0 %v4207
    %v4570 = vpop.f32.mrf.mxu0
    %v4571 = vadd.f32 %v4316, %v4570
    %v4572 = vpop.f32.mrf.mxu0
    %v4573 = vadd.f32 %v4316, %v4572
    %4574 = vmatmul.bf16.gmra.mxu0 %v4208
    %v4575 = vpop.f32.mrf.mxu0
    %v4576 = vadd.f32 %v4316, %v4575
    %v4577 = vpop.f32.mrf.mxu0
    %v4578 = vadd.f32 %v4316, %v4577
    %4579 = vmatmul.bf16.gmra.mxu0 %v4209
    %v4580 = vpop.f32.mrf.mxu0
    %v4581 = vadd.f32 %v4316, %v4580
    %v4582 = vpop.f32.mrf.mxu0
    %v4583 = vadd.f32 %v4316, %v4582
    %4584 = vmatmul.bf16.gmra.mxu0 %v4210
    %v4585 = vpop.f32.mrf.mxu0
    %v4586 = vadd.f32 %v4316, %v4585
    %v4587 = vpop.f32.mrf.mxu0
    %v4588 = vadd.f32 %v4316, %v4587
    %4589 = vmatmul.bf16.gmra.mxu0 %v4211
    %v4590 = vpop.f32.mrf.mxu0
    %v4591 = vadd.f32 %v4316, %v4590
    %v4592 = vpop.f32.mrf.mxu0
    %v4593 = vadd.f32 %v4316, %v4592
    %4594 = vmatmul.bf16.gmra.mxu0 %v4212
    %v4595 = vpop.f32.mrf.mxu0
    %v4596 = vadd.f32 %v4316, %v4595
    %v4597 = vpop.f32.mrf.mxu0
    %v4598 = vadd.f32 %v4316, %v4597
    %4599 = vmatmul.bf16.gmra.mxu0 %v4213
    %v4600 = vpop.f32.mrf.mxu0
    %v4601 = vadd.f32 %v4316, %v4600
    %v4602 = vpop.f32.mrf.mxu0
    %v4603 = vadd.f32 %v4316, %v4602
    %4604 = vmatmul.bf16.gmra.mxu0 %v4214
    %v4605 = vpop.f32.mrf.mxu0
    %v4606 = vadd.f32 %v4316, %v4605
    %v4607 = vpop.f32.mrf.mxu0
    %v4608 = vadd.f32 %v4316, %v4607
    %4609 = vmatmul.bf16.gmra.mxu0 %v4215
    %v4610 = vpop.f32.mrf.mxu0
    %v4611 = vadd.f32 %v4316, %v4610
    %v4612 = vpop.f32.mrf.mxu0
    %v4613 = vadd.f32 %v4316, %v4612
    %4614 = vmatmul.bf16.gmra.mxu0 %v4216
    %v4615 = vpop.f32.mrf.mxu0
    %v4616 = vadd.f32 %v4316, %v4615
    %v4617 = vpop.f32.mrf.mxu0
    %v4618 = vadd.f32 %v4316, %v4617
    %4619 = vmatmul.bf16.gmra.mxu0 %v4217
    %v4620 = vpop.f32.mrf.mxu0
    %v4621 = vadd.f32 %v4316, %v4620
    %v4622 = vpop.f32.mrf.mxu0
    %v4623 = vadd.f32 %v4316, %v4622
    %4624 = vmatmul.bf16.gmra.mxu0 %v4218
    %v4625 = vpop.f32.mrf.mxu0
    %v4626 = vadd.f32 %v4316, %v4625
    %v4627 = vpop.f32.mrf.mxu0
    %v4628 = vadd.f32 %v4316, %v4627
    %4629 = vmatmul.bf16.gmra.mxu0 %v4219
    %v4630 = vpop.f32.mrf.mxu0
    %v4631 = vadd.f32 %v4316, %v4630
    %v4632 = vpop.f32.mrf.mxu0
    %v4633 = vadd.f32 %v4316, %v4632
    %4634 = vmatmul.bf16.gmra.mxu0 %v4220
    %v4635 = vpop.f32.mrf.mxu0
    %v4636 = vadd.f32 %v4316, %v4635
    %v4637 = vpop.f32.mrf.mxu0
    %v4638 = vadd.f32 %v4316, %v4637
    %4639 = vmatmul.bf16.gmra.mxu0 %v4221
    %v4640 = vpop.f32.mrf.mxu0
    %v4641 = vadd.f32 %v4316, %v4640
    %v4642 = vpop.f32.mrf.mxu0
    %v4643 = vadd.f32 %v4316, %v4642
    %4644 = vmatmul.bf16.gmra.mxu0 %v4222
    %v4645 = vpop.f32.mrf.mxu0
    %v4646 = vadd.f32 %v4316, %v4645
    %v4647 = vpop.f32.mrf.mxu0
    %v4648 = vadd.f32 %v4316, %v4647
    %4649 = vmatmul.bf16.gmra.mxu0 %v4223
    %v4650 = vpop.f32.mrf.mxu0
    %v4651 = vadd.f32 %v4316, %v4650
    %v4652 = vpop.f32.mrf.mxu0
    %v4653 = vadd.f32 %v4316, %v4652
    %4654 = vmatmul.bf16.gmra.mxu0 %v4224
    %v4655 = vpop.f32.mrf.mxu0
    %v4656 = vadd.f32 %v4316, %v4655
    %v4657 = vpop.f32.mrf.mxu0
    %v4658 = vadd.f32 %v4316, %v4657
    %4659 = vmatmul.bf16.gmra.mxu0 %v4225
    %v4660 = vpop.f32.mrf.mxu0
    %v4661 = vadd.f32 %v4316, %v4660
    %v4662 = vpop.f32.mrf.mxu0
    %v4663 = vadd.f32 %v4316, %v4662
    %4664 = vmatmul.bf16.gmra.mxu0 %v4226
    %v4665 = vpop.f32.mrf.mxu0
    %v4666 = vadd.f32 %v4316, %v4665
    %v4667 = vpop.f32.mrf.mxu0
    %v4668 = vadd.f32 %v4316, %v4667
    %4669 = vmatmul.bf16.gmra.mxu0 %v4227
    %v4670 = vpop.f32.mrf.mxu0
    %v4671 = vadd.f32 %v4316, %v4670
    %v4672 = vpop.f32.mrf.mxu0
    %v4673 = vadd.f32 %v4316, %v4672
    %4674 = vmatmul.bf16.gmra.mxu0 %v4228
    %v4675 = vpop.f32.mrf.mxu0
    %v4676 = vadd.f32 %v4316, %v4675
    %v4677 = vpop.f32.mrf.mxu0
    %v4678 = vadd.f32 %v4316, %v4677
    %4679 = vmatmul.bf16.gmra.mxu0 %v4229
    %v4680 = vpop.f32.mrf.mxu0
    %v4681 = vadd.f32 %v4316, %v4680
    %v4682 = vpop.f32.mrf.mxu0
    %v4683 = vadd.f32 %v4316, %v4682
    %4684 = vmatmul.bf16.gmra.mxu0 %v4230
    %v4685 = vpop.f32.mrf.mxu0
    %v4686 = vadd.f32 %v4316, %v4685
    %v4687 = vpop.f32.mrf.mxu0
    %v4688 = vadd.f32 %v4316, %v4687
    %4689 = vmatmul.bf16.gmra.mxu0 %v4231
    %v4690 = vpop.f32.mrf.mxu0
    %v4691 = vadd.f32 %v4316, %v4690
    %v4692 = vpop.f32.mrf.mxu0
    %v4693 = vadd.f32 %v4316, %v4692
    %4694 = vmatmul.bf16.gmra.mxu0 %v4232
    %v4695 = vpop.f32.mrf.mxu0
    %v4696 = vadd.f32 %v4316, %v4695
    %v4697 = vpop.f32.mrf.mxu0
    %v4698 = vadd.f32 %v4316, %v4697
    %4699 = vmatmul.bf16.gmra.mxu0 %v4233
    %v4700 = vpop.f32.mrf.mxu0
    %v4701 = vadd.f32 %v4316, %v4700
    %v4702 = vpop.f32.mrf.mxu0
    %v4703 = vadd.f32 %v4316, %v4702
    %4704 = vmatmul.bf16.gmra.mxu0 %v4234
    %v4705 = vpop.f32.mrf.mxu0
    %v4706 = vadd.f32 %v4316, %v4705
    %v4707 = vpop.f32.mrf.mxu0
    %v4708 = vadd.f32 %v4316, %v4707
    %4709 = vmatmul.bf16.gmra.mxu0 %v4235
    %v4710 = vpop.f32.mrf.mxu0
    %v4711 = vadd.f32 %v4316, %v4710
    %v4712 = vpop.f32.mrf.mxu0
    %v4713 = vadd.f32 %v4316, %v4712
    %4714 = vmatmul.bf16.gmra.mxu0 %v4236
    %v4715 = vpop.f32.mrf.mxu0
    %v4716 = vadd.f32 %v4316, %v4715
    %v4717 = vpop.f32.mrf.mxu0
    %v4718 = vadd.f32 %v4316, %v4717
    %4719 = vmatmul.bf16.gmra.mxu0 %v4237
    %v4720 = vpop.f32.mrf.mxu0
    %v4721 = vadd.f32 %v4316, %v4720
    %v4722 = vpop.f32.mrf.mxu0
    %v4723 = vadd.f32 %v4316, %v4722
    %4724 = vmatmul.bf16.gmra.mxu0 %v4238
    %v4725 = vpop.f32.mrf.mxu0
    %v4726 = vadd.f32 %v4316, %v4725
    %v4727 = vpop.f32.mrf.mxu0
    %v4728 = vadd.f32 %v4316, %v4727
    %4729 = vmatmul.bf16.gmra.mxu0 %v4239
    %v4730 = vpop.f32.mrf.mxu0
    %v4731 = vadd.f32 %v4316, %v4730
    %v4732 = vpop.f32.mrf.mxu0
    %v4733 = vadd.f32 %v4316, %v4732
    %4734 = vmatmul.bf16.gmra.mxu0 %v4240
    %v4735 = vpop.f32.mrf.mxu0
    %v4736 = vadd.f32 %v4316, %v4735
    %v4737 = vpop.f32.mrf.mxu0
    %v4738 = vadd.f32 %v4316, %v4737
    %4739 = vmatmul.bf16.gmra.mxu0 %v4241
    %v4740 = vpop.f32.mrf.mxu0
    %v4741 = vadd.f32 %v4316, %v4740
    %v4742 = vpop.f32.mrf.mxu0
    %v4743 = vadd.f32 %v4316, %v4742
    %4744 = vmatmul.bf16.gmra.mxu0 %v4242
    %v4745 = vpop.f32.mrf.mxu0
    %v4746 = vadd.f32 %v4316, %v4745
    %v4747 = vpop.f32.mrf.mxu0
    %v4748 = vadd.f32 %v4316, %v4747
    %4749 = vmatmul.bf16.gmra.mxu0 %v4243
    %v4750 = vpop.f32.mrf.mxu0
    %v4751 = vadd.f32 %v4316, %v4750
    %v4752 = vpop.f32.mrf.mxu0
    %v4753 = vadd.f32 %v4316, %v4752
    %4754 = vmatmul.bf16.gmra.mxu0 %v4244
    %v4755 = vpop.f32.mrf.mxu0
    %v4756 = vadd.f32 %v4316, %v4755
    %v4757 = vpop.f32.mrf.mxu0
    %v4758 = vadd.f32 %v4316, %v4757
    %4759 = vmatmul.bf16.gmra.mxu0 %v4245
    %v4760 = vpop.f32.mrf.mxu0
    %v4761 = vadd.f32 %v4316, %v4760
    %v4762 = vpop.f32.mrf.mxu0
    %v4763 = vadd.f32 %v4316, %v4762
    %4764 = vmatmul.bf16.gmra.mxu0 %v4246
    %v4765 = vpop.f32.mrf.mxu0
    %v4766 = vadd.f32 %v4316, %v4765
    %v4767 = vpop.f32.mrf.mxu0
    %v4768 = vadd.f32 %v4316, %v4767
    %4769 = vmatmul.bf16.gmra.mxu0 %v4247
    %v4770 = vpop.f32.mrf.mxu0
    %v4771 = vadd.f32 %v4316, %v4770
    %v4772 = vpop.f32.mrf.mxu0
    %v4773 = vadd.f32 %v4316, %v4772
    %4774 = vmatmul.bf16.gmra.mxu0 %v4248
    %v4775 = vpop.f32.mrf.mxu0
    %v4776 = vadd.f32 %v4316, %v4775
    %v4777 = vpop.f32.mrf.mxu0
    %v4778 = vadd.f32 %v4316, %v4777
    %4779 = vmatmul.bf16.gmra.mxu0 %v4249
    %v4780 = vpop.f32.mrf.mxu0
    %v4781 = vadd.f32 %v4316, %v4780
    %v4782 = vpop.f32.mrf.mxu0
    %v4783 = vadd.f32 %v4316, %v4782
    %4784 = vmatmul.bf16.gmra.mxu0 %v4250
    %v4785 = vpop.f32.mrf.mxu0
    %v4786 = vadd.f32 %v4316, %v4785
    %v4787 = vpop.f32.mrf.mxu0
    %v4788 = vadd.f32 %v4316, %v4787
    %4789 = vmatmul.bf16.gmra.mxu0 %v4251
    %v4790 = vpop.f32.mrf.mxu0
    %v4791 = vadd.f32 %v4316, %v4790
    %v4792 = vpop.f32.mrf.mxu0
    %v4793 = vadd.f32 %v4316, %v4792
    %4794 = vmatmul.bf16.gmra.mxu0 %v4252
    %v4795 = vpop.f32.mrf.mxu0
    %v4796 = vadd.f32 %v4316, %v4795
    %v4797 = vpop.f32.mrf.mxu0
    %v4798 = vadd.f32 %v4316, %v4797
    %4799 = vmatmul.bf16.gmra.mxu0 %v4253
    %v4800 = vpop.f32.mrf.mxu0
    %v4801 = vadd.f32 %v4316, %v4800
    %v4802 = vpop.f32.mrf.mxu0
    %v4803 = vadd.f32 %v4316, %v4802
    %4804 = vmatmul.bf16.gmra.mxu0 %v4254
    %v4805 = vpop.f32.mrf.mxu0
    %v4806 = vadd.f32 %v4316, %v4805
    %v4807 = vpop.f32.mrf.mxu0
    %v4808 = vadd.f32 %v4316, %v4807
    %4809 = vmatmul.bf16.gmra.mxu0 %v4255
    %v4810 = vpop.f32.mrf.mxu0
    %v4811 = vadd.f32 %v4316, %v4810
    %v4812 = vpop.f32.mrf.mxu0
    %v4813 = vadd.f32 %v4316, %v4812
    %4814 = vmatmul.bf16.gmra.mxu0 %v4256
    %v4815 = vpop.f32.mrf.mxu0
    %v4816 = vadd.f32 %v4316, %v4815
    %v4817 = vpop.f32.mrf.mxu0
    %v4818 = vadd.f32 %v4316, %v4817
    %4819 = vmatmul.bf16.gmra.mxu0 %v4257
    %v4820 = vpop.f32.mrf.mxu0
    %v4821 = vadd.f32 %v4316, %v4820
    %v4822 = vpop.f32.mrf.mxu0
    %v4823 = vadd.f32 %v4316, %v4822
    %4824 = vmatmul.bf16.gmra.mxu0 %v4258
    %v4825 = vpop.f32.mrf.mxu0
    %v4826 = vadd.f32 %v4316, %v4825
    %v4827 = vpop.f32.mrf.mxu0
    %v4828 = vadd.f32 %v4316, %v4827
    %4829 = vmatmul.bf16.gmra.mxu0 %v4259
    %v4830 = vpop.f32.mrf.mxu0
    %v4831 = vadd.f32 %v4316, %v4830
    %v4832 = vpop.f32.mrf.mxu0
    %v4833 = vadd.f32 %v4316, %v4832
    %4834 = vmatmul.bf16.gmra.mxu0 %v4260
    %v4835 = vpop.f32.mrf.mxu0
    %v4836 = vadd.f32 %v4316, %v4835
    %v4837 = vpop.f32.mrf.mxu0
    %v4838 = vadd.f32 %v4316, %v4837
    %4839 = vmatmul.bf16.gmra.mxu0 %v4261
    %v4840 = vpop.f32.mrf.mxu0
    %v4841 = vadd.f32 %v4316, %v4840
    %v4842 = vpop.f32.mrf.mxu0
    %v4843 = vadd.f32 %v4316, %v4842
    %4844 = vmatmul.bf16.gmra.mxu0 %v4262
    %v4845 = vpop.f32.mrf.mxu0
    %v4846 = vadd.f32 %v4316, %v4845
    %v4847 = vpop.f32.mrf.mxu0
    %v4848 = vadd.f32 %v4316, %v4847
    %4849 = vmatmul.bf16.gmra.mxu0 %v4263
    %v4850 = vpop.f32.mrf.mxu0
    %v4851 = vadd.f32 %v4316, %v4850
    %v4852 = vpop.f32.mrf.mxu0
    %v4853 = vadd.f32 %v4316, %v4852
    %4854 = vmatmul.bf16.gmra.mxu0 %v4264
    %v4855 = vpop.f32.mrf.mxu0
    %v4856 = vadd.f32 %v4316, %v4855
    %v4857 = vpop.f32.mrf.mxu0
    %v4858 = vadd.f32 %v4316, %v4857
    %4859 = vmatmul.bf16.gmra.mxu0 %v4265
    %v4860 = vpop.f32.mrf.mxu0
    %v4861 = vadd.f32 %v4316, %v4860
    %v4862 = vpop.f32.mrf.mxu0
    %v4863 = vadd.f32 %v4316, %v4862
    %4864 = vmatmul.bf16.gmra.mxu0 %v4266
    %v4865 = vpop.f32.mrf.mxu0
    %v4866 = vadd.f32 %v4316, %v4865
    %v4867 = vpop.f32.mrf.mxu0
    %v4868 = vadd.f32 %v4316, %v4867
    %4869 = vmatmul.bf16.gmra.mxu0 %v4267
    %v4870 = vpop.f32.mrf.mxu0
    %v4871 = vadd.f32 %v4316, %v4870
    %v4872 = vpop.f32.mrf.mxu0
    %v4873 = vadd.f32 %v4316, %v4872
    %4874 = vmatmul.bf16.gmra.mxu0 %v4268
    %v4875 = vpop.f32.mrf.mxu0
    %v4876 = vadd.f32 %v4316, %v4875
    %v4877 = vpop.f32.mrf.mxu0
    %v4878 = vadd.f32 %v4316, %v4877
    %4879 = vmatmul.bf16.gmra.mxu0 %v4269
    %v4880 = vpop.f32.mrf.mxu0
    %v4881 = vadd.f32 %v4316, %v4880
    %v4882 = vpop.f32.mrf.mxu0
    %v4883 = vadd.f32 %v4316, %v4882
    %4884 = vmatmul.bf16.gmra.mxu0 %v4270
    %v4885 = vpop.f32.mrf.mxu0
    %v4886 = vadd.f32 %v4316, %v4885
    %v4887 = vpop.f32.mrf.mxu0
    %v4888 = vadd.f32 %v4316, %v4887
    %4889 = vmatmul.bf16.gmra.mxu0 %v4271
    %v4890 = vpop.f32.mrf.mxu0
    %v4891 = vadd.f32 %v4316, %v4890
    %v4892 = vpop.f32.mrf.mxu0
    %v4893 = vadd.f32 %v4316, %v4892
    %4894 = vmatmul.bf16.gmra.mxu0 %v4272
    %v4895 = vpop.f32.mrf.mxu0
    %v4896 = vadd.f32 %v4316, %v4895
    %v4897 = vpop.f32.mrf.mxu0
    %v4898 = vadd.f32 %v4316, %v4897
    %4899 = vmatmul.bf16.gmra.mxu0 %v4273
    %v4900 = vpop.f32.mrf.mxu0
    %v4901 = vadd.f32 %v4316, %v4900
    %v4902 = vpop.f32.mrf.mxu0
    %v4903 = vadd.f32 %v4316, %v4902
    %4904 = vmatmul.bf16.gmra.mxu0 %v4274
    %v4905 = vpop.f32.mrf.mxu0
    %v4906 = vadd.f32 %v4316, %v4905
    %v4907 = vpop.f32.mrf.mxu0
    %v4908 = vadd.f32 %v4316, %v4907
    %4909 = vmatmul.bf16.gmra.mxu0 %v4275
    %v4910 = vpop.f32.mrf.mxu0
    %v4911 = vadd.f32 %v4316, %v4910
    %v4912 = vpop.f32.mrf.mxu0
    %v4913 = vadd.f32 %v4316, %v4912
    %4914 = vmatmul.bf16.gmra.mxu0 %v4276
    %v4915 = vpop.f32.mrf.mxu0
    %v4916 = vadd.f32 %v4316, %v4915
    %v4917 = vpop.f32.mrf.mxu0
    %v4918 = vadd.f32 %v4316, %v4917
    %4919 = vmatmul.bf16.gmra.mxu0 %v4277
    %v4920 = vpop.f32.mrf.mxu0
    %v4921 = vadd.f32 %v4316, %v4920
    %v4922 = vpop.f32.mrf.mxu0
    %v4923 = vadd.f32 %v4316, %v4922
    %4924 = vmatmul.bf16.gmra.mxu0 %v4278
    %v4925 = vpop.f32.mrf.mxu0
    %v4926 = vadd.f32 %v4316, %v4925
    %v4927 = vpop.f32.mrf.mxu0
    %v4928 = vadd.f32 %v4316, %v4927
    %4929 = vmatmul.bf16.gmra.mxu0 %v4279
    %v4930 = vpop.f32.mrf.mxu0
    %v4931 = vadd.f32 %v4316, %v4930
    %v4932 = vpop.f32.mrf.mxu0
    %v4933 = vadd.f32 %v4316, %v4932
    %4934 = vmatmul.bf16.gmra.mxu0 %v4280
    %v4935 = vpop.f32.mrf.mxu0
    %v4936 = vadd.f32 %v4316, %v4935
    %v4937 = vpop.f32.mrf.mxu0
    %v4938 = vadd.f32 %v4316, %v4937
    %4939 = vmatmul.bf16.gmra.mxu0 %v4281
    %v4940 = vpop.f32.mrf.mxu0
    %v4941 = vadd.f32 %v4316, %v4940
    %v4942 = vpop.f32.mrf.mxu0
    %v4943 = vadd.f32 %v4316, %v4942
    %4944 = vmatmul.bf16.gmra.mxu0 %v4282
    %v4945 = vpop.f32.mrf.mxu0
    %v4946 = vadd.f32 %v4316, %v4945
    %v4947 = vpop.f32.mrf.mxu0
    %v4948 = vadd.f32 %v4316, %v4947
    %4949 = vmatmul.bf16.gmra.mxu0 %v4283
    %v4950 = vpop.f32.mrf.mxu0
    %v4951 = vadd.f32 %v4316, %v4950
    %v4952 = vpop.f32.mrf.mxu0
    %v4953 = vadd.f32 %v4316, %v4952
    %4954 = vmatmul.bf16.gmra.mxu0 %v4284
    %v4955 = vpop.f32.mrf.mxu0
    %v4956 = vadd.f32 %v4316, %v4955
    %v4957 = vpop.f32.mrf.mxu0
    %v4958 = vadd.f32 %v4316, %v4957
    %4959 = vmatmul.bf16.gmra.mxu0 %v4285
    %v4960 = vpop.f32.mrf.mxu0
    %v4961 = vadd.f32 %v4316, %v4960
    %v4962 = vpop.f32.mrf.mxu0
    %v4963 = vadd.f32 %v4316, %v4962
    %4964 = vmatmul.bf16.gmra.mxu0 %v4286
    %v4965 = vpop.f32.mrf.mxu0
    %v4966 = vadd.f32 %v4316, %v4965
    %v4967 = vpop.f32.mrf.mxu0
    %v4968 = vadd.f32 %v4316, %v4967
    %4969 = vmatmul.bf16.gmra.mxu0 %v4287
    %v4970 = vpop.f32.mrf.mxu0
    %v4971 = vadd.f32 %v4316, %v4970
    %v4972 = vpop.f32.mrf.mxu0
    %v4973 = vadd.f32 %v4316, %v4972
    %4974 = vmatmul.bf16.gmra.mxu0 %v4288
    %v4975 = vpop.f32.mrf.mxu0
    %v4976 = vadd.f32 %v4316, %v4975
    %v4977 = vpop.f32.mrf.mxu0
    %v4978 = vadd.f32 %v4316, %v4977
    %4979 = vmatmul.bf16.gmra.mxu0 %v4289
    %v4980 = vpop.f32.mrf.mxu0
    %v4981 = vadd.f32 %v4316, %v4980
    %v4982 = vpop.f32.mrf.mxu0
    %v4983 = vadd.f32 %v4316, %v4982
    %4984 = vmatmul.bf16.gmra.mxu0 %v4290
    %v4985 = vpop.f32.mrf.mxu0
    %v4986 = vadd.f32 %v4316, %v4985
    %v4987 = vpop.f32.mrf.mxu0
    %v4988 = vadd.f32 %v4316, %v4987
    %4989 = vmatmul.bf16.gmra.mxu0 %v4291
    %v4990 = vpop.f32.mrf.mxu0
    %v4991 = vadd.f32 %v4316, %v4990
    %v4992 = vpop.f32.mrf.mxu0
    %v4993 = vadd.f32 %v4316, %v4992
    %4994 = vmatmul.bf16.gmra.mxu0 %v4292
    %v4995 = vpop.f32.mrf.mxu0
    %v4996 = vadd.f32 %v4316, %v4995
    %v4997 = vpop.f32.mrf.mxu0
    %v4998 = vadd.f32 %v4316, %v4997
    %4999 = vmatmul.bf16.gmra.mxu0 %v4293
    %v5000 = vpop.f32.mrf.mxu0
    %v5001 = vadd.f32 %v4316, %v5000
    %v5002 = vpop.f32.mrf.mxu0
    %v5003 = vadd.f32 %v4316, %v5002
    %5004 = vmatmul.bf16.gmra.mxu0 %v4294
    %v5005 = vpop.f32.mrf.mxu0
    %v5006 = vadd.f32 %v4316, %v5005
    %v5007 = vpop.f32.mrf.mxu0
    %v5008 = vadd.f32 %v4316, %v5007
    %5009 = vmatmul.bf16.gmra.mxu0 %v4295
    %v5010 = vpop.f32.mrf.mxu0
    %v5011 = vadd.f32 %v4316, %v5010
    %v5012 = vpop.f32.mrf.mxu0
    %v5013 = vadd.f32 %v4316, %v5012
    %5014 = vdwg.mxu0
    %v5015 = vmax.f32 %v4376, 0.0
    %v5016 = vmax.f32 %v4378, 0.0
    %v5017 = vmax.f32 %v4381, 0.0
    %v5018 = vmax.f32 %v4383, 0.0
    %v5019 = vmax.f32 %v4386, 0.0
    %v5020 = vmax.f32 %v4388, 0.0
    %v5021 = vmax.f32 %v4391, 0.0
    %v5022 = vmax.f32 %v4393, 0.0
    %v5023 = vmax.f32 %v4396, 0.0
    %v5024 = vmax.f32 %v4398, 0.0
    %v5025 = vmax.f32 %v4401, 0.0
    %v5026 = vmax.f32 %v4403, 0.0
    %v5027 = vmax.f32 %v4406, 0.0
    %v5028 = vmax.f32 %v4408, 0.0
    %v5029 = vmax.f32 %v4411, 0.0
    %v5030 = vmax.f32 %v4413, 0.0
    %v5031 = vmax.f32 %v4416, 0.0
    %v5032 = vmax.f32 %v4418, 0.0
    %v5033 = vmax.f32 %v4421, 0.0
    %v5034 = vmax.f32 %v4423, 0.0
    %v5035 = vmax.f32 %v4426, 0.0
    %v5036 = vmax.f32 %v4428, 0.0
    %v5037 = vmax.f32 %v4431, 0.0
    %v5038 = vmax.f32 %v4433, 0.0
    %v5039 = vmax.f32 %v4436, 0.0
    %v5040 = vmax.f32 %v4438, 0.0
    %v5041 = vmax.f32 %v4441, 0.0
    %v5042 = vmax.f32 %v4443, 0.0
    %v5043 = vmax.f32 %v4446, 0.0
    %v5044 = vmax.f32 %v4448, 0.0
    %v5045 = vmax.f32 %v4451, 0.0
    %v5046 = vmax.f32 %v4453, 0.0
    %v5047 = vmax.f32 %v4456, 0.0
    %v5048 = vmax.f32 %v4458, 0.0
    %v5049 = vmax.f32 %v4461, 0.0
    %v5050 = vmax.f32 %v4463, 0.0
    %v5051 = vmax.f32 %v4466, 0.0
    %v5052 = vmax.f32 %v4468, 0.0
    %v5053 = vmax.f32 %v4471, 0.0
    %v5054 = vmax.f32 %v4473, 0.0
    %v5055 = vmax.f32 %v4476, 0.0
    %v5056 = vmax.f32 %v4478, 0.0
    %v5057 = vmax.f32 %v4481, 0.0
    %v5058 = vmax.f32 %v4483, 0.0
    %v5059 = vmax.f32 %v4486, 0.0
    %v5060 = vmax.f32 %v4488, 0.0
    %v5061 = vmax.f32 %v4491, 0.0
    %v5062 = vmax.f32 %v4493, 0.0
    %v5063 = vmax.f32 %v4496, 0.0
    %v5064 = vmax.f32 %v4498, 0.0
    %v5065 = vmax.f32 %v4501, 0.0
    %v5066 = vmax.f32 %v4503, 0.0
    %v5067 = vmax.f32 %v4506, 0.0
    %v5068 = vmax.f32 %v4508, 0.0
    %v5069 = vmax.f32 %v4511, 0.0
    %v5070 = vmax.f32 %v4513, 0.0
    %v5071 = vmax.f32 %v4516, 0.0
    %v5072 = vmax.f32 %v4518, 0.0
    %v5073 = vmax.f32 %v4521, 0.0
    %v5074 = vmax.f32 %v4523, 0.0
    %v5075 = vmax.f32 %v4526, 0.0
    %v5076 = vmax.f32 %v4528, 0.0
    %v5077 = vmax.f32 %v4531, 0.0
    %v5078 = vmax.f32 %v4533, 0.0
    %v5079 = vmax.f32 %v4536, 0.0
    %v5080 = vmax.f32 %v4538, 0.0
    %v5081 = vmax.f32 %v4541, 0.0
    %v5082 = vmax.f32 %v4543, 0.0
    %v5083 = vmax.f32 %v4546, 0.0
    %v5084 = vmax.f32 %v4548, 0.0
    %v5085 = vmax.f32 %v4551, 0.0
    %v5086 = vmax.f32 %v4553, 0.0
    %v5087 = vmax.f32 %v4556, 0.0
    %v5088 = vmax.f32 %v4558, 0.0
    %v5089 = vmax.f32 %v4561, 0.0
    %v5090 = vmax.f32 %v4563, 0.0
    %v5091 = vmax.f32 %v4566, 0.0
    %v5092 = vmax.f32 %v4568, 0.0
    %v5093 = vmax.f32 %v4571, 0.0
    %v5094 = vmax.f32 %v4573, 0.0
    %v5095 = vmax.f32 %v4576, 0.0
    %v5096 = vmax.f32 %v4578, 0.0
    %v5097 = vmax.f32 %v4581, 0.0
    %v5098 = vmax.f32 %v4583, 0.0
    %v5099 = vmax.f32 %v4586, 0.0
    %v5100 = vmax.f32 %v4588, 0.0
    %v5101 = vmax.f32 %v4591, 0.0
    %v5102 = vmax.f32 %v4593, 0.0
    %v5103 = vmax.f32 %v4596, 0.0
    %v5104 = vmax.f32 %v4598, 0.0
    %v5105 = vmax.f32 %v4601, 0.0
    %v5106 = vmax.f32 %v4603, 0.0
    %v5107 = vmax.f32 %v4606, 0.0
    %v5108 = vmax.f32 %v4608, 0.0
    %v5109 = vmax.f32 %v4611, 0.0
    %v5110 = vmax.f32 %v4613, 0.0
    %v5111 = vmax.f32 %v4616, 0.0
    %v5112 = vmax.f32 %v4618, 0.0
    %v5113 = vmax.f32 %v4621, 0.0
    %v5114 = vmax.f32 %v4623, 0.0
    %v5115 = vmax.f32 %v4626, 0.0
    %v5116 = vmax.f32 %v4628, 0.0
    %v5117 = vmax.f32 %v4631, 0.0
    %v5118 = vmax.f32 %v4633, 0.0
    %v5119 = vmax.f32 %v4636, 0.0
    %v5120 = vmax.f32 %v4638, 0.0
    %v5121 = vmax.f32 %v4641, 0.0
    %v5122 = vmax.f32 %v4643, 0.0
    %v5123 = vmax.f32 %v4646, 0.0
    %v5124 = vmax.f32 %v4648, 0.0
    %v5125 = vmax.f32 %v4651, 0.0
    %v5126 = vmax.f32 %v4653, 0.0
    %v5127 = vmax.f32 %v4656, 0.0
    %v5128 = vmax.f32 %v4658, 0.0
    %v5129 = vmax.f32 %v4661, 0.0
    %v5130 = vmax.f32 %v4663, 0.0
    %v5131 = vmax.f32 %v4666, 0.0
    %v5132 = vmax.f32 %v4668, 0.0
    %v5133 = vmax.f32 %v4671, 0.0
    %v5134 = vmax.f32 %v4673, 0.0
    %v5135 = vmax.f32 %v4676, 0.0
    %v5136 = vmax.f32 %v4678, 0.0
    %v5137 = vmax.f32 %v4681, 0.0
    %v5138 = vmax.f32 %v4683, 0.0
    %v5139 = vmax.f32 %v4686, 0.0
    %v5140 = vmax.f32 %v4688, 0.0
    %v5141 = vmax.f32 %v4691, 0.0
    %v5142 = vmax.f32 %v4693, 0.0
    %v5143 = vmax.f32 %v4696, 0.0
    %v5144 = vmax.f32 %v4698, 0.0
    %v5145 = vmax.f32 %v4701, 0.0
    %v5146 = vmax.f32 %v4703, 0.0
    %v5147 = vmax.f32 %v4706, 0.0
    %v5148 = vmax.f32 %v4708, 0.0
    %v5149 = vmax.f32 %v4711, 0.0
    %v5150 = vmax.f32 %v4713, 0.0
    %v5151 = vmax.f32 %v4716, 0.0
    %v5152 = vmax.f32 %v4718, 0.0
    %v5153 = vmax.f32 %v4721, 0.0
    %v5154 = vmax.f32 %v4723, 0.0
    %v5155 = vmax.f32 %v4726, 0.0
    %v5156 = vmax.f32 %v4728, 0.0
    %v5157 = vmax.f32 %v4731, 0.0
    %v5158 = vmax.f32 %v4733, 0.0
    %v5159 = vmax.f32 %v4736, 0.0
    %v5160 = vmax.f32 %v4738, 0.0
    %v5161 = vmax.f32 %v4741, 0.0
    %v5162 = vmax.f32 %v4743, 0.0
    %v5163 = vmax.f32 %v4746, 0.0
    %v5164 = vmax.f32 %v4748, 0.0
    %v5165 = vmax.f32 %v4751, 0.0
    %v5166 = vmax.f32 %v4753, 0.0
    %v5167 = vmax.f32 %v4756, 0.0
    %v5168 = vmax.f32 %v4758, 0.0
    %v5169 = vmax.f32 %v4761, 0.0
    %v5170 = vmax.f32 %v4763, 0.0
    %v5171 = vmax.f32 %v4766, 0.0
    %v5172 = vmax.f32 %v4768, 0.0
    %v5173 = vmax.f32 %v4771, 0.0
    %v5174 = vmax.f32 %v4773, 0.0
    %v5175 = vmax.f32 %v4776, 0.0
    %v5176 = vmax.f32 %v4778, 0.0
    %v5177 = vmax.f32 %v4781, 0.0
    %v5178 = vmax.f32 %v4783, 0.0
    %v5179 = vmax.f32 %v4786, 0.0
    %v5180 = vmax.f32 %v4788, 0.0
    %v5181 = vmax.f32 %v4791, 0.0
    %v5182 = vmax.f32 %v4793, 0.0
    %v5183 = vmax.f32 %v4796, 0.0
    %v5184 = vmax.f32 %v4798, 0.0
    %v5185 = vmax.f32 %v4801, 0.0
    %v5186 = vmax.f32 %v4803, 0.0
    %v5187 = vmax.f32 %v4806, 0.0
    %v5188 = vmax.f32 %v4808, 0.0
    %v5189 = vmax.f32 %v4811, 0.0
    %v5190 = vmax.f32 %v4813, 0.0
    %v5191 = vmax.f32 %v4816, 0.0
    %v5192 = vmax.f32 %v4818, 0.0
    %v5193 = vmax.f32 %v4821, 0.0
    %v5194 = vmax.f32 %v4823, 0.0
    %v5195 = vmax.f32 %v4826, 0.0
    %v5196 = vmax.f32 %v4828, 0.0
    %v5197 = vmax.f32 %v4831, 0.0
    %v5198 = vmax.f32 %v4833, 0.0
    %v5199 = vmax.f32 %v4836, 0.0
    %v5200 = vmax.f32 %v4838, 0.0
    %v5201 = vmax.f32 %v4841, 0.0
    %v5202 = vmax.f32 %v4843, 0.0
    %v5203 = vmax.f32 %v4846, 0.0
    %v5204 = vmax.f32 %v4848, 0.0
    %v5205 = vmax.f32 %v4851, 0.0
    %v5206 = vmax.f32 %v4853, 0.0
    %v5207 = vmax.f32 %v4856, 0.0
    %v5208 = vmax.f32 %v4858, 0.0
    %v5209 = vmax.f32 %v4861, 0.0
    %v5210 = vmax.f32 %v4863, 0.0
    %v5211 = vmax.f32 %v4866, 0.0
    %v5212 = vmax.f32 %v4868, 0.0
    %v5213 = vmax.f32 %v4871, 0.0
    %v5214 = vmax.f32 %v4873, 0.0
    %v5215 = vmax.f32 %v4876, 0.0
    %v5216 = vmax.f32 %v4878, 0.0
    %v5217 = vmax.f32 %v4881, 0.0
    %v5218 = vmax.f32 %v4883, 0.0
    %v5219 = vmax.f32 %v4886, 0.0
    %v5220 = vmax.f32 %v4888, 0.0
    %v5221 = vmax.f32 %v4891, 0.0
    %v5222 = vmax.f32 %v4893, 0.0
    %v5223 = vmax.f32 %v4896, 0.0
    %v5224 = vmax.f32 %v4898, 0.0
    %v5225 = vmax.f32 %v4901, 0.0
    %v5226 = vmax.f32 %v4903, 0.0
    %v5227 = vmax.f32 %v4906, 0.0
    %v5228 = vmax.f32 %v4908, 0.0
    %v5229 = vmax.f32 %v4911, 0.0
    %v5230 = vmax.f32 %v4913, 0.0
    %v5231 = vmax.f32 %v4916, 0.0
    %v5232 = vmax.f32 %v4918, 0.0
    %v5233 = vmax.f32 %v4921, 0.0
    %v5234 = vmax.f32 %v4923, 0.0
    %v5235 = vmax.f32 %v4926, 0.0
    %v5236 = vmax.f32 %v4928, 0.0
    %v5237 = vmax.f32 %v4931, 0.0
    %v5238 = vmax.f32 %v4933, 0.0
    %v5239 = vmax.f32 %v4936, 0.0
    %v5240 = vmax.f32 %v4938, 0.0
    %v5241 = vmax.f32 %v4941, 0.0
    %v5242 = vmax.f32 %v4943, 0.0
    %v5243 = vmax.f32 %v4946, 0.0
    %v5244 = vmax.f32 %v4948, 0.0
    %v5245 = vmax.f32 %v4951, 0.0
    %v5246 = vmax.f32 %v4953, 0.0
    %v5247 = vmax.f32 %v4956, 0.0
    %v5248 = vmax.f32 %v4958, 0.0
    %v5249 = vmax.f32 %v4961, 0.0
    %v5250 = vmax.f32 %v4963, 0.0
    %v5251 = vmax.f32 %v4966, 0.0
    %v5252 = vmax.f32 %v4968, 0.0
    %v5253 = vmax.f32 %v4971, 0.0
    %v5254 = vmax.f32 %v4973, 0.0
    %v5255 = vmax.f32 %v4976, 0.0
    %v5256 = vmax.f32 %v4978, 0.0
    %v5257 = vmax.f32 %v4981, 0.0
    %v5258 = vmax.f32 %v4983, 0.0
    %v5259 = vmax.f32 %v4986, 0.0
    %v5260 = vmax.f32 %v4988, 0.0
    %v5261 = vmax.f32 %v4991, 0.0
    %v5262 = vmax.f32 %v4993, 0.0
    %v5263 = vmax.f32 %v4996, 0.0
    %v5264 = vmax.f32 %v4998, 0.0
    %v5265 = vmax.f32 %v5001, 0.0
    %v5266 = vmax.f32 %v5003, 0.0
    %v5267 = vmax.f32 %v5006, 0.0
    %v5268 = vmax.f32 %v5008, 0.0
    %v5269 = vmax.f32 %v5011, 0.0
    %v5270 = vmax.f32 %v5013, 0.0
    %v5271 = vpack.c.bf16 %v5016, %v5015
    %v5272 = vpack.c.bf16 %v5018, %v5017
    %v5273 = vpack.c.bf16 %v5020, %v5019
    %v5274 = vpack.c.bf16 %v5022, %v5021
    %v5275 = vpack.c.bf16 %v5024, %v5023
    %v5276 = vpack.c.bf16 %v5026, %v5025
    %v5277 = vpack.c.bf16 %v5028, %v5027
    %v5278 = vpack.c.bf16 %v5030, %v5029
    %v5279 = vpack.c.bf16 %v5032, %v5031
    %v5280 = vpack.c.bf16 %v5034, %v5033
    %v5281 = vpack.c.bf16 %v5036, %v5035
    %v5282 = vpack.c.bf16 %v5038, %v5037
    %v5283 = vpack.c.bf16 %v5040, %v5039
    %v5284 = vpack.c.bf16 %v5042, %v5041
    %v5285 = vpack.c.bf16 %v5044, %v5043
    %v5286 = vpack.c.bf16 %v5046, %v5045
    %v5287 = vpack.c.bf16 %v5048, %v5047
    %v5288 = vpack.c.bf16 %v5050, %v5049
    %v5289 = vpack.c.bf16 %v5052, %v5051
    %v5290 = vpack.c.bf16 %v5054, %v5053
    %v5291 = vpack.c.bf16 %v5056, %v5055
    %v5292 = vpack.c.bf16 %v5058, %v5057
    %v5293 = vpack.c.bf16 %v5060, %v5059
    %v5294 = vpack.c.bf16 %v5062, %v5061
    %v5295 = vpack.c.bf16 %v5064, %v5063
    %v5296 = vpack.c.bf16 %v5066, %v5065
    %v5297 = vpack.c.bf16 %v5068, %v5067
    %v5298 = vpack.c.bf16 %v5070, %v5069
    %v5299 = vpack.c.bf16 %v5072, %v5071
    %v5300 = vpack.c.bf16 %v5074, %v5073
    %v5301 = vpack.c.bf16 %v5076, %v5075
    %v5302 = vpack.c.bf16 %v5078, %v5077
    %v5303 = vpack.c.bf16 %v5080, %v5079
    %v5304 = vpack.c.bf16 %v5082, %v5081
    %v5305 = vpack.c.bf16 %v5084, %v5083
    %v5306 = vpack.c.bf16 %v5086, %v5085
    %v5307 = vpack.c.bf16 %v5088, %v5087
    %v5308 = vpack.c.bf16 %v5090, %v5089
    %v5309 = vpack.c.bf16 %v5092, %v5091
    %v5310 = vpack.c.bf16 %v5094, %v5093
    %v5311 = vpack.c.bf16 %v5096, %v5095
    %v5312 = vpack.c.bf16 %v5098, %v5097
    %v5313 = vpack.c.bf16 %v5100, %v5099
    %v5314 = vpack.c.bf16 %v5102, %v5101
    %v5315 = vpack.c.bf16 %v5104, %v5103
    %v5316 = vpack.c.bf16 %v5106, %v5105
    %v5317 = vpack.c.bf16 %v5108, %v5107
    %v5318 = vpack.c.bf16 %v5110, %v5109
    %v5319 = vpack.c.bf16 %v5112, %v5111
    %v5320 = vpack.c.bf16 %v5114, %v5113
    %v5321 = vpack.c.bf16 %v5116, %v5115
    %v5322 = vpack.c.bf16 %v5118, %v5117
    %v5323 = vpack.c.bf16 %v5120, %v5119
    %v5324 = vpack.c.bf16 %v5122, %v5121
    %v5325 = vpack.c.bf16 %v5124, %v5123
    %v5326 = vpack.c.bf16 %v5126, %v5125
    %v5327 = vpack.c.bf16 %v5128, %v5127
    %v5328 = vpack.c.bf16 %v5130, %v5129
    %v5329 = vpack.c.bf16 %v5132, %v5131
    %v5330 = vpack.c.bf16 %v5134, %v5133
    %v5331 = vpack.c.bf16 %v5136, %v5135
    %v5332 = vpack.c.bf16 %v5138, %v5137
    %v5333 = vpack.c.bf16 %v5140, %v5139
    %v5334 = vpack.c.bf16 %v5142, %v5141
    %v5335 = vpack.c.bf16 %v5144, %v5143
    %v5336 = vpack.c.bf16 %v5146, %v5145
    %v5337 = vpack.c.bf16 %v5148, %v5147
    %v5338 = vpack.c.bf16 %v5150, %v5149
    %v5339 = vpack.c.bf16 %v5152, %v5151
    %v5340 = vpack.c.bf16 %v5154, %v5153
    %v5341 = vpack.c.bf16 %v5156, %v5155
    %v5342 = vpack.c.bf16 %v5158, %v5157
    %v5343 = vpack.c.bf16 %v5160, %v5159
    %v5344 = vpack.c.bf16 %v5162, %v5161
    %v5345 = vpack.c.bf16 %v5164, %v5163
    %v5346 = vpack.c.bf16 %v5166, %v5165
    %v5347 = vpack.c.bf16 %v5168, %v5167
    %v5348 = vpack.c.bf16 %v5170, %v5169
    %v5349 = vpack.c.bf16 %v5172, %v5171
    %v5350 = vpack.c.bf16 %v5174, %v5173
    %v5351 = vpack.c.bf16 %v5176, %v5175
    %v5352 = vpack.c.bf16 %v5178, %v5177
    %v5353 = vpack.c.bf16 %v5180, %v5179
    %v5354 = vpack.c.bf16 %v5182, %v5181
    %v5355 = vpack.c.bf16 %v5184, %v5183
    %v5356 = vpack.c.bf16 %v5186, %v5185
    %v5357 = vpack.c.bf16 %v5188, %v5187
    %v5358 = vpack.c.bf16 %v5190, %v5189
    %v5359 = vpack.c.bf16 %v5192, %v5191
    %v5360 = vpack.c.bf16 %v5194, %v5193
    %v5361 = vpack.c.bf16 %v5196, %v5195
    %v5362 = vpack.c.bf16 %v5198, %v5197
    %v5363 = vpack.c.bf16 %v5200, %v5199
    %v5364 = vpack.c.bf16 %v5202, %v5201
    %v5365 = vpack.c.bf16 %v5204, %v5203
    %v5366 = vpack.c.bf16 %v5206, %v5205
    %v5367 = vpack.c.bf16 %v5208, %v5207
    %v5368 = vpack.c.bf16 %v5210, %v5209
    %v5369 = vpack.c.bf16 %v5212, %v5211
    %v5370 = vpack.c.bf16 %v5214, %v5213
    %v5371 = vpack.c.bf16 %v5216, %v5215
    %v5372 = vpack.c.bf16 %v5218, %v5217
    %v5373 = vpack.c.bf16 %v5220, %v5219
    %v5374 = vpack.c.bf16 %v5222, %v5221
    %v5375 = vpack.c.bf16 %v5224, %v5223
    %v5376 = vpack.c.bf16 %v5226, %v5225
    %v5377 = vpack.c.bf16 %v5228, %v5227
    %v5378 = vpack.c.bf16 %v5230, %v5229
    %v5379 = vpack.c.bf16 %v5232, %v5231
    %v5380 = vpack.c.bf16 %v5234, %v5233
    %v5381 = vpack.c.bf16 %v5236, %v5235
    %v5382 = vpack.c.bf16 %v5238, %v5237
    %v5383 = vpack.c.bf16 %v5240, %v5239
    %v5384 = vpack.c.bf16 %v5242, %v5241
    %v5385 = vpack.c.bf16 %v5244, %v5243
    %v5386 = vpack.c.bf16 %v5246, %v5245
    %v5387 = vpack.c.bf16 %v5248, %v5247
    %v5388 = vpack.c.bf16 %v5250, %v5249
    %v5389 = vpack.c.bf16 %v5252, %v5251
    %v5390 = vpack.c.bf16 %v5254, %v5253
    %v5391 = vpack.c.bf16 %v5256, %v5255
    %v5392 = vpack.c.bf16 %v5258, %v5257
    %v5393 = vpack.c.bf16 %v5260, %v5259
    %v5394 = vpack.c.bf16 %v5262, %v5261
    %v5395 = vpack.c.bf16 %v5264, %v5263
    %v5396 = vpack.c.bf16 %v5266, %v5265
    %v5397 = vpack.c.bf16 %v5268, %v5267
    %v5398 = vpack.c.bf16 %v5270, %v5269
    %s5399 = scalar_lea.vmem %s3, 192
    %v5400 = vld [vmem:[%s5399] sm:$0xf]
    %v5401 = vld [vmem:[%s5399 + $0x4] sm:$0xf]
    %v5402 = vld [vmem:[%s5399 + $0x8] sm:$0xf]
    %v5403 = vld [vmem:[%s5399 + $0xc] sm:$0xf]
    %v5404 = vld [vmem:[%s5399 + $0x10] sm:$0xf]
    %v5405 = vld [vmem:[%s5399 + $0x14] sm:$0xf]
    %v5406 = vld [vmem:[%s5399 + $0x18] sm:$0xf]
    %v5407 = vld [vmem:[%s5399 + $0x1c] sm:$0xf]
    %v5408 = vld [vmem:[%s5399 + $0x20] sm:$0xf]
    %v5409 = vld [vmem:[%s5399 + $0x24] sm:$0xf]
    %v5410 = vld [vmem:[%s5399 + $0x28] sm:$0xf]
    %v5411 = vld [vmem:[%s5399 + $0x2c] sm:$0xf]
    %v5412 = vld [vmem:[%s5399 + $0x30] sm:$0xf]
    %v5413 = vld [vmem:[%s5399 + $0x34] sm:$0xf]
    %v5414 = vld [vmem:[%s5399 + $0x38] sm:$0xf]
    %v5415 = vld [vmem:[%s5399 + $0x3c] sm:$0xf]
    %s5416 = scalar_lea.vmem %s4, 3
    %v5417 = vld [vmem:[%s5416] sm:$0x1]
    %v5419 = vperm.slane %v5417, 0
    %v5437 = vunpack.c.l.b16 %v5400
    %v5438 = vunpack.c.l.b16 %v5401
    %v5439 = vunpack.c.l.b16 %v5402
    %v5440 = vunpack.c.l.b16 %v5403
    %v5441 = vunpack.c.l.b16 %v5404
    %v5442 = vunpack.c.l.b16 %v5405
    %v5443 = vunpack.c.l.b16 %v5406
    %v5444 = vunpack.c.l.b16 %v5407
    %v5445 = vunpack.c.l.b16 %v5408
    %v5446 = vunpack.c.l.b16 %v5409
    %v5447 = vunpack.c.l.b16 %v5410
    %v5448 = vunpack.c.l.b16 %v5411
    %v5449 = vunpack.c.l.b16 %v5412
    %v5450 = vunpack.c.l.b16 %v5413
    %v5451 = vunpack.c.l.b16 %v5414
    %v5452 = vunpack.c.l.b16 %v5415
    %v5453 = vpack.c.b16 %v5438, %v5437
    %v5454 = vpack.c.b16 %v5440, %v5439
    %v5455 = vpack.c.b16 %v5442, %v5441
    %v5456 = vpack.c.b16 %v5444, %v5443
    %v5457 = vpack.c.b16 %v5446, %v5445
    %v5458 = vpack.c.b16 %v5448, %v5447
    %v5459 = vpack.c.b16 %v5450, %v5449
    %v5460 = vpack.c.b16 %v5452, %v5451
    %5469 = vmatpush.bf16.msra.mxu0 %v5460
    %5470 = vmatpush.bf16.msra.mxu0 %v5459
    %5471 = vmatpush.bf16.msra.mxu0 %v5458
    %5472 = vmatpush.bf16.msra.mxu0 %v5457
    %5473 = vmatpush.bf16.msra.mxu0 %v5456
    %5474 = vmatpush.bf16.msra.mxu0 %v5455
    %5475 = vmatpush.bf16.msra.mxu0 %v5454
    %5476 = vmatpush.bf16.msra.mxu0 %v5453
    %5477 = vmatmul.bf16.gmra.mxu0 %v5271
    %v5478 = vpop.f32.mrf.mxu0
    %v5479 = vadd.f32 %v5419, %v5478
    %v5480 = vpop.f32.mrf.mxu0
    %v5481 = vadd.f32 %v5419, %v5480
    %5482 = vmatmul.bf16.gmra.mxu0 %v5272
    %v5483 = vpop.f32.mrf.mxu0
    %v5484 = vadd.f32 %v5419, %v5483
    %v5485 = vpop.f32.mrf.mxu0
    %v5486 = vadd.f32 %v5419, %v5485
    %5487 = vmatmul.bf16.gmra.mxu0 %v5273
    %v5488 = vpop.f32.mrf.mxu0
    %v5489 = vadd.f32 %v5419, %v5488
    %v5490 = vpop.f32.mrf.mxu0
    %v5491 = vadd.f32 %v5419, %v5490
    %5492 = vmatmul.bf16.gmra.mxu0 %v5274
    %v5493 = vpop.f32.mrf.mxu0
    %v5494 = vadd.f32 %v5419, %v5493
    %v5495 = vpop.f32.mrf.mxu0
    %v5496 = vadd.f32 %v5419, %v5495
    %5497 = vmatmul.bf16.gmra.mxu0 %v5275
    %v5498 = vpop.f32.mrf.mxu0
    %v5499 = vadd.f32 %v5419, %v5498
    %v5500 = vpop.f32.mrf.mxu0
    %v5501 = vadd.f32 %v5419, %v5500
    %5502 = vmatmul.bf16.gmra.mxu0 %v5276
    %v5503 = vpop.f32.mrf.mxu0
    %v5504 = vadd.f32 %v5419, %v5503
    %v5505 = vpop.f32.mrf.mxu0
    %v5506 = vadd.f32 %v5419, %v5505
    %5507 = vmatmul.bf16.gmra.mxu0 %v5277
    %v5508 = vpop.f32.mrf.mxu0
    %v5509 = vadd.f32 %v5419, %v5508
    %v5510 = vpop.f32.mrf.mxu0
    %v5511 = vadd.f32 %v5419, %v5510
    %5512 = vmatmul.bf16.gmra.mxu0 %v5278
    %v5513 = vpop.f32.mrf.mxu0
    %v5514 = vadd.f32 %v5419, %v5513
    %v5515 = vpop.f32.mrf.mxu0
    %v5516 = vadd.f32 %v5419, %v5515
    %5517 = vmatmul.bf16.gmra.mxu0 %v5279
    %v5518 = vpop.f32.mrf.mxu0
    %v5519 = vadd.f32 %v5419, %v5518
    %v5520 = vpop.f32.mrf.mxu0
    %v5521 = vadd.f32 %v5419, %v5520
    %5522 = vmatmul.bf16.gmra.mxu0 %v5280
    %v5523 = vpop.f32.mrf.mxu0
    %v5524 = vadd.f32 %v5419, %v5523
    %v5525 = vpop.f32.mrf.mxu0
    %v5526 = vadd.f32 %v5419, %v5525
    %5527 = vmatmul.bf16.gmra.mxu0 %v5281
    %v5528 = vpop.f32.mrf.mxu0
    %v5529 = vadd.f32 %v5419, %v5528
    %v5530 = vpop.f32.mrf.mxu0
    %v5531 = vadd.f32 %v5419, %v5530
    %5532 = vmatmul.bf16.gmra.mxu0 %v5282
    %v5533 = vpop.f32.mrf.mxu0
    %v5534 = vadd.f32 %v5419, %v5533
    %v5535 = vpop.f32.mrf.mxu0
    %v5536 = vadd.f32 %v5419, %v5535
    %5537 = vmatmul.bf16.gmra.mxu0 %v5283
    %v5538 = vpop.f32.mrf.mxu0
    %v5539 = vadd.f32 %v5419, %v5538
    %v5540 = vpop.f32.mrf.mxu0
    %v5541 = vadd.f32 %v5419, %v5540
    %5542 = vmatmul.bf16.gmra.mxu0 %v5284
    %v5543 = vpop.f32.mrf.mxu0
    %v5544 = vadd.f32 %v5419, %v5543
    %v5545 = vpop.f32.mrf.mxu0
    %v5546 = vadd.f32 %v5419, %v5545
    %5547 = vmatmul.bf16.gmra.mxu0 %v5285
    %v5548 = vpop.f32.mrf.mxu0
    %v5549 = vadd.f32 %v5419, %v5548
    %v5550 = vpop.f32.mrf.mxu0
    %v5551 = vadd.f32 %v5419, %v5550
    %5552 = vmatmul.bf16.gmra.mxu0 %v5286
    %v5553 = vpop.f32.mrf.mxu0
    %v5554 = vadd.f32 %v5419, %v5553
    %v5555 = vpop.f32.mrf.mxu0
    %v5556 = vadd.f32 %v5419, %v5555
    %5557 = vmatmul.bf16.gmra.mxu0 %v5287
    %v5558 = vpop.f32.mrf.mxu0
    %v5559 = vadd.f32 %v5419, %v5558
    %v5560 = vpop.f32.mrf.mxu0
    %v5561 = vadd.f32 %v5419, %v5560
    %5562 = vmatmul.bf16.gmra.mxu0 %v5288
    %v5563 = vpop.f32.mrf.mxu0
    %v5564 = vadd.f32 %v5419, %v5563
    %v5565 = vpop.f32.mrf.mxu0
    %v5566 = vadd.f32 %v5419, %v5565
    %5567 = vmatmul.bf16.gmra.mxu0 %v5289
    %v5568 = vpop.f32.mrf.mxu0
    %v5569 = vadd.f32 %v5419, %v5568
    %v5570 = vpop.f32.mrf.mxu0
    %v5571 = vadd.f32 %v5419, %v5570
    %5572 = vmatmul.bf16.gmra.mxu0 %v5290
    %v5573 = vpop.f32.mrf.mxu0
    %v5574 = vadd.f32 %v5419, %v5573
    %v5575 = vpop.f32.mrf.mxu0
    %v5576 = vadd.f32 %v5419, %v5575
    %5577 = vmatmul.bf16.gmra.mxu0 %v5291
    %v5578 = vpop.f32.mrf.mxu0
    %v5579 = vadd.f32 %v5419, %v5578
    %v5580 = vpop.f32.mrf.mxu0
    %v5581 = vadd.f32 %v5419, %v5580
    %5582 = vmatmul.bf16.gmra.mxu0 %v5292
    %v5583 = vpop.f32.mrf.mxu0
    %v5584 = vadd.f32 %v5419, %v5583
    %v5585 = vpop.f32.mrf.mxu0
    %v5586 = vadd.f32 %v5419, %v5585
    %5587 = vmatmul.bf16.gmra.mxu0 %v5293
    %v5588 = vpop.f32.mrf.mxu0
    %v5589 = vadd.f32 %v5419, %v5588
    %v5590 = vpop.f32.mrf.mxu0
    %v5591 = vadd.f32 %v5419, %v5590
    %5592 = vmatmul.bf16.gmra.mxu0 %v5294
    %v5593 = vpop.f32.mrf.mxu0
    %v5594 = vadd.f32 %v5419, %v5593
    %v5595 = vpop.f32.mrf.mxu0
    %v5596 = vadd.f32 %v5419, %v5595
    %5597 = vmatmul.bf16.gmra.mxu0 %v5295
    %v5598 = vpop.f32.mrf.mxu0
    %v5599 = vadd.f32 %v5419, %v5598
    %v5600 = vpop.f32.mrf.mxu0
    %v5601 = vadd.f32 %v5419, %v5600
    %5602 = vmatmul.bf16.gmra.mxu0 %v5296
    %v5603 = vpop.f32.mrf.mxu0
    %v5604 = vadd.f32 %v5419, %v5603
    %v5605 = vpop.f32.mrf.mxu0
    %v5606 = vadd.f32 %v5419, %v5605
    %5607 = vmatmul.bf16.gmra.mxu0 %v5297
    %v5608 = vpop.f32.mrf.mxu0
    %v5609 = vadd.f32 %v5419, %v5608
    %v5610 = vpop.f32.mrf.mxu0
    %v5611 = vadd.f32 %v5419, %v5610
    %5612 = vmatmul.bf16.gmra.mxu0 %v5298
    %v5613 = vpop.f32.mrf.mxu0
    %v5614 = vadd.f32 %v5419, %v5613
    %v5615 = vpop.f32.mrf.mxu0
    %v5616 = vadd.f32 %v5419, %v5615
    %5617 = vmatmul.bf16.gmra.mxu0 %v5299
    %v5618 = vpop.f32.mrf.mxu0
    %v5619 = vadd.f32 %v5419, %v5618
    %v5620 = vpop.f32.mrf.mxu0
    %v5621 = vadd.f32 %v5419, %v5620
    %5622 = vmatmul.bf16.gmra.mxu0 %v5300
    %v5623 = vpop.f32.mrf.mxu0
    %v5624 = vadd.f32 %v5419, %v5623
    %v5625 = vpop.f32.mrf.mxu0
    %v5626 = vadd.f32 %v5419, %v5625
    %5627 = vmatmul.bf16.gmra.mxu0 %v5301
    %v5628 = vpop.f32.mrf.mxu0
    %v5629 = vadd.f32 %v5419, %v5628
    %v5630 = vpop.f32.mrf.mxu0
    %v5631 = vadd.f32 %v5419, %v5630
    %5632 = vmatmul.bf16.gmra.mxu0 %v5302
    %v5633 = vpop.f32.mrf.mxu0
    %v5634 = vadd.f32 %v5419, %v5633
    %v5635 = vpop.f32.mrf.mxu0
    %v5636 = vadd.f32 %v5419, %v5635
    %5637 = vmatmul.bf16.gmra.mxu0 %v5303
    %v5638 = vpop.f32.mrf.mxu0
    %v5639 = vadd.f32 %v5419, %v5638
    %v5640 = vpop.f32.mrf.mxu0
    %v5641 = vadd.f32 %v5419, %v5640
    %5642 = vmatmul.bf16.gmra.mxu0 %v5304
    %v5643 = vpop.f32.mrf.mxu0
    %v5644 = vadd.f32 %v5419, %v5643
    %v5645 = vpop.f32.mrf.mxu0
    %v5646 = vadd.f32 %v5419, %v5645
    %5647 = vmatmul.bf16.gmra.mxu0 %v5305
    %v5648 = vpop.f32.mrf.mxu0
    %v5649 = vadd.f32 %v5419, %v5648
    %v5650 = vpop.f32.mrf.mxu0
    %v5651 = vadd.f32 %v5419, %v5650
    %5652 = vmatmul.bf16.gmra.mxu0 %v5306
    %v5653 = vpop.f32.mrf.mxu0
    %v5654 = vadd.f32 %v5419, %v5653
    %v5655 = vpop.f32.mrf.mxu0
    %v5656 = vadd.f32 %v5419, %v5655
    %5657 = vmatmul.bf16.gmra.mxu0 %v5307
    %v5658 = vpop.f32.mrf.mxu0
    %v5659 = vadd.f32 %v5419, %v5658
    %v5660 = vpop.f32.mrf.mxu0
    %v5661 = vadd.f32 %v5419, %v5660
    %5662 = vmatmul.bf16.gmra.mxu0 %v5308
    %v5663 = vpop.f32.mrf.mxu0
    %v5664 = vadd.f32 %v5419, %v5663
    %v5665 = vpop.f32.mrf.mxu0
    %v5666 = vadd.f32 %v5419, %v5665
    %5667 = vmatmul.bf16.gmra.mxu0 %v5309
    %v5668 = vpop.f32.mrf.mxu0
    %v5669 = vadd.f32 %v5419, %v5668
    %v5670 = vpop.f32.mrf.mxu0
    %v5671 = vadd.f32 %v5419, %v5670
    %5672 = vmatmul.bf16.gmra.mxu0 %v5310
    %v5673 = vpop.f32.mrf.mxu0
    %v5674 = vadd.f32 %v5419, %v5673
    %v5675 = vpop.f32.mrf.mxu0
    %v5676 = vadd.f32 %v5419, %v5675
    %5677 = vmatmul.bf16.gmra.mxu0 %v5311
    %v5678 = vpop.f32.mrf.mxu0
    %v5679 = vadd.f32 %v5419, %v5678
    %v5680 = vpop.f32.mrf.mxu0
    %v5681 = vadd.f32 %v5419, %v5680
    %5682 = vmatmul.bf16.gmra.mxu0 %v5312
    %v5683 = vpop.f32.mrf.mxu0
    %v5684 = vadd.f32 %v5419, %v5683
    %v5685 = vpop.f32.mrf.mxu0
    %v5686 = vadd.f32 %v5419, %v5685
    %5687 = vmatmul.bf16.gmra.mxu0 %v5313
    %v5688 = vpop.f32.mrf.mxu0
    %v5689 = vadd.f32 %v5419, %v5688
    %v5690 = vpop.f32.mrf.mxu0
    %v5691 = vadd.f32 %v5419, %v5690
    %5692 = vmatmul.bf16.gmra.mxu0 %v5314
    %v5693 = vpop.f32.mrf.mxu0
    %v5694 = vadd.f32 %v5419, %v5693
    %v5695 = vpop.f32.mrf.mxu0
    %v5696 = vadd.f32 %v5419, %v5695
    %5697 = vmatmul.bf16.gmra.mxu0 %v5315
    %v5698 = vpop.f32.mrf.mxu0
    %v5699 = vadd.f32 %v5419, %v5698
    %v5700 = vpop.f32.mrf.mxu0
    %v5701 = vadd.f32 %v5419, %v5700
    %5702 = vmatmul.bf16.gmra.mxu0 %v5316
    %v5703 = vpop.f32.mrf.mxu0
    %v5704 = vadd.f32 %v5419, %v5703
    %v5705 = vpop.f32.mrf.mxu0
    %v5706 = vadd.f32 %v5419, %v5705
    %5707 = vmatmul.bf16.gmra.mxu0 %v5317
    %v5708 = vpop.f32.mrf.mxu0
    %v5709 = vadd.f32 %v5419, %v5708
    %v5710 = vpop.f32.mrf.mxu0
    %v5711 = vadd.f32 %v5419, %v5710
    %5712 = vmatmul.bf16.gmra.mxu0 %v5318
    %v5713 = vpop.f32.mrf.mxu0
    %v5714 = vadd.f32 %v5419, %v5713
    %v5715 = vpop.f32.mrf.mxu0
    %v5716 = vadd.f32 %v5419, %v5715
    %5717 = vmatmul.bf16.gmra.mxu0 %v5319
    %v5718 = vpop.f32.mrf.mxu0
    %v5719 = vadd.f32 %v5419, %v5718
    %v5720 = vpop.f32.mrf.mxu0
    %v5721 = vadd.f32 %v5419, %v5720
    %5722 = vmatmul.bf16.gmra.mxu0 %v5320
    %v5723 = vpop.f32.mrf.mxu0
    %v5724 = vadd.f32 %v5419, %v5723
    %v5725 = vpop.f32.mrf.mxu0
    %v5726 = vadd.f32 %v5419, %v5725
    %5727 = vmatmul.bf16.gmra.mxu0 %v5321
    %v5728 = vpop.f32.mrf.mxu0
    %v5729 = vadd.f32 %v5419, %v5728
    %v5730 = vpop.f32.mrf.mxu0
    %v5731 = vadd.f32 %v5419, %v5730
    %5732 = vmatmul.bf16.gmra.mxu0 %v5322
    %v5733 = vpop.f32.mrf.mxu0
    %v5734 = vadd.f32 %v5419, %v5733
    %v5735 = vpop.f32.mrf.mxu0
    %v5736 = vadd.f32 %v5419, %v5735
    %5737 = vmatmul.bf16.gmra.mxu0 %v5323
    %v5738 = vpop.f32.mrf.mxu0
    %v5739 = vadd.f32 %v5419, %v5738
    %v5740 = vpop.f32.mrf.mxu0
    %v5741 = vadd.f32 %v5419, %v5740
    %5742 = vmatmul.bf16.gmra.mxu0 %v5324
    %v5743 = vpop.f32.mrf.mxu0
    %v5744 = vadd.f32 %v5419, %v5743
    %v5745 = vpop.f32.mrf.mxu0
    %v5746 = vadd.f32 %v5419, %v5745
    %5747 = vmatmul.bf16.gmra.mxu0 %v5325
    %v5748 = vpop.f32.mrf.mxu0
    %v5749 = vadd.f32 %v5419, %v5748
    %v5750 = vpop.f32.mrf.mxu0
    %v5751 = vadd.f32 %v5419, %v5750
    %5752 = vmatmul.bf16.gmra.mxu0 %v5326
    %v5753 = vpop.f32.mrf.mxu0
    %v5754 = vadd.f32 %v5419, %v5753
    %v5755 = vpop.f32.mrf.mxu0
    %v5756 = vadd.f32 %v5419, %v5755
    %5757 = vmatmul.bf16.gmra.mxu0 %v5327
    %v5758 = vpop.f32.mrf.mxu0
    %v5759 = vadd.f32 %v5419, %v5758
    %v5760 = vpop.f32.mrf.mxu0
    %v5761 = vadd.f32 %v5419, %v5760
    %5762 = vmatmul.bf16.gmra.mxu0 %v5328
    %v5763 = vpop.f32.mrf.mxu0
    %v5764 = vadd.f32 %v5419, %v5763
    %v5765 = vpop.f32.mrf.mxu0
    %v5766 = vadd.f32 %v5419, %v5765
    %5767 = vmatmul.bf16.gmra.mxu0 %v5329
    %v5768 = vpop.f32.mrf.mxu0
    %v5769 = vadd.f32 %v5419, %v5768
    %v5770 = vpop.f32.mrf.mxu0
    %v5771 = vadd.f32 %v5419, %v5770
    %5772 = vmatmul.bf16.gmra.mxu0 %v5330
    %v5773 = vpop.f32.mrf.mxu0
    %v5774 = vadd.f32 %v5419, %v5773
    %v5775 = vpop.f32.mrf.mxu0
    %v5776 = vadd.f32 %v5419, %v5775
    %5777 = vmatmul.bf16.gmra.mxu0 %v5331
    %v5778 = vpop.f32.mrf.mxu0
    %v5779 = vadd.f32 %v5419, %v5778
    %v5780 = vpop.f32.mrf.mxu0
    %v5781 = vadd.f32 %v5419, %v5780
    %5782 = vmatmul.bf16.gmra.mxu0 %v5332
    %v5783 = vpop.f32.mrf.mxu0
    %v5784 = vadd.f32 %v5419, %v5783
    %v5785 = vpop.f32.mrf.mxu0
    %v5786 = vadd.f32 %v5419, %v5785
    %5787 = vmatmul.bf16.gmra.mxu0 %v5333
    %v5788 = vpop.f32.mrf.mxu0
    %v5789 = vadd.f32 %v5419, %v5788
    %v5790 = vpop.f32.mrf.mxu0
    %v5791 = vadd.f32 %v5419, %v5790
    %5792 = vmatmul.bf16.gmra.mxu0 %v5334
    %v5793 = vpop.f32.mrf.mxu0
    %v5794 = vadd.f32 %v5419, %v5793
    %v5795 = vpop.f32.mrf.mxu0
    %v5796 = vadd.f32 %v5419, %v5795
    %5797 = vmatmul.bf16.gmra.mxu0 %v5335
    %v5798 = vpop.f32.mrf.mxu0
    %v5799 = vadd.f32 %v5419, %v5798
    %v5800 = vpop.f32.mrf.mxu0
    %v5801 = vadd.f32 %v5419, %v5800
    %5802 = vmatmul.bf16.gmra.mxu0 %v5336
    %v5803 = vpop.f32.mrf.mxu0
    %v5804 = vadd.f32 %v5419, %v5803
    %v5805 = vpop.f32.mrf.mxu0
    %v5806 = vadd.f32 %v5419, %v5805
    %5807 = vmatmul.bf16.gmra.mxu0 %v5337
    %v5808 = vpop.f32.mrf.mxu0
    %v5809 = vadd.f32 %v5419, %v5808
    %v5810 = vpop.f32.mrf.mxu0
    %v5811 = vadd.f32 %v5419, %v5810
    %5812 = vmatmul.bf16.gmra.mxu0 %v5338
    %v5813 = vpop.f32.mrf.mxu0
    %v5814 = vadd.f32 %v5419, %v5813
    %v5815 = vpop.f32.mrf.mxu0
    %v5816 = vadd.f32 %v5419, %v5815
    %5817 = vmatmul.bf16.gmra.mxu0 %v5339
    %v5818 = vpop.f32.mrf.mxu0
    %v5819 = vadd.f32 %v5419, %v5818
    %v5820 = vpop.f32.mrf.mxu0
    %v5821 = vadd.f32 %v5419, %v5820
    %5822 = vmatmul.bf16.gmra.mxu0 %v5340
    %v5823 = vpop.f32.mrf.mxu0
    %v5824 = vadd.f32 %v5419, %v5823
    %v5825 = vpop.f32.mrf.mxu0
    %v5826 = vadd.f32 %v5419, %v5825
    %5827 = vmatmul.bf16.gmra.mxu0 %v5341
    %v5828 = vpop.f32.mrf.mxu0
    %v5829 = vadd.f32 %v5419, %v5828
    %v5830 = vpop.f32.mrf.mxu0
    %v5831 = vadd.f32 %v5419, %v5830
    %5832 = vmatmul.bf16.gmra.mxu0 %v5342
    %v5833 = vpop.f32.mrf.mxu0
    %v5834 = vadd.f32 %v5419, %v5833
    %v5835 = vpop.f32.mrf.mxu0
    %v5836 = vadd.f32 %v5419, %v5835
    %5837 = vmatmul.bf16.gmra.mxu0 %v5343
    %v5838 = vpop.f32.mrf.mxu0
    %v5839 = vadd.f32 %v5419, %v5838
    %v5840 = vpop.f32.mrf.mxu0
    %v5841 = vadd.f32 %v5419, %v5840
    %5842 = vmatmul.bf16.gmra.mxu0 %v5344
    %v5843 = vpop.f32.mrf.mxu0
    %v5844 = vadd.f32 %v5419, %v5843
    %v5845 = vpop.f32.mrf.mxu0
    %v5846 = vadd.f32 %v5419, %v5845
    %5847 = vmatmul.bf16.gmra.mxu0 %v5345
    %v5848 = vpop.f32.mrf.mxu0
    %v5849 = vadd.f32 %v5419, %v5848
    %v5850 = vpop.f32.mrf.mxu0
    %v5851 = vadd.f32 %v5419, %v5850
    %5852 = vmatmul.bf16.gmra.mxu0 %v5346
    %v5853 = vpop.f32.mrf.mxu0
    %v5854 = vadd.f32 %v5419, %v5853
    %v5855 = vpop.f32.mrf.mxu0
    %v5856 = vadd.f32 %v5419, %v5855
    %5857 = vmatmul.bf16.gmra.mxu0 %v5347
    %v5858 = vpop.f32.mrf.mxu0
    %v5859 = vadd.f32 %v5419, %v5858
    %v5860 = vpop.f32.mrf.mxu0
    %v5861 = vadd.f32 %v5419, %v5860
    %5862 = vmatmul.bf16.gmra.mxu0 %v5348
    %v5863 = vpop.f32.mrf.mxu0
    %v5864 = vadd.f32 %v5419, %v5863
    %v5865 = vpop.f32.mrf.mxu0
    %v5866 = vadd.f32 %v5419, %v5865
    %5867 = vmatmul.bf16.gmra.mxu0 %v5349
    %v5868 = vpop.f32.mrf.mxu0
    %v5869 = vadd.f32 %v5419, %v5868
    %v5870 = vpop.f32.mrf.mxu0
    %v5871 = vadd.f32 %v5419, %v5870
    %5872 = vmatmul.bf16.gmra.mxu0 %v5350
    %v5873 = vpop.f32.mrf.mxu0
    %v5874 = vadd.f32 %v5419, %v5873
    %v5875 = vpop.f32.mrf.mxu0
    %v5876 = vadd.f32 %v5419, %v5875
    %5877 = vmatmul.bf16.gmra.mxu0 %v5351
    %v5878 = vpop.f32.mrf.mxu0
    %v5879 = vadd.f32 %v5419, %v5878
    %v5880 = vpop.f32.mrf.mxu0
    %v5881 = vadd.f32 %v5419, %v5880
    %5882 = vmatmul.bf16.gmra.mxu0 %v5352
    %v5883 = vpop.f32.mrf.mxu0
    %v5884 = vadd.f32 %v5419, %v5883
    %v5885 = vpop.f32.mrf.mxu0
    %v5886 = vadd.f32 %v5419, %v5885
    %5887 = vmatmul.bf16.gmra.mxu0 %v5353
    %v5888 = vpop.f32.mrf.mxu0
    %v5889 = vadd.f32 %v5419, %v5888
    %v5890 = vpop.f32.mrf.mxu0
    %v5891 = vadd.f32 %v5419, %v5890
    %5892 = vmatmul.bf16.gmra.mxu0 %v5354
    %v5893 = vpop.f32.mrf.mxu0
    %v5894 = vadd.f32 %v5419, %v5893
    %v5895 = vpop.f32.mrf.mxu0
    %v5896 = vadd.f32 %v5419, %v5895
    %5897 = vmatmul.bf16.gmra.mxu0 %v5355
    %v5898 = vpop.f32.mrf.mxu0
    %v5899 = vadd.f32 %v5419, %v5898
    %v5900 = vpop.f32.mrf.mxu0
    %v5901 = vadd.f32 %v5419, %v5900
    %5902 = vmatmul.bf16.gmra.mxu0 %v5356
    %v5903 = vpop.f32.mrf.mxu0
    %v5904 = vadd.f32 %v5419, %v5903
    %v5905 = vpop.f32.mrf.mxu0
    %v5906 = vadd.f32 %v5419, %v5905
    %5907 = vmatmul.bf16.gmra.mxu0 %v5357
    %v5908 = vpop.f32.mrf.mxu0
    %v5909 = vadd.f32 %v5419, %v5908
    %v5910 = vpop.f32.mrf.mxu0
    %v5911 = vadd.f32 %v5419, %v5910
    %5912 = vmatmul.bf16.gmra.mxu0 %v5358
    %v5913 = vpop.f32.mrf.mxu0
    %v5914 = vadd.f32 %v5419, %v5913
    %v5915 = vpop.f32.mrf.mxu0
    %v5916 = vadd.f32 %v5419, %v5915
    %5917 = vmatmul.bf16.gmra.mxu0 %v5359
    %v5918 = vpop.f32.mrf.mxu0
    %v5919 = vadd.f32 %v5419, %v5918
    %v5920 = vpop.f32.mrf.mxu0
    %v5921 = vadd.f32 %v5419, %v5920
    %5922 = vmatmul.bf16.gmra.mxu0 %v5360
    %v5923 = vpop.f32.mrf.mxu0
    %v5924 = vadd.f32 %v5419, %v5923
    %v5925 = vpop.f32.mrf.mxu0
    %v5926 = vadd.f32 %v5419, %v5925
    %5927 = vmatmul.bf16.gmra.mxu0 %v5361
    %v5928 = vpop.f32.mrf.mxu0
    %v5929 = vadd.f32 %v5419, %v5928
    %v5930 = vpop.f32.mrf.mxu0
    %v5931 = vadd.f32 %v5419, %v5930
    %5932 = vmatmul.bf16.gmra.mxu0 %v5362
    %v5933 = vpop.f32.mrf.mxu0
    %v5934 = vadd.f32 %v5419, %v5933
    %v5935 = vpop.f32.mrf.mxu0
    %v5936 = vadd.f32 %v5419, %v5935
    %5937 = vmatmul.bf16.gmra.mxu0 %v5363
    %v5938 = vpop.f32.mrf.mxu0
    %v5939 = vadd.f32 %v5419, %v5938
    %v5940 = vpop.f32.mrf.mxu0
    %v5941 = vadd.f32 %v5419, %v5940
    %5942 = vmatmul.bf16.gmra.mxu0 %v5364
    %v5943 = vpop.f32.mrf.mxu0
    %v5944 = vadd.f32 %v5419, %v5943
    %v5945 = vpop.f32.mrf.mxu0
    %v5946 = vadd.f32 %v5419, %v5945
    %5947 = vmatmul.bf16.gmra.mxu0 %v5365
    %v5948 = vpop.f32.mrf.mxu0
    %v5949 = vadd.f32 %v5419, %v5948
    %v5950 = vpop.f32.mrf.mxu0
    %v5951 = vadd.f32 %v5419, %v5950
    %5952 = vmatmul.bf16.gmra.mxu0 %v5366
    %v5953 = vpop.f32.mrf.mxu0
    %v5954 = vadd.f32 %v5419, %v5953
    %v5955 = vpop.f32.mrf.mxu0
    %v5956 = vadd.f32 %v5419, %v5955
    %5957 = vmatmul.bf16.gmra.mxu0 %v5367
    %v5958 = vpop.f32.mrf.mxu0
    %v5959 = vadd.f32 %v5419, %v5958
    %v5960 = vpop.f32.mrf.mxu0
    %v5961 = vadd.f32 %v5419, %v5960
    %5962 = vmatmul.bf16.gmra.mxu0 %v5368
    %v5963 = vpop.f32.mrf.mxu0
    %v5964 = vadd.f32 %v5419, %v5963
    %v5965 = vpop.f32.mrf.mxu0
    %v5966 = vadd.f32 %v5419, %v5965
    %5967 = vmatmul.bf16.gmra.mxu0 %v5369
    %v5968 = vpop.f32.mrf.mxu0
    %v5969 = vadd.f32 %v5419, %v5968
    %v5970 = vpop.f32.mrf.mxu0
    %v5971 = vadd.f32 %v5419, %v5970
    %5972 = vmatmul.bf16.gmra.mxu0 %v5370
    %v5973 = vpop.f32.mrf.mxu0
    %v5974 = vadd.f32 %v5419, %v5973
    %v5975 = vpop.f32.mrf.mxu0
    %v5976 = vadd.f32 %v5419, %v5975
    %5977 = vmatmul.bf16.gmra.mxu0 %v5371
    %v5978 = vpop.f32.mrf.mxu0
    %v5979 = vadd.f32 %v5419, %v5978
    %v5980 = vpop.f32.mrf.mxu0
    %v5981 = vadd.f32 %v5419, %v5980
    %5982 = vmatmul.bf16.gmra.mxu0 %v5372
    %v5983 = vpop.f32.mrf.mxu0
    %v5984 = vadd.f32 %v5419, %v5983
    %v5985 = vpop.f32.mrf.mxu0
    %v5986 = vadd.f32 %v5419, %v5985
    %5987 = vmatmul.bf16.gmra.mxu0 %v5373
    %v5988 = vpop.f32.mrf.mxu0
    %v5989 = vadd.f32 %v5419, %v5988
    %v5990 = vpop.f32.mrf.mxu0
    %v5991 = vadd.f32 %v5419, %v5990
    %5992 = vmatmul.bf16.gmra.mxu0 %v5374
    %v5993 = vpop.f32.mrf.mxu0
    %v5994 = vadd.f32 %v5419, %v5993
    %v5995 = vpop.f32.mrf.mxu0
    %v5996 = vadd.f32 %v5419, %v5995
    %5997 = vmatmul.bf16.gmra.mxu0 %v5375
    %v5998 = vpop.f32.mrf.mxu0
    %v5999 = vadd.f32 %v5419, %v5998
    %v6000 = vpop.f32.mrf.mxu0
    %v6001 = vadd.f32 %v5419, %v6000
    %6002 = vmatmul.bf16.gmra.mxu0 %v5376
    %v6003 = vpop.f32.mrf.mxu0
    %v6004 = vadd.f32 %v5419, %v6003
    %v6005 = vpop.f32.mrf.mxu0
    %v6006 = vadd.f32 %v5419, %v6005
    %6007 = vmatmul.bf16.gmra.mxu0 %v5377
    %v6008 = vpop.f32.mrf.mxu0
    %v6009 = vadd.f32 %v5419, %v6008
    %v6010 = vpop.f32.mrf.mxu0
    %v6011 = vadd.f32 %v5419, %v6010
    %6012 = vmatmul.bf16.gmra.mxu0 %v5378
    %v6013 = vpop.f32.mrf.mxu0
    %v6014 = vadd.f32 %v5419, %v6013
    %v6015 = vpop.f32.mrf.mxu0
    %v6016 = vadd.f32 %v5419, %v6015
    %6017 = vmatmul.bf16.gmra.mxu0 %v5379
    %v6018 = vpop.f32.mrf.mxu0
    %v6019 = vadd.f32 %v5419, %v6018
    %v6020 = vpop.f32.mrf.mxu0
    %v6021 = vadd.f32 %v5419, %v6020
    %6022 = vmatmul.bf16.gmra.mxu0 %v5380
    %v6023 = vpop.f32.mrf.mxu0
    %v6024 = vadd.f32 %v5419, %v6023
    %v6025 = vpop.f32.mrf.mxu0
    %v6026 = vadd.f32 %v5419, %v6025
    %6027 = vmatmul.bf16.gmra.mxu0 %v5381
    %v6028 = vpop.f32.mrf.mxu0
    %v6029 = vadd.f32 %v5419, %v6028
    %v6030 = vpop.f32.mrf.mxu0
    %v6031 = vadd.f32 %v5419, %v6030
    %6032 = vmatmul.bf16.gmra.mxu0 %v5382
    %v6033 = vpop.f32.mrf.mxu0
    %v6034 = vadd.f32 %v5419, %v6033
    %v6035 = vpop.f32.mrf.mxu0
    %v6036 = vadd.f32 %v5419, %v6035
    %6037 = vmatmul.bf16.gmra.mxu0 %v5383
    %v6038 = vpop.f32.mrf.mxu0
    %v6039 = vadd.f32 %v5419, %v6038
    %v6040 = vpop.f32.mrf.mxu0
    %v6041 = vadd.f32 %v5419, %v6040
    %6042 = vmatmul.bf16.gmra.mxu0 %v5384
    %v6043 = vpop.f32.mrf.mxu0
    %v6044 = vadd.f32 %v5419, %v6043
    %v6045 = vpop.f32.mrf.mxu0
    %v6046 = vadd.f32 %v5419, %v6045
    %6047 = vmatmul.bf16.gmra.mxu0 %v5385
    %v6048 = vpop.f32.mrf.mxu0
    %v6049 = vadd.f32 %v5419, %v6048
    %v6050 = vpop.f32.mrf.mxu0
    %v6051 = vadd.f32 %v5419, %v6050
    %6052 = vmatmul.bf16.gmra.mxu0 %v5386
    %v6053 = vpop.f32.mrf.mxu0
    %v6054 = vadd.f32 %v5419, %v6053
    %v6055 = vpop.f32.mrf.mxu0
    %v6056 = vadd.f32 %v5419, %v6055
    %6057 = vmatmul.bf16.gmra.mxu0 %v5387
    %v6058 = vpop.f32.mrf.mxu0
    %v6059 = vadd.f32 %v5419, %v6058
    %v6060 = vpop.f32.mrf.mxu0
    %v6061 = vadd.f32 %v5419, %v6060
    %6062 = vmatmul.bf16.gmra.mxu0 %v5388
    %v6063 = vpop.f32.mrf.mxu0
    %v6064 = vadd.f32 %v5419, %v6063
    %v6065 = vpop.f32.mrf.mxu0
    %v6066 = vadd.f32 %v5419, %v6065
    %6067 = vmatmul.bf16.gmra.mxu0 %v5389
    %v6068 = vpop.f32.mrf.mxu0
    %v6069 = vadd.f32 %v5419, %v6068
    %v6070 = vpop.f32.mrf.mxu0
    %v6071 = vadd.f32 %v5419, %v6070
    %6072 = vmatmul.bf16.gmra.mxu0 %v5390
    %v6073 = vpop.f32.mrf.mxu0
    %v6074 = vadd.f32 %v5419, %v6073
    %v6075 = vpop.f32.mrf.mxu0
    %v6076 = vadd.f32 %v5419, %v6075
    %6077 = vmatmul.bf16.gmra.mxu0 %v5391
    %v6078 = vpop.f32.mrf.mxu0
    %v6079 = vadd.f32 %v5419, %v6078
    %v6080 = vpop.f32.mrf.mxu0
    %v6081 = vadd.f32 %v5419, %v6080
    %6082 = vmatmul.bf16.gmra.mxu0 %v5392
    %v6083 = vpop.f32.mrf.mxu0
    %v6084 = vadd.f32 %v5419, %v6083
    %v6085 = vpop.f32.mrf.mxu0
    %v6086 = vadd.f32 %v5419, %v6085
    %6087 = vmatmul.bf16.gmra.mxu0 %v5393
    %v6088 = vpop.f32.mrf.mxu0
    %v6089 = vadd.f32 %v5419, %v6088
    %v6090 = vpop.f32.mrf.mxu0
    %v6091 = vadd.f32 %v5419, %v6090
    %6092 = vmatmul.bf16.gmra.mxu0 %v5394
    %v6093 = vpop.f32.mrf.mxu0
    %v6094 = vadd.f32 %v5419, %v6093
    %v6095 = vpop.f32.mrf.mxu0
    %v6096 = vadd.f32 %v5419, %v6095
    %6097 = vmatmul.bf16.gmra.mxu0 %v5395
    %v6098 = vpop.f32.mrf.mxu0
    %v6099 = vadd.f32 %v5419, %v6098
    %v6100 = vpop.f32.mrf.mxu0
    %v6101 = vadd.f32 %v5419, %v6100
    %6102 = vmatmul.bf16.gmra.mxu0 %v5396
    %v6103 = vpop.f32.mrf.mxu0
    %v6104 = vadd.f32 %v5419, %v6103
    %v6105 = vpop.f32.mrf.mxu0
    %v6106 = vadd.f32 %v5419, %v6105
    %6107 = vmatmul.bf16.gmra.mxu0 %v5397
    %v6108 = vpop.f32.mrf.mxu0
    %v6109 = vadd.f32 %v5419, %v6108
    %v6110 = vpop.f32.mrf.mxu0
    %v6111 = vadd.f32 %v5419, %v6110
    %6112 = vmatmul.bf16.gmra.mxu0 %v5398
    %v6113 = vpop.f32.mrf.mxu0
    %v6114 = vadd.f32 %v5419, %v6113
    %v6115 = vpop.f32.mrf.mxu0
    %v6116 = vadd.f32 %v5419, %v6115
    %6117 = vdwg.mxu0
    %v6118 = vadd.f32 %v5479, %v3912
    %v6119 = vadd.f32 %v5481, %v3913
    %v6120 = vadd.f32 %v5484, %v3914
    %v6121 = vadd.f32 %v5486, %v3915
    %v6122 = vadd.f32 %v5489, %v3916
    %v6123 = vadd.f32 %v5491, %v3917
    %v6124 = vadd.f32 %v5494, %v3918
    %v6125 = vadd.f32 %v5496, %v3919
    %v6126 = vadd.f32 %v5499, %v3920
    %v6127 = vadd.f32 %v5501, %v3921
    %v6128 = vadd.f32 %v5504, %v3922
    %v6129 = vadd.f32 %v5506, %v3923
    %v6130 = vadd.f32 %v5509, %v3924
    %v6131 = vadd.f32 %v5511, %v3925
    %v6132 = vadd.f32 %v5514, %v3926
    %v6133 = vadd.f32 %v5516, %v3927
    %v6134 = vadd.f32 %v5519, %v3928
    %v6135 = vadd.f32 %v5521, %v3929
    %v6136 = vadd.f32 %v5524, %v3930
    %v6137 = vadd.f32 %v5526, %v3931
    %v6138 = vadd.f32 %v5529, %v3932
    %v6139 = vadd.f32 %v5531, %v3933
    %v6140 = vadd.f32 %v5534, %v3934
    %v6141 = vadd.f32 %v5536, %v3935
    %v6142 = vadd.f32 %v5539, %v3936
    %v6143 = vadd.f32 %v5541, %v3937
    %v6144 = vadd.f32 %v5544, %v3938
    %v6145 = vadd.f32 %v5546, %v3939
    %v6146 = vadd.f32 %v5549, %v3940
    %v6147 = vadd.f32 %v5551, %v3941
    %v6148 = vadd.f32 %v5554, %v3942
    %v6149 = vadd.f32 %v5556, %v3943
    %v6150 = vadd.f32 %v5559, %v3944
    %v6151 = vadd.f32 %v5561, %v3945
    %v6152 = vadd.f32 %v5564, %v3946
    %v6153 = vadd.f32 %v5566, %v3947
    %v6154 = vadd.f32 %v5569, %v3948
    %v6155 = vadd.f32 %v5571, %v3949
    %v6156 = vadd.f32 %v5574, %v3950
    %v6157 = vadd.f32 %v5576, %v3951
    %v6158 = vadd.f32 %v5579, %v3952
    %v6159 = vadd.f32 %v5581, %v3953
    %v6160 = vadd.f32 %v5584, %v3954
    %v6161 = vadd.f32 %v5586, %v3955
    %v6162 = vadd.f32 %v5589, %v3956
    %v6163 = vadd.f32 %v5591, %v3957
    %v6164 = vadd.f32 %v5594, %v3958
    %v6165 = vadd.f32 %v5596, %v3959
    %v6166 = vadd.f32 %v5599, %v3960
    %v6167 = vadd.f32 %v5601, %v3961
    %v6168 = vadd.f32 %v5604, %v3962
    %v6169 = vadd.f32 %v5606, %v3963
    %v6170 = vadd.f32 %v5609, %v3964
    %v6171 = vadd.f32 %v5611, %v3965
    %v6172 = vadd.f32 %v5614, %v3966
    %v6173 = vadd.f32 %v5616, %v3967
    %v6174 = vadd.f32 %v5619, %v3968
    %v6175 = vadd.f32 %v5621, %v3969
    %v6176 = vadd.f32 %v5624, %v3970
    %v6177 = vadd.f32 %v5626, %v3971
    %v6178 = vadd.f32 %v5629, %v3972
    %v6179 = vadd.f32 %v5631, %v3973
    %v6180 = vadd.f32 %v5634, %v3974
    %v6181 = vadd.f32 %v5636, %v3975
    %v6182 = vadd.f32 %v5639, %v3976
    %v6183 = vadd.f32 %v5641, %v3977
    %v6184 = vadd.f32 %v5644, %v3978
    %v6185 = vadd.f32 %v5646, %v3979
    %v6186 = vadd.f32 %v5649, %v3980
    %v6187 = vadd.f32 %v5651, %v3981
    %v6188 = vadd.f32 %v5654, %v3982
    %v6189 = vadd.f32 %v5656, %v3983
    %v6190 = vadd.f32 %v5659, %v3984
    %v6191 = vadd.f32 %v5661, %v3985
    %v6192 = vadd.f32 %v5664, %v3986
    %v6193 = vadd.f32 %v5666, %v3987
    %v6194 = vadd.f32 %v5669, %v3988
    %v6195 = vadd.f32 %v5671, %v3989
    %v6196 = vadd.f32 %v5674, %v3990
    %v6197 = vadd.f32 %v5676, %v3991
    %v6198 = vadd.f32 %v5679, %v3992
    %v6199 = vadd.f32 %v5681, %v3993
    %v6200 = vadd.f32 %v5684, %v3994
    %v6201 = vadd.f32 %v5686, %v3995
    %v6202 = vadd.f32 %v5689, %v3996
    %v6203 = vadd.f32 %v5691, %v3997
    %v6204 = vadd.f32 %v5694, %v3998
    %v6205 = vadd.f32 %v5696, %v3999
    %v6206 = vadd.f32 %v5699, %v4000
    %v6207 = vadd.f32 %v5701, %v4001
    %v6208 = vadd.f32 %v5704, %v4002
    %v6209 = vadd.f32 %v5706, %v4003
    %v6210 = vadd.f32 %v5709, %v4004
    %v6211 = vadd.f32 %v5711, %v4005
    %v6212 = vadd.f32 %v5714, %v4006
    %v6213 = vadd.f32 %v5716, %v4007
    %v6214 = vadd.f32 %v5719, %v4008
    %v6215 = vadd.f32 %v5721, %v4009
    %v6216 = vadd.f32 %v5724, %v4010
    %v6217 = vadd.f32 %v5726, %v4011
    %v6218 = vadd.f32 %v5729, %v4012
    %v6219 = vadd.f32 %v5731, %v4013
    %v6220 = vadd.f32 %v5734, %v4014
    %v6221 = vadd.f32 %v5736, %v4015
    %v6222 = vadd.f32 %v5739, %v4016
    %v6223 = vadd.f32 %v5741, %v4017
    %v6224 = vadd.f32 %v5744, %v4018
    %v6225 = vadd.f32 %v5746, %v4019
    %v6226 = vadd.f32 %v5749, %v4020
    %v6227 = vadd.f32 %v5751, %v4021
    %v6228 = vadd.f32 %v5754, %v4022
    %v6229 = vadd.f32 %v5756, %v4023
    %v6230 = vadd.f32 %v5759, %v4024
    %v6231 = vadd.f32 %v5761, %v4025
    %v6232 = vadd.f32 %v5764, %v4026
    %v6233 = vadd.f32 %v5766, %v4027
    %v6234 = vadd.f32 %v5769, %v4028
    %v6235 = vadd.f32 %v5771, %v4029
    %v6236 = vadd.f32 %v5774, %v4030
    %v6237 = vadd.f32 %v5776, %v4031
    %v6238 = vadd.f32 %v5779, %v4032
    %v6239 = vadd.f32 %v5781, %v4033
    %v6240 = vadd.f32 %v5784, %v4034
    %v6241 = vadd.f32 %v5786, %v4035
    %v6242 = vadd.f32 %v5789, %v4036
    %v6243 = vadd.f32 %v5791, %v4037
    %v6244 = vadd.f32 %v5794, %v4038
    %v6245 = vadd.f32 %v5796, %v4039
    %v6246 = vadd.f32 %v5799, %v4040
    %v6247 = vadd.f32 %v5801, %v4041
    %v6248 = vadd.f32 %v5804, %v4042
    %v6249 = vadd.f32 %v5806, %v4043
    %v6250 = vadd.f32 %v5809, %v4044
    %v6251 = vadd.f32 %v5811, %v4045
    %v6252 = vadd.f32 %v5814, %v4046
    %v6253 = vadd.f32 %v5816, %v4047
    %v6254 = vadd.f32 %v5819, %v4048
    %v6255 = vadd.f32 %v5821, %v4049
    %v6256 = vadd.f32 %v5824, %v4050
    %v6257 = vadd.f32 %v5826, %v4051
    %v6258 = vadd.f32 %v5829, %v4052
    %v6259 = vadd.f32 %v5831, %v4053
    %v6260 = vadd.f32 %v5834, %v4054
    %v6261 = vadd.f32 %v5836, %v4055
    %v6262 = vadd.f32 %v5839, %v4056
    %v6263 = vadd.f32 %v5841, %v4057
    %v6264 = vadd.f32 %v5844, %v4058
    %v6265 = vadd.f32 %v5846, %v4059
    %v6266 = vadd.f32 %v5849, %v4060
    %v6267 = vadd.f32 %v5851, %v4061
    %v6268 = vadd.f32 %v5854, %v4062
    %v6269 = vadd.f32 %v5856, %v4063
    %v6270 = vadd.f32 %v5859, %v4064
    %v6271 = vadd.f32 %v5861, %v4065
    %v6272 = vadd.f32 %v5864, %v4066
    %v6273 = vadd.f32 %v5866, %v4067
    %v6274 = vadd.f32 %v5869, %v4068
    %v6275 = vadd.f32 %v5871, %v4069
    %v6276 = vadd.f32 %v5874, %v4070
    %v6277 = vadd.f32 %v5876, %v4071
    %v6278 = vadd.f32 %v5879, %v4072
    %v6279 = vadd.f32 %v5881, %v4073
    %v6280 = vadd.f32 %v5884, %v4074
    %v6281 = vadd.f32 %v5886, %v4075
    %v6282 = vadd.f32 %v5889, %v4076
    %v6283 = vadd.f32 %v5891, %v4077
    %v6284 = vadd.f32 %v5894, %v4078
    %v6285 = vadd.f32 %v5896, %v4079
    %v6286 = vadd.f32 %v5899, %v4080
    %v6287 = vadd.f32 %v5901, %v4081
    %v6288 = vadd.f32 %v5904, %v4082
    %v6289 = vadd.f32 %v5906, %v4083
    %v6290 = vadd.f32 %v5909, %v4084
    %v6291 = vadd.f32 %v5911, %v4085
    %v6292 = vadd.f32 %v5914, %v4086
    %v6293 = vadd.f32 %v5916, %v4087
    %v6294 = vadd.f32 %v5919, %v4088
    %v6295 = vadd.f32 %v5921, %v4089
    %v6296 = vadd.f32 %v5924, %v4090
    %v6297 = vadd.f32 %v5926, %v4091
    %v6298 = vadd.f32 %v5929, %v4092
    %v6299 = vadd.f32 %v5931, %v4093
    %v6300 = vadd.f32 %v5934, %v4094
    %v6301 = vadd.f32 %v5936, %v4095
    %v6302 = vadd.f32 %v5939, %v4096
    %v6303 = vadd.f32 %v5941, %v4097
    %v6304 = vadd.f32 %v5944, %v4098
    %v6305 = vadd.f32 %v5946, %v4099
    %v6306 = vadd.f32 %v5949, %v4100
    %v6307 = vadd.f32 %v5951, %v4101
    %v6308 = vadd.f32 %v5954, %v4102
    %v6309 = vadd.f32 %v5956, %v4103
    %v6310 = vadd.f32 %v5959, %v4104
    %v6311 = vadd.f32 %v5961, %v4105
    %v6312 = vadd.f32 %v5964, %v4106
    %v6313 = vadd.f32 %v5966, %v4107
    %v6314 = vadd.f32 %v5969, %v4108
    %v6315 = vadd.f32 %v5971, %v4109
    %v6316 = vadd.f32 %v5974, %v4110
    %v6317 = vadd.f32 %v5976, %v4111
    %v6318 = vadd.f32 %v5979, %v4112
    %v6319 = vadd.f32 %v5981, %v4113
    %v6320 = vadd.f32 %v5984, %v4114
    %v6321 = vadd.f32 %v5986, %v4115
    %v6322 = vadd.f32 %v5989, %v4116
    %v6323 = vadd.f32 %v5991, %v4117
    %v6324 = vadd.f32 %v5994, %v4118
    %v6325 = vadd.f32 %v5996, %v4119
    %v6326 = vadd.f32 %v5999, %v4120
    %v6327 = vadd.f32 %v6001, %v4121
    %v6328 = vadd.f32 %v6004, %v4122
    %v6329 = vadd.f32 %v6006, %v4123
    %v6330 = vadd.f32 %v6009, %v4124
    %v6331 = vadd.f32 %v6011, %v4125
    %v6332 = vadd.f32 %v6014, %v4126
    %v6333 = vadd.f32 %v6016, %v4127
    %v6334 = vadd.f32 %v6019, %v4128
    %v6335 = vadd.f32 %v6021, %v4129
    %v6336 = vadd.f32 %v6024, %v4130
    %v6337 = vadd.f32 %v6026, %v4131
    %v6338 = vadd.f32 %v6029, %v4132
    %v6339 = vadd.f32 %v6031, %v4133
    %v6340 = vadd.f32 %v6034, %v4134
    %v6341 = vadd.f32 %v6036, %v4135
    %v6342 = vadd.f32 %v6039, %v4136
    %v6343 = vadd.f32 %v6041, %v4137
    %v6344 = vadd.f32 %v6044, %v4138
    %v6345 = vadd.f32 %v6046, %v4139
    %v6346 = vadd.f32 %v6049, %v4140
    %v6347 = vadd.f32 %v6051, %v4141
    %v6348 = vadd.f32 %v6054, %v4142
    %v6349 = vadd.f32 %v6056, %v4143
    %v6350 = vadd.f32 %v6059, %v4144
    %v6351 = vadd.f32 %v6061, %v4145
    %v6352 = vadd.f32 %v6064, %v4146
    %v6353 = vadd.f32 %v6066, %v4147
    %v6354 = vadd.f32 %v6069, %v4148
    %v6355 = vadd.f32 %v6071, %v4149
    %v6356 = vadd.f32 %v6074, %v4150
    %v6357 = vadd.f32 %v6076, %v4151
    %v6358 = vadd.f32 %v6079, %v4152
    %v6359 = vadd.f32 %v6081, %v4153
    %v6360 = vadd.f32 %v6084, %v4154
    %v6361 = vadd.f32 %v6086, %v4155
    %v6362 = vadd.f32 %v6089, %v4156
    %v6363 = vadd.f32 %v6091, %v4157
    %v6364 = vadd.f32 %v6094, %v4158
    %v6365 = vadd.f32 %v6096, %v4159
    %v6366 = vadd.f32 %v6099, %v4160
    %v6367 = vadd.f32 %v6101, %v4161
    %v6368 = vadd.f32 %v6104, %v4162
    %v6369 = vadd.f32 %v6106, %v4163
    %v6370 = vadd.f32 %v6109, %v4164
    %v6371 = vadd.f32 %v6111, %v4165
    %v6372 = vadd.f32 %v6114, %v4166
    %v6373 = vadd.f32 %v6116, %v4167
    %v6374 = vmax.f32 %v6118, 0.0
    %v6375 = vmax.f32 %v6119, 0.0
    %v6376 = vmax.f32 %v6120, 0.0
    %v6377 = vmax.f32 %v6121, 0.0
    %v6378 = vmax.f32 %v6122, 0.0
    %v6379 = vmax.f32 %v6123, 0.0
    %v6380 = vmax.f32 %v6124, 0.0
    %v6381 = vmax.f32 %v6125, 0.0
    %v6382 = vmax.f32 %v6126, 0.0
    %v6383 = vmax.f32 %v6127, 0.0
    %v6384 = vmax.f32 %v6128, 0.0
    %v6385 = vmax.f32 %v6129, 0.0
    %v6386 = vmax.f32 %v6130, 0.0
    %v6387 = vmax.f32 %v6131, 0.0
    %v6388 = vmax.f32 %v6132, 0.0
    %v6389 = vmax.f32 %v6133, 0.0
    %v6390 = vmax.f32 %v6134, 0.0
    %v6391 = vmax.f32 %v6135, 0.0
    %v6392 = vmax.f32 %v6136, 0.0
    %v6393 = vmax.f32 %v6137, 0.0
    %v6394 = vmax.f32 %v6138, 0.0
    %v6395 = vmax.f32 %v6139, 0.0
    %v6396 = vmax.f32 %v6140, 0.0
    %v6397 = vmax.f32 %v6141, 0.0
    %v6398 = vmax.f32 %v6142, 0.0
    %v6399 = vmax.f32 %v6143, 0.0
    %v6400 = vmax.f32 %v6144, 0.0
    %v6401 = vmax.f32 %v6145, 0.0
    %v6402 = vmax.f32 %v6146, 0.0
    %v6403 = vmax.f32 %v6147, 0.0
    %v6404 = vmax.f32 %v6148, 0.0
    %v6405 = vmax.f32 %v6149, 0.0
    %v6406 = vmax.f32 %v6150, 0.0
    %v6407 = vmax.f32 %v6151, 0.0
    %v6408 = vmax.f32 %v6152, 0.0
    %v6409 = vmax.f32 %v6153, 0.0
    %v6410 = vmax.f32 %v6154, 0.0
    %v6411 = vmax.f32 %v6155, 0.0
    %v6412 = vmax.f32 %v6156, 0.0
    %v6413 = vmax.f32 %v6157, 0.0
    %v6414 = vmax.f32 %v6158, 0.0
    %v6415 = vmax.f32 %v6159, 0.0
    %v6416 = vmax.f32 %v6160, 0.0
    %v6417 = vmax.f32 %v6161, 0.0
    %v6418 = vmax.f32 %v6162, 0.0
    %v6419 = vmax.f32 %v6163, 0.0
    %v6420 = vmax.f32 %v6164, 0.0
    %v6421 = vmax.f32 %v6165, 0.0
    %v6422 = vmax.f32 %v6166, 0.0
    %v6423 = vmax.f32 %v6167, 0.0
    %v6424 = vmax.f32 %v6168, 0.0
    %v6425 = vmax.f32 %v6169, 0.0
    %v6426 = vmax.f32 %v6170, 0.0
    %v6427 = vmax.f32 %v6171, 0.0
    %v6428 = vmax.f32 %v6172, 0.0
    %v6429 = vmax.f32 %v6173, 0.0
    %v6430 = vmax.f32 %v6174, 0.0
    %v6431 = vmax.f32 %v6175, 0.0
    %v6432 = vmax.f32 %v6176, 0.0
    %v6433 = vmax.f32 %v6177, 0.0
    %v6434 = vmax.f32 %v6178, 0.0
    %v6435 = vmax.f32 %v6179, 0.0
    %v6436 = vmax.f32 %v6180, 0.0
    %v6437 = vmax.f32 %v6181, 0.0
    %v6438 = vmax.f32 %v6182, 0.0
    %v6439 = vmax.f32 %v6183, 0.0
    %v6440 = vmax.f32 %v6184, 0.0
    %v6441 = vmax.f32 %v6185, 0.0
    %v6442 = vmax.f32 %v6186, 0.0
    %v6443 = vmax.f32 %v6187, 0.0
    %v6444 = vmax.f32 %v6188, 0.0
    %v6445 = vmax.f32 %v6189, 0.0
    %v6446 = vmax.f32 %v6190, 0.0
    %v6447 = vmax.f32 %v6191, 0.0
    %v6448 = vmax.f32 %v6192, 0.0
    %v6449 = vmax.f32 %v6193, 0.0
    %v6450 = vmax.f32 %v6194, 0.0
    %v6451 = vmax.f32 %v6195, 0.0
    %v6452 = vmax.f32 %v6196, 0.0
    %v6453 = vmax.f32 %v6197, 0.0
    %v6454 = vmax.f32 %v6198, 0.0
    %v6455 = vmax.f32 %v6199, 0.0
    %v6456 = vmax.f32 %v6200, 0.0
    %v6457 = vmax.f32 %v6201, 0.0
    %v6458 = vmax.f32 %v6202, 0.0
    %v6459 = vmax.f32 %v6203, 0.0
    %v6460 = vmax.f32 %v6204, 0.0
    %v6461 = vmax.f32 %v6205, 0.0
    %v6462 = vmax.f32 %v6206, 0.0
    %v6463 = vmax.f32 %v6207, 0.0
    %v6464 = vmax.f32 %v6208, 0.0
    %v6465 = vmax.f32 %v6209, 0.0
    %v6466 = vmax.f32 %v6210, 0.0
    %v6467 = vmax.f32 %v6211, 0.0
    %v6468 = vmax.f32 %v6212, 0.0
    %v6469 = vmax.f32 %v6213, 0.0
    %v6470 = vmax.f32 %v6214, 0.0
    %v6471 = vmax.f32 %v6215, 0.0
    %v6472 = vmax.f32 %v6216, 0.0
    %v6473 = vmax.f32 %v6217, 0.0
    %v6474 = vmax.f32 %v6218, 0.0
    %v6475 = vmax.f32 %v6219, 0.0
    %v6476 = vmax.f32 %v6220, 0.0
    %v6477 = vmax.f32 %v6221, 0.0
    %v6478 = vmax.f32 %v6222, 0.0
    %v6479 = vmax.f32 %v6223, 0.0
    %v6480 = vmax.f32 %v6224, 0.0
    %v6481 = vmax.f32 %v6225, 0.0
    %v6482 = vmax.f32 %v6226, 0.0
    %v6483 = vmax.f32 %v6227, 0.0
    %v6484 = vmax.f32 %v6228, 0.0
    %v6485 = vmax.f32 %v6229, 0.0
    %v6486 = vmax.f32 %v6230, 0.0
    %v6487 = vmax.f32 %v6231, 0.0
    %v6488 = vmax.f32 %v6232, 0.0
    %v6489 = vmax.f32 %v6233, 0.0
    %v6490 = vmax.f32 %v6234, 0.0
    %v6491 = vmax.f32 %v6235, 0.0
    %v6492 = vmax.f32 %v6236, 0.0
    %v6493 = vmax.f32 %v6237, 0.0
    %v6494 = vmax.f32 %v6238, 0.0
    %v6495 = vmax.f32 %v6239, 0.0
    %v6496 = vmax.f32 %v6240, 0.0
    %v6497 = vmax.f32 %v6241, 0.0
    %v6498 = vmax.f32 %v6242, 0.0
    %v6499 = vmax.f32 %v6243, 0.0
    %v6500 = vmax.f32 %v6244, 0.0
    %v6501 = vmax.f32 %v6245, 0.0
    %v6502 = vmax.f32 %v6246, 0.0
    %v6503 = vmax.f32 %v6247, 0.0
    %v6504 = vmax.f32 %v6248, 0.0
    %v6505 = vmax.f32 %v6249, 0.0
    %v6506 = vmax.f32 %v6250, 0.0
    %v6507 = vmax.f32 %v6251, 0.0
    %v6508 = vmax.f32 %v6252, 0.0
    %v6509 = vmax.f32 %v6253, 0.0
    %v6510 = vmax.f32 %v6254, 0.0
    %v6511 = vmax.f32 %v6255, 0.0
    %v6512 = vmax.f32 %v6256, 0.0
    %v6513 = vmax.f32 %v6257, 0.0
    %v6514 = vmax.f32 %v6258, 0.0
    %v6515 = vmax.f32 %v6259, 0.0
    %v6516 = vmax.f32 %v6260, 0.0
    %v6517 = vmax.f32 %v6261, 0.0
    %v6518 = vmax.f32 %v6262, 0.0
    %v6519 = vmax.f32 %v6263, 0.0
    %v6520 = vmax.f32 %v6264, 0.0
    %v6521 = vmax.f32 %v6265, 0.0
    %v6522 = vmax.f32 %v6266, 0.0
    %v6523 = vmax.f32 %v6267, 0.0
    %v6524 = vmax.f32 %v6268, 0.0
    %v6525 = vmax.f32 %v6269, 0.0
    %v6526 = vmax.f32 %v6270, 0.0
    %v6527 = vmax.f32 %v6271, 0.0
    %v6528 = vmax.f32 %v6272, 0.0
    %v6529 = vmax.f32 %v6273, 0.0
    %v6530 = vmax.f32 %v6274, 0.0
    %v6531 = vmax.f32 %v6275, 0.0
    %v6532 = vmax.f32 %v6276, 0.0
    %v6533 = vmax.f32 %v6277, 0.0
    %v6534 = vmax.f32 %v6278, 0.0
    %v6535 = vmax.f32 %v6279, 0.0
    %v6536 = vmax.f32 %v6280, 0.0
    %v6537 = vmax.f32 %v6281, 0.0
    %v6538 = vmax.f32 %v6282, 0.0
    %v6539 = vmax.f32 %v6283, 0.0
    %v6540 = vmax.f32 %v6284, 0.0
    %v6541 = vmax.f32 %v6285, 0.0
    %v6542 = vmax.f32 %v6286, 0.0
    %v6543 = vmax.f32 %v6287, 0.0
    %v6544 = vmax.f32 %v6288, 0.0
    %v6545 = vmax.f32 %v6289, 0.0
    %v6546 = vmax.f32 %v6290, 0.0
    %v6547 = vmax.f32 %v6291, 0.0
    %v6548 = vmax.f32 %v6292, 0.0
    %v6549 = vmax.f32 %v6293, 0.0
    %v6550 = vmax.f32 %v6294, 0.0
    %v6551 = vmax.f32 %v6295, 0.0
    %v6552 = vmax.f32 %v6296, 0.0
    %v6553 = vmax.f32 %v6297, 0.0
    %v6554 = vmax.f32 %v6298, 0.0
    %v6555 = vmax.f32 %v6299, 0.0
    %v6556 = vmax.f32 %v6300, 0.0
    %v6557 = vmax.f32 %v6301, 0.0
    %v6558 = vmax.f32 %v6302, 0.0
    %v6559 = vmax.f32 %v6303, 0.0
    %v6560 = vmax.f32 %v6304, 0.0
    %v6561 = vmax.f32 %v6305, 0.0
    %v6562 = vmax.f32 %v6306, 0.0
    %v6563 = vmax.f32 %v6307, 0.0
    %v6564 = vmax.f32 %v6308, 0.0
    %v6565 = vmax.f32 %v6309, 0.0
    %v6566 = vmax.f32 %v6310, 0.0
    %v6567 = vmax.f32 %v6311, 0.0
    %v6568 = vmax.f32 %v6312, 0.0
    %v6569 = vmax.f32 %v6313, 0.0
    %v6570 = vmax.f32 %v6314, 0.0
    %v6571 = vmax.f32 %v6315, 0.0
    %v6572 = vmax.f32 %v6316, 0.0
    %v6573 = vmax.f32 %v6317, 0.0
    %v6574 = vmax.f32 %v6318, 0.0
    %v6575 = vmax.f32 %v6319, 0.0
    %v6576 = vmax.f32 %v6320, 0.0
    %v6577 = vmax.f32 %v6321, 0.0
    %v6578 = vmax.f32 %v6322, 0.0
    %v6579 = vmax.f32 %v6323, 0.0
    %v6580 = vmax.f32 %v6324, 0.0
    %v6581 = vmax.f32 %v6325, 0.0
    %v6582 = vmax.f32 %v6326, 0.0
    %v6583 = vmax.f32 %v6327, 0.0
    %v6584 = vmax.f32 %v6328, 0.0
    %v6585 = vmax.f32 %v6329, 0.0
    %v6586 = vmax.f32 %v6330, 0.0
    %v6587 = vmax.f32 %v6331, 0.0
    %v6588 = vmax.f32 %v6332, 0.0
    %v6589 = vmax.f32 %v6333, 0.0
    %v6590 = vmax.f32 %v6334, 0.0
    %v6591 = vmax.f32 %v6335, 0.0
    %v6592 = vmax.f32 %v6336, 0.0
    %v6593 = vmax.f32 %v6337, 0.0
    %v6594 = vmax.f32 %v6338, 0.0
    %v6595 = vmax.f32 %v6339, 0.0
    %v6596 = vmax.f32 %v6340, 0.0
    %v6597 = vmax.f32 %v6341, 0.0
    %v6598 = vmax.f32 %v6342, 0.0
    %v6599 = vmax.f32 %v6343, 0.0
    %v6600 = vmax.f32 %v6344, 0.0
    %v6601 = vmax.f32 %v6345, 0.0
    %v6602 = vmax.f32 %v6346, 0.0
    %v6603 = vmax.f32 %v6347, 0.0
    %v6604 = vmax.f32 %v6348, 0.0
    %v6605 = vmax.f32 %v6349, 0.0
    %v6606 = vmax.f32 %v6350, 0.0
    %v6607 = vmax.f32 %v6351, 0.0
    %v6608 = vmax.f32 %v6352, 0.0
    %v6609 = vmax.f32 %v6353, 0.0
    %v6610 = vmax.f32 %v6354, 0.0
    %v6611 = vmax.f32 %v6355, 0.0
    %v6612 = vmax.f32 %v6356, 0.0
    %v6613 = vmax.f32 %v6357, 0.0
    %v6614 = vmax.f32 %v6358, 0.0
    %v6615 = vmax.f32 %v6359, 0.0
    %v6616 = vmax.f32 %v6360, 0.0
    %v6617 = vmax.f32 %v6361, 0.0
    %v6618 = vmax.f32 %v6362, 0.0
    %v6619 = vmax.f32 %v6363, 0.0
    %v6620 = vmax.f32 %v6364, 0.0
    %v6621 = vmax.f32 %v6365, 0.0
    %v6622 = vmax.f32 %v6366, 0.0
    %v6623 = vmax.f32 %v6367, 0.0
    %v6624 = vmax.f32 %v6368, 0.0
    %v6625 = vmax.f32 %v6369, 0.0
    %v6626 = vmax.f32 %v6370, 0.0
    %v6627 = vmax.f32 %v6371, 0.0
    %v6628 = vmax.f32 %v6372, 0.0
    %v6629 = vmax.f32 %v6373, 0.0
    %v6630 = vmax.f32 %v6374, %v6375
    %v6631 = vrot.slane %v6630, 4
    %v6632 = vmax.f32 %v6630, %v6631
    %v6633 = vrot.slane %v6632, 2
    %v6634 = vmax.f32 %v6632, %v6633
    %v6635 = vrot.slane %v6634, 1
    %v6636 = vmax.f32 %v6634, %v6635
    %v6637 = vmax.f32 %v6376, %v6377
    %v6638 = vrot.slane %v6637, 4
    %v6639 = vmax.f32 %v6637, %v6638
    %v6640 = vrot.slane %v6639, 2
    %v6641 = vmax.f32 %v6639, %v6640
    %v6642 = vrot.slane %v6641, 1
    %v6643 = vmax.f32 %v6641, %v6642
    %v6644 = vmax.f32 %v6378, %v6379
    %v6645 = vrot.slane %v6644, 4
    %v6646 = vmax.f32 %v6644, %v6645
    %v6647 = vrot.slane %v6646, 2
    %v6648 = vmax.f32 %v6646, %v6647
    %v6649 = vrot.slane %v6648, 1
    %v6650 = vmax.f32 %v6648, %v6649
    %v6651 = vmax.f32 %v6380, %v6381
    %v6652 = vrot.slane %v6651, 4
    %v6653 = vmax.f32 %v6651, %v6652
    %v6654 = vrot.slane %v6653, 2
    %v6655 = vmax.f32 %v6653, %v6654
    %v6656 = vrot.slane %v6655, 1
    %v6657 = vmax.f32 %v6655, %v6656
    %v6658 = vmax.f32 %v6382, %v6383
    %v6659 = vrot.slane %v6658, 4
    %v6660 = vmax.f32 %v6658, %v6659
    %v6661 = vrot.slane %v6660, 2
    %v6662 = vmax.f32 %v6660, %v6661
    %v6663 = vrot.slane %v6662, 1
    %v6664 = vmax.f32 %v6662, %v6663
    %v6665 = vmax.f32 %v6384, %v6385
    %v6666 = vrot.slane %v6665, 4
    %v6667 = vmax.f32 %v6665, %v6666
    %v6668 = vrot.slane %v6667, 2
    %v6669 = vmax.f32 %v6667, %v6668
    %v6670 = vrot.slane %v6669, 1
    %v6671 = vmax.f32 %v6669, %v6670
    %v6672 = vmax.f32 %v6386, %v6387
    %v6673 = vrot.slane %v6672, 4
    %v6674 = vmax.f32 %v6672, %v6673
    %v6675 = vrot.slane %v6674, 2
    %v6676 = vmax.f32 %v6674, %v6675
    %v6677 = vrot.slane %v6676, 1
    %v6678 = vmax.f32 %v6676, %v6677
    %v6679 = vmax.f32 %v6388, %v6389
    %v6680 = vrot.slane %v6679, 4
    %v6681 = vmax.f32 %v6679, %v6680
    %v6682 = vrot.slane %v6681, 2
    %v6683 = vmax.f32 %v6681, %v6682
    %v6684 = vrot.slane %v6683, 1
    %v6685 = vmax.f32 %v6683, %v6684
    %v6686 = vmax.f32 %v6390, %v6391
    %v6687 = vrot.slane %v6686, 4
    %v6688 = vmax.f32 %v6686, %v6687
    %v6689 = vrot.slane %v6688, 2
    %v6690 = vmax.f32 %v6688, %v6689
    %v6691 = vrot.slane %v6690, 1
    %v6692 = vmax.f32 %v6690, %v6691
    %v6693 = vmax.f32 %v6392, %v6393
    %v6694 = vrot.slane %v6693, 4
    %v6695 = vmax.f32 %v6693, %v6694
    %v6696 = vrot.slane %v6695, 2
    %v6697 = vmax.f32 %v6695, %v6696
    %v6698 = vrot.slane %v6697, 1
    %v6699 = vmax.f32 %v6697, %v6698
    %v6700 = vmax.f32 %v6394, %v6395
    %v6701 = vrot.slane %v6700, 4
    %v6702 = vmax.f32 %v6700, %v6701
    %v6703 = vrot.slane %v6702, 2
    %v6704 = vmax.f32 %v6702, %v6703
    %v6705 = vrot.slane %v6704, 1
    %v6706 = vmax.f32 %v6704, %v6705
    %v6707 = vmax.f32 %v6396, %v6397
    %v6708 = vrot.slane %v6707, 4
    %v6709 = vmax.f32 %v6707, %v6708
    %v6710 = vrot.slane %v6709, 2
    %v6711 = vmax.f32 %v6709, %v6710
    %v6712 = vrot.slane %v6711, 1
    %v6713 = vmax.f32 %v6711, %v6712
    %v6714 = vmax.f32 %v6398, %v6399
    %v6715 = vrot.slane %v6714, 4
    %v6716 = vmax.f32 %v6714, %v6715
    %v6717 = vrot.slane %v6716, 2
    %v6718 = vmax.f32 %v6716, %v6717
    %v6719 = vrot.slane %v6718, 1
    %v6720 = vmax.f32 %v6718, %v6719
    %v6721 = vmax.f32 %v6400, %v6401
    %v6722 = vrot.slane %v6721, 4
    %v6723 = vmax.f32 %v6721, %v6722
    %v6724 = vrot.slane %v6723, 2
    %v6725 = vmax.f32 %v6723, %v6724
    %v6726 = vrot.slane %v6725, 1
    %v6727 = vmax.f32 %v6725, %v6726
    %v6728 = vmax.f32 %v6402, %v6403
    %v6729 = vrot.slane %v6728, 4
    %v6730 = vmax.f32 %v6728, %v6729
    %v6731 = vrot.slane %v6730, 2
    %v6732 = vmax.f32 %v6730, %v6731
    %v6733 = vrot.slane %v6732, 1
    %v6734 = vmax.f32 %v6732, %v6733
    %v6735 = vmax.f32 %v6404, %v6405
    %v6736 = vrot.slane %v6735, 4
    %v6737 = vmax.f32 %v6735, %v6736
    %v6738 = vrot.slane %v6737, 2
    %v6739 = vmax.f32 %v6737, %v6738
    %v6740 = vrot.slane %v6739, 1
    %v6741 = vmax.f32 %v6739, %v6740
    %v6742 = vmax.f32 %v6406, %v6407
    %v6743 = vrot.slane %v6742, 4
    %v6744 = vmax.f32 %v6742, %v6743
    %v6745 = vrot.slane %v6744, 2
    %v6746 = vmax.f32 %v6744, %v6745
    %v6747 = vrot.slane %v6746, 1
    %v6748 = vmax.f32 %v6746, %v6747
    %v6749 = vmax.f32 %v6408, %v6409
    %v6750 = vrot.slane %v6749, 4
    %v6751 = vmax.f32 %v6749, %v6750
    %v6752 = vrot.slane %v6751, 2
    %v6753 = vmax.f32 %v6751, %v6752
    %v6754 = vrot.slane %v6753, 1
    %v6755 = vmax.f32 %v6753, %v6754
    %v6756 = vmax.f32 %v6410, %v6411
    %v6757 = vrot.slane %v6756, 4
    %v6758 = vmax.f32 %v6756, %v6757
    %v6759 = vrot.slane %v6758, 2
    %v6760 = vmax.f32 %v6758, %v6759
    %v6761 = vrot.slane %v6760, 1
    %v6762 = vmax.f32 %v6760, %v6761
    %v6763 = vmax.f32 %v6412, %v6413
    %v6764 = vrot.slane %v6763, 4
    %v6765 = vmax.f32 %v6763, %v6764
    %v6766 = vrot.slane %v6765, 2
    %v6767 = vmax.f32 %v6765, %v6766
    %v6768 = vrot.slane %v6767, 1
    %v6769 = vmax.f32 %v6767, %v6768
    %v6770 = vmax.f32 %v6414, %v6415
    %v6771 = vrot.slane %v6770, 4
    %v6772 = vmax.f32 %v6770, %v6771
    %v6773 = vrot.slane %v6772, 2
    %v6774 = vmax.f32 %v6772, %v6773
    %v6775 = vrot.slane %v6774, 1
    %v6776 = vmax.f32 %v6774, %v6775
    %v6777 = vmax.f32 %v6416, %v6417
    %v6778 = vrot.slane %v6777, 4
    %v6779 = vmax.f32 %v6777, %v6778
    %v6780 = vrot.slane %v6779, 2
    %v6781 = vmax.f32 %v6779, %v6780
    %v6782 = vrot.slane %v6781, 1
    %v6783 = vmax.f32 %v6781, %v6782
    %v6784 = vmax.f32 %v6418, %v6419
    %v6785 = vrot.slane %v6784, 4
    %v6786 = vmax.f32 %v6784, %v6785
    %v6787 = vrot.slane %v6786, 2
    %v6788 = vmax.f32 %v6786, %v6787
    %v6789 = vrot.slane %v6788, 1
    %v6790 = vmax.f32 %v6788, %v6789
    %v6791 = vmax.f32 %v6420, %v6421
    %v6792 = vrot.slane %v6791, 4
    %v6793 = vmax.f32 %v6791, %v6792
    %v6794 = vrot.slane %v6793, 2
    %v6795 = vmax.f32 %v6793, %v6794
    %v6796 = vrot.slane %v6795, 1
    %v6797 = vmax.f32 %v6795, %v6796
    %v6798 = vmax.f32 %v6422, %v6423
    %v6799 = vrot.slane %v6798, 4
    %v6800 = vmax.f32 %v6798, %v6799
    %v6801 = vrot.slane %v6800, 2
    %v6802 = vmax.f32 %v6800, %v6801
    %v6803 = vrot.slane %v6802, 1
    %v6804 = vmax.f32 %v6802, %v6803
    %v6805 = vmax.f32 %v6424, %v6425
    %v6806 = vrot.slane %v6805, 4
    %v6807 = vmax.f32 %v6805, %v6806
    %v6808 = vrot.slane %v6807, 2
    %v6809 = vmax.f32 %v6807, %v6808
    %v6810 = vrot.slane %v6809, 1
    %v6811 = vmax.f32 %v6809, %v6810
    %v6812 = vmax.f32 %v6426, %v6427
    %v6813 = vrot.slane %v6812, 4
    %v6814 = vmax.f32 %v6812, %v6813
    %v6815 = vrot.slane %v6814, 2
    %v6816 = vmax.f32 %v6814, %v6815
    %v6817 = vrot.slane %v6816, 1
    %v6818 = vmax.f32 %v6816, %v6817
    %v6819 = vmax.f32 %v6428, %v6429
    %v6820 = vrot.slane %v6819, 4
    %v6821 = vmax.f32 %v6819, %v6820
    %v6822 = vrot.slane %v6821, 2
    %v6823 = vmax.f32 %v6821, %v6822
    %v6824 = vrot.slane %v6823, 1
    %v6825 = vmax.f32 %v6823, %v6824
    %v6826 = vmax.f32 %v6430, %v6431
    %v6827 = vrot.slane %v6826, 4
    %v6828 = vmax.f32 %v6826, %v6827
    %v6829 = vrot.slane %v6828, 2
    %v6830 = vmax.f32 %v6828, %v6829
    %v6831 = vrot.slane %v6830, 1
    %v6832 = vmax.f32 %v6830, %v6831
    %v6833 = vmax.f32 %v6432, %v6433
    %v6834 = vrot.slane %v6833, 4
    %v6835 = vmax.f32 %v6833, %v6834
    %v6836 = vrot.slane %v6835, 2
    %v6837 = vmax.f32 %v6835, %v6836
    %v6838 = vrot.slane %v6837, 1
    %v6839 = vmax.f32 %v6837, %v6838
    %v6840 = vmax.f32 %v6434, %v6435
    %v6841 = vrot.slane %v6840, 4
    %v6842 = vmax.f32 %v6840, %v6841
    %v6843 = vrot.slane %v6842, 2
    %v6844 = vmax.f32 %v6842, %v6843
    %v6845 = vrot.slane %v6844, 1
    %v6846 = vmax.f32 %v6844, %v6845
    %v6847 = vmax.f32 %v6436, %v6437
    %v6848 = vrot.slane %v6847, 4
    %v6849 = vmax.f32 %v6847, %v6848
    %v6850 = vrot.slane %v6849, 2
    %v6851 = vmax.f32 %v6849, %v6850
    %v6852 = vrot.slane %v6851, 1
    %v6853 = vmax.f32 %v6851, %v6852
    %v6854 = vmax.f32 %v6438, %v6439
    %v6855 = vrot.slane %v6854, 4
    %v6856 = vmax.f32 %v6854, %v6855
    %v6857 = vrot.slane %v6856, 2
    %v6858 = vmax.f32 %v6856, %v6857
    %v6859 = vrot.slane %v6858, 1
    %v6860 = vmax.f32 %v6858, %v6859
    %v6861 = vmax.f32 %v6440, %v6441
    %v6862 = vrot.slane %v6861, 4
    %v6863 = vmax.f32 %v6861, %v6862
    %v6864 = vrot.slane %v6863, 2
    %v6865 = vmax.f32 %v6863, %v6864
    %v6866 = vrot.slane %v6865, 1
    %v6867 = vmax.f32 %v6865, %v6866
    %v6868 = vmax.f32 %v6442, %v6443
    %v6869 = vrot.slane %v6868, 4
    %v6870 = vmax.f32 %v6868, %v6869
    %v6871 = vrot.slane %v6870, 2
    %v6872 = vmax.f32 %v6870, %v6871
    %v6873 = vrot.slane %v6872, 1
    %v6874 = vmax.f32 %v6872, %v6873
    %v6875 = vmax.f32 %v6444, %v6445
    %v6876 = vrot.slane %v6875, 4
    %v6877 = vmax.f32 %v6875, %v6876
    %v6878 = vrot.slane %v6877, 2
    %v6879 = vmax.f32 %v6877, %v6878
    %v6880 = vrot.slane %v6879, 1
    %v6881 = vmax.f32 %v6879, %v6880
    %v6882 = vmax.f32 %v6446, %v6447
    %v6883 = vrot.slane %v6882, 4
    %v6884 = vmax.f32 %v6882, %v6883
    %v6885 = vrot.slane %v6884, 2
    %v6886 = vmax.f32 %v6884, %v6885
    %v6887 = vrot.slane %v6886, 1
    %v6888 = vmax.f32 %v6886, %v6887
    %v6889 = vmax.f32 %v6448, %v6449
    %v6890 = vrot.slane %v6889, 4
    %v6891 = vmax.f32 %v6889, %v6890
    %v6892 = vrot.slane %v6891, 2
    %v6893 = vmax.f32 %v6891, %v6892
    %v6894 = vrot.slane %v6893, 1
    %v6895 = vmax.f32 %v6893, %v6894
    %v6896 = vmax.f32 %v6450, %v6451
    %v6897 = vrot.slane %v6896, 4
    %v6898 = vmax.f32 %v6896, %v6897
    %v6899 = vrot.slane %v6898, 2
    %v6900 = vmax.f32 %v6898, %v6899
    %v6901 = vrot.slane %v6900, 1
    %v6902 = vmax.f32 %v6900, %v6901
    %v6903 = vmax.f32 %v6452, %v6453
    %v6904 = vrot.slane %v6903, 4
    %v6905 = vmax.f32 %v6903, %v6904
    %v6906 = vrot.slane %v6905, 2
    %v6907 = vmax.f32 %v6905, %v6906
    %v6908 = vrot.slane %v6907, 1
    %v6909 = vmax.f32 %v6907, %v6908
    %v6910 = vmax.f32 %v6454, %v6455
    %v6911 = vrot.slane %v6910, 4
    %v6912 = vmax.f32 %v6910, %v6911
    %v6913 = vrot.slane %v6912, 2
    %v6914 = vmax.f32 %v6912, %v6913
    %v6915 = vrot.slane %v6914, 1
    %v6916 = vmax.f32 %v6914, %v6915
    %v6917 = vmax.f32 %v6456, %v6457
    %v6918 = vrot.slane %v6917, 4
    %v6919 = vmax.f32 %v6917, %v6918
    %v6920 = vrot.slane %v6919, 2
    %v6921 = vmax.f32 %v6919, %v6920
    %v6922 = vrot.slane %v6921, 1
    %v6923 = vmax.f32 %v6921, %v6922
    %v6924 = vmax.f32 %v6458, %v6459
    %v6925 = vrot.slane %v6924, 4
    %v6926 = vmax.f32 %v6924, %v6925
    %v6927 = vrot.slane %v6926, 2
    %v6928 = vmax.f32 %v6926, %v6927
    %v6929 = vrot.slane %v6928, 1
    %v6930 = vmax.f32 %v6928, %v6929
    %v6931 = vmax.f32 %v6460, %v6461
    %v6932 = vrot.slane %v6931, 4
    %v6933 = vmax.f32 %v6931, %v6932
    %v6934 = vrot.slane %v6933, 2
    %v6935 = vmax.f32 %v6933, %v6934
    %v6936 = vrot.slane %v6935, 1
    %v6937 = vmax.f32 %v6935, %v6936
    %v6938 = vmax.f32 %v6462, %v6463
    %v6939 = vrot.slane %v6938, 4
    %v6940 = vmax.f32 %v6938, %v6939
    %v6941 = vrot.slane %v6940, 2
    %v6942 = vmax.f32 %v6940, %v6941
    %v6943 = vrot.slane %v6942, 1
    %v6944 = vmax.f32 %v6942, %v6943
    %v6945 = vmax.f32 %v6464, %v6465
    %v6946 = vrot.slane %v6945, 4
    %v6947 = vmax.f32 %v6945, %v6946
    %v6948 = vrot.slane %v6947, 2
    %v6949 = vmax.f32 %v6947, %v6948
    %v6950 = vrot.slane %v6949, 1
    %v6951 = vmax.f32 %v6949, %v6950
    %v6952 = vmax.f32 %v6466, %v6467
    %v6953 = vrot.slane %v6952, 4
    %v6954 = vmax.f32 %v6952, %v6953
    %v6955 = vrot.slane %v6954, 2
    %v6956 = vmax.f32 %v6954, %v6955
    %v6957 = vrot.slane %v6956, 1
    %v6958 = vmax.f32 %v6956, %v6957
    %v6959 = vmax.f32 %v6468, %v6469
    %v6960 = vrot.slane %v6959, 4
    %v6961 = vmax.f32 %v6959, %v6960
    %v6962 = vrot.slane %v6961, 2
    %v6963 = vmax.f32 %v6961, %v6962
    %v6964 = vrot.slane %v6963, 1
    %v6965 = vmax.f32 %v6963, %v6964
    %v6966 = vmax.f32 %v6470, %v6471
    %v6967 = vrot.slane %v6966, 4
    %v6968 = vmax.f32 %v6966, %v6967
    %v6969 = vrot.slane %v6968, 2
    %v6970 = vmax.f32 %v6968, %v6969
    %v6971 = vrot.slane %v6970, 1
    %v6972 = vmax.f32 %v6970, %v6971
    %v6973 = vmax.f32 %v6472, %v6473
    %v6974 = vrot.slane %v6973, 4
    %v6975 = vmax.f32 %v6973, %v6974
    %v6976 = vrot.slane %v6975, 2
    %v6977 = vmax.f32 %v6975, %v6976
    %v6978 = vrot.slane %v6977, 1
    %v6979 = vmax.f32 %v6977, %v6978
    %v6980 = vmax.f32 %v6474, %v6475
    %v6981 = vrot.slane %v6980, 4
    %v6982 = vmax.f32 %v6980, %v6981
    %v6983 = vrot.slane %v6982, 2
    %v6984 = vmax.f32 %v6982, %v6983
    %v6985 = vrot.slane %v6984, 1
    %v6986 = vmax.f32 %v6984, %v6985
    %v6987 = vmax.f32 %v6476, %v6477
    %v6988 = vrot.slane %v6987, 4
    %v6989 = vmax.f32 %v6987, %v6988
    %v6990 = vrot.slane %v6989, 2
    %v6991 = vmax.f32 %v6989, %v6990
    %v6992 = vrot.slane %v6991, 1
    %v6993 = vmax.f32 %v6991, %v6992
    %v6994 = vmax.f32 %v6478, %v6479
    %v6995 = vrot.slane %v6994, 4
    %v6996 = vmax.f32 %v6994, %v6995
    %v6997 = vrot.slane %v6996, 2
    %v6998 = vmax.f32 %v6996, %v6997
    %v6999 = vrot.slane %v6998, 1
    %v7000 = vmax.f32 %v6998, %v6999
    %v7001 = vmax.f32 %v6480, %v6481
    %v7002 = vrot.slane %v7001, 4
    %v7003 = vmax.f32 %v7001, %v7002
    %v7004 = vrot.slane %v7003, 2
    %v7005 = vmax.f32 %v7003, %v7004
    %v7006 = vrot.slane %v7005, 1
    %v7007 = vmax.f32 %v7005, %v7006
    %v7008 = vmax.f32 %v6482, %v6483
    %v7009 = vrot.slane %v7008, 4
    %v7010 = vmax.f32 %v7008, %v7009
    %v7011 = vrot.slane %v7010, 2
    %v7012 = vmax.f32 %v7010, %v7011
    %v7013 = vrot.slane %v7012, 1
    %v7014 = vmax.f32 %v7012, %v7013
    %v7015 = vmax.f32 %v6484, %v6485
    %v7016 = vrot.slane %v7015, 4
    %v7017 = vmax.f32 %v7015, %v7016
    %v7018 = vrot.slane %v7017, 2
    %v7019 = vmax.f32 %v7017, %v7018
    %v7020 = vrot.slane %v7019, 1
    %v7021 = vmax.f32 %v7019, %v7020
    %v7022 = vmax.f32 %v6486, %v6487
    %v7023 = vrot.slane %v7022, 4
    %v7024 = vmax.f32 %v7022, %v7023
    %v7025 = vrot.slane %v7024, 2
    %v7026 = vmax.f32 %v7024, %v7025
    %v7027 = vrot.slane %v7026, 1
    %v7028 = vmax.f32 %v7026, %v7027
    %v7029 = vmax.f32 %v6488, %v6489
    %v7030 = vrot.slane %v7029, 4
    %v7031 = vmax.f32 %v7029, %v7030
    %v7032 = vrot.slane %v7031, 2
    %v7033 = vmax.f32 %v7031, %v7032
    %v7034 = vrot.slane %v7033, 1
    %v7035 = vmax.f32 %v7033, %v7034
    %v7036 = vmax.f32 %v6490, %v6491
    %v7037 = vrot.slane %v7036, 4
    %v7038 = vmax.f32 %v7036, %v7037
    %v7039 = vrot.slane %v7038, 2
    %v7040 = vmax.f32 %v7038, %v7039
    %v7041 = vrot.slane %v7040, 1
    %v7042 = vmax.f32 %v7040, %v7041
    %v7043 = vmax.f32 %v6492, %v6493
    %v7044 = vrot.slane %v7043, 4
    %v7045 = vmax.f32 %v7043, %v7044
    %v7046 = vrot.slane %v7045, 2
    %v7047 = vmax.f32 %v7045, %v7046
    %v7048 = vrot.slane %v7047, 1
    %v7049 = vmax.f32 %v7047, %v7048
    %v7050 = vmax.f32 %v6494, %v6495
    %v7051 = vrot.slane %v7050, 4
    %v7052 = vmax.f32 %v7050, %v7051
    %v7053 = vrot.slane %v7052, 2
    %v7054 = vmax.f32 %v7052, %v7053
    %v7055 = vrot.slane %v7054, 1
    %v7056 = vmax.f32 %v7054, %v7055
    %v7057 = vmax.f32 %v6496, %v6497
    %v7058 = vrot.slane %v7057, 4
    %v7059 = vmax.f32 %v7057, %v7058
    %v7060 = vrot.slane %v7059, 2
    %v7061 = vmax.f32 %v7059, %v7060
    %v7062 = vrot.slane %v7061, 1
    %v7063 = vmax.f32 %v7061, %v7062
    %v7064 = vmax.f32 %v6498, %v6499
    %v7065 = vrot.slane %v7064, 4
    %v7066 = vmax.f32 %v7064, %v7065
    %v7067 = vrot.slane %v7066, 2
    %v7068 = vmax.f32 %v7066, %v7067
    %v7069 = vrot.slane %v7068, 1
    %v7070 = vmax.f32 %v7068, %v7069
    %v7071 = vmax.f32 %v6500, %v6501
    %v7072 = vrot.slane %v7071, 4
    %v7073 = vmax.f32 %v7071, %v7072
    %v7074 = vrot.slane %v7073, 2
    %v7075 = vmax.f32 %v7073, %v7074
    %v7076 = vrot.slane %v7075, 1
    %v7077 = vmax.f32 %v7075, %v7076
    %v7078 = vmax.f32 %v6502, %v6503
    %v7079 = vrot.slane %v7078, 4
    %v7080 = vmax.f32 %v7078, %v7079
    %v7081 = vrot.slane %v7080, 2
    %v7082 = vmax.f32 %v7080, %v7081
    %v7083 = vrot.slane %v7082, 1
    %v7084 = vmax.f32 %v7082, %v7083
    %v7085 = vmax.f32 %v6504, %v6505
    %v7086 = vrot.slane %v7085, 4
    %v7087 = vmax.f32 %v7085, %v7086
    %v7088 = vrot.slane %v7087, 2
    %v7089 = vmax.f32 %v7087, %v7088
    %v7090 = vrot.slane %v7089, 1
    %v7091 = vmax.f32 %v7089, %v7090
    %v7092 = vmax.f32 %v6506, %v6507
    %v7093 = vrot.slane %v7092, 4
    %v7094 = vmax.f32 %v7092, %v7093
    %v7095 = vrot.slane %v7094, 2
    %v7096 = vmax.f32 %v7094, %v7095
    %v7097 = vrot.slane %v7096, 1
    %v7098 = vmax.f32 %v7096, %v7097
    %v7099 = vmax.f32 %v6508, %v6509
    %v7100 = vrot.slane %v7099, 4
    %v7101 = vmax.f32 %v7099, %v7100
    %v7102 = vrot.slane %v7101, 2
    %v7103 = vmax.f32 %v7101, %v7102
    %v7104 = vrot.slane %v7103, 1
    %v7105 = vmax.f32 %v7103, %v7104
    %v7106 = vmax.f32 %v6510, %v6511
    %v7107 = vrot.slane %v7106, 4
    %v7108 = vmax.f32 %v7106, %v7107
    %v7109 = vrot.slane %v7108, 2
    %v7110 = vmax.f32 %v7108, %v7109
    %v7111 = vrot.slane %v7110, 1
    %v7112 = vmax.f32 %v7110, %v7111
    %v7113 = vmax.f32 %v6512, %v6513
    %v7114 = vrot.slane %v7113, 4
    %v7115 = vmax.f32 %v7113, %v7114
    %v7116 = vrot.slane %v7115, 2
    %v7117 = vmax.f32 %v7115, %v7116
    %v7118 = vrot.slane %v7117, 1
    %v7119 = vmax.f32 %v7117, %v7118
    %v7120 = vmax.f32 %v6514, %v6515
    %v7121 = vrot.slane %v7120, 4
    %v7122 = vmax.f32 %v7120, %v7121
    %v7123 = vrot.slane %v7122, 2
    %v7124 = vmax.f32 %v7122, %v7123
    %v7125 = vrot.slane %v7124, 1
    %v7126 = vmax.f32 %v7124, %v7125
    %v7127 = vmax.f32 %v6516, %v6517
    %v7128 = vrot.slane %v7127, 4
    %v7129 = vmax.f32 %v7127, %v7128
    %v7130 = vrot.slane %v7129, 2
    %v7131 = vmax.f32 %v7129, %v7130
    %v7132 = vrot.slane %v7131, 1
    %v7133 = vmax.f32 %v7131, %v7132
    %v7134 = vmax.f32 %v6518, %v6519
    %v7135 = vrot.slane %v7134, 4
    %v7136 = vmax.f32 %v7134, %v7135
    %v7137 = vrot.slane %v7136, 2
    %v7138 = vmax.f32 %v7136, %v7137
    %v7139 = vrot.slane %v7138, 1
    %v7140 = vmax.f32 %v7138, %v7139
    %v7141 = vmax.f32 %v6520, %v6521
    %v7142 = vrot.slane %v7141, 4
    %v7143 = vmax.f32 %v7141, %v7142
    %v7144 = vrot.slane %v7143, 2
    %v7145 = vmax.f32 %v7143, %v7144
    %v7146 = vrot.slane %v7145, 1
    %v7147 = vmax.f32 %v7145, %v7146
    %v7148 = vmax.f32 %v6522, %v6523
    %v7149 = vrot.slane %v7148, 4
    %v7150 = vmax.f32 %v7148, %v7149
    %v7151 = vrot.slane %v7150, 2
    %v7152 = vmax.f32 %v7150, %v7151
    %v7153 = vrot.slane %v7152, 1
    %v7154 = vmax.f32 %v7152, %v7153
    %v7155 = vmax.f32 %v6524, %v6525
    %v7156 = vrot.slane %v7155, 4
    %v7157 = vmax.f32 %v7155, %v7156
    %v7158 = vrot.slane %v7157, 2
    %v7159 = vmax.f32 %v7157, %v7158
    %v7160 = vrot.slane %v7159, 1
    %v7161 = vmax.f32 %v7159, %v7160
    %v7162 = vmax.f32 %v6526, %v6527
    %v7163 = vrot.slane %v7162, 4
    %v7164 = vmax.f32 %v7162, %v7163
    %v7165 = vrot.slane %v7164, 2
    %v7166 = vmax.f32 %v7164, %v7165
    %v7167 = vrot.slane %v7166, 1
    %v7168 = vmax.f32 %v7166, %v7167
    %v7169 = vmax.f32 %v6528, %v6529
    %v7170 = vrot.slane %v7169, 4
    %v7171 = vmax.f32 %v7169, %v7170
    %v7172 = vrot.slane %v7171, 2
    %v7173 = vmax.f32 %v7171, %v7172
    %v7174 = vrot.slane %v7173, 1
    %v7175 = vmax.f32 %v7173, %v7174
    %v7176 = vmax.f32 %v6530, %v6531
    %v7177 = vrot.slane %v7176, 4
    %v7178 = vmax.f32 %v7176, %v7177
    %v7179 = vrot.slane %v7178, 2
    %v7180 = vmax.f32 %v7178, %v7179
    %v7181 = vrot.slane %v7180, 1
    %v7182 = vmax.f32 %v7180, %v7181
    %v7183 = vmax.f32 %v6532, %v6533
    %v7184 = vrot.slane %v7183, 4
    %v7185 = vmax.f32 %v7183, %v7184
    %v7186 = vrot.slane %v7185, 2
    %v7187 = vmax.f32 %v7185, %v7186
    %v7188 = vrot.slane %v7187, 1
    %v7189 = vmax.f32 %v7187, %v7188
    %v7190 = vmax.f32 %v6534, %v6535
    %v7191 = vrot.slane %v7190, 4
    %v7192 = vmax.f32 %v7190, %v7191
    %v7193 = vrot.slane %v7192, 2
    %v7194 = vmax.f32 %v7192, %v7193
    %v7195 = vrot.slane %v7194, 1
    %v7196 = vmax.f32 %v7194, %v7195
    %v7197 = vmax.f32 %v6536, %v6537
    %v7198 = vrot.slane %v7197, 4
    %v7199 = vmax.f32 %v7197, %v7198
    %v7200 = vrot.slane %v7199, 2
    %v7201 = vmax.f32 %v7199, %v7200
    %v7202 = vrot.slane %v7201, 1
    %v7203 = vmax.f32 %v7201, %v7202
    %v7204 = vmax.f32 %v6538, %v6539
    %v7205 = vrot.slane %v7204, 4
    %v7206 = vmax.f32 %v7204, %v7205
    %v7207 = vrot.slane %v7206, 2
    %v7208 = vmax.f32 %v7206, %v7207
    %v7209 = vrot.slane %v7208, 1
    %v7210 = vmax.f32 %v7208, %v7209
    %v7211 = vmax.f32 %v6540, %v6541
    %v7212 = vrot.slane %v7211, 4
    %v7213 = vmax.f32 %v7211, %v7212
    %v7214 = vrot.slane %v7213, 2
    %v7215 = vmax.f32 %v7213, %v7214
    %v7216 = vrot.slane %v7215, 1
    %v7217 = vmax.f32 %v7215, %v7216
    %v7218 = vmax.f32 %v6542, %v6543
    %v7219 = vrot.slane %v7218, 4
    %v7220 = vmax.f32 %v7218, %v7219
    %v7221 = vrot.slane %v7220, 2
    %v7222 = vmax.f32 %v7220, %v7221
    %v7223 = vrot.slane %v7222, 1
    %v7224 = vmax.f32 %v7222, %v7223
    %v7225 = vmax.f32 %v6544, %v6545
    %v7226 = vrot.slane %v7225, 4
    %v7227 = vmax.f32 %v7225, %v7226
    %v7228 = vrot.slane %v7227, 2
    %v7229 = vmax.f32 %v7227, %v7228
    %v7230 = vrot.slane %v7229, 1
    %v7231 = vmax.f32 %v7229, %v7230
    %v7232 = vmax.f32 %v6546, %v6547
    %v7233 = vrot.slane %v7232, 4
    %v7234 = vmax.f32 %v7232, %v7233
    %v7235 = vrot.slane %v7234, 2
    %v7236 = vmax.f32 %v7234, %v7235
    %v7237 = vrot.slane %v7236, 1
    %v7238 = vmax.f32 %v7236, %v7237
    %v7239 = vmax.f32 %v6548, %v6549
    %v7240 = vrot.slane %v7239, 4
    %v7241 = vmax.f32 %v7239, %v7240
    %v7242 = vrot.slane %v7241, 2
    %v7243 = vmax.f32 %v7241, %v7242
    %v7244 = vrot.slane %v7243, 1
    %v7245 = vmax.f32 %v7243, %v7244
    %v7246 = vmax.f32 %v6550, %v6551
    %v7247 = vrot.slane %v7246, 4
    %v7248 = vmax.f32 %v7246, %v7247
    %v7249 = vrot.slane %v7248, 2
    %v7250 = vmax.f32 %v7248, %v7249
    %v7251 = vrot.slane %v7250, 1
    %v7252 = vmax.f32 %v7250, %v7251
    %v7253 = vmax.f32 %v6552, %v6553
    %v7254 = vrot.slane %v7253, 4
    %v7255 = vmax.f32 %v7253, %v7254
    %v7256 = vrot.slane %v7255, 2
    %v7257 = vmax.f32 %v7255, %v7256
    %v7258 = vrot.slane %v7257, 1
    %v7259 = vmax.f32 %v7257, %v7258
    %v7260 = vmax.f32 %v6554, %v6555
    %v7261 = vrot.slane %v7260, 4
    %v7262 = vmax.f32 %v7260, %v7261
    %v7263 = vrot.slane %v7262, 2
    %v7264 = vmax.f32 %v7262, %v7263
    %v7265 = vrot.slane %v7264, 1
    %v7266 = vmax.f32 %v7264, %v7265
    %v7267 = vmax.f32 %v6556, %v6557
    %v7268 = vrot.slane %v7267, 4
    %v7269 = vmax.f32 %v7267, %v7268
    %v7270 = vrot.slane %v7269, 2
    %v7271 = vmax.f32 %v7269, %v7270
    %v7272 = vrot.slane %v7271, 1
    %v7273 = vmax.f32 %v7271, %v7272
    %v7274 = vmax.f32 %v6558, %v6559
    %v7275 = vrot.slane %v7274, 4
    %v7276 = vmax.f32 %v7274, %v7275
    %v7277 = vrot.slane %v7276, 2
    %v7278 = vmax.f32 %v7276, %v7277
    %v7279 = vrot.slane %v7278, 1
    %v7280 = vmax.f32 %v7278, %v7279
    %v7281 = vmax.f32 %v6560, %v6561
    %v7282 = vrot.slane %v7281, 4
    %v7283 = vmax.f32 %v7281, %v7282
    %v7284 = vrot.slane %v7283, 2
    %v7285 = vmax.f32 %v7283, %v7284
    %v7286 = vrot.slane %v7285, 1
    %v7287 = vmax.f32 %v7285, %v7286
    %v7288 = vmax.f32 %v6562, %v6563
    %v7289 = vrot.slane %v7288, 4
    %v7290 = vmax.f32 %v7288, %v7289
    %v7291 = vrot.slane %v7290, 2
    %v7292 = vmax.f32 %v7290, %v7291
    %v7293 = vrot.slane %v7292, 1
    %v7294 = vmax.f32 %v7292, %v7293
    %v7295 = vmax.f32 %v6564, %v6565
    %v7296 = vrot.slane %v7295, 4
    %v7297 = vmax.f32 %v7295, %v7296
    %v7298 = vrot.slane %v7297, 2
    %v7299 = vmax.f32 %v7297, %v7298
    %v7300 = vrot.slane %v7299, 1
    %v7301 = vmax.f32 %v7299, %v7300
    %v7302 = vmax.f32 %v6566, %v6567
    %v7303 = vrot.slane %v7302, 4
    %v7304 = vmax.f32 %v7302, %v7303
    %v7305 = vrot.slane %v7304, 2
    %v7306 = vmax.f32 %v7304, %v7305
    %v7307 = vrot.slane %v7306, 1
    %v7308 = vmax.f32 %v7306, %v7307
    %v7309 = vmax.f32 %v6568, %v6569
    %v7310 = vrot.slane %v7309, 4
    %v7311 = vmax.f32 %v7309, %v7310
    %v7312 = vrot.slane %v7311, 2
    %v7313 = vmax.f32 %v7311, %v7312
    %v7314 = vrot.slane %v7313, 1
    %v7315 = vmax.f32 %v7313, %v7314
    %v7316 = vmax.f32 %v6570, %v6571
    %v7317 = vrot.slane %v7316, 4
    %v7318 = vmax.f32 %v7316, %v7317
    %v7319 = vrot.slane %v7318, 2
    %v7320 = vmax.f32 %v7318, %v7319
    %v7321 = vrot.slane %v7320, 1
    %v7322 = vmax.f32 %v7320, %v7321
    %v7323 = vmax.f32 %v6572, %v6573
    %v7324 = vrot.slane %v7323, 4
    %v7325 = vmax.f32 %v7323, %v7324
    %v7326 = vrot.slane %v7325, 2
    %v7327 = vmax.f32 %v7325, %v7326
    %v7328 = vrot.slane %v7327, 1
    %v7329 = vmax.f32 %v7327, %v7328
    %v7330 = vmax.f32 %v6574, %v6575
    %v7331 = vrot.slane %v7330, 4
    %v7332 = vmax.f32 %v7330, %v7331
    %v7333 = vrot.slane %v7332, 2
    %v7334 = vmax.f32 %v7332, %v7333
    %v7335 = vrot.slane %v7334, 1
    %v7336 = vmax.f32 %v7334, %v7335
    %v7337 = vmax.f32 %v6576, %v6577
    %v7338 = vrot.slane %v7337, 4
    %v7339 = vmax.f32 %v7337, %v7338
    %v7340 = vrot.slane %v7339, 2
    %v7341 = vmax.f32 %v7339, %v7340
    %v7342 = vrot.slane %v7341, 1
    %v7343 = vmax.f32 %v7341, %v7342
    %v7344 = vmax.f32 %v6578, %v6579
    %v7345 = vrot.slane %v7344, 4
    %v7346 = vmax.f32 %v7344, %v7345
    %v7347 = vrot.slane %v7346, 2
    %v7348 = vmax.f32 %v7346, %v7347
    %v7349 = vrot.slane %v7348, 1
    %v7350 = vmax.f32 %v7348, %v7349
    %v7351 = vmax.f32 %v6580, %v6581
    %v7352 = vrot.slane %v7351, 4
    %v7353 = vmax.f32 %v7351, %v7352
    %v7354 = vrot.slane %v7353, 2
    %v7355 = vmax.f32 %v7353, %v7354
    %v7356 = vrot.slane %v7355, 1
    %v7357 = vmax.f32 %v7355, %v7356
    %v7358 = vmax.f32 %v6582, %v6583
    %v7359 = vrot.slane %v7358, 4
    %v7360 = vmax.f32 %v7358, %v7359
    %v7361 = vrot.slane %v7360, 2
    %v7362 = vmax.f32 %v7360, %v7361
    %v7363 = vrot.slane %v7362, 1
    %v7364 = vmax.f32 %v7362, %v7363
    %v7365 = vmax.f32 %v6584, %v6585
    %v7366 = vrot.slane %v7365, 4
    %v7367 = vmax.f32 %v7365, %v7366
    %v7368 = vrot.slane %v7367, 2
    %v7369 = vmax.f32 %v7367, %v7368
    %v7370 = vrot.slane %v7369, 1
    %v7371 = vmax.f32 %v7369, %v7370
    %v7372 = vmax.f32 %v6586, %v6587
    %v7373 = vrot.slane %v7372, 4
    %v7374 = vmax.f32 %v7372, %v7373
    %v7375 = vrot.slane %v7374, 2
    %v7376 = vmax.f32 %v7374, %v7375
    %v7377 = vrot.slane %v7376, 1
    %v7378 = vmax.f32 %v7376, %v7377
    %v7379 = vmax.f32 %v6588, %v6589
    %v7380 = vrot.slane %v7379, 4
    %v7381 = vmax.f32 %v7379, %v7380
    %v7382 = vrot.slane %v7381, 2
    %v7383 = vmax.f32 %v7381, %v7382
    %v7384 = vrot.slane %v7383, 1
    %v7385 = vmax.f32 %v7383, %v7384
    %v7386 = vmax.f32 %v6590, %v6591
    %v7387 = vrot.slane %v7386, 4
    %v7388 = vmax.f32 %v7386, %v7387
    %v7389 = vrot.slane %v7388, 2
    %v7390 = vmax.f32 %v7388, %v7389
    %v7391 = vrot.slane %v7390, 1
    %v7392 = vmax.f32 %v7390, %v7391
    %v7393 = vmax.f32 %v6592, %v6593
    %v7394 = vrot.slane %v7393, 4
    %v7395 = vmax.f32 %v7393, %v7394
    %v7396 = vrot.slane %v7395, 2
    %v7397 = vmax.f32 %v7395, %v7396
    %v7398 = vrot.slane %v7397, 1
    %v7399 = vmax.f32 %v7397, %v7398
    %v7400 = vmax.f32 %v6594, %v6595
    %v7401 = vrot.slane %v7400, 4
    %v7402 = vmax.f32 %v7400, %v7401
    %v7403 = vrot.slane %v7402, 2
    %v7404 = vmax.f32 %v7402, %v7403
    %v7405 = vrot.slane %v7404, 1
    %v7406 = vmax.f32 %v7404, %v7405
    %v7407 = vmax.f32 %v6596, %v6597
    %v7408 = vrot.slane %v7407, 4
    %v7409 = vmax.f32 %v7407, %v7408
    %v7410 = vrot.slane %v7409, 2
    %v7411 = vmax.f32 %v7409, %v7410
    %v7412 = vrot.slane %v7411, 1
    %v7413 = vmax.f32 %v7411, %v7412
    %v7414 = vmax.f32 %v6598, %v6599
    %v7415 = vrot.slane %v7414, 4
    %v7416 = vmax.f32 %v7414, %v7415
    %v7417 = vrot.slane %v7416, 2
    %v7418 = vmax.f32 %v7416, %v7417
    %v7419 = vrot.slane %v7418, 1
    %v7420 = vmax.f32 %v7418, %v7419
    %v7421 = vmax.f32 %v6600, %v6601
    %v7422 = vrot.slane %v7421, 4
    %v7423 = vmax.f32 %v7421, %v7422
    %v7424 = vrot.slane %v7423, 2
    %v7425 = vmax.f32 %v7423, %v7424
    %v7426 = vrot.slane %v7425, 1
    %v7427 = vmax.f32 %v7425, %v7426
    %v7428 = vmax.f32 %v6602, %v6603
    %v7429 = vrot.slane %v7428, 4
    %v7430 = vmax.f32 %v7428, %v7429
    %v7431 = vrot.slane %v7430, 2
    %v7432 = vmax.f32 %v7430, %v7431
    %v7433 = vrot.slane %v7432, 1
    %v7434 = vmax.f32 %v7432, %v7433
    %v7435 = vmax.f32 %v6604, %v6605
    %v7436 = vrot.slane %v7435, 4
    %v7437 = vmax.f32 %v7435, %v7436
    %v7438 = vrot.slane %v7437, 2
    %v7439 = vmax.f32 %v7437, %v7438
    %v7440 = vrot.slane %v7439, 1
    %v7441 = vmax.f32 %v7439, %v7440
    %v7442 = vmax.f32 %v6606, %v6607
    %v7443 = vrot.slane %v7442, 4
    %v7444 = vmax.f32 %v7442, %v7443
    %v7445 = vrot.slane %v7444, 2
    %v7446 = vmax.f32 %v7444, %v7445
    %v7447 = vrot.slane %v7446, 1
    %v7448 = vmax.f32 %v7446, %v7447
    %v7449 = vmax.f32 %v6608, %v6609
    %v7450 = vrot.slane %v7449, 4
    %v7451 = vmax.f32 %v7449, %v7450
    %v7452 = vrot.slane %v7451, 2
    %v7453 = vmax.f32 %v7451, %v7452
    %v7454 = vrot.slane %v7453, 1
    %v7455 = vmax.f32 %v7453, %v7454
    %v7456 = vmax.f32 %v6610, %v6611
    %v7457 = vrot.slane %v7456, 4
    %v7458 = vmax.f32 %v7456, %v7457
    %v7459 = vrot.slane %v7458, 2
    %v7460 = vmax.f32 %v7458, %v7459
    %v7461 = vrot.slane %v7460, 1
    %v7462 = vmax.f32 %v7460, %v7461
    %v7463 = vmax.f32 %v6612, %v6613
    %v7464 = vrot.slane %v7463, 4
    %v7465 = vmax.f32 %v7463, %v7464
    %v7466 = vrot.slane %v7465, 2
    %v7467 = vmax.f32 %v7465, %v7466
    %v7468 = vrot.slane %v7467, 1
    %v7469 = vmax.f32 %v7467, %v7468
    %v7470 = vmax.f32 %v6614, %v6615
    %v7471 = vrot.slane %v7470, 4
    %v7472 = vmax.f32 %v7470, %v7471
    %v7473 = vrot.slane %v7472, 2
    %v7474 = vmax.f32 %v7472, %v7473
    %v7475 = vrot.slane %v7474, 1
    %v7476 = vmax.f32 %v7474, %v7475
    %v7477 = vmax.f32 %v6616, %v6617
    %v7478 = vrot.slane %v7477, 4
    %v7479 = vmax.f32 %v7477, %v7478
    %v7480 = vrot.slane %v7479, 2
    %v7481 = vmax.f32 %v7479, %v7480
    %v7482 = vrot.slane %v7481, 1
    %v7483 = vmax.f32 %v7481, %v7482
    %v7484 = vmax.f32 %v6618, %v6619
    %v7485 = vrot.slane %v7484, 4
    %v7486 = vmax.f32 %v7484, %v7485
    %v7487 = vrot.slane %v7486, 2
    %v7488 = vmax.f32 %v7486, %v7487
    %v7489 = vrot.slane %v7488, 1
    %v7490 = vmax.f32 %v7488, %v7489
    %v7491 = vmax.f32 %v6620, %v6621
    %v7492 = vrot.slane %v7491, 4
    %v7493 = vmax.f32 %v7491, %v7492
    %v7494 = vrot.slane %v7493, 2
    %v7495 = vmax.f32 %v7493, %v7494
    %v7496 = vrot.slane %v7495, 1
    %v7497 = vmax.f32 %v7495, %v7496
    %v7498 = vmax.f32 %v6622, %v6623
    %v7499 = vrot.slane %v7498, 4
    %v7500 = vmax.f32 %v7498, %v7499
    %v7501 = vrot.slane %v7500, 2
    %v7502 = vmax.f32 %v7500, %v7501
    %v7503 = vrot.slane %v7502, 1
    %v7504 = vmax.f32 %v7502, %v7503
    %v7505 = vmax.f32 %v6624, %v6625
    %v7506 = vrot.slane %v7505, 4
    %v7507 = vmax.f32 %v7505, %v7506
    %v7508 = vrot.slane %v7507, 2
    %v7509 = vmax.f32 %v7507, %v7508
    %v7510 = vrot.slane %v7509, 1
    %v7511 = vmax.f32 %v7509, %v7510
    %v7512 = vmax.f32 %v6626, %v6627
    %v7513 = vrot.slane %v7512, 4
    %v7514 = vmax.f32 %v7512, %v7513
    %v7515 = vrot.slane %v7514, 2
    %v7516 = vmax.f32 %v7514, %v7515
    %v7517 = vrot.slane %v7516, 1
    %v7518 = vmax.f32 %v7516, %v7517
    %v7519 = vmax.f32 %v6628, %v6629
    %v7520 = vrot.slane %v7519, 4
    %v7521 = vmax.f32 %v7519, %v7520
    %v7522 = vrot.slane %v7521, 2
    %v7523 = vmax.f32 %v7521, %v7522
    %v7524 = vrot.slane %v7523, 1
    %v7525 = vmax.f32 %v7523, %v7524
    %vm7654 = vcmask 1041409
    %v7655 = vsel %vm7654, %v6643, %v6636
    %vm7656 = vcmask 1042434
    %v7657 = vsel %vm7656, %v6650, %v7655
    %vm7658 = vcmask 1043459
    %v7659 = vsel %vm7658, %v6657, %v7657
    %vm7660 = vcmask 1044484
    %v7661 = vsel %vm7660, %v6664, %v7659
    %vm7662 = vcmask 1045509
    %v7663 = vsel %vm7662, %v6671, %v7661
    %vm7664 = vcmask 1046534
    %v7665 = vsel %vm7664, %v6678, %v7663
    %vm7666 = vcmask 1047559
    %v7667 = vsel %vm7666, %v6685, %v7665
    %v7668 = vsel %vm7654, %v6699, %v6692
    %v7669 = vsel %vm7656, %v6706, %v7668
    %v7670 = vsel %vm7658, %v6713, %v7669
    %v7671 = vsel %vm7660, %v6720, %v7670
    %v7672 = vsel %vm7662, %v6727, %v7671
    %v7673 = vsel %vm7664, %v6734, %v7672
    %v7674 = vsel %vm7666, %v6741, %v7673
    %v7675 = vsel %vm7654, %v6755, %v6748
    %v7676 = vsel %vm7656, %v6762, %v7675
    %v7677 = vsel %vm7658, %v6769, %v7676
    %v7678 = vsel %vm7660, %v6776, %v7677
    %v7679 = vsel %vm7662, %v6783, %v7678
    %v7680 = vsel %vm7664, %v6790, %v7679
    %v7681 = vsel %vm7666, %v6797, %v7680
    %v7682 = vsel %vm7654, %v6811, %v6804
    %v7683 = vsel %vm7656, %v6818, %v7682
    %v7684 = vsel %vm7658, %v6825, %v7683
    %v7685 = vsel %vm7660, %v6832, %v7684
    %v7686 = vsel %vm7662, %v6839, %v7685
    %v7687 = vsel %vm7664, %v6846, %v7686
    %v7688 = vsel %vm7666, %v6853, %v7687
    %v7689 = vsel %vm7654, %v6867, %v6860
    %v7690 = vsel %vm7656, %v6874, %v7689
    %v7691 = vsel %vm7658, %v6881, %v7690
    %v7692 = vsel %vm7660, %v6888, %v7691
    %v7693 = vsel %vm7662, %v6895, %v7692
    %v7694 = vsel %vm7664, %v6902, %v7693
    %v7695 = vsel %vm7666, %v6909, %v7694
    %v7696 = vsel %vm7654, %v6923, %v6916
    %v7697 = vsel %vm7656, %v6930, %v7696
    %v7698 = vsel %vm7658, %v6937, %v7697
    %v7699 = vsel %vm7660, %v6944, %v7698
    %v7700 = vsel %vm7662, %v6951, %v7699
    %v7701 = vsel %vm7664, %v6958, %v7700
    %v7702 = vsel %vm7666, %v6965, %v7701
    %v7703 = vsel %vm7654, %v6979, %v6972
    %v7704 = vsel %vm7656, %v6986, %v7703
    %v7705 = vsel %vm7658, %v6993, %v7704
    %v7706 = vsel %vm7660, %v7000, %v7705
    %v7707 = vsel %vm7662, %v7007, %v7706
    %v7708 = vsel %vm7664, %v7014, %v7707
    %v7709 = vsel %vm7666, %v7021, %v7708
    %v7710 = vsel %vm7654, %v7035, %v7028
    %v7711 = vsel %vm7656, %v7042, %v7710
    %v7712 = vsel %vm7658, %v7049, %v7711
    %v7713 = vsel %vm7660, %v7056, %v7712
    %v7714 = vsel %vm7662, %v7063, %v7713
    %v7715 = vsel %vm7664, %v7070, %v7714
    %v7716 = vsel %vm7666, %v7077, %v7715
    %v7717 = vsel %vm7654, %v7091, %v7084
    %v7718 = vsel %vm7656, %v7098, %v7717
    %v7719 = vsel %vm7658, %v7105, %v7718
    %v7720 = vsel %vm7660, %v7112, %v7719
    %v7721 = vsel %vm7662, %v7119, %v7720
    %v7722 = vsel %vm7664, %v7126, %v7721
    %v7723 = vsel %vm7666, %v7133, %v7722
    %v7724 = vsel %vm7654, %v7147, %v7140
    %v7725 = vsel %vm7656, %v7154, %v7724
    %v7726 = vsel %vm7658, %v7161, %v7725
    %v7727 = vsel %vm7660, %v7168, %v7726
    %v7728 = vsel %vm7662, %v7175, %v7727
    %v7729 = vsel %vm7664, %v7182, %v7728
    %v7730 = vsel %vm7666, %v7189, %v7729
    %v7731 = vsel %vm7654, %v7203, %v7196
    %v7732 = vsel %vm7656, %v7210, %v7731
    %v7733 = vsel %vm7658, %v7217, %v7732
    %v7734 = vsel %vm7660, %v7224, %v7733
    %v7735 = vsel %vm7662, %v7231, %v7734
    %v7736 = vsel %vm7664, %v7238, %v7735
    %v7737 = vsel %vm7666, %v7245, %v7736
    %v7738 = vsel %vm7654, %v7259, %v7252
    %v7739 = vsel %vm7656, %v7266, %v7738
    %v7740 = vsel %vm7658, %v7273, %v7739
    %v7741 = vsel %vm7660, %v7280, %v7740
    %v7742 = vsel %vm7662, %v7287, %v7741
    %v7743 = vsel %vm7664, %v7294, %v7742
    %v7744 = vsel %vm7666, %v7301, %v7743
    %v7745 = vsel %vm7654, %v7315, %v7308
    %v7746 = vsel %vm7656, %v7322, %v7745
    %v7747 = vsel %vm7658, %v7329, %v7746
    %v7748 = vsel %vm7660, %v7336, %v7747
    %v7749 = vsel %vm7662, %v7343, %v7748
    %v7750 = vsel %vm7664, %v7350, %v7749
    %v7751 = vsel %vm7666, %v7357, %v7750
    %v7752 = vsel %vm7654, %v7371, %v7364
    %v7753 = vsel %vm7656, %v7378, %v7752
    %v7754 = vsel %vm7658, %v7385, %v7753
    %v7755 = vsel %vm7660, %v7392, %v7754
    %v7756 = vsel %vm7662, %v7399, %v7755
    %v7757 = vsel %vm7664, %v7406, %v7756
    %v7758 = vsel %vm7666, %v7413, %v7757
    %v7759 = vsel %vm7654, %v7427, %v7420
    %v7760 = vsel %vm7656, %v7434, %v7759
    %v7761 = vsel %vm7658, %v7441, %v7760
    %v7762 = vsel %vm7660, %v7448, %v7761
    %v7763 = vsel %vm7662, %v7455, %v7762
    %v7764 = vsel %vm7664, %v7462, %v7763
    %v7765 = vsel %vm7666, %v7469, %v7764
    %v7766 = vsel %vm7654, %v7483, %v7476
    %v7767 = vsel %vm7656, %v7490, %v7766
    %v7768 = vsel %vm7658, %v7497, %v7767
    %v7769 = vsel %vm7660, %v7504, %v7768
    %v7770 = vsel %vm7662, %v7511, %v7769
    %v7771 = vsel %vm7664, %v7518, %v7770
    %v7772 = vsel %vm7666, %v7525, %v7771
    %7789 = vst [vmem:[#allocation2] sm:$0xff] %v7667
    %7790 = vst [vmem:[#allocation2 + $0x8] sm:$0xff] %v7674
    %7791 = vst [vmem:[#allocation2 + $0x10] sm:$0xff] %v7681
    %7792 = vst [vmem:[#allocation2 + $0x18] sm:$0xff] %v7688
    %7793 = vst [vmem:[#allocation2 + $0x20] sm:$0xff] %v7695
    %7794 = vst [vmem:[#allocation2 + $0x28] sm:$0xff] %v7702
    %7795 = vst [vmem:[#allocation2 + $0x30] sm:$0xff] %v7709
    %7796 = vst [vmem:[#allocation2 + $0x38] sm:$0xff] %v7716
    %7797 = vst [vmem:[#allocation2 + $0x40] sm:$0xff] %v7723
    %7798 = vst [vmem:[#allocation2 + $0x48] sm:$0xff] %v7730
    %7799 = vst [vmem:[#allocation2 + $0x50] sm:$0xff] %v7737
    %7800 = vst [vmem:[#allocation2 + $0x58] sm:$0xff] %v7744
    %7801 = vst [vmem:[#allocation2 + $0x60] sm:$0xff] %v7751
    %7802 = vst [vmem:[#allocation2 + $0x68] sm:$0xff] %v7758
    %7803 = vst [vmem:[#allocation2 + $0x70] sm:$0xff] %v7765
    %7804 = vst [vmem:[#allocation2 + $0x78] sm:$0xff] %v7772
    // Predicated region
    $region22: #{tpu_custom_call.1} parent=1 // pred_check
      _
    $region23: #{tpu_custom_call.1} parent=1 // pred_check_branch
      %7806 = sbr.rel (0) target = $region25
    $region24: #{tpu_custom_call.1} parent=1 // pred_region
      %7808 = vsyncadd [#allocation3], 0
      %s7809 = sshll.u32 [#allocation2], 4
      %s7810 = int_to_ptr.vmem [resolvable:$true] %s7809
      %s7811 = sshll.u32 %s5, 4
      %s7812 = int_to_ptr.hbm [resolvable:$true] %s7811
      %7817 = dma.vmem_to_hbm [thread:$0]  %s7810, 2048, %s7812, [#allocation3], 128, 128, 8
    $region25: #{tpu_custom_call.1} parent=1 // pred_fallthru
      _
    // Predicated region
    $region26: #{tpu_custom_call.1} parent=1 // pred_check
      _
    $region27: #{tpu_custom_call.1} parent=1 // pred_check_branch
      %7819 = sbr.rel (0) target = $region29
    $region28: #{tpu_custom_call.1} parent=1 // pred_region
      %7821 = dma.done [#allocation3], 2048
    $region29: #{tpu_custom_call.1} parent=1 // pred_fallthru
      _
    %7822 = vsyncpa [#allocation3], 1

</llo_original>
